<compile_context>
chip_gen: v7x
topology: tpu7x:2x2x1
jax: 0.10.0
libtpu: 0.0.40
codegen_flags: <defaults>
</compile_context>

<pallas_src>
import functools
import math

import jax
import jax.numpy as jnp
import numpy as np
from jax.experimental import pallas as pl
from jax.experimental.pallas import tpu as pltpu


def cross_site_attn_kernel(x_ref, wqkv_ref, bqkv_ref, wo_ref, obn_ref,
                           o_ref, kv_scr, *, num_heads):
    # x_ref, o_ref: (S, C, TB)  -- transposed layout, tokens on lanes
    # wqkv_ref: (3C, C) = [scale*Wq | Wk | Wv]^T, bqkv_ref: (3C, 1)
    # wo_ref: (C, C) = Wo^T, obn_ref: (C, 3) = [bo | gamma | beta]
    # kv_scr: (S, 2C, TB) VMEM scratch with K^T / V^T for every site
    S, C, TB = x_ref.shape
    H = num_heads
    D = C // H
    f32 = jnp.float32

    # ---- tiny constant selectors (2-D iota, VPU-only), built once per grid step ----
    # head_sel[h, c] = 1 if channel c belongs to head h  -> segmented sum over D on the MXU
    r_hc = jax.lax.broadcasted_iota(jnp.int32, (H, C), 0)
    c_hc = jax.lax.broadcasted_iota(jnp.int32, (H, C), 1)
    head_sel = ((c_hc >= r_hc * D) & (c_hc < (r_hc + 1) * D)).astype(f32)       # (H, C)
    # head_bcast[c, h] = 1 if channel c belongs to head h -> sublane broadcast on the MXU
    r_ch = jax.lax.broadcasted_iota(jnp.int32, (C, H), 0)
    c_ch = jax.lax.broadcasted_iota(jnp.int32, (C, H), 1)
    head_bcast = ((r_ch >= c_ch * D) & (r_ch < (c_ch + 1) * D)).astype(f32)     # (C, H)
    ones_row = jnp.ones((1, C), f32)                                            # LN sums on MXU

    # ---- Phase 1: fused K/V projection (Q is intentionally NOT materialised) ----
    wkv = wqkv_ref[C:3 * C, :]                 # (2C, C) = [Wk | Wv]^T
    bkv = bqkv_ref[C:3 * C, :]                 # (2C, 1)
    for t in range(S):
        kv_scr[t] = jnp.dot(wkv, x_ref[t], preferred_element_type=f32) + bkv    # (2C, TB)

    wq = wqkv_ref[0:C, :]                      # (C, C), pre-scaled by 1/sqrt(D)
    bq = bqkv_ref[0:C, :]                      # (C, 1), pre-scaled
    wo = wo_ref[...]                           # (C, C)
    bo = obn_ref[:, 0:1]
    gamma = obn_ref[:, 1:2]
    beta = obn_ref[:, 2:3]
    inv_c = 1.0 / C

    # ---- Phase 2: attention over sites, output projection, residual, LayerNorm ----
    for s in range(S):
        x_s = x_ref[s].astype(f32)                                              # (C, TB)
        q = jnp.dot(wq, x_s, preferred_element_type=f32) + bq                   # (C, TB)

        # lane-dense (H, TB) score slab per key site; the sum over D runs on the MXU
        sc = []
        mx = None
        for t in range(S):
            prod = q * kv_scr[t, 0:C, :]                                        # (C, TB) VPU
            sc_t = jnp.dot(head_sel, prod, preferred_element_type=f32)          # (H, TB) MXU
            sc.append(sc_t)
            mx = sc_t if mx is None else jnp.maximum(mx, sc_t)

        # un-normalised softmax + weighted-V accumulation in a single pass over key sites
        den = None
        attn_un = None
        for t in range(S):
            e_t = jnp.exp(sc[t] - mx)                                           # (H, TB) EUP
            den = e_t if den is None else den + e_t
            w_t = jnp.dot(head_bcast, e_t, preferred_element_type=f32)          # (C, TB) MXU
            contrib = w_t * kv_scr[t, C:2 * C, :]                               # (C, TB) VPU
            attn_un = contrib if attn_un is None else attn_un + contrib

        # normalise once: approximate reciprocal (EUP slot) + one Newton step for f32 accuracy
        r0 = pl.reciprocal(den, approx=True)                                    # (H, TB)
        r = r0 * (2.0 - den * r0)
        attn = attn_un * jnp.dot(head_bcast, r, preferred_element_type=f32)     # (C, TB)

        # output projection + residual
        out = jnp.dot(wo, attn, preferred_element_type=f32) + bo + x_s          # (C, TB)

        # LayerNorm over channels: sums offloaded to the MXU, variance clamped at 0
        mean = jnp.dot(ones_row, out, preferred_element_type=f32) * inv_c       # (1, TB)
        msq = jnp.dot(ones_row, out * out, preferred_element_type=f32) * inv_c  # (1, TB)
        var = jnp.maximum(msq - mean * mean, 0.0)
        y = (out - mean) * jax.lax.rsqrt(var + 1e-5)
        o_ref[s] = (y * gamma + beta).astype(o_ref.dtype)


def _chip_info():
    """Physical VMEM capacity + a dual-TensorCore (v7x-like) heuristic."""
    vmem_cap = 128 * 1024 * 1024
    try:
        vmem_cap = int(pltpu.get_tpu_info().vmem_capacity_bytes)
    except Exception:
        pass
    dual_tc = vmem_cap <= 80 * 1024 * 1024    # v7x: 64 MiB per TensorCore, 2 TCs per chip
    return vmem_cap, dual_tc


def _footprint_bytes(S, C, tb):
    act = 4 * S * C * tb * (2 + 2 + 2)        # double-buffered in/out tiles + (S,2C,tb) scratch
    tmp = 4 * 10 * C * tb                     # live f32 temporaries (q, attn, out, score slabs)
    wgt = 2 * 4 * (4 * C * C + 8 * C)         # weights + small params, 2x margin
    return act + tmp + wgt


def _select_tiling(S, C, B, tb=None):
    """Pick the token-tile width and VMEM limit per chip generation."""
    vmem_cap, dual_tc = _chip_info()
    budget = int(0.70 * vmem_cap) if dual_tc else int(0.80 * vmem_cap)
    max_tb = 512 if dual_tc else 2048
    if tb is None:
        cands = [t for t in range(128, min(B, max_tb) + 1, 128)
                 if B % t == 0 and _footprint_bytes(S, C, t) <= budget]
        if not cands:
            tb = B                            # small inputs: single full-width tile is legal
        elif dual_tc:
            # >= 2 grid steps per TensorCore keeps each core's DMA pipeline double-buffered
            good = [t for t in cands if (B // t) >= 4 and (B // t) % 2 == 0]
            tb = max(good) if good else max(cands)
        else:
            # single TensorCore (v5e / v6e): the grid is a serial loop, bigger tiles win
            tb = max(cands)
    vmem_limit = int(min(max(1.5 * _footprint_bytes(S, C, tb), 32 * 1024 * 1024),
                         0.85 * vmem_cap))
    return tb, vmem_limit


def cross_site_attention(site_features, params, *, num_heads=4, tb=None):
    """site_features: list of (N, L, C) arrays. Returns a list of (N, L, C) arrays."""
    stacked = jnp.stack(site_features, axis=0)               # (S, N, L, C)
    S, N, L, C = stacked.shape
    assert C % num_heads == 0, "hidden_size must be divisible by num_heads"
    B = N * L
    D = C // num_heads
    scale = 1.0 / math.sqrt(D)

    # TODO(synk): in the full network the neighbouring ops should produce/consume this
    # (S, C, B) tokens-on-lanes layout directly so these two XLA transposes (an extra HBM
    # round-trip each) fuse away; in this self-contained script they remain.
    x = stacked.reshape(S, B, C).transpose(0, 2, 1)          # (S, C, B)

    # Fused / transposed parameters; 1/sqrt(D) folded into the Q rows.
    wqkv_t = jnp.concatenate(
        [params['wq'] * scale, params['wk'], params['wv']], axis=1).T           # (3C, C)
    bqkv_t = jnp.concatenate(
        [params['bq'] * scale, params['bk'], params['bv']], axis=1).T           # (3C, 1)
    wo_t = params['wo'].T                                                        # (C, C)
    obn_t = jnp.concatenate([params['bo'], params['gamma'], params['beta']],
                            axis=0).T                                            # (C, 3)

    tb, vmem_limit = _select_tiling(S, C, B, tb)
    assert B % tb == 0

    kernel = functools.partial(cross_site_attn_kernel, num_heads=num_heads)

    R = B * S
    cost = pl.CostEstimate(
        flops=int(2 * R * C * (3 * C + C) + 4 * R * S * num_heads * C + 12 * R * C),
        transcendentals=int(R * S * num_heads + 2 * R),
        bytes_accessed=int(2 * R * C * 4 + (4 * C * C + 8 * C) * 4),
    )

    out = pl.pallas_call(
        kernel,
        out_shape=jax.ShapeDtypeStruct((S, C, B), x.dtype),
        grid_spec=pltpu.PrefetchScalarGridSpec(
            num_scalar_prefetch=0,
            grid=(B // tb,),
            in_specs=[
                pl.BlockSpec((S, C, tb), lambda i: (0, 0, i)),   # x^T tile (lane-dense)
                pl.BlockSpec((3 * C, C), lambda i: (0, 0)),      # fused [scale*Wq|Wk|Wv]^T
                pl.BlockSpec((3 * C, 1), lambda i: (0, 0)),      # fused biases
                pl.BlockSpec((C, C), lambda i: (0, 0)),          # Wo^T
                pl.BlockSpec((C, 3), lambda i: (0, 0)),          # [bo | gamma | beta]
            ],
            out_specs=pl.BlockSpec((S, C, tb), lambda i: (0, 0, i)),
            scratch_shapes=[pltpu.VMEM((S, 2 * C, tb), jnp.float32)],
        ),
        compiler_params=pltpu.CompilerParams(
            dimension_semantics=("parallel",),
            vmem_limit_bytes=vmem_limit,
        ),
        cost_estimate=cost,
    )(x, wqkv_t, bqkv_t, wo_t, obn_t)

    out = out.transpose(0, 2, 1).reshape(S, N, L, C)          # back to (S, N, L, C)
    return [out[s] for s in range(S)]


def reference(site_features, params, *, num_heads=4):
    """Pure-JAX reference mirroring PyTorch nn.MultiheadAttention + residual + LayerNorm."""
    stacked = jnp.stack(site_features, axis=1)
    N, S, L, C = stacked.shape
    x = jnp.transpose(stacked, (0, 2, 1, 3)).reshape(N * L, S, C).astype(jnp.float32)
    D = C // num_heads

    q = x @ params['wq'] + params['bq']
    k = x @ params['wk'] + params['bk']
    v = x @ params['wv'] + params['bv']

    def split(t):
        return t.reshape(N * L, S, num_heads, D).transpose(0, 2, 1, 3)  # (B,H,S,D)

    qh, kh, vh = split(q), split(k), split(v)
    s = jnp.einsum('bhsd,bhtd->bhst', qh, kh) / (D ** 0.5)
    p = jax.nn.softmax(s, axis=-1)
    oh = jnp.einsum('bhst,bhtd->bhsd', p, vh)
    attn = oh.transpose(0, 2, 1, 3).reshape(N * L, S, C)
    out = attn @ params['wo'] + params['bo'] + x

    mean = jnp.mean(out, axis=-1, keepdims=True)
    var = jnp.mean((out - mean) ** 2, axis=-1, keepdims=True)
    y = (out - mean) / jnp.sqrt(var + 1e-5) * params['gamma'] + params['beta']
    y = y.reshape(N, L, S, C).transpose(0, 2, 1, 3)
    return [y[:, i, :, :] for i in range(S)]


def make_params(key, C):
    ks = jax.random.split(key, 4)
    scale = 1.0 / np.sqrt(C)
    return {
        'wq': jax.random.normal(ks[0], (C, C), jnp.float32) * scale,
        'wk': jax.random.normal(ks[1], (C, C), jnp.float32) * scale,
        'wv': jax.random.normal(ks[2], (C, C), jnp.float32) * scale,
        'wo': jax.random.normal(ks[3], (C, C), jnp.float32) * scale,
        'bq': jnp.zeros((1, C), jnp.float32),
        'bk': jnp.zeros((1, C), jnp.float32),
        'bv': jnp.zeros((1, C), jnp.float32),
        'bo': jnp.zeros((1, C), jnp.float32),
        'gamma': jnp.ones((1, C), jnp.float32),
        'beta': jnp.zeros((1, C), jnp.float32),
    }


if __name__ == "__main__":
    N, L, C = 2, 8, 32          # batch, per-site sequence length, hidden_size
    NUM_SITES = 4               # attention sequence length
    NUM_HEADS = 4

    key = jax.random.PRNGKey(0)
    pkey, *xkeys = jax.random.split(key, NUM_SITES + 1)
    params = make_params(pkey, C)
    site_features = [jax.random.normal(k, (N, L, C), jnp.float32) for k in xkeys]

    outs = cross_site_attention(site_features, params, num_heads=NUM_HEADS)
    outs = jax.block_until_ready(outs)

    refs = reference(site_features, params, num_heads=NUM_HEADS)
    for o, r in zip(outs, refs):
        np.testing.assert_allclose(np.asarray(o), np.asarray(r), rtol=1e-4, atol=1e-4)

    print("KERNEL_OK")
</pallas_src>

<mosaic_0001>
module attributes {stable_mosaic.version = 11 : i64} {
  func.func @cross_site_attn_kernel(%arg0: i32, %arg1: memref<4x32x16xf32, #tpu.memory_space<vmem>>, %arg2: memref<96x32xf32, #tpu.memory_space<vmem>>, %arg3: memref<96x1xf32, #tpu.memory_space<vmem>>, %arg4: memref<32x32xf32, #tpu.memory_space<vmem>>, %arg5: memref<32x3xf32, #tpu.memory_space<vmem>>, %arg6: memref<4x32x16xf32, #tpu.memory_space<vmem>>, %arg7: memref<4x64x16xf32, #tpu.memory_space<vmem>>) attributes {dimension_semantics = [#tpu.dimension_semantics<parallel>], iteration_bounds = array<i64: 1>, scalar_prefetch = 0 : i64, scratch_operands = 1 : i64, tpu.core_type = #tpu.core_type<tc>, window_params = [{transform_indices = @transform_0, window_bounds = array<i64: 4, 32, 16>}, {pipeline_mode = #tpu.pipeline_mode<synchronous>, transform_indices = @transform_1, window_bounds = array<i64: 96, 32>}, {pipeline_mode = #tpu.pipeline_mode<synchronous>, transform_indices = @transform_2, window_bounds = array<i64: 96, 1>}, {pipeline_mode = #tpu.pipeline_mode<synchronous>, transform_indices = @transform_3, window_bounds = array<i64: 32, 32>}, {pipeline_mode = #tpu.pipeline_mode<synchronous>, transform_indices = @transform_4, window_bounds = array<i64: 32, 3>}, {transform_indices = @transform_5, window_bounds = array<i64: 4, 32, 16>}]} {
    %0 = tpu.iota {dimensions = array<i32: 0>} : vector<4x32xi32>
    %1 = tpu.iota {dimensions = array<i32: 1>} : vector<4x32xi32>
    %c8_i32 = arith.constant 8 : i32
    %2 = vector.broadcast %c8_i32 : i32 to vector<4x32xi32>
    %3 = arith.muli %0, %2 : vector<4x32xi32>
    %4 = arith.cmpi sge, %1, %3 : vector<4x32xi32>
    %c1_i32 = arith.constant 1 : i32
    %5 = vector.broadcast %c1_i32 : i32 to vector<4x32xi32>
    %6 = arith.addi %0, %5 : vector<4x32xi32>
    %c8_i32_0 = arith.constant 8 : i32
    %7 = vector.broadcast %c8_i32_0 : i32 to vector<4x32xi32>
    %8 = arith.muli %6, %7 : vector<4x32xi32>
    %9 = arith.cmpi slt, %1, %8 : vector<4x32xi32>
    %10 = arith.andi %4, %9 : vector<4x32xi1>
    %11 = arith.extui %10 : vector<4x32xi1> to vector<4x32xi32>
    %12 = arith.sitofp %11 : vector<4x32xi32> to vector<4x32xf32>
    %13 = tpu.iota {dimensions = array<i32: 0>} : vector<32x4xi32>
    %14 = tpu.iota {dimensions = array<i32: 1>} : vector<32x4xi32>
    %c8_i32_1 = arith.constant 8 : i32
    %15 = vector.broadcast %c8_i32_1 : i32 to vector<32x4xi32>
    %16 = arith.muli %14, %15 : vector<32x4xi32>
    %17 = arith.cmpi sge, %13, %16 : vector<32x4xi32>
    %c1_i32_2 = arith.constant 1 : i32
    %18 = vector.broadcast %c1_i32_2 : i32 to vector<32x4xi32>
    %19 = arith.addi %14, %18 : vector<32x4xi32>
    %c8_i32_3 = arith.constant 8 : i32
    %20 = vector.broadcast %c8_i32_3 : i32 to vector<32x4xi32>
    %21 = arith.muli %19, %20 : vector<32x4xi32>
    %22 = arith.cmpi slt, %13, %21 : vector<32x4xi32>
    %23 = arith.andi %17, %22 : vector<32x4xi1>
    %24 = arith.extui %23 : vector<32x4xi1> to vector<32x4xi32>
    %25 = arith.sitofp %24 : vector<32x4xi32> to vector<32x4xf32>
    %cst = arith.constant 1.000000e+00 : f32
    %26 = vector.broadcast %cst : f32 to vector<1x32xf32>
    %c32 = arith.constant 32 : index
    %c0 = arith.constant 0 : index
    %27 = vector.load %arg2[%c32, %c0] : memref<96x32xf32, #tpu.memory_space<vmem>>, vector<64x32xf32>
    %c32_4 = arith.constant 32 : index
    %c0_5 = arith.constant 0 : index
    %28 = vector.load %arg3[%c32_4, %c0_5] : memref<96x1xf32, #tpu.memory_space<vmem>>, vector<64x1xf32>
    %c0_6 = arith.constant 0 : index
    %c0_7 = arith.constant 0 : index
    %c0_8 = arith.constant 0 : index
    %29 = vector.load %arg1[%c0_6, %c0_7, %c0_8] : memref<4x32x16xf32, #tpu.memory_space<vmem>>, vector<1x32x16xf32>
    %30 = vector.shape_cast %29 : vector<1x32x16xf32> to vector<32x16xf32>
    %cst_9 = arith.constant dense<0.000000e+00> : vector<64x16xf32>
    %31 = tpu.matmul %27, %30, %cst_9 {dimension_numbers = #tpu.dot_dimension_numbers<[1], [0], [0], [1], [0, 0, 1, 1], [], []>} : vector<64x32xf32>, vector<32x16xf32>, vector<64x16xf32> -> vector<64x16xf32>
    %32 = vector.broadcast %28 : vector<64x1xf32> to vector<64x16xf32>
    %33 = arith.addf %31, %32 : vector<64x16xf32>
    %c0_10 = arith.constant 0 : index
    %c0_11 = arith.constant 0 : index
    %c0_12 = arith.constant 0 : index
    %34 = vector.load %arg7[%c0_10, %c0_11, %c0_12] : memref<4x64x16xf32, #tpu.memory_space<vmem>>, vector<1x64x16xf32>
    %35 = vector.shape_cast %34 : vector<1x64x16xf32> to vector<64x16xf32>
    %36 = vector.shape_cast %33 : vector<64x16xf32> to vector<1x64x16xf32>
    tpu.vector_store %arg7[%c0_10, %c0_11, %c0_12], %36 {strides = array<i32>} : memref<4x64x16xf32, #tpu.memory_space<vmem>>, vector<1x64x16xf32>,
    %c1 = arith.constant 1 : index
    %c0_13 = arith.constant 0 : index
    %c0_14 = arith.constant 0 : index
    %37 = vector.load %arg1[%c1, %c0_13, %c0_14] : memref<4x32x16xf32, #tpu.memory_space<vmem>>, vector<1x32x16xf32>
    %38 = vector.shape_cast %37 : vector<1x32x16xf32> to vector<32x16xf32>
    %cst_15 = arith.constant dense<0.000000e+00> : vector<64x16xf32>
    %39 = tpu.matmul %27, %38, %cst_15 {dimension_numbers = #tpu.dot_dimension_numbers<[1], [0], [0], [1], [0, 0, 1, 1], [], []>} : vector<64x32xf32>, vector<32x16xf32>, vector<64x16xf32> -> vector<64x16xf32>
    %40 = vector.broadcast %28 : vector<64x1xf32> to vector<64x16xf32>
    %41 = arith.addf %39, %40 : vector<64x16xf32>
    %c1_16 = arith.constant 1 : index
    %c0_17 = arith.constant 0 : index
    %c0_18 = arith.constant 0 : index
    %42 = vector.load %arg7[%c1_16, %c0_17, %c0_18] : memref<4x64x16xf32, #tpu.memory_space<vmem>>, vector<1x64x16xf32>
    %43 = vector.shape_cast %42 : vector<1x64x16xf32> to vector<64x16xf32>
    %44 = vector.shape_cast %41 : vector<64x16xf32> to vector<1x64x16xf32>
    tpu.vector_store %arg7[%c1_16, %c0_17, %c0_18], %44 {strides = array<i32>} : memref<4x64x16xf32, #tpu.memory_space<vmem>>, vector<1x64x16xf32>,
    %c2 = arith.constant 2 : index
    %c0_19 = arith.constant 0 : index
    %c0_20 = arith.constant 0 : index
    %45 = vector.load %arg1[%c2, %c0_19, %c0_20] : memref<4x32x16xf32, #tpu.memory_space<vmem>>, vector<1x32x16xf32>
    %46 = vector.shape_cast %45 : vector<1x32x16xf32> to vector<32x16xf32>
    %cst_21 = arith.constant dense<0.000000e+00> : vector<64x16xf32>
    %47 = tpu.matmul %27, %46, %cst_21 {dimension_numbers = #tpu.dot_dimension_numbers<[1], [0], [0], [1], [0, 0, 1, 1], [], []>} : vector<64x32xf32>, vector<32x16xf32>, vector<64x16xf32> -> vector<64x16xf32>
    %48 = vector.broadcast %28 : vector<64x1xf32> to vector<64x16xf32>
    %49 = arith.addf %47, %48 : vector<64x16xf32>
    %c2_22 = arith.constant 2 : index
    %c0_23 = arith.constant 0 : index
    %c0_24 = arith.constant 0 : index
    %50 = vector.load %arg7[%c2_22, %c0_23, %c0_24] : memref<4x64x16xf32, #tpu.memory_space<vmem>>, vector<1x64x16xf32>
    %51 = vector.shape_cast %50 : vector<1x64x16xf32> to vector<64x16xf32>
    %52 = vector.shape_cast %49 : vector<64x16xf32> to vector<1x64x16xf32>
    tpu.vector_store %arg7[%c2_22, %c0_23, %c0_24], %52 {strides = array<i32>} : memref<4x64x16xf32, #tpu.memory_space<vmem>>, vector<1x64x16xf32>,
    %c3 = arith.constant 3 : index
    %c0_25 = arith.constant 0 : index
    %c0_26 = arith.constant 0 : index
    %53 = vector.load %arg1[%c3, %c0_25, %c0_26] : memref<4x32x16xf32, #tpu.memory_space<vmem>>, vector<1x32x16xf32>
    %54 = vector.shape_cast %53 : vector<1x32x16xf32> to vector<32x16xf32>
    %cst_27 = arith.constant dense<0.000000e+00> : vector<64x16xf32>
    %55 = tpu.matmul %27, %54, %cst_27 {dimension_numbers = #tpu.dot_dimension_numbers<[1], [0], [0], [1], [0, 0, 1, 1], [], []>} : vector<64x32xf32>, vector<32x16xf32>, vector<64x16xf32> -> vector<64x16xf32>
    %56 = vector.broadcast %28 : vector<64x1xf32> to vector<64x16xf32>
    %57 = arith.addf %55, %56 : vector<64x16xf32>
    %c3_28 = arith.constant 3 : index
    %c0_29 = arith.constant 0 : index
    %c0_30 = arith.constant 0 : index
    %58 = vector.load %arg7[%c3_28, %c0_29, %c0_30] : memref<4x64x16xf32, #tpu.memory_space<vmem>>, vector<1x64x16xf32>
    %59 = vector.shape_cast %58 : vector<1x64x16xf32> to vector<64x16xf32>
    %60 = vector.shape_cast %57 : vector<64x16xf32> to vector<1x64x16xf32>
    tpu.vector_store %arg7[%c3_28, %c0_29, %c0_30], %60 {strides = array<i32>} : memref<4x64x16xf32, #tpu.memory_space<vmem>>, vector<1x64x16xf32>,
    %c0_31 = arith.constant 0 : index
    %c0_32 = arith.constant 0 : index
    %61 = vector.load %arg2[%c0_31, %c0_32] : memref<96x32xf32, #tpu.memory_space<vmem>>, vector<32x32xf32>
    %c0_33 = arith.constant 0 : index
    %c0_34 = arith.constant 0 : index
    %62 = vector.load %arg3[%c0_33, %c0_34] : memref<96x1xf32, #tpu.memory_space<vmem>>, vector<32x1xf32>
    %c0_35 = arith.constant 0 : index
    %c0_36 = arith.constant 0 : index
    %63 = vector.load %arg4[%c0_35, %c0_36] : memref<32x32xf32, #tpu.memory_space<vmem>>, vector<32x32xf32>
    %c0_37 = arith.constant 0 : index
    %c0_38 = arith.constant 0 : index
    %64 = vector.load %arg5[%c0_37, %c0_38] : memref<32x3xf32, #tpu.memory_space<vmem>>, vector<32x1xf32>
    %c0_39 = arith.constant 0 : index
    %c1_40 = arith.constant 1 : index
    %65 = vector.load %arg5[%c0_39, %c1_40] : memref<32x3xf32, #tpu.memory_space<vmem>>, vector<32x1xf32>
    %c0_41 = arith.constant 0 : index
    %c2_42 = arith.constant 2 : index
    %66 = vector.load %arg5[%c0_41, %c2_42] : memref<32x3xf32, #tpu.memory_space<vmem>>, vector<32x1xf32>
    %c0_43 = arith.constant 0 : index
    %c0_44 = arith.constant 0 : index
    %c0_45 = arith.constant 0 : index
    %67 = vector.load %arg1[%c0_43, %c0_44, %c0_45] : memref<4x32x16xf32, #tpu.memory_space<vmem>>, vector<1x32x16xf32>
    %68 = vector.shape_cast %67 : vector<1x32x16xf32> to vector<32x16xf32>
    %cst_46 = arith.constant dense<0.000000e+00> : vector<32x16xf32>
    %69 = tpu.matmul %61, %68, %cst_46 {dimension_numbers = #tpu.dot_dimension_numbers<[1], [0], [0], [1], [0, 0, 1, 1], [], []>} : vector<32x32xf32>, vector<32x16xf32>, vector<32x16xf32> -> vector<32x16xf32>
    %70 = vector.broadcast %62 : vector<32x1xf32> to vector<32x16xf32>
    %71 = arith.addf %69, %70 : vector<32x16xf32>
    %c0_47 = arith.constant 0 : index
    %c0_48 = arith.constant 0 : index
    %c0_49 = arith.constant 0 : index
    %72 = vector.load %arg7[%c0_47, %c0_48, %c0_49] : memref<4x64x16xf32, #tpu.memory_space<vmem>>, vector<1x32x16xf32>
    %73 = vector.shape_cast %72 : vector<1x32x16xf32> to vector<32x16xf32>
    %74 = arith.mulf %71, %73 : vector<32x16xf32>
    %cst_50 = arith.constant dense<0.000000e+00> : vector<4x16xf32>
    %75 = tpu.matmul %12, %74, %cst_50 {dimension_numbers = #tpu.dot_dimension_numbers<[1], [0], [0], [1], [0, 0, 1, 1], [], []>} : vector<4x32xf32>, vector<32x16xf32>, vector<4x16xf32> -> vector<4x16xf32>
    %c1_51 = arith.constant 1 : index
    %c0_52 = arith.constant 0 : index
    %c0_53 = arith.constant 0 : index
    %76 = vector.load %arg7[%c1_51, %c0_52, %c0_53] : memref<4x64x16xf32, #tpu.memory_space<vmem>>, vector<1x32x16xf32>
    %77 = vector.shape_cast %76 : vector<1x32x16xf32> to vector<32x16xf32>
    %78 = arith.mulf %71, %77 : vector<32x16xf32>
    %cst_54 = arith.constant dense<0.000000e+00> : vector<4x16xf32>
    %79 = tpu.matmul %12, %78, %cst_54 {dimension_numbers = #tpu.dot_dimension_numbers<[1], [0], [0], [1], [0, 0, 1, 1], [], []>} : vector<4x32xf32>, vector<32x16xf32>, vector<4x16xf32> -> vector<4x16xf32>
    %80 = arith.maximumf %75, %79 : vector<4x16xf32>
    %c2_55 = arith.constant 2 : index
    %c0_56 = arith.constant 0 : index
    %c0_57 = arith.constant 0 : index
    %81 = vector.load %arg7[%c2_55, %c0_56, %c0_57] : memref<4x64x16xf32, #tpu.memory_space<vmem>>, vector<1x32x16xf32>
    %82 = vector.shape_cast %81 : vector<1x32x16xf32> to vector<32x16xf32>
    %83 = arith.mulf %71, %82 : vector<32x16xf32>
    %cst_58 = arith.constant dense<0.000000e+00> : vector<4x16xf32>
    %84 = tpu.matmul %12, %83, %cst_58 {dimension_numbers = #tpu.dot_dimension_numbers<[1], [0], [0], [1], [0, 0, 1, 1], [], []>} : vector<4x32xf32>, vector<32x16xf32>, vector<4x16xf32> -> vector<4x16xf32>
    %85 = arith.maximumf %80, %84 : vector<4x16xf32>
    %c3_59 = arith.constant 3 : index
    %c0_60 = arith.constant 0 : index
    %c0_61 = arith.constant 0 : index
    %86 = vector.load %arg7[%c3_59, %c0_60, %c0_61] : memref<4x64x16xf32, #tpu.memory_space<vmem>>, vector<1x32x16xf32>
    %87 = vector.shape_cast %86 : vector<1x32x16xf32> to vector<32x16xf32>
    %88 = arith.mulf %71, %87 : vector<32x16xf32>
    %cst_62 = arith.constant dense<0.000000e+00> : vector<4x16xf32>
    %89 = tpu.matmul %12, %88, %cst_62 {dimension_numbers = #tpu.dot_dimension_numbers<[1], [0], [0], [1], [0, 0, 1, 1], [], []>} : vector<4x32xf32>, vector<32x16xf32>, vector<4x16xf32> -> vector<4x16xf32>
    %90 = arith.maximumf %85, %89 : vector<4x16xf32>
    %91 = arith.subf %75, %90 : vector<4x16xf32>
    %92 = math.exp %91 : vector<4x16xf32>
    %cst_63 = arith.constant dense<0.000000e+00> : vector<32x16xf32>
    %93 = tpu.matmul %25, %92, %cst_63 {dimension_numbers = #tpu.dot_dimension_numbers<[1], [0], [0], [1], [0, 0, 1, 1], [], []>} : vector<32x4xf32>, vector<4x16xf32>, vector<32x16xf32> -> vector<32x16xf32>
    %c0_64 = arith.constant 0 : index
    %c32_65 = arith.constant 32 : index
    %c0_66 = arith.constant 0 : index
    %94 = vector.load %arg7[%c0_64, %c32_65, %c0_66] : memref<4x64x16xf32, #tpu.memory_space<vmem>>, vector<1x32x16xf32>
    %95 = vector.shape_cast %94 : vector<1x32x16xf32> to vector<32x16xf32>
    %96 = arith.mulf %93, %95 : vector<32x16xf32>
    %97 = arith.subf %79, %90 : vector<4x16xf32>
    %98 = math.exp %97 : vector<4x16xf32>
    %99 = arith.addf %92, %98 : vector<4x16xf32>
    %cst_67 = arith.constant dense<0.000000e+00> : vector<32x16xf32>
    %100 = tpu.matmul %25, %98, %cst_67 {dimension_numbers = #tpu.dot_dimension_numbers<[1], [0], [0], [1], [0, 0, 1, 1], [], []>} : vector<32x4xf32>, vector<4x16xf32>, vector<32x16xf32> -> vector<32x16xf32>
    %c1_68 = arith.constant 1 : index
    %c32_69 = arith.constant 32 : index
    %c0_70 = arith.constant 0 : index
    %101 = vector.load %arg7[%c1_68, %c32_69, %c0_70] : memref<4x64x16xf32, #tpu.memory_space<vmem>>, vector<1x32x16xf32>
    %102 = vector.shape_cast %101 : vector<1x32x16xf32> to vector<32x16xf32>
    %103 = arith.mulf %100, %102 : vector<32x16xf32>
    %104 = arith.addf %96, %103 : vector<32x16xf32>
    %105 = arith.subf %84, %90 : vector<4x16xf32>
    %106 = math.exp %105 : vector<4x16xf32>
    %107 = arith.addf %99, %106 : vector<4x16xf32>
    %cst_71 = arith.constant dense<0.000000e+00> : vector<32x16xf32>
    %108 = tpu.matmul %25, %106, %cst_71 {dimension_numbers = #tpu.dot_dimension_numbers<[1], [0], [0], [1], [0, 0, 1, 1], [], []>} : vector<32x4xf32>, vector<4x16xf32>, vector<32x16xf32> -> vector<32x16xf32>
    %c2_72 = arith.constant 2 : index
    %c32_73 = arith.constant 32 : index
    %c0_74 = arith.constant 0 : index
    %109 = vector.load %arg7[%c2_72, %c32_73, %c0_74] : memref<4x64x16xf32, #tpu.memory_space<vmem>>, vector<1x32x16xf32>
    %110 = vector.shape_cast %109 : vector<1x32x16xf32> to vector<32x16xf32>
    %111 = arith.mulf %108, %110 : vector<32x16xf32>
    %112 = arith.addf %104, %111 : vector<32x16xf32>
    %113 = arith.subf %89, %90 : vector<4x16xf32>
    %114 = math.exp %113 : vector<4x16xf32>
    %115 = arith.addf %107, %114 : vector<4x16xf32>
    %cst_75 = arith.constant dense<0.000000e+00> : vector<32x16xf32>
    %116 = tpu.matmul %25, %114, %cst_75 {dimension_numbers = #tpu.dot_dimension_numbers<[1], [0], [0], [1], [0, 0, 1, 1], [], []>} : vector<32x4xf32>, vector<4x16xf32>, vector<32x16xf32> -> vector<32x16xf32>
    %c3_76 = arith.constant 3 : index
    %c32_77 = arith.constant 32 : index
    %c0_78 = arith.constant 0 : index
    %117 = vector.load %arg7[%c3_76, %c32_77, %c0_78] : memref<4x64x16xf32, #tpu.memory_space<vmem>>, vector<1x32x16xf32>
    %118 = vector.shape_cast %117 : vector<1x32x16xf32> to vector<32x16xf32>
    %119 = arith.mulf %116, %118 : vector<32x16xf32>
    %120 = arith.addf %112, %119 : vector<32x16xf32>
    %121 = tpu.reciprocal %115 {approx = true} : vector<4x16xf32> -> vector<4x16xf32>
    %122 = arith.mulf %115, %121 : vector<4x16xf32>
    %cst_79 = arith.constant 2.000000e+00 : f32
    %123 = vector.broadcast %cst_79 : f32 to vector<4x16xf32>
    %124 = arith.subf %123, %122 : vector<4x16xf32>
    %125 = arith.mulf %121, %124 : vector<4x16xf32>
    %cst_80 = arith.constant dense<0.000000e+00> : vector<32x16xf32>
    %126 = tpu.matmul %25, %125, %cst_80 {dimension_numbers = #tpu.dot_dimension_numbers<[1], [0], [0], [1], [0, 0, 1, 1], [], []>} : vector<32x4xf32>, vector<4x16xf32>, vector<32x16xf32> -> vector<32x16xf32>
    %127 = arith.mulf %120, %126 : vector<32x16xf32>
    %cst_81 = arith.constant dense<0.000000e+00> : vector<32x16xf32>
    %128 = tpu.matmul %63, %127, %cst_81 {dimension_numbers = #tpu.dot_dimension_numbers<[1], [0], [0], [1], [0, 0, 1, 1], [], []>} : vector<32x32xf32>, vector<32x16xf32>, vector<32x16xf32> -> vector<32x16xf32>
    %129 = vector.broadcast %64 : vector<32x1xf32> to vector<32x16xf32>
    %130 = arith.addf %128, %129 : vector<32x16xf32>
    %131 = arith.addf %130, %68 : vector<32x16xf32>
    %cst_82 = arith.constant dense<0.000000e+00> : vector<1x16xf32>
    %132 = tpu.matmul %26, %131, %cst_82 {dimension_numbers = #tpu.dot_dimension_numbers<[1], [0], [0], [1], [0, 0, 1, 1], [], []>} : vector<1x32xf32>, vector<32x16xf32>, vector<1x16xf32> -> vector<1x16xf32>
    %cst_83 = arith.constant 3.125000e-02 : f32
    %133 = vector.broadcast %cst_83 : f32 to vector<1x16xf32>
    %134 = arith.mulf %132, %133 : vector<1x16xf32>
    %135 = arith.mulf %131, %131 : vector<32x16xf32>
    %cst_84 = arith.constant dense<0.000000e+00> : vector<1x16xf32>
    %136 = tpu.matmul %26, %135, %cst_84 {dimension_numbers = #tpu.dot_dimension_numbers<[1], [0], [0], [1], [0, 0, 1, 1], [], []>} : vector<1x32xf32>, vector<32x16xf32>, vector<1x16xf32> -> vector<1x16xf32>
    %cst_85 = arith.constant 3.125000e-02 : f32
    %137 = vector.broadcast %cst_85 : f32 to vector<1x16xf32>
    %138 = arith.mulf %136, %137 : vector<1x16xf32>
    %139 = arith.mulf %134, %134 : vector<1x16xf32>
    %140 = arith.subf %138, %139 : vector<1x16xf32>
    %cst_86 = arith.constant 0.000000e+00 : f32
    %141 = vector.broadcast %cst_86 : f32 to vector<1x16xf32>
    %142 = arith.maximumf %140, %141 : vector<1x16xf32>
    %143 = vector.broadcast %134 : vector<1x16xf32> to vector<32x16xf32>
    %144 = arith.subf %131, %143 : vector<32x16xf32>
    %cst_87 = arith.constant 9.99999974E-6 : f32
    %145 = vector.broadcast %cst_87 : f32 to vector<1x16xf32>
    %146 = arith.addf %142, %145 : vector<1x16xf32>
    %147 = math.rsqrt %146 : vector<1x16xf32>
    %148 = vector.broadcast %147 : vector<1x16xf32> to vector<32x16xf32>
    %149 = arith.mulf %144, %148 : vector<32x16xf32>
    %150 = vector.broadcast %65 : vector<32x1xf32> to vector<32x16xf32>
    %151 = arith.mulf %149, %150 : vector<32x16xf32>
    %152 = vector.broadcast %66 : vector<32x1xf32> to vector<32x16xf32>
    %153 = arith.addf %151, %152 : vector<32x16xf32>
    %c0_88 = arith.constant 0 : index
    %c0_89 = arith.constant 0 : index
    %c0_90 = arith.constant 0 : index
    %154 = vector.load %arg6[%c0_88, %c0_89, %c0_90] : memref<4x32x16xf32, #tpu.memory_space<vmem>>, vector<1x32x16xf32>
    %155 = vector.shape_cast %154 : vector<1x32x16xf32> to vector<32x16xf32>
    %156 = vector.shape_cast %153 : vector<32x16xf32> to vector<1x32x16xf32>
    tpu.vector_store %arg6[%c0_88, %c0_89, %c0_90], %156 {strides = array<i32>} : memref<4x32x16xf32, #tpu.memory_space<vmem>>, vector<1x32x16xf32>,
    %c1_91 = arith.constant 1 : index
    %c0_92 = arith.constant 0 : index
    %c0_93 = arith.constant 0 : index
    %157 = vector.load %arg1[%c1_91, %c0_92, %c0_93] : memref<4x32x16xf32, #tpu.memory_space<vmem>>, vector<1x32x16xf32>
    %158 = vector.shape_cast %157 : vector<1x32x16xf32> to vector<32x16xf32>
    %cst_94 = arith.constant dense<0.000000e+00> : vector<32x16xf32>
    %159 = tpu.matmul %61, %158, %cst_94 {dimension_numbers = #tpu.dot_dimension_numbers<[1], [0], [0], [1], [0, 0, 1, 1], [], []>} : vector<32x32xf32>, vector<32x16xf32>, vector<32x16xf32> -> vector<32x16xf32>
    %160 = vector.broadcast %62 : vector<32x1xf32> to vector<32x16xf32>
    %161 = arith.addf %159, %160 : vector<32x16xf32>
    %c0_95 = arith.constant 0 : index
    %c0_96 = arith.constant 0 : index
    %c0_97 = arith.constant 0 : index
    %162 = vector.load %arg7[%c0_95, %c0_96, %c0_97] : memref<4x64x16xf32, #tpu.memory_space<vmem>>, vector<1x32x16xf32>
    %163 = vector.shape_cast %162 : vector<1x32x16xf32> to vector<32x16xf32>
    %164 = arith.mulf %161, %163 : vector<32x16xf32>
    %cst_98 = arith.constant dense<0.000000e+00> : vector<4x16xf32>
    %165 = tpu.matmul %12, %164, %cst_98 {dimension_numbers = #tpu.dot_dimension_numbers<[1], [0], [0], [1], [0, 0, 1, 1], [], []>} : vector<4x32xf32>, vector<32x16xf32>, vector<4x16xf32> -> vector<4x16xf32>
    %c1_99 = arith.constant 1 : index
    %c0_100 = arith.constant 0 : index
    %c0_101 = arith.constant 0 : index
    %166 = vector.load %arg7[%c1_99, %c0_100, %c0_101] : memref<4x64x16xf32, #tpu.memory_space<vmem>>, vector<1x32x16xf32>
    %167 = vector.shape_cast %166 : vector<1x32x16xf32> to vector<32x16xf32>
    %168 = arith.mulf %161, %167 : vector<32x16xf32>
    %cst_102 = arith.constant dense<0.000000e+00> : vector<4x16xf32>
    %169 = tpu.matmul %12, %168, %cst_102 {dimension_numbers = #tpu.dot_dimension_numbers<[1], [0], [0], [1], [0, 0, 1, 1], [], []>} : vector<4x32xf32>, vector<32x16xf32>, vector<4x16xf32> -> vector<4x16xf32>
    %170 = arith.maximumf %165, %169 : vector<4x16xf32>
    %c2_103 = arith.constant 2 : index
    %c0_104 = arith.constant 0 : index
    %c0_105 = arith.constant 0 : index
    %171 = vector.load %arg7[%c2_103, %c0_104, %c0_105] : memref<4x64x16xf32, #tpu.memory_space<vmem>>, vector<1x32x16xf32>
    %172 = vector.shape_cast %171 : vector<1x32x16xf32> to vector<32x16xf32>
    %173 = arith.mulf %161, %172 : vector<32x16xf32>
    %cst_106 = arith.constant dense<0.000000e+00> : vector<4x16xf32>
    %174 = tpu.matmul %12, %173, %cst_106 {dimension_numbers = #tpu.dot_dimension_numbers<[1], [0], [0], [1], [0, 0, 1, 1], [], []>} : vector<4x32xf32>, vector<32x16xf32>, vector<4x16xf32> -> vector<4x16xf32>
    %175 = arith.maximumf %170, %174 : vector<4x16xf32>
    %c3_107 = arith.constant 3 : index
    %c0_108 = arith.constant 0 : index
    %c0_109 = arith.constant 0 : index
    %176 = vector.load %arg7[%c3_107, %c0_108, %c0_109] : memref<4x64x16xf32, #tpu.memory_space<vmem>>, vector<1x32x16xf32>
    %177 = vector.shape_cast %176 : vector<1x32x16xf32> to vector<32x16xf32>
    %178 = arith.mulf %161, %177 : vector<32x16xf32>
    %cst_110 = arith.constant dense<0.000000e+00> : vector<4x16xf32>
    %179 = tpu.matmul %12, %178, %cst_110 {dimension_numbers = #tpu.dot_dimension_numbers<[1], [0], [0], [1], [0, 0, 1, 1], [], []>} : vector<4x32xf32>, vector<32x16xf32>, vector<4x16xf32> -> vector<4x16xf32>
    %180 = arith.maximumf %175, %179 : vector<4x16xf32>
    %181 = arith.subf %165, %180 : vector<4x16xf32>
    %182 = math.exp %181 : vector<4x16xf32>
    %cst_111 = arith.constant dense<0.000000e+00> : vector<32x16xf32>
    %183 = tpu.matmul %25, %182, %cst_111 {dimension_numbers = #tpu.dot_dimension_numbers<[1], [0], [0], [1], [0, 0, 1, 1], [], []>} : vector<32x4xf32>, vector<4x16xf32>, vector<32x16xf32> -> vector<32x16xf32>
    %c0_112 = arith.constant 0 : index
    %c32_113 = arith.constant 32 : index
    %c0_114 = arith.constant 0 : index
    %184 = vector.load %arg7[%c0_112, %c32_113, %c0_114] : memref<4x64x16xf32, #tpu.memory_space<vmem>>, vector<1x32x16xf32>
    %185 = vector.shape_cast %184 : vector<1x32x16xf32> to vector<32x16xf32>
    %186 = arith.mulf %183, %185 : vector<32x16xf32>
    %187 = arith.subf %169, %180 : vector<4x16xf32>
    %188 = math.exp %187 : vector<4x16xf32>
    %189 = arith.addf %182, %188 : vector<4x16xf32>
    %cst_115 = arith.constant dense<0.000000e+00> : vector<32x16xf32>
    %190 = tpu.matmul %25, %188, %cst_115 {dimension_numbers = #tpu.dot_dimension_numbers<[1], [0], [0], [1], [0, 0, 1, 1], [], []>} : vector<32x4xf32>, vector<4x16xf32>, vector<32x16xf32> -> vector<32x16xf32>
    %c1_116 = arith.constant 1 : index
    %c32_117 = arith.constant 32 : index
    %c0_118 = arith.constant 0 : index
    %191 = vector.load %arg7[%c1_116, %c32_117, %c0_118] : memref<4x64x16xf32, #tpu.memory_space<vmem>>, vector<1x32x16xf32>
    %192 = vector.shape_cast %191 : vector<1x32x16xf32> to vector<32x16xf32>
    %193 = arith.mulf %190, %192 : vector<32x16xf32>
    %194 = arith.addf %186, %193 : vector<32x16xf32>
    %195 = arith.subf %174, %180 : vector<4x16xf32>
    %196 = math.exp %195 : vector<4x16xf32>
    %197 = arith.addf %189, %196 : vector<4x16xf32>
    %cst_119 = arith.constant dense<0.000000e+00> : vector<32x16xf32>
    %198 = tpu.matmul %25, %196, %cst_119 {dimension_numbers = #tpu.dot_dimension_numbers<[1], [0], [0], [1], [0, 0, 1, 1], [], []>} : vector<32x4xf32>, vector<4x16xf32>, vector<32x16xf32> -> vector<32x16xf32>
    %c2_120 = arith.constant 2 : index
    %c32_121 = arith.constant 32 : index
    %c0_122 = arith.constant 0 : index
    %199 = vector.load %arg7[%c2_120, %c32_121, %c0_122] : memref<4x64x16xf32, #tpu.memory_space<vmem>>, vector<1x32x16xf32>
    %200 = vector.shape_cast %199 : vector<1x32x16xf32> to vector<32x16xf32>
    %201 = arith.mulf %198, %200 : vector<32x16xf32>
    %202 = arith.addf %194, %201 : vector<32x16xf32>
    %203 = arith.subf %179, %180 : vector<4x16xf32>
    %204 = math.exp %203 : vector<4x16xf32>
    %205 = arith.addf %197, %204 : vector<4x16xf32>
    %cst_123 = arith.constant dense<0.000000e+00> : vector<32x16xf32>
    %206 = tpu.matmul %25, %204, %cst_123 {dimension_numbers = #tpu.dot_dimension_numbers<[1], [0], [0], [1], [0, 0, 1, 1], [], []>} : vector<32x4xf32>, vector<4x16xf32>, vector<32x16xf32> -> vector<32x16xf32>
    %c3_124 = arith.constant 3 : index
    %c32_125 = arith.constant 32 : index
    %c0_126 = arith.constant 0 : index
    %207 = vector.load %arg7[%c3_124, %c32_125, %c0_126] : memref<4x64x16xf32, #tpu.memory_space<vmem>>, vector<1x32x16xf32>
    %208 = vector.shape_cast %207 : vector<1x32x16xf32> to vector<32x16xf32>
    %209 = arith.mulf %206, %208 : vector<32x16xf32>
    %210 = arith.addf %202, %209 : vector<32x16xf32>
    %211 = tpu.reciprocal %205 {approx = true} : vector<4x16xf32> -> vector<4x16xf32>
    %212 = arith.mulf %205, %211 : vector<4x16xf32>
    %cst_127 = arith.constant 2.000000e+00 : f32
    %213 = vector.broadcast %cst_127 : f32 to vector<4x16xf32>
    %214 = arith.subf %213, %212 : vector<4x16xf32>
    %215 = arith.mulf %211, %214 : vector<4x16xf32>
    %cst_128 = arith.constant dense<0.000000e+00> : vector<32x16xf32>
    %216 = tpu.matmul %25, %215, %cst_128 {dimension_numbers = #tpu.dot_dimension_numbers<[1], [0], [0], [1], [0, 0, 1, 1], [], []>} : vector<32x4xf32>, vector<4x16xf32>, vector<32x16xf32> -> vector<32x16xf32>
    %217 = arith.mulf %210, %216 : vector<32x16xf32>
    %cst_129 = arith.constant dense<0.000000e+00> : vector<32x16xf32>
    %218 = tpu.matmul %63, %217, %cst_129 {dimension_numbers = #tpu.dot_dimension_numbers<[1], [0], [0], [1], [0, 0, 1, 1], [], []>} : vector<32x32xf32>, vector<32x16xf32>, vector<32x16xf32> -> vector<32x16xf32>
    %219 = vector.broadcast %64 : vector<32x1xf32> to vector<32x16xf32>
    %220 = arith.addf %218, %219 : vector<32x16xf32>
    %221 = arith.addf %220, %158 : vector<32x16xf32>
    %cst_130 = arith.constant dense<0.000000e+00> : vector<1x16xf32>
    %222 = tpu.matmul %26, %221, %cst_130 {dimension_numbers = #tpu.dot_dimension_numbers<[1], [0], [0], [1], [0, 0, 1, 1], [], []>} : vector<1x32xf32>, vector<32x16xf32>, vector<1x16xf32> -> vector<1x16xf32>
    %cst_131 = arith.constant 3.125000e-02 : f32
    %223 = vector.broadcast %cst_131 : f32 to vector<1x16xf32>
    %224 = arith.mulf %222, %223 : vector<1x16xf32>
    %225 = arith.mulf %221, %221 : vector<32x16xf32>
    %cst_132 = arith.constant dense<0.000000e+00> : vector<1x16xf32>
    %226 = tpu.matmul %26, %225, %cst_132 {dimension_numbers = #tpu.dot_dimension_numbers<[1], [0], [0], [1], [0, 0, 1, 1], [], []>} : vector<1x32xf32>, vector<32x16xf32>, vector<1x16xf32> -> vector<1x16xf32>
    %cst_133 = arith.constant 3.125000e-02 : f32
    %227 = vector.broadcast %cst_133 : f32 to vector<1x16xf32>
    %228 = arith.mulf %226, %227 : vector<1x16xf32>
    %229 = arith.mulf %224, %224 : vector<1x16xf32>
    %230 = arith.subf %228, %229 : vector<1x16xf32>
    %cst_134 = arith.constant 0.000000e+00 : f32
    %231 = vector.broadcast %cst_134 : f32 to vector<1x16xf32>
    %232 = arith.maximumf %230, %231 : vector<1x16xf32>
    %233 = vector.broadcast %224 : vector<1x16xf32> to vector<32x16xf32>
    %234 = arith.subf %221, %233 : vector<32x16xf32>
    %cst_135 = arith.constant 9.99999974E-6 : f32
    %235 = vector.broadcast %cst_135 : f32 to vector<1x16xf32>
    %236 = arith.addf %232, %235 : vector<1x16xf32>
    %237 = math.rsqrt %236 : vector<1x16xf32>
    %238 = vector.broadcast %237 : vector<1x16xf32> to vector<32x16xf32>
    %239 = arith.mulf %234, %238 : vector<32x16xf32>
    %240 = vector.broadcast %65 : vector<32x1xf32> to vector<32x16xf32>
    %241 = arith.mulf %239, %240 : vector<32x16xf32>
    %242 = vector.broadcast %66 : vector<32x1xf32> to vector<32x16xf32>
    %243 = arith.addf %241, %242 : vector<32x16xf32>
    %c1_136 = arith.constant 1 : index
    %c0_137 = arith.constant 0 : index
    %c0_138 = arith.constant 0 : index
    %244 = vector.load %arg6[%c1_136, %c0_137, %c0_138] : memref<4x32x16xf32, #tpu.memory_space<vmem>>, vector<1x32x16xf32>
    %245 = vector.shape_cast %244 : vector<1x32x16xf32> to vector<32x16xf32>
    %246 = vector.shape_cast %243 : vector<32x16xf32> to vector<1x32x16xf32>
    tpu.vector_store %arg6[%c1_136, %c0_137, %c0_138], %246 {strides = array<i32>} : memref<4x32x16xf32, #tpu.memory_space<vmem>>, vector<1x32x16xf32>,
    %c2_139 = arith.constant 2 : index
    %c0_140 = arith.constant 0 : index
    %c0_141 = arith.constant 0 : index
    %247 = vector.load %arg1[%c2_139, %c0_140, %c0_141] : memref<4x32x16xf32, #tpu.memory_space<vmem>>, vector<1x32x16xf32>
    %248 = vector.shape_cast %247 : vector<1x32x16xf32> to vector<32x16xf32>
    %cst_142 = arith.constant dense<0.000000e+00> : vector<32x16xf32>
    %249 = tpu.matmul %61, %248, %cst_142 {dimension_numbers = #tpu.dot_dimension_numbers<[1], [0], [0], [1], [0, 0, 1, 1], [], []>} : vector<32x32xf32>, vector<32x16xf32>, vector<32x16xf32> -> vector<32x16xf32>
    %250 = vector.broadcast %62 : vector<32x1xf32> to vector<32x16xf32>
    %251 = arith.addf %249, %250 : vector<32x16xf32>
    %c0_143 = arith.constant 0 : index
    %c0_144 = arith.constant 0 : index
    %c0_145 = arith.constant 0 : index
    %252 = vector.load %arg7[%c0_143, %c0_144, %c0_145] : memref<4x64x16xf32, #tpu.memory_space<vmem>>, vector<1x32x16xf32>
    %253 = vector.shape_cast %252 : vector<1x32x16xf32> to vector<32x16xf32>
    %254 = arith.mulf %251, %253 : vector<32x16xf32>
    %cst_146 = arith.constant dense<0.000000e+00> : vector<4x16xf32>
    %255 = tpu.matmul %12, %254, %cst_146 {dimension_numbers = #tpu.dot_dimension_numbers<[1], [0], [0], [1], [0, 0, 1, 1], [], []>} : vector<4x32xf32>, vector<32x16xf32>, vector<4x16xf32> -> vector<4x16xf32>
    %c1_147 = arith.constant 1 : index
    %c0_148 = arith.constant 0 : index
    %c0_149 = arith.constant 0 : index
    %256 = vector.load %arg7[%c1_147, %c0_148, %c0_149] : memref<4x64x16xf32, #tpu.memory_space<vmem>>, vector<1x32x16xf32>
    %257 = vector.shape_cast %256 : vector<1x32x16xf32> to vector<32x16xf32>
    %258 = arith.mulf %251, %257 : vector<32x16xf32>
    %cst_150 = arith.constant dense<0.000000e+00> : vector<4x16xf32>
    %259 = tpu.matmul %12, %258, %cst_150 {dimension_numbers = #tpu.dot_dimension_numbers<[1], [0], [0], [1], [0, 0, 1, 1], [], []>} : vector<4x32xf32>, vector<32x16xf32>, vector<4x16xf32> -> vector<4x16xf32>
    %260 = arith.maximumf %255, %259 : vector<4x16xf32>
    %c2_151 = arith.constant 2 : index
    %c0_152 = arith.constant 0 : index
    %c0_153 = arith.constant 0 : index
    %261 = vector.load %arg7[%c2_151, %c0_152, %c0_153] : memref<4x64x16xf32, #tpu.memory_space<vmem>>, vector<1x32x16xf32>
    %262 = vector.shape_cast %261 : vector<1x32x16xf32> to vector<32x16xf32>
    %263 = arith.mulf %251, %262 : vector<32x16xf32>
    %cst_154 = arith.constant dense<0.000000e+00> : vector<4x16xf32>
    %264 = tpu.matmul %12, %263, %cst_154 {dimension_numbers = #tpu.dot_dimension_numbers<[1], [0], [0], [1], [0, 0, 1, 1], [], []>} : vector<4x32xf32>, vector<32x16xf32>, vector<4x16xf32> -> vector<4x16xf32>
    %265 = arith.maximumf %260, %264 : vector<4x16xf32>
    %c3_155 = arith.constant 3 : index
    %c0_156 = arith.constant 0 : index
    %c0_157 = arith.constant 0 : index
    %266 = vector.load %arg7[%c3_155, %c0_156, %c0_157] : memref<4x64x16xf32, #tpu.memory_space<vmem>>, vector<1x32x16xf32>
    %267 = vector.shape_cast %266 : vector<1x32x16xf32> to vector<32x16xf32>
    %268 = arith.mulf %251, %267 : vector<32x16xf32>
    %cst_158 = arith.constant dense<0.000000e+00> : vector<4x16xf32>
    %269 = tpu.matmul %12, %268, %cst_158 {dimension_numbers = #tpu.dot_dimension_numbers<[1], [0], [0], [1], [0, 0, 1, 1], [], []>} : vector<4x32xf32>, vector<32x16xf32>, vector<4x16xf32> -> vector<4x16xf32>
    %270 = arith.maximumf %265, %269 : vector<4x16xf32>
    %271 = arith.subf %255, %270 : vector<4x16xf32>
    %272 = math.exp %271 : vector<4x16xf32>
    %cst_159 = arith.constant dense<0.000000e+00> : vector<32x16xf32>
    %273 = tpu.matmul %25, %272, %cst_159 {dimension_numbers = #tpu.dot_dimension_numbers<[1], [0], [0], [1], [0, 0, 1, 1], [], []>} : vector<32x4xf32>, vector<4x16xf32>, vector<32x16xf32> -> vector<32x16xf32>
    %c0_160 = arith.constant 0 : index
    %c32_161 = arith.constant 32 : index
    %c0_162 = arith.constant 0 : index
    %274 = vector.load %arg7[%c0_160, %c32_161, %c0_162] : memref<4x64x16xf32, #tpu.memory_space<vmem>>, vector<1x32x16xf32>
    %275 = vector.shape_cast %274 : vector<1x32x16xf32> to vector<32x16xf32>
    %276 = arith.mulf %273, %275 : vector<32x16xf32>
    %277 = arith.subf %259, %270 : vector<4x16xf32>
    %278 = math.exp %277 : vector<4x16xf32>
    %279 = arith.addf %272, %278 : vector<4x16xf32>
    %cst_163 = arith.constant dense<0.000000e+00> : vector<32x16xf32>
    %280 = tpu.matmul %25, %278, %cst_163 {dimension_numbers = #tpu.dot_dimension_numbers<[1], [0], [0], [1], [0, 0, 1, 1], [], []>} : vector<32x4xf32>, vector<4x16xf32>, vector<32x16xf32> -> vector<32x16xf32>
    %c1_164 = arith.constant 1 : index
    %c32_165 = arith.constant 32 : index
    %c0_166 = arith.constant 0 : index
    %281 = vector.load %arg7[%c1_164, %c32_165, %c0_166] : memref<4x64x16xf32, #tpu.memory_space<vmem>>, vector<1x32x16xf32>
    %282 = vector.shape_cast %281 : vector<1x32x16xf32> to vector<32x16xf32>
    %283 = arith.mulf %280, %282 : vector<32x16xf32>
    %284 = arith.addf %276, %283 : vector<32x16xf32>
    %285 = arith.subf %264, %270 : vector<4x16xf32>
    %286 = math.exp %285 : vector<4x16xf32>
    %287 = arith.addf %279, %286 : vector<4x16xf32>
    %cst_167 = arith.constant dense<0.000000e+00> : vector<32x16xf32>
    %288 = tpu.matmul %25, %286, %cst_167 {dimension_numbers = #tpu.dot_dimension_numbers<[1], [0], [0], [1], [0, 0, 1, 1], [], []>} : vector<32x4xf32>, vector<4x16xf32>, vector<32x16xf32> -> vector<32x16xf32>
    %c2_168 = arith.constant 2 : index
    %c32_169 = arith.constant 32 : index
    %c0_170 = arith.constant 0 : index
    %289 = vector.load %arg7[%c2_168, %c32_169, %c0_170] : memref<4x64x16xf32, #tpu.memory_space<vmem>>, vector<1x32x16xf32>
    %290 = vector.shape_cast %289 : vector<1x32x16xf32> to vector<32x16xf32>
    %291 = arith.mulf %288, %290 : vector<32x16xf32>
    %292 = arith.addf %284, %291 : vector<32x16xf32>
    %293 = arith.subf %269, %270 : vector<4x16xf32>
    %294 = math.exp %293 : vector<4x16xf32>
    %295 = arith.addf %287, %294 : vector<4x16xf32>
    %cst_171 = arith.constant dense<0.000000e+00> : vector<32x16xf32>
    %296 = tpu.matmul %25, %294, %cst_171 {dimension_numbers = #tpu.dot_dimension_numbers<[1], [0], [0], [1], [0, 0, 1, 1], [], []>} : vector<32x4xf32>, vector<4x16xf32>, vector<32x16xf32> -> vector<32x16xf32>
    %c3_172 = arith.constant 3 : index
    %c32_173 = arith.constant 32 : index
    %c0_174 = arith.constant 0 : index
    %297 = vector.load %arg7[%c3_172, %c32_173, %c0_174] : memref<4x64x16xf32, #tpu.memory_space<vmem>>, vector<1x32x16xf32>
    %298 = vector.shape_cast %297 : vector<1x32x16xf32> to vector<32x16xf32>
    %299 = arith.mulf %296, %298 : vector<32x16xf32>
    %300 = arith.addf %292, %299 : vector<32x16xf32>
    %301 = tpu.reciprocal %295 {approx = true} : vector<4x16xf32> -> vector<4x16xf32>
    %302 = arith.mulf %295, %301 : vector<4x16xf32>
    %cst_175 = arith.constant 2.000000e+00 : f32
    %303 = vector.broadcast %cst_175 : f32 to vector<4x16xf32>
    %304 = arith.subf %303, %302 : vector<4x16xf32>
    %305 = arith.mulf %301, %304 : vector<4x16xf32>
    %cst_176 = arith.constant dense<0.000000e+00> : vector<32x16xf32>
    %306 = tpu.matmul %25, %305, %cst_176 {dimension_numbers = #tpu.dot_dimension_numbers<[1], [0], [0], [1], [0, 0, 1, 1], [], []>} : vector<32x4xf32>, vector<4x16xf32>, vector<32x16xf32> -> vector<32x16xf32>
    %307 = arith.mulf %300, %306 : vector<32x16xf32>
    %cst_177 = arith.constant dense<0.000000e+00> : vector<32x16xf32>
    %308 = tpu.matmul %63, %307, %cst_177 {dimension_numbers = #tpu.dot_dimension_numbers<[1], [0], [0], [1], [0, 0, 1, 1], [], []>} : vector<32x32xf32>, vector<32x16xf32>, vector<32x16xf32> -> vector<32x16xf32>
    %309 = vector.broadcast %64 : vector<32x1xf32> to vector<32x16xf32>
    %310 = arith.addf %308, %309 : vector<32x16xf32>
    %311 = arith.addf %310, %248 : vector<32x16xf32>
    %cst_178 = arith.constant dense<0.000000e+00> : vector<1x16xf32>
    %312 = tpu.matmul %26, %311, %cst_178 {dimension_numbers = #tpu.dot_dimension_numbers<[1], [0], [0], [1], [0, 0, 1, 1], [], []>} : vector<1x32xf32>, vector<32x16xf32>, vector<1x16xf32> -> vector<1x16xf32>
    %cst_179 = arith.constant 3.125000e-02 : f32
    %313 = vector.broadcast %cst_179 : f32 to vector<1x16xf32>
    %314 = arith.mulf %312, %313 : vector<1x16xf32>
    %315 = arith.mulf %311, %311 : vector<32x16xf32>
    %cst_180 = arith.constant dense<0.000000e+00> : vector<1x16xf32>
    %316 = tpu.matmul %26, %315, %cst_180 {dimension_numbers = #tpu.dot_dimension_numbers<[1], [0], [0], [1], [0, 0, 1, 1], [], []>} : vector<1x32xf32>, vector<32x16xf32>, vector<1x16xf32> -> vector<1x16xf32>
    %cst_181 = arith.constant 3.125000e-02 : f32
    %317 = vector.broadcast %cst_181 : f32 to vector<1x16xf32>
    %318 = arith.mulf %316, %317 : vector<1x16xf32>
    %319 = arith.mulf %314, %314 : vector<1x16xf32>
    %320 = arith.subf %318, %319 : vector<1x16xf32>
    %cst_182 = arith.constant 0.000000e+00 : f32
    %321 = vector.broadcast %cst_182 : f32 to vector<1x16xf32>
    %322 = arith.maximumf %320, %321 : vector<1x16xf32>
    %323 = vector.broadcast %314 : vector<1x16xf32> to vector<32x16xf32>
    %324 = arith.subf %311, %323 : vector<32x16xf32>
    %cst_183 = arith.constant 9.99999974E-6 : f32
    %325 = vector.broadcast %cst_183 : f32 to vector<1x16xf32>
    %326 = arith.addf %322, %325 : vector<1x16xf32>
    %327 = math.rsqrt %326 : vector<1x16xf32>
    %328 = vector.broadcast %327 : vector<1x16xf32> to vector<32x16xf32>
    %329 = arith.mulf %324, %328 : vector<32x16xf32>
    %330 = vector.broadcast %65 : vector<32x1xf32> to vector<32x16xf32>
    %331 = arith.mulf %329, %330 : vector<32x16xf32>
    %332 = vector.broadcast %66 : vector<32x1xf32> to vector<32x16xf32>
    %333 = arith.addf %331, %332 : vector<32x16xf32>
    %c2_184 = arith.constant 2 : index
    %c0_185 = arith.constant 0 : index
    %c0_186 = arith.constant 0 : index
    %334 = vector.load %arg6[%c2_184, %c0_185, %c0_186] : memref<4x32x16xf32, #tpu.memory_space<vmem>>, vector<1x32x16xf32>
    %335 = vector.shape_cast %334 : vector<1x32x16xf32> to vector<32x16xf32>
    %336 = vector.shape_cast %333 : vector<32x16xf32> to vector<1x32x16xf32>
    tpu.vector_store %arg6[%c2_184, %c0_185, %c0_186], %336 {strides = array<i32>} : memref<4x32x16xf32, #tpu.memory_space<vmem>>, vector<1x32x16xf32>,
    %c3_187 = arith.constant 3 : index
    %c0_188 = arith.constant 0 : index
    %c0_189 = arith.constant 0 : index
    %337 = vector.load %arg1[%c3_187, %c0_188, %c0_189] : memref<4x32x16xf32, #tpu.memory_space<vmem>>, vector<1x32x16xf32>
    %338 = vector.shape_cast %337 : vector<1x32x16xf32> to vector<32x16xf32>
    %cst_190 = arith.constant dense<0.000000e+00> : vector<32x16xf32>
    %339 = tpu.matmul %61, %338, %cst_190 {dimension_numbers = #tpu.dot_dimension_numbers<[1], [0], [0], [1], [0, 0, 1, 1], [], []>} : vector<32x32xf32>, vector<32x16xf32>, vector<32x16xf32> -> vector<32x16xf32>
    %340 = vector.broadcast %62 : vector<32x1xf32> to vector<32x16xf32>
    %341 = arith.addf %339, %340 : vector<32x16xf32>
    %c0_191 = arith.constant 0 : index
    %c0_192 = arith.constant 0 : index
    %c0_193 = arith.constant 0 : index
    %342 = vector.load %arg7[%c0_191, %c0_192, %c0_193] : memref<4x64x16xf32, #tpu.memory_space<vmem>>, vector<1x32x16xf32>
    %343 = vector.shape_cast %342 : vector<1x32x16xf32> to vector<32x16xf32>
    %344 = arith.mulf %341, %343 : vector<32x16xf32>
    %cst_194 = arith.constant dense<0.000000e+00> : vector<4x16xf32>
    %345 = tpu.matmul %12, %344, %cst_194 {dimension_numbers = #tpu.dot_dimension_numbers<[1], [0], [0], [1], [0, 0, 1, 1], [], []>} : vector<4x32xf32>, vector<32x16xf32>, vector<4x16xf32> -> vector<4x16xf32>
    %c1_195 = arith.constant 1 : index
    %c0_196 = arith.constant 0 : index
    %c0_197 = arith.constant 0 : index
    %346 = vector.load %arg7[%c1_195, %c0_196, %c0_197] : memref<4x64x16xf32, #tpu.memory_space<vmem>>, vector<1x32x16xf32>
    %347 = vector.shape_cast %346 : vector<1x32x16xf32> to vector<32x16xf32>
    %348 = arith.mulf %341, %347 : vector<32x16xf32>
    %cst_198 = arith.constant dense<0.000000e+00> : vector<4x16xf32>
    %349 = tpu.matmul %12, %348, %cst_198 {dimension_numbers = #tpu.dot_dimension_numbers<[1], [0], [0], [1], [0, 0, 1, 1], [], []>} : vector<4x32xf32>, vector<32x16xf32>, vector<4x16xf32> -> vector<4x16xf32>
    %350 = arith.maximumf %345, %349 : vector<4x16xf32>
    %c2_199 = arith.constant 2 : index
    %c0_200 = arith.constant 0 : index
    %c0_201 = arith.constant 0 : index
    %351 = vector.load %arg7[%c2_199, %c0_200, %c0_201] : memref<4x64x16xf32, #tpu.memory_space<vmem>>, vector<1x32x16xf32>
    %352 = vector.shape_cast %351 : vector<1x32x16xf32> to vector<32x16xf32>
    %353 = arith.mulf %341, %352 : vector<32x16xf32>
    %cst_202 = arith.constant dense<0.000000e+00> : vector<4x16xf32>
    %354 = tpu.matmul %12, %353, %cst_202 {dimension_numbers = #tpu.dot_dimension_numbers<[1], [0], [0], [1], [0, 0, 1, 1], [], []>} : vector<4x32xf32>, vector<32x16xf32>, vector<4x16xf32> -> vector<4x16xf32>
    %355 = arith.maximumf %350, %354 : vector<4x16xf32>
    %c3_203 = arith.constant 3 : index
    %c0_204 = arith.constant 0 : index
    %c0_205 = arith.constant 0 : index
    %356 = vector.load %arg7[%c3_203, %c0_204, %c0_205] : memref<4x64x16xf32, #tpu.memory_space<vmem>>, vector<1x32x16xf32>
    %357 = vector.shape_cast %356 : vector<1x32x16xf32> to vector<32x16xf32>
    %358 = arith.mulf %341, %357 : vector<32x16xf32>
    %cst_206 = arith.constant dense<0.000000e+00> : vector<4x16xf32>
    %359 = tpu.matmul %12, %358, %cst_206 {dimension_numbers = #tpu.dot_dimension_numbers<[1], [0], [0], [1], [0, 0, 1, 1], [], []>} : vector<4x32xf32>, vector<32x16xf32>, vector<4x16xf32> -> vector<4x16xf32>
    %360 = arith.maximumf %355, %359 : vector<4x16xf32>
    %361 = arith.subf %345, %360 : vector<4x16xf32>
    %362 = math.exp %361 : vector<4x16xf32>
    %cst_207 = arith.constant dense<0.000000e+00> : vector<32x16xf32>
    %363 = tpu.matmul %25, %362, %cst_207 {dimension_numbers = #tpu.dot_dimension_numbers<[1], [0], [0], [1], [0, 0, 1, 1], [], []>} : vector<32x4xf32>, vector<4x16xf32>, vector<32x16xf32> -> vector<32x16xf32>
    %c0_208 = arith.constant 0 : index
    %c32_209 = arith.constant 32 : index
    %c0_210 = arith.constant 0 : index
    %364 = vector.load %arg7[%c0_208, %c32_209, %c0_210] : memref<4x64x16xf32, #tpu.memory_space<vmem>>, vector<1x32x16xf32>
    %365 = vector.shape_cast %364 : vector<1x32x16xf32> to vector<32x16xf32>
    %366 = arith.mulf %363, %365 : vector<32x16xf32>
    %367 = arith.subf %349, %360 : vector<4x16xf32>
    %368 = math.exp %367 : vector<4x16xf32>
    %369 = arith.addf %362, %368 : vector<4x16xf32>
    %cst_211 = arith.constant dense<0.000000e+00> : vector<32x16xf32>
    %370 = tpu.matmul %25, %368, %cst_211 {dimension_numbers = #tpu.dot_dimension_numbers<[1], [0], [0], [1], [0, 0, 1, 1], [], []>} : vector<32x4xf32>, vector<4x16xf32>, vector<32x16xf32> -> vector<32x16xf32>
    %c1_212 = arith.constant 1 : index
    %c32_213 = arith.constant 32 : index
    %c0_214 = arith.constant 0 : index
    %371 = vector.load %arg7[%c1_212, %c32_213, %c0_214] : memref<4x64x16xf32, #tpu.memory_space<vmem>>, vector<1x32x16xf32>
    %372 = vector.shape_cast %371 : vector<1x32x16xf32> to vector<32x16xf32>
    %373 = arith.mulf %370, %372 : vector<32x16xf32>
    %374 = arith.addf %366, %373 : vector<32x16xf32>
    %375 = arith.subf %354, %360 : vector<4x16xf32>
    %376 = math.exp %375 : vector<4x16xf32>
    %377 = arith.addf %369, %376 : vector<4x16xf32>
    %cst_215 = arith.constant dense<0.000000e+00> : vector<32x16xf32>
    %378 = tpu.matmul %25, %376, %cst_215 {dimension_numbers = #tpu.dot_dimension_numbers<[1], [0], [0], [1], [0, 0, 1, 1], [], []>} : vector<32x4xf32>, vector<4x16xf32>, vector<32x16xf32> -> vector<32x16xf32>
    %c2_216 = arith.constant 2 : index
    %c32_217 = arith.constant 32 : index
    %c0_218 = arith.constant 0 : index
    %379 = vector.load %arg7[%c2_216, %c32_217, %c0_218] : memref<4x64x16xf32, #tpu.memory_space<vmem>>, vector<1x32x16xf32>
    %380 = vector.shape_cast %379 : vector<1x32x16xf32> to vector<32x16xf32>
    %381 = arith.mulf %378, %380 : vector<32x16xf32>
    %382 = arith.addf %374, %381 : vector<32x16xf32>
    %383 = arith.subf %359, %360 : vector<4x16xf32>
    %384 = math.exp %383 : vector<4x16xf32>
    %385 = arith.addf %377, %384 : vector<4x16xf32>
    %cst_219 = arith.constant dense<0.000000e+00> : vector<32x16xf32>
    %386 = tpu.matmul %25, %384, %cst_219 {dimension_numbers = #tpu.dot_dimension_numbers<[1], [0], [0], [1], [0, 0, 1, 1], [], []>} : vector<32x4xf32>, vector<4x16xf32>, vector<32x16xf32> -> vector<32x16xf32>
    %c3_220 = arith.constant 3 : index
    %c32_221 = arith.constant 32 : index
    %c0_222 = arith.constant 0 : index
    %387 = vector.load %arg7[%c3_220, %c32_221, %c0_222] : memref<4x64x16xf32, #tpu.memory_space<vmem>>, vector<1x32x16xf32>
    %388 = vector.shape_cast %387 : vector<1x32x16xf32> to vector<32x16xf32>
    %389 = arith.mulf %386, %388 : vector<32x16xf32>
    %390 = arith.addf %382, %389 : vector<32x16xf32>
    %391 = tpu.reciprocal %385 {approx = true} : vector<4x16xf32> -> vector<4x16xf32>
    %392 = arith.mulf %385, %391 : vector<4x16xf32>
    %cst_223 = arith.constant 2.000000e+00 : f32
    %393 = vector.broadcast %cst_223 : f32 to vector<4x16xf32>
    %394 = arith.subf %393, %392 : vector<4x16xf32>
    %395 = arith.mulf %391, %394 : vector<4x16xf32>
    %cst_224 = arith.constant dense<0.000000e+00> : vector<32x16xf32>
    %396 = tpu.matmul %25, %395, %cst_224 {dimension_numbers = #tpu.dot_dimension_numbers<[1], [0], [0], [1], [0, 0, 1, 1], [], []>} : vector<32x4xf32>, vector<4x16xf32>, vector<32x16xf32> -> vector<32x16xf32>
    %397 = arith.mulf %390, %396 : vector<32x16xf32>
    %cst_225 = arith.constant dense<0.000000e+00> : vector<32x16xf32>
    %398 = tpu.matmul %63, %397, %cst_225 {dimension_numbers = #tpu.dot_dimension_numbers<[1], [0], [0], [1], [0, 0, 1, 1], [], []>} : vector<32x32xf32>, vector<32x16xf32>, vector<32x16xf32> -> vector<32x16xf32>
    %399 = vector.broadcast %64 : vector<32x1xf32> to vector<32x16xf32>
    %400 = arith.addf %398, %399 : vector<32x16xf32>
    %401 = arith.addf %400, %338 : vector<32x16xf32>
    %cst_226 = arith.constant dense<0.000000e+00> : vector<1x16xf32>
    %402 = tpu.matmul %26, %401, %cst_226 {dimension_numbers = #tpu.dot_dimension_numbers<[1], [0], [0], [1], [0, 0, 1, 1], [], []>} : vector<1x32xf32>, vector<32x16xf32>, vector<1x16xf32> -> vector<1x16xf32>
    %cst_227 = arith.constant 3.125000e-02 : f32
    %403 = vector.broadcast %cst_227 : f32 to vector<1x16xf32>
    %404 = arith.mulf %402, %403 : vector<1x16xf32>
    %405 = arith.mulf %401, %401 : vector<32x16xf32>
    %cst_228 = arith.constant dense<0.000000e+00> : vector<1x16xf32>
    %406 = tpu.matmul %26, %405, %cst_228 {dimension_numbers = #tpu.dot_dimension_numbers<[1], [0], [0], [1], [0, 0, 1, 1], [], []>} : vector<1x32xf32>, vector<32x16xf32>, vector<1x16xf32> -> vector<1x16xf32>
    %cst_229 = arith.constant 3.125000e-02 : f32
    %407 = vector.broadcast %cst_229 : f32 to vector<1x16xf32>
    %408 = arith.mulf %406, %407 : vector<1x16xf32>
    %409 = arith.mulf %404, %404 : vector<1x16xf32>
    %410 = arith.subf %408, %409 : vector<1x16xf32>
    %cst_230 = arith.constant 0.000000e+00 : f32
    %411 = vector.broadcast %cst_230 : f32 to vector<1x16xf32>
    %412 = arith.maximumf %410, %411 : vector<1x16xf32>
    %413 = vector.broadcast %404 : vector<1x16xf32> to vector<32x16xf32>
    %414 = arith.subf %401, %413 : vector<32x16xf32>
    %cst_231 = arith.constant 9.99999974E-6 : f32
    %415 = vector.broadcast %cst_231 : f32 to vector<1x16xf32>
    %416 = arith.addf %412, %415 : vector<1x16xf32>
    %417 = math.rsqrt %416 : vector<1x16xf32>
    %418 = vector.broadcast %417 : vector<1x16xf32> to vector<32x16xf32>
    %419 = arith.mulf %414, %418 : vector<32x16xf32>
    %420 = vector.broadcast %65 : vector<32x1xf32> to vector<32x16xf32>
    %421 = arith.mulf %419, %420 : vector<32x16xf32>
    %422 = vector.broadcast %66 : vector<32x1xf32> to vector<32x16xf32>
    %423 = arith.addf %421, %422 : vector<32x16xf32>
    %c3_232 = arith.constant 3 : index
    %c0_233 = arith.constant 0 : index
    %c0_234 = arith.constant 0 : index
    %424 = vector.load %arg6[%c3_232, %c0_233, %c0_234] : memref<4x32x16xf32, #tpu.memory_space<vmem>>, vector<1x32x16xf32>
    %425 = vector.shape_cast %424 : vector<1x32x16xf32> to vector<32x16xf32>
    %426 = vector.shape_cast %423 : vector<32x16xf32> to vector<1x32x16xf32>
    tpu.vector_store %arg6[%c3_232, %c0_233, %c0_234], %426 {strides = array<i32>} : memref<4x32x16xf32, #tpu.memory_space<vmem>>, vector<1x32x16xf32>,
    return
  }
  func.func @transform_0(%arg0: i32) -> (i32, i32, i32) {
    %c0_i32 = arith.constant 0 : i32
    %c0_i32_0 = arith.constant 0 : i32
    %c0_i32_1 = arith.constant 0 : i32
    return %c0_i32, %c0_i32_0, %arg0 : i32, i32, i32
  }
  func.func @transform_1(%arg0: i32) -> (i32, i32) {
    %c0_i32 = arith.constant 0 : i32
    %c0_i32_0 = arith.constant 0 : i32
    %c0_i32_1 = arith.constant 0 : i32
    return %c0_i32, %c0_i32_0 : i32, i32
  }
  func.func @transform_2(%arg0: i32) -> (i32, i32) {
    %c0_i32 = arith.constant 0 : i32
    %c0_i32_0 = arith.constant 0 : i32
    %c0_i32_1 = arith.constant 0 : i32
    return %c0_i32, %c0_i32_0 : i32, i32
  }
  func.func @transform_3(%arg0: i32) -> (i32, i32) {
    %c0_i32 = arith.constant 0 : i32
    %c0_i32_0 = arith.constant 0 : i32
    %c0_i32_1 = arith.constant 0 : i32
    return %c0_i32, %c0_i32_0 : i32, i32
  }
  func.func @transform_4(%arg0: i32) -> (i32, i32) {
    %c0_i32 = arith.constant 0 : i32
    %c0_i32_0 = arith.constant 0 : i32
    %c0_i32_1 = arith.constant 0 : i32
    return %c0_i32, %c0_i32_0 : i32, i32
  }
  func.func @transform_5(%arg0: i32) -> (i32, i32, i32) {
    %c0_i32 = arith.constant 0 : i32
    %c0_i32_0 = arith.constant 0 : i32
    %c0_i32_1 = arith.constant 0 : i32
    return %c0_i32, %c0_i32_0, %arg0 : i32, i32, i32
  }
}

</mosaic_0001>

<llo_original>
// kernel: tpu_custom_call.1
$region0: #{tpu_custom_call.1}
  #allocation0 [shape = 'u32[]', space=smem, size = 0x4, offset = 0x4, fixed_abs, tag = 'smem constant byte address 0x4 - core index']
  #allocation1 [shape = 'u32[144,128]{1,0:T(1,128)}', space=vmem, size = 0x12000, scoped, tag = 'internal scratch']
  #allocation2 [shape = 'f32[4,64,16]{2,1,0:T(8,128)}', space=vmem, size = 0x20000, scoped, tag = 'scratch operand']
  %s0 = inlined_call_operand.vmem [shape: f32[4,32,16], index: 0, kind: input, shape index: {}]
  %s1 = inlined_call_operand.vmem [shape: f32[96,32], index: 1, kind: input, shape index: {}]
  %s2 = inlined_call_operand.vmem [shape: f32[96,1], index: 2, kind: input, shape index: {}]
  %s3 = inlined_call_operand.vmem [shape: f32[32,32], index: 3, kind: input, shape index: {}]
  %s4 = inlined_call_operand.vmem [shape: f32[32,3], index: 4, kind: input, shape index: {}]
  %s5 = inlined_call_operand.vmem [shape: f32[4,32,16], index: 5, kind: output, shape index: {}]
  %s6 = sld [smem:[#allocation0]]
  $region30: #{tpu_custom_call.1} parent=0
    _
  %s8 = ssub.s32 1, %s6
  %s9 = scalar_select 0, %s8, %s6
  // Predicated region
  $region2: #{tpu_custom_call.1} parent=0 // pred_check
    _
  $region3: #{tpu_custom_call.1} parent=0 // pred_check_branch
    %11 = sbr.rel (0) target = $region5
  $region4: #{tpu_custom_call.1} parent=0 // pred_region
    _
  $region5: #{tpu_custom_call.1} parent=0 // pred_fallthru
    _
  // Predicated region
  $region6: #{tpu_custom_call.1} parent=0 // pred_check
    _
  $region7: #{tpu_custom_call.1} parent=0 // pred_check_branch
    %13 = sbr.rel (0) target = $region9
  $region8: #{tpu_custom_call.1} parent=0 // pred_region
    _
  $region9: #{tpu_custom_call.1} parent=0 // pred_fallthru
    _
  // Predicated region
  $region10: #{tpu_custom_call.1} parent=0 // pred_check
    _
  $region11: #{tpu_custom_call.1} parent=0 // pred_check_branch
    %15 = sbr.rel (0) target = $region13
  $region12: #{tpu_custom_call.1} parent=0 // pred_region
    _
  $region13: #{tpu_custom_call.1} parent=0 // pred_fallthru
    _
  // Predicated region
  $region14: #{tpu_custom_call.1} parent=0 // pred_check
    _
  $region15: #{tpu_custom_call.1} parent=0 // pred_check_branch
    %17 = sbr.rel (0) target = $region17
  $region16: #{tpu_custom_call.1} parent=0 // pred_region
    _
  $region17: #{tpu_custom_call.1} parent=0 // pred_fallthru
    _
  // Predicated region
  $region18: #{tpu_custom_call.1} parent=0 // pred_check
    _
  $region19: #{tpu_custom_call.1} parent=0 // pred_check_branch
    %19 = sbr.rel (0) target = $region21
  $region20: #{tpu_custom_call.1} parent=0 // pred_region
    _
  $region21: #{tpu_custom_call.1} parent=0 // pred_fallthru
    _
  %v20 = vlaneseq
  %v21 = vshrl.u32 %v20, 7
  %v22 = vlaneseq
  %v23 = vand.u32 %v22, 127
  %v24 = vmul.u32 %v21, 8
  %vm25 = vcmp.ge.s32.totalorder %v23, %v24
  %v26 = vadd.s32 %v21, 1
  %v27 = vmul.u32 %v26, 8
  %vm28 = vcmp.lt.s32.totalorder %v23, %v27
  %vm29 = vmand %vm25, %vm28
  %v30 = vsel %vm29, 1, 0
  %v31 = vcvt.s32.f32 %v30
  %v32 = vadd.s32 %v21, 8
  %v33 = vadd.s32 %v21, 16
  %v34 = vadd.s32 %v21, 24
  %v35 = vmul.u32 %v23, 8
  %vm36 = vcmp.ge.s32.totalorder %v21, %v35
  %vm37 = vcmp.ge.s32.totalorder %v32, %v35
  %vm38 = vcmp.ge.s32.totalorder %v33, %v35
  %vm39 = vcmp.ge.s32.totalorder %v34, %v35
  %v40 = vadd.s32 %v23, 1
  %v41 = vmul.u32 %v40, 8
  %vm42 = vcmp.lt.s32.totalorder %v21, %v41
  %vm43 = vcmp.lt.s32.totalorder %v32, %v41
  %vm44 = vcmp.lt.s32.totalorder %v33, %v41
  %vm45 = vcmp.lt.s32.totalorder %v34, %v41
  %vm46 = vmand %vm36, %vm42
  %vm47 = vmand %vm37, %vm43
  %vm48 = vmand %vm38, %vm44
  %vm49 = vmand %vm39, %vm45
  %v50 = vsel %vm46, 1, 0
  %v51 = vsel %vm47, 1, 0
  %v52 = vsel %vm48, 1, 0
  %v53 = vsel %vm49, 1, 0
  %v54 = vcvt.s32.f32 %v50
  %v55 = vcvt.s32.f32 %v51
  %v56 = vcvt.s32.f32 %v52
  %v57 = vcvt.s32.f32 %v53
  %v58 = vld [vmem:[%s1 + $0x20] sm:$0xff]
  %v59 = vld [vmem:[%s1 + $0x28] sm:$0xff]
  %v60 = vld [vmem:[%s1 + $0x30] sm:$0xff]
  %v61 = vld [vmem:[%s1 + $0x38] sm:$0xff]
  %v62 = vld [vmem:[%s1 + $0x40] sm:$0xff]
  %v63 = vld [vmem:[%s1 + $0x48] sm:$0xff]
  %v64 = vld [vmem:[%s1 + $0x50] sm:$0xff]
  %v65 = vld [vmem:[%s1 + $0x58] sm:$0xff]
  %v66 = vld [vmem:[%s2 + $0x20] sm:$0xff]
  %v67 = vld [vmem:[%s2 + $0x28] sm:$0xff]
  %v68 = vld [vmem:[%s2 + $0x30] sm:$0xff]
  %v69 = vld [vmem:[%s2 + $0x38] sm:$0xff]
  %v70 = vld [vmem:[%s2 + $0x40] sm:$0xff]
  %v71 = vld [vmem:[%s2 + $0x48] sm:$0xff]
  %v72 = vld [vmem:[%s2 + $0x50] sm:$0xff]
  %v73 = vld [vmem:[%s2 + $0x58] sm:$0xff]
  %v74 = vld [vmem:[%s0] sm:$0xff]
  %v75 = vld [vmem:[%s0 + $0x8] sm:$0xff]
  %v76 = vld [vmem:[%s0 + $0x10] sm:$0xff]
  %v77 = vld [vmem:[%s0 + $0x18] sm:$0xff]
  %79 = vset.pattern.permute.xlu0 0
  %80 = vperm.xlu0 %79, %v66
  %v81 = vpop.permute.xlu0 %80
  %84 = vset.pattern.permute.xlu0 0
  %85 = vperm.xlu0 %84, %v67
  %v86 = vpop.permute.xlu0 %85
  %89 = vset.pattern.permute.xlu0 0
  %90 = vperm.xlu0 %89, %v68
  %v91 = vpop.permute.xlu0 %90
  %94 = vset.pattern.permute.xlu0 0
  %95 = vperm.xlu0 %94, %v69
  %v96 = vpop.permute.xlu0 %95
  %99 = vset.pattern.permute.xlu0 0
  %100 = vperm.xlu0 %99, %v70
  %v101 = vpop.permute.xlu0 %100
  %104 = vset.pattern.permute.xlu0 0
  %105 = vperm.xlu0 %104, %v71
  %v106 = vpop.permute.xlu0 %105
  %109 = vset.pattern.permute.xlu0 0
  %110 = vperm.xlu0 %109, %v72
  %v111 = vpop.permute.xlu0 %110
  %114 = vset.pattern.permute.xlu0 0
  %115 = vperm.xlu0 %114, %v73
  %v116 = vpop.permute.xlu0 %115
  %vm118 = vcmask 261120
  %v120 = vsel %vm118, %v58, 0
  %v123 = vsel %vm118, %v59, 0
  %v126 = vsel %vm118, %v60, 0
  %v129 = vsel %vm118, %v61, 0
  %v132 = vsel %vm118, %v62, 0
  %v135 = vsel %vm118, %v63, 0
  %v138 = vsel %vm118, %v64, 0
  %v141 = vsel %vm118, %v65, 0
  %143 = vmatprep.subr.mxu0 0.0
  %144 = vmatpush1.msra.mxu0 %v74
  %145 = vmatprep.subr.mxu0 0.0
  %146 = vmatpush1.msra.mxu0 %v75
  %147 = vmatprep.subr.mxu0 0.0
  %148 = vmatpush1.msra.mxu0 %v76
  %149 = vmatprep.subr.mxu0 0.0
  %150 = vmatpush1.msra.mxu0 %v77
  %151 = vmatprep.subr.mxu0 0.0
  %152 = vmatpush1.msra.mxu0 0.0
  %153 = vmatprep.subr.mxu0 0.0
  %154 = vmatpush1.msra.mxu0 0.0
  %155 = vmatprep.subr.mxu0 0.0
  %156 = vmatpush1.msra.mxu0 0.0
  %157 = vmatprep.subr.mxu0 0.0
  %158 = vmatpush1.msra.mxu0 0.0
  %159 = vmatprep.subr.mxu0 0.0
  %160 = vmatpush1.msra.mxu0 0.0
  %161 = vmatprep.subr.mxu0 0.0
  %162 = vmatpush1.msra.mxu0 0.0
  %163 = vmatprep.subr.mxu0 0.0
  %164 = vmatpush1.msra.mxu0 0.0
  %165 = vmatprep.subr.mxu0 0.0
  %166 = vmatpush1.msra.mxu0 0.0
  %167 = vmatprep.subr.mxu0 0.0
  %168 = vmatpush1.msra.mxu0 0.0
  %169 = vmatprep.subr.mxu0 0.0
  %170 = vmatpush1.msra.mxu0 0.0
  %171 = vmatprep.subr.mxu0 0.0
  %172 = vmatpush1.msra.mxu0 0.0
  %173 = vmatprep.subr.mxu0 0.0
  %174 = vmatpush1.msra.mxu0 0.0
  %175 = vmatprep.subr.mxu0 0.0
  %176 = vmatpush1.msra.mxu0 0.0
  %177 = vmatprep.subr.mxu0 0.0
  %178 = vmatpush1.msra.mxu0 0.0
  %179 = vmatprep.subr.mxu0 0.0
  %180 = vmatpush1.msra.mxu0 0.0
  %181 = vmatprep.subr.mxu0 0.0
  %182 = vmatpush1.msra.mxu0 0.0
  %183 = vmatprep.subr.mxu0 0.0
  %184 = vmatpush1.msra.mxu0 0.0
  %185 = vmatprep.subr.mxu0 0.0
  %186 = vmatpush1.msra.mxu0 0.0
  %187 = vmatprep.subr.mxu0 0.0
  %188 = vmatpush1.msra.mxu0 0.0
  %189 = vmatprep.subr.mxu0 0.0
  %190 = vmatpush1.msra.mxu0 0.0
  %191 = vmatprep.subr.mxu0 0.0
  %192 = vmatpush1.msra.mxu0 0.0
  %193 = vmatprep.subr.mxu0 0.0
  %194 = vmatpush1.msra.mxu0 0.0
  %195 = vmatprep.subr.mxu0 0.0
  %196 = vmatpush1.msra.mxu0 0.0
  %197 = vmatprep.subr.mxu0 0.0
  %198 = vmatpush1.msra.mxu0 0.0
  %199 = vmatprep.subr.mxu0 0.0
  %200 = vmatpush1.msra.mxu0 0.0
  %201 = vmatprep.subr.mxu0 0.0
  %202 = vmatpush1.msra.mxu0 0.0
  %203 = vmatprep.subr.mxu0 0.0
  %204 = vmatpush1.msra.mxu0 0.0
  %205 = vmatprep.subr.mxu0 0.0
  %206 = vmatpush1.msra.mxu0 0.0
  %207 = vmatprep.mubr.f32.mxu0 0.0
  %208 = vmatmul.mubr.f32.gmra.mrb[0].mxu0 %v120
  %v209 = vpop.f32.mrb[0].mxu0
  %v210 = vadd.f32 %v81, %v209
  %v211 = vpop.f32.mrb[0].mxu0
  %212 = vmatprep.mubr.f32.mxu0 0.0
  %213 = vmatmul.mubr.f32.gmra.mrb[0].mxu0 %v123
  %v214 = vpop.f32.mrb[0].mxu0
  %v215 = vadd.f32 %v86, %v214
  %v216 = vpop.f32.mrb[0].mxu0
  %217 = vmatprep.mubr.f32.mxu0 0.0
  %218 = vmatmul.mubr.f32.gmra.mrb[0].mxu0 %v126
  %v219 = vpop.f32.mrb[0].mxu0
  %v220 = vadd.f32 %v91, %v219
  %v221 = vpop.f32.mrb[0].mxu0
  %222 = vmatprep.mubr.f32.mxu0 0.0
  %223 = vmatmul.mubr.f32.gmra.mrb[0].mxu0 %v129
  %v224 = vpop.f32.mrb[0].mxu0
  %v225 = vadd.f32 %v96, %v224
  %v226 = vpop.f32.mrb[0].mxu0
  %227 = vmatprep.mubr.f32.mxu0 0.0
  %228 = vmatmul.mubr.f32.gmra.mrb[0].mxu0 %v132
  %v229 = vpop.f32.mrb[0].mxu0
  %v230 = vadd.f32 %v101, %v229
  %v231 = vpop.f32.mrb[0].mxu0
  %232 = vmatprep.mubr.f32.mxu0 0.0
  %233 = vmatmul.mubr.f32.gmra.mrb[0].mxu0 %v135
  %v234 = vpop.f32.mrb[0].mxu0
  %v235 = vadd.f32 %v106, %v234
  %v236 = vpop.f32.mrb[0].mxu0
  %237 = vmatprep.mubr.f32.mxu0 0.0
  %238 = vmatmul.mubr.f32.gmra.mrb[0].mxu0 %v138
  %v239 = vpop.f32.mrb[0].mxu0
  %v240 = vadd.f32 %v111, %v239
  %v241 = vpop.f32.mrb[0].mxu0
  %242 = vmatprep.mubr.f32.mxu0 0.0
  %243 = vmatmul.mubr.f32.gmra.mrb[0].mxu0 %v141
  %v244 = vpop.f32.mrb[0].mxu0
  %v245 = vadd.f32 %v116, %v244
  %v246 = vpop.f32.mrb[0].mxu0
  %247 = vdwg.mxu0
  %vm248 = vcmask 130048
  %249 = vst.msk [vmem:[#allocation2] sm:$0xff] %vm248, %v210
  %250 = vst.msk [vmem:[#allocation2 + $0x8] sm:$0xff] %vm248, %v215
  %251 = vst.msk [vmem:[#allocation2 + $0x10] sm:$0xff] %vm248, %v220
  %252 = vst.msk [vmem:[#allocation2 + $0x18] sm:$0xff] %vm248, %v225
  %253 = vst.msk [vmem:[#allocation2 + $0x20] sm:$0xff] %vm248, %v230
  %254 = vst.msk [vmem:[#allocation2 + $0x28] sm:$0xff] %vm248, %v235
  %255 = vst.msk [vmem:[#allocation2 + $0x30] sm:$0xff] %vm248, %v240
  %256 = vst.msk [vmem:[#allocation2 + $0x38] sm:$0xff] %vm248, %v245
  %s257 = scalar_lea.vmem %s0, 32
  %v258 = vld [vmem:[%s257] sm:$0xff]
  %v259 = vld [vmem:[%s257 + $0x8] sm:$0xff]
  %v260 = vld [vmem:[%s257 + $0x10] sm:$0xff]
  %v261 = vld [vmem:[%s257 + $0x18] sm:$0xff]
  %262 = vmatprep.subr.mxu0 0.0
  %263 = vmatpush1.msra.mxu0 %v258
  %264 = vmatprep.subr.mxu0 0.0
  %265 = vmatpush1.msra.mxu0 %v259
  %266 = vmatprep.subr.mxu0 0.0
  %267 = vmatpush1.msra.mxu0 %v260
  %268 = vmatprep.subr.mxu0 0.0
  %269 = vmatpush1.msra.mxu0 %v261
  %270 = vmatprep.subr.mxu0 0.0
  %271 = vmatpush1.msra.mxu0 0.0
  %272 = vmatprep.subr.mxu0 0.0
  %273 = vmatpush1.msra.mxu0 0.0
  %274 = vmatprep.subr.mxu0 0.0
  %275 = vmatpush1.msra.mxu0 0.0
  %276 = vmatprep.subr.mxu0 0.0
  %277 = vmatpush1.msra.mxu0 0.0
  %278 = vmatprep.subr.mxu0 0.0
  %279 = vmatpush1.msra.mxu0 0.0
  %280 = vmatprep.subr.mxu0 0.0
  %281 = vmatpush1.msra.mxu0 0.0
  %282 = vmatprep.subr.mxu0 0.0
  %283 = vmatpush1.msra.mxu0 0.0
  %284 = vmatprep.subr.mxu0 0.0
  %285 = vmatpush1.msra.mxu0 0.0
  %286 = vmatprep.subr.mxu0 0.0
  %287 = vmatpush1.msra.mxu0 0.0
  %288 = vmatprep.subr.mxu0 0.0
  %289 = vmatpush1.msra.mxu0 0.0
  %290 = vmatprep.subr.mxu0 0.0
  %291 = vmatpush1.msra.mxu0 0.0
  %292 = vmatprep.subr.mxu0 0.0
  %293 = vmatpush1.msra.mxu0 0.0
  %294 = vmatprep.subr.mxu0 0.0
  %295 = vmatpush1.msra.mxu0 0.0
  %296 = vmatprep.subr.mxu0 0.0
  %297 = vmatpush1.msra.mxu0 0.0
  %298 = vmatprep.subr.mxu0 0.0
  %299 = vmatpush1.msra.mxu0 0.0
  %300 = vmatprep.subr.mxu0 0.0
  %301 = vmatpush1.msra.mxu0 0.0
  %302 = vmatprep.subr.mxu0 0.0
  %303 = vmatpush1.msra.mxu0 0.0
  %304 = vmatprep.subr.mxu0 0.0
  %305 = vmatpush1.msra.mxu0 0.0
  %306 = vmatprep.subr.mxu0 0.0
  %307 = vmatpush1.msra.mxu0 0.0
  %308 = vmatprep.subr.mxu0 0.0
  %309 = vmatpush1.msra.mxu0 0.0
  %310 = vmatprep.subr.mxu0 0.0
  %311 = vmatpush1.msra.mxu0 0.0
  %312 = vmatprep.subr.mxu0 0.0
  %313 = vmatpush1.msra.mxu0 0.0
  %314 = vmatprep.subr.mxu0 0.0
  %315 = vmatpush1.msra.mxu0 0.0
  %316 = vmatprep.subr.mxu0 0.0
  %317 = vmatpush1.msra.mxu0 0.0
  %318 = vmatprep.subr.mxu0 0.0
  %319 = vmatpush1.msra.mxu0 0.0
  %320 = vmatprep.subr.mxu0 0.0
  %321 = vmatpush1.msra.mxu0 0.0
  %322 = vmatprep.subr.mxu0 0.0
  %323 = vmatpush1.msra.mxu0 0.0
  %324 = vmatprep.subr.mxu0 0.0
  %325 = vmatpush1.msra.mxu0 0.0
  %326 = vmatprep.mubr.f32.mxu0 0.0
  %327 = vmatmul.mubr.f32.gmra.mrb[0].mxu0 %v120
  %v328 = vpop.f32.mrb[0].mxu0
  %v329 = vadd.f32 %v81, %v328
  %v330 = vpop.f32.mrb[0].mxu0
  %331 = vmatprep.mubr.f32.mxu0 0.0
  %332 = vmatmul.mubr.f32.gmra.mrb[0].mxu0 %v123
  %v333 = vpop.f32.mrb[0].mxu0
  %v334 = vadd.f32 %v86, %v333
  %v335 = vpop.f32.mrb[0].mxu0
  %336 = vmatprep.mubr.f32.mxu0 0.0
  %337 = vmatmul.mubr.f32.gmra.mrb[0].mxu0 %v126
  %v338 = vpop.f32.mrb[0].mxu0
  %v339 = vadd.f32 %v91, %v338
  %v340 = vpop.f32.mrb[0].mxu0
  %341 = vmatprep.mubr.f32.mxu0 0.0
  %342 = vmatmul.mubr.f32.gmra.mrb[0].mxu0 %v129
  %v343 = vpop.f32.mrb[0].mxu0
  %v344 = vadd.f32 %v96, %v343
  %v345 = vpop.f32.mrb[0].mxu0
  %346 = vmatprep.mubr.f32.mxu0 0.0
  %347 = vmatmul.mubr.f32.gmra.mrb[0].mxu0 %v132
  %v348 = vpop.f32.mrb[0].mxu0
  %v349 = vadd.f32 %v101, %v348
  %v350 = vpop.f32.mrb[0].mxu0
  %351 = vmatprep.mubr.f32.mxu0 0.0
  %352 = vmatmul.mubr.f32.gmra.mrb[0].mxu0 %v135
  %v353 = vpop.f32.mrb[0].mxu0
  %v354 = vadd.f32 %v106, %v353
  %v355 = vpop.f32.mrb[0].mxu0
  %356 = vmatprep.mubr.f32.mxu0 0.0
  %357 = vmatmul.mubr.f32.gmra.mrb[0].mxu0 %v138
  %v358 = vpop.f32.mrb[0].mxu0
  %v359 = vadd.f32 %v111, %v358
  %v360 = vpop.f32.mrb[0].mxu0
  %361 = vmatprep.mubr.f32.mxu0 0.0
  %362 = vmatmul.mubr.f32.gmra.mrb[0].mxu0 %v141
  %v363 = vpop.f32.mrb[0].mxu0
  %v364 = vadd.f32 %v116, %v363
  %v365 = vpop.f32.mrb[0].mxu0
  %366 = vdwg.mxu0
  %s367 = scalar_lea.vmem [#allocation2], 64
  %368 = vst.msk [vmem:[%s367] sm:$0xff] %vm248, %v329
  %369 = vst.msk [vmem:[%s367 + $0x8] sm:$0xff] %vm248, %v334
  %370 = vst.msk [vmem:[%s367 + $0x10] sm:$0xff] %vm248, %v339
  %371 = vst.msk [vmem:[%s367 + $0x18] sm:$0xff] %vm248, %v344
  %372 = vst.msk [vmem:[%s367 + $0x20] sm:$0xff] %vm248, %v349
  %373 = vst.msk [vmem:[%s367 + $0x28] sm:$0xff] %vm248, %v354
  %374 = vst.msk [vmem:[%s367 + $0x30] sm:$0xff] %vm248, %v359
  %375 = vst.msk [vmem:[%s367 + $0x38] sm:$0xff] %vm248, %v364
  %s376 = scalar_lea.vmem %s0, 64
  %v377 = vld [vmem:[%s376] sm:$0xff]
  %v378 = vld [vmem:[%s376 + $0x8] sm:$0xff]
  %v379 = vld [vmem:[%s376 + $0x10] sm:$0xff]
  %v380 = vld [vmem:[%s376 + $0x18] sm:$0xff]
  %381 = vmatprep.subr.mxu0 0.0
  %382 = vmatpush1.msra.mxu0 %v377
  %383 = vmatprep.subr.mxu0 0.0
  %384 = vmatpush1.msra.mxu0 %v378
  %385 = vmatprep.subr.mxu0 0.0
  %386 = vmatpush1.msra.mxu0 %v379
  %387 = vmatprep.subr.mxu0 0.0
  %388 = vmatpush1.msra.mxu0 %v380
  %389 = vmatprep.subr.mxu0 0.0
  %390 = vmatpush1.msra.mxu0 0.0
  %391 = vmatprep.subr.mxu0 0.0
  %392 = vmatpush1.msra.mxu0 0.0
  %393 = vmatprep.subr.mxu0 0.0
  %394 = vmatpush1.msra.mxu0 0.0
  %395 = vmatprep.subr.mxu0 0.0
  %396 = vmatpush1.msra.mxu0 0.0
  %397 = vmatprep.subr.mxu0 0.0
  %398 = vmatpush1.msra.mxu0 0.0
  %399 = vmatprep.subr.mxu0 0.0
  %400 = vmatpush1.msra.mxu0 0.0
  %401 = vmatprep.subr.mxu0 0.0
  %402 = vmatpush1.msra.mxu0 0.0
  %403 = vmatprep.subr.mxu0 0.0
  %404 = vmatpush1.msra.mxu0 0.0
  %405 = vmatprep.subr.mxu0 0.0
  %406 = vmatpush1.msra.mxu0 0.0
  %407 = vmatprep.subr.mxu0 0.0
  %408 = vmatpush1.msra.mxu0 0.0
  %409 = vmatprep.subr.mxu0 0.0
  %410 = vmatpush1.msra.mxu0 0.0
  %411 = vmatprep.subr.mxu0 0.0
  %412 = vmatpush1.msra.mxu0 0.0
  %413 = vmatprep.subr.mxu0 0.0
  %414 = vmatpush1.msra.mxu0 0.0
  %415 = vmatprep.subr.mxu0 0.0
  %416 = vmatpush1.msra.mxu0 0.0
  %417 = vmatprep.subr.mxu0 0.0
  %418 = vmatpush1.msra.mxu0 0.0
  %419 = vmatprep.subr.mxu0 0.0
  %420 = vmatpush1.msra.mxu0 0.0
  %421 = vmatprep.subr.mxu0 0.0
  %422 = vmatpush1.msra.mxu0 0.0
  %423 = vmatprep.subr.mxu0 0.0
  %424 = vmatpush1.msra.mxu0 0.0
  %425 = vmatprep.subr.mxu0 0.0
  %426 = vmatpush1.msra.mxu0 0.0
  %427 = vmatprep.subr.mxu0 0.0
  %428 = vmatpush1.msra.mxu0 0.0
  %429 = vmatprep.subr.mxu0 0.0
  %430 = vmatpush1.msra.mxu0 0.0
  %431 = vmatprep.subr.mxu0 0.0
  %432 = vmatpush1.msra.mxu0 0.0
  %433 = vmatprep.subr.mxu0 0.0
  %434 = vmatpush1.msra.mxu0 0.0
  %435 = vmatprep.subr.mxu0 0.0
  %436 = vmatpush1.msra.mxu0 0.0
  %437 = vmatprep.subr.mxu0 0.0
  %438 = vmatpush1.msra.mxu0 0.0
  %439 = vmatprep.subr.mxu0 0.0
  %440 = vmatpush1.msra.mxu0 0.0
  %441 = vmatprep.subr.mxu0 0.0
  %442 = vmatpush1.msra.mxu0 0.0
  %443 = vmatprep.subr.mxu0 0.0
  %444 = vmatpush1.msra.mxu0 0.0
  %445 = vmatprep.mubr.f32.mxu0 0.0
  %446 = vmatmul.mubr.f32.gmra.mrb[0].mxu0 %v120
  %v447 = vpop.f32.mrb[0].mxu0
  %v448 = vadd.f32 %v81, %v447
  %v449 = vpop.f32.mrb[0].mxu0
  %450 = vmatprep.mubr.f32.mxu0 0.0
  %451 = vmatmul.mubr.f32.gmra.mrb[0].mxu0 %v123
  %v452 = vpop.f32.mrb[0].mxu0
  %v453 = vadd.f32 %v86, %v452
  %v454 = vpop.f32.mrb[0].mxu0
  %455 = vmatprep.mubr.f32.mxu0 0.0
  %456 = vmatmul.mubr.f32.gmra.mrb[0].mxu0 %v126
  %v457 = vpop.f32.mrb[0].mxu0
  %v458 = vadd.f32 %v91, %v457
  %v459 = vpop.f32.mrb[0].mxu0
  %460 = vmatprep.mubr.f32.mxu0 0.0
  %461 = vmatmul.mubr.f32.gmra.mrb[0].mxu0 %v129
  %v462 = vpop.f32.mrb[0].mxu0
  %v463 = vadd.f32 %v96, %v462
  %v464 = vpop.f32.mrb[0].mxu0
  %465 = vmatprep.mubr.f32.mxu0 0.0
  %466 = vmatmul.mubr.f32.gmra.mrb[0].mxu0 %v132
  %v467 = vpop.f32.mrb[0].mxu0
  %v468 = vadd.f32 %v101, %v467
  %v469 = vpop.f32.mrb[0].mxu0
  %470 = vmatprep.mubr.f32.mxu0 0.0
  %471 = vmatmul.mubr.f32.gmra.mrb[0].mxu0 %v135
  %v472 = vpop.f32.mrb[0].mxu0
  %v473 = vadd.f32 %v106, %v472
  %v474 = vpop.f32.mrb[0].mxu0
  %475 = vmatprep.mubr.f32.mxu0 0.0
  %476 = vmatmul.mubr.f32.gmra.mrb[0].mxu0 %v138
  %v477 = vpop.f32.mrb[0].mxu0
  %v478 = vadd.f32 %v111, %v477
  %v479 = vpop.f32.mrb[0].mxu0
  %480 = vmatprep.mubr.f32.mxu0 0.0
  %481 = vmatmul.mubr.f32.gmra.mrb[0].mxu0 %v141
  %v482 = vpop.f32.mrb[0].mxu0
  %v483 = vadd.f32 %v116, %v482
  %v484 = vpop.f32.mrb[0].mxu0
  %485 = vdwg.mxu0
  %s486 = scalar_lea.vmem [#allocation2], 128
  %487 = vst.msk [vmem:[%s486] sm:$0xff] %vm248, %v448
  %488 = vst.msk [vmem:[%s486 + $0x8] sm:$0xff] %vm248, %v453
  %489 = vst.msk [vmem:[%s486 + $0x10] sm:$0xff] %vm248, %v458
  %490 = vst.msk [vmem:[%s486 + $0x18] sm:$0xff] %vm248, %v463
  %491 = vst.msk [vmem:[%s486 + $0x20] sm:$0xff] %vm248, %v468
  %492 = vst.msk [vmem:[%s486 + $0x28] sm:$0xff] %vm248, %v473
  %493 = vst.msk [vmem:[%s486 + $0x30] sm:$0xff] %vm248, %v478
  %494 = vst.msk [vmem:[%s486 + $0x38] sm:$0xff] %vm248, %v483
  %s495 = scalar_lea.vmem %s0, 96
  %v496 = vld [vmem:[%s495] sm:$0xff]
  %v497 = vld [vmem:[%s495 + $0x8] sm:$0xff]
  %v498 = vld [vmem:[%s495 + $0x10] sm:$0xff]
  %v499 = vld [vmem:[%s495 + $0x18] sm:$0xff]
  %500 = vmatprep.subr.mxu0 0.0
  %501 = vmatpush1.msra.mxu0 %v496
  %502 = vmatprep.subr.mxu0 0.0
  %503 = vmatpush1.msra.mxu0 %v497
  %504 = vmatprep.subr.mxu0 0.0
  %505 = vmatpush1.msra.mxu0 %v498
  %506 = vmatprep.subr.mxu0 0.0
  %507 = vmatpush1.msra.mxu0 %v499
  %508 = vmatprep.subr.mxu0 0.0
  %509 = vmatpush1.msra.mxu0 0.0
  %510 = vmatprep.subr.mxu0 0.0
  %511 = vmatpush1.msra.mxu0 0.0
  %512 = vmatprep.subr.mxu0 0.0
  %513 = vmatpush1.msra.mxu0 0.0
  %514 = vmatprep.subr.mxu0 0.0
  %515 = vmatpush1.msra.mxu0 0.0
  %516 = vmatprep.subr.mxu0 0.0
  %517 = vmatpush1.msra.mxu0 0.0
  %518 = vmatprep.subr.mxu0 0.0
  %519 = vmatpush1.msra.mxu0 0.0
  %520 = vmatprep.subr.mxu0 0.0
  %521 = vmatpush1.msra.mxu0 0.0
  %522 = vmatprep.subr.mxu0 0.0
  %523 = vmatpush1.msra.mxu0 0.0
  %524 = vmatprep.subr.mxu0 0.0
  %525 = vmatpush1.msra.mxu0 0.0
  %526 = vmatprep.subr.mxu0 0.0
  %527 = vmatpush1.msra.mxu0 0.0
  %528 = vmatprep.subr.mxu0 0.0
  %529 = vmatpush1.msra.mxu0 0.0
  %530 = vmatprep.subr.mxu0 0.0
  %531 = vmatpush1.msra.mxu0 0.0
  %532 = vmatprep.subr.mxu0 0.0
  %533 = vmatpush1.msra.mxu0 0.0
  %534 = vmatprep.subr.mxu0 0.0
  %535 = vmatpush1.msra.mxu0 0.0
  %536 = vmatprep.subr.mxu0 0.0
  %537 = vmatpush1.msra.mxu0 0.0
  %538 = vmatprep.subr.mxu0 0.0
  %539 = vmatpush1.msra.mxu0 0.0
  %540 = vmatprep.subr.mxu0 0.0
  %541 = vmatpush1.msra.mxu0 0.0
  %542 = vmatprep.subr.mxu0 0.0
  %543 = vmatpush1.msra.mxu0 0.0
  %544 = vmatprep.subr.mxu0 0.0
  %545 = vmatpush1.msra.mxu0 0.0
  %546 = vmatprep.subr.mxu0 0.0
  %547 = vmatpush1.msra.mxu0 0.0
  %548 = vmatprep.subr.mxu0 0.0
  %549 = vmatpush1.msra.mxu0 0.0
  %550 = vmatprep.subr.mxu0 0.0
  %551 = vmatpush1.msra.mxu0 0.0
  %552 = vmatprep.subr.mxu0 0.0
  %553 = vmatpush1.msra.mxu0 0.0
  %554 = vmatprep.subr.mxu0 0.0
  %555 = vmatpush1.msra.mxu0 0.0
  %556 = vmatprep.subr.mxu0 0.0
  %557 = vmatpush1.msra.mxu0 0.0
  %558 = vmatprep.subr.mxu0 0.0
  %559 = vmatpush1.msra.mxu0 0.0
  %560 = vmatprep.subr.mxu0 0.0
  %561 = vmatpush1.msra.mxu0 0.0
  %562 = vmatprep.subr.mxu0 0.0
  %563 = vmatpush1.msra.mxu0 0.0
  %564 = vmatprep.mubr.f32.mxu0 0.0
  %565 = vmatmul.mubr.f32.gmra.mrb[0].mxu0 %v120
  %v566 = vpop.f32.mrb[0].mxu0
  %v567 = vadd.f32 %v81, %v566
  %v568 = vpop.f32.mrb[0].mxu0
  %569 = vmatprep.mubr.f32.mxu0 0.0
  %570 = vmatmul.mubr.f32.gmra.mrb[0].mxu0 %v123
  %v571 = vpop.f32.mrb[0].mxu0
  %v572 = vadd.f32 %v86, %v571
  %v573 = vpop.f32.mrb[0].mxu0
  %574 = vmatprep.mubr.f32.mxu0 0.0
  %575 = vmatmul.mubr.f32.gmra.mrb[0].mxu0 %v126
  %v576 = vpop.f32.mrb[0].mxu0
  %v577 = vadd.f32 %v91, %v576
  %v578 = vpop.f32.mrb[0].mxu0
  %579 = vmatprep.mubr.f32.mxu0 0.0
  %580 = vmatmul.mubr.f32.gmra.mrb[0].mxu0 %v129
  %v581 = vpop.f32.mrb[0].mxu0
  %v582 = vadd.f32 %v96, %v581
  %v583 = vpop.f32.mrb[0].mxu0
  %584 = vmatprep.mubr.f32.mxu0 0.0
  %585 = vmatmul.mubr.f32.gmra.mrb[0].mxu0 %v132
  %v586 = vpop.f32.mrb[0].mxu0
  %v587 = vadd.f32 %v101, %v586
  %v588 = vpop.f32.mrb[0].mxu0
  %589 = vmatprep.mubr.f32.mxu0 0.0
  %590 = vmatmul.mubr.f32.gmra.mrb[0].mxu0 %v135
  %v591 = vpop.f32.mrb[0].mxu0
  %v592 = vadd.f32 %v106, %v591
  %v593 = vpop.f32.mrb[0].mxu0
  %594 = vmatprep.mubr.f32.mxu0 0.0
  %595 = vmatmul.mubr.f32.gmra.mrb[0].mxu0 %v138
  %v596 = vpop.f32.mrb[0].mxu0
  %v597 = vadd.f32 %v111, %v596
  %v598 = vpop.f32.mrb[0].mxu0
  %599 = vmatprep.mubr.f32.mxu0 0.0
  %600 = vmatmul.mubr.f32.gmra.mrb[0].mxu0 %v141
  %v601 = vpop.f32.mrb[0].mxu0
  %v602 = vadd.f32 %v116, %v601
  %v603 = vpop.f32.mrb[0].mxu0
  %604 = vdwg.mxu0
  %s605 = scalar_lea.vmem [#allocation2], 192
  %606 = vst.msk [vmem:[%s605] sm:$0xff] %vm248, %v567
  %607 = vst.msk [vmem:[%s605 + $0x8] sm:$0xff] %vm248, %v572
  %608 = vst.msk [vmem:[%s605 + $0x10] sm:$0xff] %vm248, %v577
  %609 = vst.msk [vmem:[%s605 + $0x18] sm:$0xff] %vm248, %v582
  %610 = vst.msk [vmem:[%s605 + $0x20] sm:$0xff] %vm248, %v587
  %611 = vst.msk [vmem:[%s605 + $0x28] sm:$0xff] %vm248, %v592
  %612 = vst.msk [vmem:[%s605 + $0x30] sm:$0xff] %vm248, %v597
  %613 = vst.msk [vmem:[%s605 + $0x38] sm:$0xff] %vm248, %v602
  %v614 = vld [vmem:[%s1] sm:$0xff]
  %v615 = vld [vmem:[%s1 + $0x8] sm:$0xff]
  %v616 = vld [vmem:[%s1 + $0x10] sm:$0xff]
  %v617 = vld [vmem:[%s1 + $0x18] sm:$0xff]
  %v618 = vld [vmem:[%s2] sm:$0xff]
  %v619 = vld [vmem:[%s2 + $0x8] sm:$0xff]
  %v620 = vld [vmem:[%s2 + $0x10] sm:$0xff]
  %v621 = vld [vmem:[%s2 + $0x18] sm:$0xff]
  %v622 = vld [vmem:[%s3] sm:$0xff]
  %v623 = vld [vmem:[%s3 + $0x8] sm:$0xff]
  %v624 = vld [vmem:[%s3 + $0x10] sm:$0xff]
  %v625 = vld [vmem:[%s3 + $0x18] sm:$0xff]
  %v626 = vld [vmem:[%s4] sm:$0xff]
  %v627 = vld [vmem:[%s4 + $0x8] sm:$0xff]
  %v628 = vld [vmem:[%s4 + $0x10] sm:$0xff]
  %v629 = vld [vmem:[%s4 + $0x18] sm:$0xff]
  %v630 = vld [vmem:[%s0] sm:$0xff]
  %v631 = vld [vmem:[%s0 + $0x8] sm:$0xff]
  %v632 = vld [vmem:[%s0 + $0x10] sm:$0xff]
  %v633 = vld [vmem:[%s0 + $0x18] sm:$0xff]
  %635 = vset.pattern.permute.xlu0 0
  %636 = vperm.xlu0 %635, %v618
  %v637 = vpop.permute.xlu0 %636
  %640 = vset.pattern.permute.xlu0 0
  %641 = vperm.xlu0 %640, %v619
  %v642 = vpop.permute.xlu0 %641
  %645 = vset.pattern.permute.xlu0 0
  %646 = vperm.xlu0 %645, %v620
  %v647 = vpop.permute.xlu0 %646
  %650 = vset.pattern.permute.xlu0 0
  %651 = vperm.xlu0 %650, %v621
  %v652 = vpop.permute.xlu0 %651
  %v655 = vsel %vm118, %v614, 0
  %v658 = vsel %vm118, %v615, 0
  %v661 = vsel %vm118, %v616, 0
  %v664 = vsel %vm118, %v617, 0
  %666 = vmatprep.subr.mxu0 0.0
  %667 = vmatpush1.msra.mxu0 %v630
  %668 = vmatprep.subr.mxu0 0.0
  %669 = vmatpush1.msra.mxu0 %v631
  %670 = vmatprep.subr.mxu0 0.0
  %671 = vmatpush1.msra.mxu0 %v632
  %672 = vmatprep.subr.mxu0 0.0
  %673 = vmatpush1.msra.mxu0 %v633
  %674 = vmatprep.subr.mxu0 0.0
  %675 = vmatpush1.msra.mxu0 0.0
  %676 = vmatprep.subr.mxu0 0.0
  %677 = vmatpush1.msra.mxu0 0.0
  %678 = vmatprep.subr.mxu0 0.0
  %679 = vmatpush1.msra.mxu0 0.0
  %680 = vmatprep.subr.mxu0 0.0
  %681 = vmatpush1.msra.mxu0 0.0
  %682 = vmatprep.subr.mxu0 0.0
  %683 = vmatpush1.msra.mxu0 0.0
  %684 = vmatprep.subr.mxu0 0.0
  %685 = vmatpush1.msra.mxu0 0.0
  %686 = vmatprep.subr.mxu0 0.0
  %687 = vmatpush1.msra.mxu0 0.0
  %688 = vmatprep.subr.mxu0 0.0
  %689 = vmatpush1.msra.mxu0 0.0
  %690 = vmatprep.subr.mxu0 0.0
  %691 = vmatpush1.msra.mxu0 0.0
  %692 = vmatprep.subr.mxu0 0.0
  %693 = vmatpush1.msra.mxu0 0.0
  %694 = vmatprep.subr.mxu0 0.0
  %695 = vmatpush1.msra.mxu0 0.0
  %696 = vmatprep.subr.mxu0 0.0
  %697 = vmatpush1.msra.mxu0 0.0
  %698 = vmatprep.subr.mxu0 0.0
  %699 = vmatpush1.msra.mxu0 0.0
  %700 = vmatprep.subr.mxu0 0.0
  %701 = vmatpush1.msra.mxu0 0.0
  %702 = vmatprep.subr.mxu0 0.0
  %703 = vmatpush1.msra.mxu0 0.0
  %704 = vmatprep.subr.mxu0 0.0
  %705 = vmatpush1.msra.mxu0 0.0
  %706 = vmatprep.subr.mxu0 0.0
  %707 = vmatpush1.msra.mxu0 0.0
  %708 = vmatprep.subr.mxu0 0.0
  %709 = vmatpush1.msra.mxu0 0.0
  %710 = vmatprep.subr.mxu0 0.0
  %711 = vmatpush1.msra.mxu0 0.0
  %712 = vmatprep.subr.mxu0 0.0
  %713 = vmatpush1.msra.mxu0 0.0
  %714 = vmatprep.subr.mxu0 0.0
  %715 = vmatpush1.msra.mxu0 0.0
  %716 = vmatprep.subr.mxu0 0.0
  %717 = vmatpush1.msra.mxu0 0.0
  %718 = vmatprep.subr.mxu0 0.0
  %719 = vmatpush1.msra.mxu0 0.0
  %720 = vmatprep.subr.mxu0 0.0
  %721 = vmatpush1.msra.mxu0 0.0
  %722 = vmatprep.subr.mxu0 0.0
  %723 = vmatpush1.msra.mxu0 0.0
  %724 = vmatprep.subr.mxu0 0.0
  %725 = vmatpush1.msra.mxu0 0.0
  %726 = vmatprep.subr.mxu0 0.0
  %727 = vmatpush1.msra.mxu0 0.0
  %728 = vmatprep.subr.mxu0 0.0
  %729 = vmatpush1.msra.mxu0 0.0
  %730 = vmatprep.mubr.f32.mxu0 0.0
  %731 = vmatmul.mubr.f32.gmra.mrb[0].mxu0 %v655
  %v732 = vpop.f32.mrb[0].mxu0
  %v733 = vadd.f32 %v637, %v732
  %v734 = vpop.f32.mrb[0].mxu0
  %735 = vmatprep.mubr.f32.mxu0 0.0
  %736 = vmatmul.mubr.f32.gmra.mrb[0].mxu0 %v658
  %v737 = vpop.f32.mrb[0].mxu0
  %v738 = vadd.f32 %v642, %v737
  %v739 = vpop.f32.mrb[0].mxu0
  %740 = vmatprep.mubr.f32.mxu0 0.0
  %741 = vmatmul.mubr.f32.gmra.mrb[0].mxu0 %v661
  %v742 = vpop.f32.mrb[0].mxu0
  %v743 = vadd.f32 %v647, %v742
  %v744 = vpop.f32.mrb[0].mxu0
  %745 = vmatprep.mubr.f32.mxu0 0.0
  %746 = vmatmul.mubr.f32.gmra.mrb[0].mxu0 %v664
  %v747 = vpop.f32.mrb[0].mxu0
  %v748 = vadd.f32 %v652, %v747
  %v749 = vpop.f32.mrb[0].mxu0
  %750 = vdwg.mxu0
  %v751 = vld [vmem:[#allocation2] sm:$0xff]
  %v752 = vld [vmem:[#allocation2 + $0x8] sm:$0xff]
  %v753 = vld [vmem:[#allocation2 + $0x10] sm:$0xff]
  %v754 = vld [vmem:[#allocation2 + $0x18] sm:$0xff]
  %v755 = vmul.f32 %v733, %v751
  %v756 = vmul.f32 %v738, %v752
  %v757 = vmul.f32 %v743, %v753
  %v758 = vmul.f32 %v748, %v754
  %v760 = vsel %vm118, %v31, 0
  %762 = vmatprep.subr.mxu0 0.0
  %763 = vmatpush1.msra.mxu0 %v755
  %764 = vmatprep.subr.mxu0 0.0
  %765 = vmatpush1.msra.mxu0 %v756
  %766 = vmatprep.subr.mxu0 0.0
  %767 = vmatpush1.msra.mxu0 %v757
  %768 = vmatprep.subr.mxu0 0.0
  %769 = vmatpush1.msra.mxu0 %v758
  %770 = vmatprep.subr.mxu0 0.0
  %771 = vmatpush1.msra.mxu0 0.0
  %772 = vmatprep.subr.mxu0 0.0
  %773 = vmatpush1.msra.mxu0 0.0
  %774 = vmatprep.subr.mxu0 0.0
  %775 = vmatpush1.msra.mxu0 0.0
  %776 = vmatprep.subr.mxu0 0.0
  %777 = vmatpush1.msra.mxu0 0.0
  %778 = vmatprep.subr.mxu0 0.0
  %779 = vmatpush1.msra.mxu0 0.0
  %780 = vmatprep.subr.mxu0 0.0
  %781 = vmatpush1.msra.mxu0 0.0
  %782 = vmatprep.subr.mxu0 0.0
  %783 = vmatpush1.msra.mxu0 0.0
  %784 = vmatprep.subr.mxu0 0.0
  %785 = vmatpush1.msra.mxu0 0.0
  %786 = vmatprep.subr.mxu0 0.0
  %787 = vmatpush1.msra.mxu0 0.0
  %788 = vmatprep.subr.mxu0 0.0
  %789 = vmatpush1.msra.mxu0 0.0
  %790 = vmatprep.subr.mxu0 0.0
  %791 = vmatpush1.msra.mxu0 0.0
  %792 = vmatprep.subr.mxu0 0.0
  %793 = vmatpush1.msra.mxu0 0.0
  %794 = vmatprep.subr.mxu0 0.0
  %795 = vmatpush1.msra.mxu0 0.0
  %796 = vmatprep.subr.mxu0 0.0
  %797 = vmatpush1.msra.mxu0 0.0
  %798 = vmatprep.subr.mxu0 0.0
  %799 = vmatpush1.msra.mxu0 0.0
  %800 = vmatprep.subr.mxu0 0.0
  %801 = vmatpush1.msra.mxu0 0.0
  %802 = vmatprep.subr.mxu0 0.0
  %803 = vmatpush1.msra.mxu0 0.0
  %804 = vmatprep.subr.mxu0 0.0
  %805 = vmatpush1.msra.mxu0 0.0
  %806 = vmatprep.subr.mxu0 0.0
  %807 = vmatpush1.msra.mxu0 0.0
  %808 = vmatprep.subr.mxu0 0.0
  %809 = vmatpush1.msra.mxu0 0.0
  %810 = vmatprep.subr.mxu0 0.0
  %811 = vmatpush1.msra.mxu0 0.0
  %812 = vmatprep.subr.mxu0 0.0
  %813 = vmatpush1.msra.mxu0 0.0
  %814 = vmatprep.subr.mxu0 0.0
  %815 = vmatpush1.msra.mxu0 0.0
  %816 = vmatprep.subr.mxu0 0.0
  %817 = vmatpush1.msra.mxu0 0.0
  %818 = vmatprep.subr.mxu0 0.0
  %819 = vmatpush1.msra.mxu0 0.0
  %820 = vmatprep.subr.mxu0 0.0
  %821 = vmatpush1.msra.mxu0 0.0
  %822 = vmatprep.subr.mxu0 0.0
  %823 = vmatpush1.msra.mxu0 0.0
  %824 = vmatprep.subr.mxu0 0.0
  %825 = vmatpush1.msra.mxu0 0.0
  %826 = vmatprep.mubr.f32.mxu0 0.0
  %827 = vmatmul.mubr.f32.gmra.mrb[0].mxu0 %v760
  %v828 = vpop.f32.mrb[0].mxu0
  %v829 = vadd.f32 0.0, %v828
  %v830 = vpop.f32.mrb[0].mxu0
  %831 = vdwg.mxu0
  %v832 = vld [vmem:[%s367] sm:$0xff]
  %v833 = vld [vmem:[%s367 + $0x8] sm:$0xff]
  %v834 = vld [vmem:[%s367 + $0x10] sm:$0xff]
  %v835 = vld [vmem:[%s367 + $0x18] sm:$0xff]
  %v836 = vmul.f32 %v733, %v832
  %v837 = vmul.f32 %v738, %v833
  %v838 = vmul.f32 %v743, %v834
  %v839 = vmul.f32 %v748, %v835
  %840 = vmatprep.subr.mxu0 0.0
  %841 = vmatpush1.msra.mxu0 %v836
  %842 = vmatprep.subr.mxu0 0.0
  %843 = vmatpush1.msra.mxu0 %v837
  %844 = vmatprep.subr.mxu0 0.0
  %845 = vmatpush1.msra.mxu0 %v838
  %846 = vmatprep.subr.mxu0 0.0
  %847 = vmatpush1.msra.mxu0 %v839
  %848 = vmatprep.subr.mxu0 0.0
  %849 = vmatpush1.msra.mxu0 0.0
  %850 = vmatprep.subr.mxu0 0.0
  %851 = vmatpush1.msra.mxu0 0.0
  %852 = vmatprep.subr.mxu0 0.0
  %853 = vmatpush1.msra.mxu0 0.0
  %854 = vmatprep.subr.mxu0 0.0
  %855 = vmatpush1.msra.mxu0 0.0
  %856 = vmatprep.subr.mxu0 0.0
  %857 = vmatpush1.msra.mxu0 0.0
  %858 = vmatprep.subr.mxu0 0.0
  %859 = vmatpush1.msra.mxu0 0.0
  %860 = vmatprep.subr.mxu0 0.0
  %861 = vmatpush1.msra.mxu0 0.0
  %862 = vmatprep.subr.mxu0 0.0
  %863 = vmatpush1.msra.mxu0 0.0
  %864 = vmatprep.subr.mxu0 0.0
  %865 = vmatpush1.msra.mxu0 0.0
  %866 = vmatprep.subr.mxu0 0.0
  %867 = vmatpush1.msra.mxu0 0.0
  %868 = vmatprep.subr.mxu0 0.0
  %869 = vmatpush1.msra.mxu0 0.0
  %870 = vmatprep.subr.mxu0 0.0
  %871 = vmatpush1.msra.mxu0 0.0
  %872 = vmatprep.subr.mxu0 0.0
  %873 = vmatpush1.msra.mxu0 0.0
  %874 = vmatprep.subr.mxu0 0.0
  %875 = vmatpush1.msra.mxu0 0.0
  %876 = vmatprep.subr.mxu0 0.0
  %877 = vmatpush1.msra.mxu0 0.0
  %878 = vmatprep.subr.mxu0 0.0
  %879 = vmatpush1.msra.mxu0 0.0
  %880 = vmatprep.subr.mxu0 0.0
  %881 = vmatpush1.msra.mxu0 0.0
  %882 = vmatprep.subr.mxu0 0.0
  %883 = vmatpush1.msra.mxu0 0.0
  %884 = vmatprep.subr.mxu0 0.0
  %885 = vmatpush1.msra.mxu0 0.0
  %886 = vmatprep.subr.mxu0 0.0
  %887 = vmatpush1.msra.mxu0 0.0
  %888 = vmatprep.subr.mxu0 0.0
  %889 = vmatpush1.msra.mxu0 0.0
  %890 = vmatprep.subr.mxu0 0.0
  %891 = vmatpush1.msra.mxu0 0.0
  %892 = vmatprep.subr.mxu0 0.0
  %893 = vmatpush1.msra.mxu0 0.0
  %894 = vmatprep.subr.mxu0 0.0
  %895 = vmatpush1.msra.mxu0 0.0
  %896 = vmatprep.subr.mxu0 0.0
  %897 = vmatpush1.msra.mxu0 0.0
  %898 = vmatprep.subr.mxu0 0.0
  %899 = vmatpush1.msra.mxu0 0.0
  %900 = vmatprep.subr.mxu0 0.0
  %901 = vmatpush1.msra.mxu0 0.0
  %902 = vmatprep.subr.mxu0 0.0
  %903 = vmatpush1.msra.mxu0 0.0
  %904 = vmatprep.mubr.f32.mxu0 0.0
  %905 = vmatmul.mubr.f32.gmra.mrb[0].mxu0 %v760
  %v906 = vpop.f32.mrb[0].mxu0
  %v907 = vadd.f32 0.0, %v906
  %v908 = vpop.f32.mrb[0].mxu0
  %909 = vdwg.mxu0
  %v910 = vmax.f32 %v829, %v907
  %v911 = vld [vmem:[%s486] sm:$0xff]
  %v912 = vld [vmem:[%s486 + $0x8] sm:$0xff]
  %v913 = vld [vmem:[%s486 + $0x10] sm:$0xff]
  %v914 = vld [vmem:[%s486 + $0x18] sm:$0xff]
  %v915 = vmul.f32 %v733, %v911
  %v916 = vmul.f32 %v738, %v912
  %v917 = vmul.f32 %v743, %v913
  %v918 = vmul.f32 %v748, %v914
  %919 = vmatprep.subr.mxu0 0.0
  %920 = vmatpush1.msra.mxu0 %v915
  %921 = vmatprep.subr.mxu0 0.0
  %922 = vmatpush1.msra.mxu0 %v916
  %923 = vmatprep.subr.mxu0 0.0
  %924 = vmatpush1.msra.mxu0 %v917
  %925 = vmatprep.subr.mxu0 0.0
  %926 = vmatpush1.msra.mxu0 %v918
  %927 = vmatprep.subr.mxu0 0.0
  %928 = vmatpush1.msra.mxu0 0.0
  %929 = vmatprep.subr.mxu0 0.0
  %930 = vmatpush1.msra.mxu0 0.0
  %931 = vmatprep.subr.mxu0 0.0
  %932 = vmatpush1.msra.mxu0 0.0
  %933 = vmatprep.subr.mxu0 0.0
  %934 = vmatpush1.msra.mxu0 0.0
  %935 = vmatprep.subr.mxu0 0.0
  %936 = vmatpush1.msra.mxu0 0.0
  %937 = vmatprep.subr.mxu0 0.0
  %938 = vmatpush1.msra.mxu0 0.0
  %939 = vmatprep.subr.mxu0 0.0
  %940 = vmatpush1.msra.mxu0 0.0
  %941 = vmatprep.subr.mxu0 0.0
  %942 = vmatpush1.msra.mxu0 0.0
  %943 = vmatprep.subr.mxu0 0.0
  %944 = vmatpush1.msra.mxu0 0.0
  %945 = vmatprep.subr.mxu0 0.0
  %946 = vmatpush1.msra.mxu0 0.0
  %947 = vmatprep.subr.mxu0 0.0
  %948 = vmatpush1.msra.mxu0 0.0
  %949 = vmatprep.subr.mxu0 0.0
  %950 = vmatpush1.msra.mxu0 0.0
  %951 = vmatprep.subr.mxu0 0.0
  %952 = vmatpush1.msra.mxu0 0.0
  %953 = vmatprep.subr.mxu0 0.0
  %954 = vmatpush1.msra.mxu0 0.0
  %955 = vmatprep.subr.mxu0 0.0
  %956 = vmatpush1.msra.mxu0 0.0
  %957 = vmatprep.subr.mxu0 0.0
  %958 = vmatpush1.msra.mxu0 0.0
  %959 = vmatprep.subr.mxu0 0.0
  %960 = vmatpush1.msra.mxu0 0.0
  %961 = vmatprep.subr.mxu0 0.0
  %962 = vmatpush1.msra.mxu0 0.0
  %963 = vmatprep.subr.mxu0 0.0
  %964 = vmatpush1.msra.mxu0 0.0
  %965 = vmatprep.subr.mxu0 0.0
  %966 = vmatpush1.msra.mxu0 0.0
  %967 = vmatprep.subr.mxu0 0.0
  %968 = vmatpush1.msra.mxu0 0.0
  %969 = vmatprep.subr.mxu0 0.0
  %970 = vmatpush1.msra.mxu0 0.0
  %971 = vmatprep.subr.mxu0 0.0
  %972 = vmatpush1.msra.mxu0 0.0
  %973 = vmatprep.subr.mxu0 0.0
  %974 = vmatpush1.msra.mxu0 0.0
  %975 = vmatprep.subr.mxu0 0.0
  %976 = vmatpush1.msra.mxu0 0.0
  %977 = vmatprep.subr.mxu0 0.0
  %978 = vmatpush1.msra.mxu0 0.0
  %979 = vmatprep.subr.mxu0 0.0
  %980 = vmatpush1.msra.mxu0 0.0
  %981 = vmatprep.subr.mxu0 0.0
  %982 = vmatpush1.msra.mxu0 0.0
  %983 = vmatprep.mubr.f32.mxu0 0.0
  %984 = vmatmul.mubr.f32.gmra.mrb[0].mxu0 %v760
  %v985 = vpop.f32.mrb[0].mxu0
  %v986 = vadd.f32 0.0, %v985
  %v987 = vpop.f32.mrb[0].mxu0
  %988 = vdwg.mxu0
  %v989 = vmax.f32 %v910, %v986
  %v990 = vld [vmem:[%s605] sm:$0xff]
  %v991 = vld [vmem:[%s605 + $0x8] sm:$0xff]
  %v992 = vld [vmem:[%s605 + $0x10] sm:$0xff]
  %v993 = vld [vmem:[%s605 + $0x18] sm:$0xff]
  %v994 = vmul.f32 %v733, %v990
  %v995 = vmul.f32 %v738, %v991
  %v996 = vmul.f32 %v743, %v992
  %v997 = vmul.f32 %v748, %v993
  %998 = vmatprep.subr.mxu0 0.0
  %999 = vmatpush1.msra.mxu0 %v994
  %1000 = vmatprep.subr.mxu0 0.0
  %1001 = vmatpush1.msra.mxu0 %v995
  %1002 = vmatprep.subr.mxu0 0.0
  %1003 = vmatpush1.msra.mxu0 %v996
  %1004 = vmatprep.subr.mxu0 0.0
  %1005 = vmatpush1.msra.mxu0 %v997
  %1006 = vmatprep.subr.mxu0 0.0
  %1007 = vmatpush1.msra.mxu0 0.0
  %1008 = vmatprep.subr.mxu0 0.0
  %1009 = vmatpush1.msra.mxu0 0.0
  %1010 = vmatprep.subr.mxu0 0.0
  %1011 = vmatpush1.msra.mxu0 0.0
  %1012 = vmatprep.subr.mxu0 0.0
  %1013 = vmatpush1.msra.mxu0 0.0
  %1014 = vmatprep.subr.mxu0 0.0
  %1015 = vmatpush1.msra.mxu0 0.0
  %1016 = vmatprep.subr.mxu0 0.0
  %1017 = vmatpush1.msra.mxu0 0.0
  %1018 = vmatprep.subr.mxu0 0.0
  %1019 = vmatpush1.msra.mxu0 0.0
  %1020 = vmatprep.subr.mxu0 0.0
  %1021 = vmatpush1.msra.mxu0 0.0
  %1022 = vmatprep.subr.mxu0 0.0
  %1023 = vmatpush1.msra.mxu0 0.0
  %1024 = vmatprep.subr.mxu0 0.0
  %1025 = vmatpush1.msra.mxu0 0.0
  %1026 = vmatprep.subr.mxu0 0.0
  %1027 = vmatpush1.msra.mxu0 0.0
  %1028 = vmatprep.subr.mxu0 0.0
  %1029 = vmatpush1.msra.mxu0 0.0
  %1030 = vmatprep.subr.mxu0 0.0
  %1031 = vmatpush1.msra.mxu0 0.0
  %1032 = vmatprep.subr.mxu0 0.0
  %1033 = vmatpush1.msra.mxu0 0.0
  %1034 = vmatprep.subr.mxu0 0.0
  %1035 = vmatpush1.msra.mxu0 0.0
  %1036 = vmatprep.subr.mxu0 0.0
  %1037 = vmatpush1.msra.mxu0 0.0
  %1038 = vmatprep.subr.mxu0 0.0
  %1039 = vmatpush1.msra.mxu0 0.0
  %1040 = vmatprep.subr.mxu0 0.0
  %1041 = vmatpush1.msra.mxu0 0.0
  %1042 = vmatprep.subr.mxu0 0.0
  %1043 = vmatpush1.msra.mxu0 0.0
  %1044 = vmatprep.subr.mxu0 0.0
  %1045 = vmatpush1.msra.mxu0 0.0
  %1046 = vmatprep.subr.mxu0 0.0
  %1047 = vmatpush1.msra.mxu0 0.0
  %1048 = vmatprep.subr.mxu0 0.0
  %1049 = vmatpush1.msra.mxu0 0.0
  %1050 = vmatprep.subr.mxu0 0.0
  %1051 = vmatpush1.msra.mxu0 0.0
  %1052 = vmatprep.subr.mxu0 0.0
  %1053 = vmatpush1.msra.mxu0 0.0
  %1054 = vmatprep.subr.mxu0 0.0
  %1055 = vmatpush1.msra.mxu0 0.0
  %1056 = vmatprep.subr.mxu0 0.0
  %1057 = vmatpush1.msra.mxu0 0.0
  %1058 = vmatprep.subr.mxu0 0.0
  %1059 = vmatpush1.msra.mxu0 0.0
  %1060 = vmatprep.subr.mxu0 0.0
  %1061 = vmatpush1.msra.mxu0 0.0
  %1062 = vmatprep.mubr.f32.mxu0 0.0
  %1063 = vmatmul.mubr.f32.gmra.mrb[0].mxu0 %v760
  %v1064 = vpop.f32.mrb[0].mxu0
  %v1065 = vadd.f32 0.0, %v1064
  %v1066 = vpop.f32.mrb[0].mxu0
  %1067 = vdwg.mxu0
  %v1068 = vmax.f32 %v989, %v1065
  %v1069 = vsub.f32 %v829, %v1068
  %v1070 = vmul.f32 %v1069, 1.442695
  %v1071 = vpow.pop %v1070
  %vm1072 = vcmask 31744
  %v1074 = vsel %vm1072, %v54, 0
  %v1077 = vsel %vm1072, %v55, 0
  %v1080 = vsel %vm1072, %v56, 0
  %v1083 = vsel %vm1072, %v57, 0
  %vm1085 = vcmask 1043456
  %v1087 = vsel %vm1085, %v1071, 0
  %1089 = vmatprep.subr.mxu0 0.0
  %1090 = vmatpush1.msra.mxu0 %v1087
  %1091 = vmatprep.subr.mxu0 0.0
  %1092 = vmatpush1.msra.mxu0 0.0
  %1093 = vmatprep.subr.mxu0 0.0
  %1094 = vmatpush1.msra.mxu0 0.0
  %1095 = vmatprep.subr.mxu0 0.0
  %1096 = vmatpush1.msra.mxu0 0.0
  %1097 = vmatprep.subr.mxu0 0.0
  %1098 = vmatpush1.msra.mxu0 0.0
  %1099 = vmatprep.subr.mxu0 0.0
  %1100 = vmatpush1.msra.mxu0 0.0
  %1101 = vmatprep.subr.mxu0 0.0
  %1102 = vmatpush1.msra.mxu0 0.0
  %1103 = vmatprep.subr.mxu0 0.0
  %1104 = vmatpush1.msra.mxu0 0.0
  %1105 = vmatprep.subr.mxu0 0.0
  %1106 = vmatpush1.msra.mxu0 0.0
  %1107 = vmatprep.subr.mxu0 0.0
  %1108 = vmatpush1.msra.mxu0 0.0
  %1109 = vmatprep.subr.mxu0 0.0
  %1110 = vmatpush1.msra.mxu0 0.0
  %1111 = vmatprep.subr.mxu0 0.0
  %1112 = vmatpush1.msra.mxu0 0.0
  %1113 = vmatprep.subr.mxu0 0.0
  %1114 = vmatpush1.msra.mxu0 0.0
  %1115 = vmatprep.subr.mxu0 0.0
  %1116 = vmatpush1.msra.mxu0 0.0
  %1117 = vmatprep.subr.mxu0 0.0
  %1118 = vmatpush1.msra.mxu0 0.0
  %1119 = vmatprep.subr.mxu0 0.0
  %1120 = vmatpush1.msra.mxu0 0.0
  %1121 = vmatprep.subr.mxu0 0.0
  %1122 = vmatpush1.msra.mxu0 0.0
  %1123 = vmatprep.subr.mxu0 0.0
  %1124 = vmatpush1.msra.mxu0 0.0
  %1125 = vmatprep.subr.mxu0 0.0
  %1126 = vmatpush1.msra.mxu0 0.0
  %1127 = vmatprep.subr.mxu0 0.0
  %1128 = vmatpush1.msra.mxu0 0.0
  %1129 = vmatprep.subr.mxu0 0.0
  %1130 = vmatpush1.msra.mxu0 0.0
  %1131 = vmatprep.subr.mxu0 0.0
  %1132 = vmatpush1.msra.mxu0 0.0
  %1133 = vmatprep.subr.mxu0 0.0
  %1134 = vmatpush1.msra.mxu0 0.0
  %1135 = vmatprep.subr.mxu0 0.0
  %1136 = vmatpush1.msra.mxu0 0.0
  %1137 = vmatprep.subr.mxu0 0.0
  %1138 = vmatpush1.msra.mxu0 0.0
  %1139 = vmatprep.subr.mxu0 0.0
  %1140 = vmatpush1.msra.mxu0 0.0
  %1141 = vmatprep.subr.mxu0 0.0
  %1142 = vmatpush1.msra.mxu0 0.0
  %1143 = vmatprep.subr.mxu0 0.0
  %1144 = vmatpush1.msra.mxu0 0.0
  %1145 = vmatprep.subr.mxu0 0.0
  %1146 = vmatpush1.msra.mxu0 0.0
  %1147 = vmatprep.subr.mxu0 0.0
  %1148 = vmatpush1.msra.mxu0 0.0
  %1149 = vmatprep.subr.mxu0 0.0
  %1150 = vmatpush1.msra.mxu0 0.0
  %1151 = vmatprep.subr.mxu0 0.0
  %1152 = vmatpush1.msra.mxu0 0.0
  %1153 = vmatprep.mubr.f32.mxu0 0.0
  %1154 = vmatmul.mubr.f32.gmra.mrb[0].mxu0 %v1074
  %v1155 = vpop.f32.mrb[0].mxu0
  %v1156 = vadd.f32 0.0, %v1155
  %v1157 = vpop.f32.mrb[0].mxu0
  %1158 = vmatprep.mubr.f32.mxu0 0.0
  %1159 = vmatmul.mubr.f32.gmra.mrb[0].mxu0 %v1077
  %v1160 = vpop.f32.mrb[0].mxu0
  %v1161 = vadd.f32 0.0, %v1160
  %v1162 = vpop.f32.mrb[0].mxu0
  %1163 = vmatprep.mubr.f32.mxu0 0.0
  %1164 = vmatmul.mubr.f32.gmra.mrb[0].mxu0 %v1080
  %v1165 = vpop.f32.mrb[0].mxu0
  %v1166 = vadd.f32 0.0, %v1165
  %v1167 = vpop.f32.mrb[0].mxu0
  %1168 = vmatprep.mubr.f32.mxu0 0.0
  %1169 = vmatmul.mubr.f32.gmra.mrb[0].mxu0 %v1083
  %v1170 = vpop.f32.mrb[0].mxu0
  %v1171 = vadd.f32 0.0, %v1170
  %v1172 = vpop.f32.mrb[0].mxu0
  %1173 = vdwg.mxu0
  %v1174 = vld [vmem:[#allocation2 + $0x20] sm:$0xff]
  %v1175 = vld [vmem:[#allocation2 + $0x28] sm:$0xff]
  %v1176 = vld [vmem:[#allocation2 + $0x30] sm:$0xff]
  %v1177 = vld [vmem:[#allocation2 + $0x38] sm:$0xff]
  %v1178 = vmul.f32 %v1156, %v1174
  %v1179 = vmul.f32 %v1161, %v1175
  %v1180 = vmul.f32 %v1166, %v1176
  %v1181 = vmul.f32 %v1171, %v1177
  %v1182 = vsub.f32 %v907, %v1068
  %v1183 = vmul.f32 %v1182, 1.442695
  %v1184 = vpow.pop %v1183
  %v1185 = vadd.f32 %v1071, %v1184
  %v1187 = vsel %vm1085, %v1184, 0
  %1189 = vmatprep.subr.mxu0 0.0
  %1190 = vmatpush1.msra.mxu0 %v1187
  %1191 = vmatprep.subr.mxu0 0.0
  %1192 = vmatpush1.msra.mxu0 0.0
  %1193 = vmatprep.subr.mxu0 0.0
  %1194 = vmatpush1.msra.mxu0 0.0
  %1195 = vmatprep.subr.mxu0 0.0
  %1196 = vmatpush1.msra.mxu0 0.0
  %1197 = vmatprep.subr.mxu0 0.0
  %1198 = vmatpush1.msra.mxu0 0.0
  %1199 = vmatprep.subr.mxu0 0.0
  %1200 = vmatpush1.msra.mxu0 0.0
  %1201 = vmatprep.subr.mxu0 0.0
  %1202 = vmatpush1.msra.mxu0 0.0
  %1203 = vmatprep.subr.mxu0 0.0
  %1204 = vmatpush1.msra.mxu0 0.0
  %1205 = vmatprep.subr.mxu0 0.0
  %1206 = vmatpush1.msra.mxu0 0.0
  %1207 = vmatprep.subr.mxu0 0.0
  %1208 = vmatpush1.msra.mxu0 0.0
  %1209 = vmatprep.subr.mxu0 0.0
  %1210 = vmatpush1.msra.mxu0 0.0
  %1211 = vmatprep.subr.mxu0 0.0
  %1212 = vmatpush1.msra.mxu0 0.0
  %1213 = vmatprep.subr.mxu0 0.0
  %1214 = vmatpush1.msra.mxu0 0.0
  %1215 = vmatprep.subr.mxu0 0.0
  %1216 = vmatpush1.msra.mxu0 0.0
  %1217 = vmatprep.subr.mxu0 0.0
  %1218 = vmatpush1.msra.mxu0 0.0
  %1219 = vmatprep.subr.mxu0 0.0
  %1220 = vmatpush1.msra.mxu0 0.0
  %1221 = vmatprep.subr.mxu0 0.0
  %1222 = vmatpush1.msra.mxu0 0.0
  %1223 = vmatprep.subr.mxu0 0.0
  %1224 = vmatpush1.msra.mxu0 0.0
  %1225 = vmatprep.subr.mxu0 0.0
  %1226 = vmatpush1.msra.mxu0 0.0
  %1227 = vmatprep.subr.mxu0 0.0
  %1228 = vmatpush1.msra.mxu0 0.0
  %1229 = vmatprep.subr.mxu0 0.0
  %1230 = vmatpush1.msra.mxu0 0.0
  %1231 = vmatprep.subr.mxu0 0.0
  %1232 = vmatpush1.msra.mxu0 0.0
  %1233 = vmatprep.subr.mxu0 0.0
  %1234 = vmatpush1.msra.mxu0 0.0
  %1235 = vmatprep.subr.mxu0 0.0
  %1236 = vmatpush1.msra.mxu0 0.0
  %1237 = vmatprep.subr.mxu0 0.0
  %1238 = vmatpush1.msra.mxu0 0.0
  %1239 = vmatprep.subr.mxu0 0.0
  %1240 = vmatpush1.msra.mxu0 0.0
  %1241 = vmatprep.subr.mxu0 0.0
  %1242 = vmatpush1.msra.mxu0 0.0
  %1243 = vmatprep.subr.mxu0 0.0
  %1244 = vmatpush1.msra.mxu0 0.0
  %1245 = vmatprep.subr.mxu0 0.0
  %1246 = vmatpush1.msra.mxu0 0.0
  %1247 = vmatprep.subr.mxu0 0.0
  %1248 = vmatpush1.msra.mxu0 0.0
  %1249 = vmatprep.subr.mxu0 0.0
  %1250 = vmatpush1.msra.mxu0 0.0
  %1251 = vmatprep.subr.mxu0 0.0
  %1252 = vmatpush1.msra.mxu0 0.0
  %1253 = vmatprep.mubr.f32.mxu0 0.0
  %1254 = vmatmul.mubr.f32.gmra.mrb[0].mxu0 %v1074
  %v1255 = vpop.f32.mrb[0].mxu0
  %v1256 = vadd.f32 0.0, %v1255
  %v1257 = vpop.f32.mrb[0].mxu0
  %1258 = vmatprep.mubr.f32.mxu0 0.0
  %1259 = vmatmul.mubr.f32.gmra.mrb[0].mxu0 %v1077
  %v1260 = vpop.f32.mrb[0].mxu0
  %v1261 = vadd.f32 0.0, %v1260
  %v1262 = vpop.f32.mrb[0].mxu0
  %1263 = vmatprep.mubr.f32.mxu0 0.0
  %1264 = vmatmul.mubr.f32.gmra.mrb[0].mxu0 %v1080
  %v1265 = vpop.f32.mrb[0].mxu0
  %v1266 = vadd.f32 0.0, %v1265
  %v1267 = vpop.f32.mrb[0].mxu0
  %1268 = vmatprep.mubr.f32.mxu0 0.0
  %1269 = vmatmul.mubr.f32.gmra.mrb[0].mxu0 %v1083
  %v1270 = vpop.f32.mrb[0].mxu0
  %v1271 = vadd.f32 0.0, %v1270
  %v1272 = vpop.f32.mrb[0].mxu0
  %1273 = vdwg.mxu0
  %v1274 = vld [vmem:[%s367 + $0x20] sm:$0xff]
  %v1275 = vld [vmem:[%s367 + $0x28] sm:$0xff]
  %v1276 = vld [vmem:[%s367 + $0x30] sm:$0xff]
  %v1277 = vld [vmem:[%s367 + $0x38] sm:$0xff]
  %v1278 = vmul.f32 %v1256, %v1274
  %v1279 = vmul.f32 %v1261, %v1275
  %v1280 = vmul.f32 %v1266, %v1276
  %v1281 = vmul.f32 %v1271, %v1277
  %v1282 = vadd.f32 %v1178, %v1278
  %v1283 = vadd.f32 %v1179, %v1279
  %v1284 = vadd.f32 %v1180, %v1280
  %v1285 = vadd.f32 %v1181, %v1281
  %v1286 = vsub.f32 %v986, %v1068
  %v1287 = vmul.f32 %v1286, 1.442695
  %v1288 = vpow.pop %v1287
  %v1289 = vadd.f32 %v1185, %v1288
  %v1291 = vsel %vm1085, %v1288, 0
  %1293 = vmatprep.subr.mxu0 0.0
  %1294 = vmatpush1.msra.mxu0 %v1291
  %1295 = vmatprep.subr.mxu0 0.0
  %1296 = vmatpush1.msra.mxu0 0.0
  %1297 = vmatprep.subr.mxu0 0.0
  %1298 = vmatpush1.msra.mxu0 0.0
  %1299 = vmatprep.subr.mxu0 0.0
  %1300 = vmatpush1.msra.mxu0 0.0
  %1301 = vmatprep.subr.mxu0 0.0
  %1302 = vmatpush1.msra.mxu0 0.0
  %1303 = vmatprep.subr.mxu0 0.0
  %1304 = vmatpush1.msra.mxu0 0.0
  %1305 = vmatprep.subr.mxu0 0.0
  %1306 = vmatpush1.msra.mxu0 0.0
  %1307 = vmatprep.subr.mxu0 0.0
  %1308 = vmatpush1.msra.mxu0 0.0
  %1309 = vmatprep.subr.mxu0 0.0
  %1310 = vmatpush1.msra.mxu0 0.0
  %1311 = vmatprep.subr.mxu0 0.0
  %1312 = vmatpush1.msra.mxu0 0.0
  %1313 = vmatprep.subr.mxu0 0.0
  %1314 = vmatpush1.msra.mxu0 0.0
  %1315 = vmatprep.subr.mxu0 0.0
  %1316 = vmatpush1.msra.mxu0 0.0
  %1317 = vmatprep.subr.mxu0 0.0
  %1318 = vmatpush1.msra.mxu0 0.0
  %1319 = vmatprep.subr.mxu0 0.0
  %1320 = vmatpush1.msra.mxu0 0.0
  %1321 = vmatprep.subr.mxu0 0.0
  %1322 = vmatpush1.msra.mxu0 0.0
  %1323 = vmatprep.subr.mxu0 0.0
  %1324 = vmatpush1.msra.mxu0 0.0
  %1325 = vmatprep.subr.mxu0 0.0
  %1326 = vmatpush1.msra.mxu0 0.0
  %1327 = vmatprep.subr.mxu0 0.0
  %1328 = vmatpush1.msra.mxu0 0.0
  %1329 = vmatprep.subr.mxu0 0.0
  %1330 = vmatpush1.msra.mxu0 0.0
  %1331 = vmatprep.subr.mxu0 0.0
  %1332 = vmatpush1.msra.mxu0 0.0
  %1333 = vmatprep.subr.mxu0 0.0
  %1334 = vmatpush1.msra.mxu0 0.0
  %1335 = vmatprep.subr.mxu0 0.0
  %1336 = vmatpush1.msra.mxu0 0.0
  %1337 = vmatprep.subr.mxu0 0.0
  %1338 = vmatpush1.msra.mxu0 0.0
  %1339 = vmatprep.subr.mxu0 0.0
  %1340 = vmatpush1.msra.mxu0 0.0
  %1341 = vmatprep.subr.mxu0 0.0
  %1342 = vmatpush1.msra.mxu0 0.0
  %1343 = vmatprep.subr.mxu0 0.0
  %1344 = vmatpush1.msra.mxu0 0.0
  %1345 = vmatprep.subr.mxu0 0.0
  %1346 = vmatpush1.msra.mxu0 0.0
  %1347 = vmatprep.subr.mxu0 0.0
  %1348 = vmatpush1.msra.mxu0 0.0
  %1349 = vmatprep.subr.mxu0 0.0
  %1350 = vmatpush1.msra.mxu0 0.0
  %1351 = vmatprep.subr.mxu0 0.0
  %1352 = vmatpush1.msra.mxu0 0.0
  %1353 = vmatprep.subr.mxu0 0.0
  %1354 = vmatpush1.msra.mxu0 0.0
  %1355 = vmatprep.subr.mxu0 0.0
  %1356 = vmatpush1.msra.mxu0 0.0
  %1357 = vmatprep.mubr.f32.mxu0 0.0
  %1358 = vmatmul.mubr.f32.gmra.mrb[0].mxu0 %v1074
  %v1359 = vpop.f32.mrb[0].mxu0
  %v1360 = vadd.f32 0.0, %v1359
  %v1361 = vpop.f32.mrb[0].mxu0
  %1362 = vmatprep.mubr.f32.mxu0 0.0
  %1363 = vmatmul.mubr.f32.gmra.mrb[0].mxu0 %v1077
  %v1364 = vpop.f32.mrb[0].mxu0
  %v1365 = vadd.f32 0.0, %v1364
  %v1366 = vpop.f32.mrb[0].mxu0
  %1367 = vmatprep.mubr.f32.mxu0 0.0
  %1368 = vmatmul.mubr.f32.gmra.mrb[0].mxu0 %v1080
  %v1369 = vpop.f32.mrb[0].mxu0
  %v1370 = vadd.f32 0.0, %v1369
  %v1371 = vpop.f32.mrb[0].mxu0
  %1372 = vmatprep.mubr.f32.mxu0 0.0
  %1373 = vmatmul.mubr.f32.gmra.mrb[0].mxu0 %v1083
  %v1374 = vpop.f32.mrb[0].mxu0
  %v1375 = vadd.f32 0.0, %v1374
  %v1376 = vpop.f32.mrb[0].mxu0
  %1377 = vdwg.mxu0
  %v1378 = vld [vmem:[%s486 + $0x20] sm:$0xff]
  %v1379 = vld [vmem:[%s486 + $0x28] sm:$0xff]
  %v1380 = vld [vmem:[%s486 + $0x30] sm:$0xff]
  %v1381 = vld [vmem:[%s486 + $0x38] sm:$0xff]
  %v1382 = vmul.f32 %v1360, %v1378
  %v1383 = vmul.f32 %v1365, %v1379
  %v1384 = vmul.f32 %v1370, %v1380
  %v1385 = vmul.f32 %v1375, %v1381
  %v1386 = vadd.f32 %v1282, %v1382
  %v1387 = vadd.f32 %v1283, %v1383
  %v1388 = vadd.f32 %v1284, %v1384
  %v1389 = vadd.f32 %v1285, %v1385
  %v1390 = vsub.f32 %v1065, %v1068
  %v1391 = vmul.f32 %v1390, 1.442695
  %v1392 = vpow.pop %v1391
  %v1393 = vadd.f32 %v1289, %v1392
  %v1395 = vsel %vm1085, %v1392, 0
  %1397 = vmatprep.subr.mxu0 0.0
  %1398 = vmatpush1.msra.mxu0 %v1395
  %1399 = vmatprep.subr.mxu0 0.0
  %1400 = vmatpush1.msra.mxu0 0.0
  %1401 = vmatprep.subr.mxu0 0.0
  %1402 = vmatpush1.msra.mxu0 0.0
  %1403 = vmatprep.subr.mxu0 0.0
  %1404 = vmatpush1.msra.mxu0 0.0
  %1405 = vmatprep.subr.mxu0 0.0
  %1406 = vmatpush1.msra.mxu0 0.0
  %1407 = vmatprep.subr.mxu0 0.0
  %1408 = vmatpush1.msra.mxu0 0.0
  %1409 = vmatprep.subr.mxu0 0.0
  %1410 = vmatpush1.msra.mxu0 0.0
  %1411 = vmatprep.subr.mxu0 0.0
  %1412 = vmatpush1.msra.mxu0 0.0
  %1413 = vmatprep.subr.mxu0 0.0
  %1414 = vmatpush1.msra.mxu0 0.0
  %1415 = vmatprep.subr.mxu0 0.0
  %1416 = vmatpush1.msra.mxu0 0.0
  %1417 = vmatprep.subr.mxu0 0.0
  %1418 = vmatpush1.msra.mxu0 0.0
  %1419 = vmatprep.subr.mxu0 0.0
  %1420 = vmatpush1.msra.mxu0 0.0
  %1421 = vmatprep.subr.mxu0 0.0
  %1422 = vmatpush1.msra.mxu0 0.0
  %1423 = vmatprep.subr.mxu0 0.0
  %1424 = vmatpush1.msra.mxu0 0.0
  %1425 = vmatprep.subr.mxu0 0.0
  %1426 = vmatpush1.msra.mxu0 0.0
  %1427 = vmatprep.subr.mxu0 0.0
  %1428 = vmatpush1.msra.mxu0 0.0
  %1429 = vmatprep.subr.mxu0 0.0
  %1430 = vmatpush1.msra.mxu0 0.0
  %1431 = vmatprep.subr.mxu0 0.0
  %1432 = vmatpush1.msra.mxu0 0.0
  %1433 = vmatprep.subr.mxu0 0.0
  %1434 = vmatpush1.msra.mxu0 0.0
  %1435 = vmatprep.subr.mxu0 0.0
  %1436 = vmatpush1.msra.mxu0 0.0
  %1437 = vmatprep.subr.mxu0 0.0
  %1438 = vmatpush1.msra.mxu0 0.0
  %1439 = vmatprep.subr.mxu0 0.0
  %1440 = vmatpush1.msra.mxu0 0.0
  %1441 = vmatprep.subr.mxu0 0.0
  %1442 = vmatpush1.msra.mxu0 0.0
  %1443 = vmatprep.subr.mxu0 0.0
  %1444 = vmatpush1.msra.mxu0 0.0
  %1445 = vmatprep.subr.mxu0 0.0
  %1446 = vmatpush1.msra.mxu0 0.0
  %1447 = vmatprep.subr.mxu0 0.0
  %1448 = vmatpush1.msra.mxu0 0.0
  %1449 = vmatprep.subr.mxu0 0.0
  %1450 = vmatpush1.msra.mxu0 0.0
  %1451 = vmatprep.subr.mxu0 0.0
  %1452 = vmatpush1.msra.mxu0 0.0
  %1453 = vmatprep.subr.mxu0 0.0
  %1454 = vmatpush1.msra.mxu0 0.0
  %1455 = vmatprep.subr.mxu0 0.0
  %1456 = vmatpush1.msra.mxu0 0.0
  %1457 = vmatprep.subr.mxu0 0.0
  %1458 = vmatpush1.msra.mxu0 0.0
  %1459 = vmatprep.subr.mxu0 0.0
  %1460 = vmatpush1.msra.mxu0 0.0
  %1461 = vmatprep.mubr.f32.mxu0 0.0
  %1462 = vmatmul.mubr.f32.gmra.mrb[0].mxu0 %v1074
  %v1463 = vpop.f32.mrb[0].mxu0
  %v1464 = vadd.f32 0.0, %v1463
  %v1465 = vpop.f32.mrb[0].mxu0
  %1466 = vmatprep.mubr.f32.mxu0 0.0
  %1467 = vmatmul.mubr.f32.gmra.mrb[0].mxu0 %v1077
  %v1468 = vpop.f32.mrb[0].mxu0
  %v1469 = vadd.f32 0.0, %v1468
  %v1470 = vpop.f32.mrb[0].mxu0
  %1471 = vmatprep.mubr.f32.mxu0 0.0
  %1472 = vmatmul.mubr.f32.gmra.mrb[0].mxu0 %v1080
  %v1473 = vpop.f32.mrb[0].mxu0
  %v1474 = vadd.f32 0.0, %v1473
  %v1475 = vpop.f32.mrb[0].mxu0
  %1476 = vmatprep.mubr.f32.mxu0 0.0
  %1477 = vmatmul.mubr.f32.gmra.mrb[0].mxu0 %v1083
  %v1478 = vpop.f32.mrb[0].mxu0
  %v1479 = vadd.f32 0.0, %v1478
  %v1480 = vpop.f32.mrb[0].mxu0
  %1481 = vdwg.mxu0
  %v1482 = vld [vmem:[%s605 + $0x20] sm:$0xff]
  %v1483 = vld [vmem:[%s605 + $0x28] sm:$0xff]
  %v1484 = vld [vmem:[%s605 + $0x30] sm:$0xff]
  %v1485 = vld [vmem:[%s605 + $0x38] sm:$0xff]
  %v1486 = vmul.f32 %v1464, %v1482
  %v1487 = vmul.f32 %v1469, %v1483
  %v1488 = vmul.f32 %v1474, %v1484
  %v1489 = vmul.f32 %v1479, %v1485
  %v1490 = vadd.f32 %v1386, %v1486
  %v1491 = vadd.f32 %v1387, %v1487
  %v1492 = vadd.f32 %v1388, %v1488
  %v1493 = vadd.f32 %v1389, %v1489
  %v1494 = vrcp.pop %v1393
  %v1495 = vmul.f32 %v1393, %v1494
  %v1496 = vsub.f32 2.0, %v1495
  %v1497 = vmul.f32 %v1494, %v1496
  %v1499 = vsel %vm1085, %v1497, 0
  %1501 = vmatprep.subr.mxu0 0.0
  %1502 = vmatpush1.msra.mxu0 %v1499
  %1503 = vmatprep.subr.mxu0 0.0
  %1504 = vmatpush1.msra.mxu0 0.0
  %1505 = vmatprep.subr.mxu0 0.0
  %1506 = vmatpush1.msra.mxu0 0.0
  %1507 = vmatprep.subr.mxu0 0.0
  %1508 = vmatpush1.msra.mxu0 0.0
  %1509 = vmatprep.subr.mxu0 0.0
  %1510 = vmatpush1.msra.mxu0 0.0
  %1511 = vmatprep.subr.mxu0 0.0
  %1512 = vmatpush1.msra.mxu0 0.0
  %1513 = vmatprep.subr.mxu0 0.0
  %1514 = vmatpush1.msra.mxu0 0.0
  %1515 = vmatprep.subr.mxu0 0.0
  %1516 = vmatpush1.msra.mxu0 0.0
  %1517 = vmatprep.subr.mxu0 0.0
  %1518 = vmatpush1.msra.mxu0 0.0
  %1519 = vmatprep.subr.mxu0 0.0
  %1520 = vmatpush1.msra.mxu0 0.0
  %1521 = vmatprep.subr.mxu0 0.0
  %1522 = vmatpush1.msra.mxu0 0.0
  %1523 = vmatprep.subr.mxu0 0.0
  %1524 = vmatpush1.msra.mxu0 0.0
  %1525 = vmatprep.subr.mxu0 0.0
  %1526 = vmatpush1.msra.mxu0 0.0
  %1527 = vmatprep.subr.mxu0 0.0
  %1528 = vmatpush1.msra.mxu0 0.0
  %1529 = vmatprep.subr.mxu0 0.0
  %1530 = vmatpush1.msra.mxu0 0.0
  %1531 = vmatprep.subr.mxu0 0.0
  %1532 = vmatpush1.msra.mxu0 0.0
  %1533 = vmatprep.subr.mxu0 0.0
  %1534 = vmatpush1.msra.mxu0 0.0
  %1535 = vmatprep.subr.mxu0 0.0
  %1536 = vmatpush1.msra.mxu0 0.0
  %1537 = vmatprep.subr.mxu0 0.0
  %1538 = vmatpush1.msra.mxu0 0.0
  %1539 = vmatprep.subr.mxu0 0.0
  %1540 = vmatpush1.msra.mxu0 0.0
  %1541 = vmatprep.subr.mxu0 0.0
  %1542 = vmatpush1.msra.mxu0 0.0
  %1543 = vmatprep.subr.mxu0 0.0
  %1544 = vmatpush1.msra.mxu0 0.0
  %1545 = vmatprep.subr.mxu0 0.0
  %1546 = vmatpush1.msra.mxu0 0.0
  %1547 = vmatprep.subr.mxu0 0.0
  %1548 = vmatpush1.msra.mxu0 0.0
  %1549 = vmatprep.subr.mxu0 0.0
  %1550 = vmatpush1.msra.mxu0 0.0
  %1551 = vmatprep.subr.mxu0 0.0
  %1552 = vmatpush1.msra.mxu0 0.0
  %1553 = vmatprep.subr.mxu0 0.0
  %1554 = vmatpush1.msra.mxu0 0.0
  %1555 = vmatprep.subr.mxu0 0.0
  %1556 = vmatpush1.msra.mxu0 0.0
  %1557 = vmatprep.subr.mxu0 0.0
  %1558 = vmatpush1.msra.mxu0 0.0
  %1559 = vmatprep.subr.mxu0 0.0
  %1560 = vmatpush1.msra.mxu0 0.0
  %1561 = vmatprep.subr.mxu0 0.0
  %1562 = vmatpush1.msra.mxu0 0.0
  %1563 = vmatprep.subr.mxu0 0.0
  %1564 = vmatpush1.msra.mxu0 0.0
  %1565 = vmatprep.mubr.f32.mxu0 0.0
  %1566 = vmatmul.mubr.f32.gmra.mrb[0].mxu0 %v1074
  %v1567 = vpop.f32.mrb[0].mxu0
  %v1568 = vadd.f32 0.0, %v1567
  %v1569 = vpop.f32.mrb[0].mxu0
  %1570 = vmatprep.mubr.f32.mxu0 0.0
  %1571 = vmatmul.mubr.f32.gmra.mrb[0].mxu0 %v1077
  %v1572 = vpop.f32.mrb[0].mxu0
  %v1573 = vadd.f32 0.0, %v1572
  %v1574 = vpop.f32.mrb[0].mxu0
  %1575 = vmatprep.mubr.f32.mxu0 0.0
  %1576 = vmatmul.mubr.f32.gmra.mrb[0].mxu0 %v1080
  %v1577 = vpop.f32.mrb[0].mxu0
  %v1578 = vadd.f32 0.0, %v1577
  %v1579 = vpop.f32.mrb[0].mxu0
  %1580 = vmatprep.mubr.f32.mxu0 0.0
  %1581 = vmatmul.mubr.f32.gmra.mrb[0].mxu0 %v1083
  %v1582 = vpop.f32.mrb[0].mxu0
  %v1583 = vadd.f32 0.0, %v1582
  %v1584 = vpop.f32.mrb[0].mxu0
  %1585 = vdwg.mxu0
  %v1586 = vmul.f32 %v1490, %v1568
  %v1587 = vmul.f32 %v1491, %v1573
  %v1588 = vmul.f32 %v1492, %v1578
  %v1589 = vmul.f32 %v1493, %v1583
  %1591 = vset.pattern.permute.xlu0 0
  %1592 = vperm.xlu0 %1591, %v626
  %v1593 = vpop.permute.xlu0 %1592
  %1596 = vset.pattern.permute.xlu0 0
  %1597 = vperm.xlu0 %1596, %v627
  %v1598 = vpop.permute.xlu0 %1597
  %1601 = vset.pattern.permute.xlu0 0
  %1602 = vperm.xlu0 %1601, %v628
  %v1603 = vpop.permute.xlu0 %1602
  %1606 = vset.pattern.permute.xlu0 0
  %1607 = vperm.xlu0 %1606, %v629
  %v1608 = vpop.permute.xlu0 %1607
  %v1611 = vsel %vm118, %v622, 0
  %v1614 = vsel %vm118, %v623, 0
  %v1617 = vsel %vm118, %v624, 0
  %v1620 = vsel %vm118, %v625, 0
  %1622 = vmatprep.subr.mxu0 0.0
  %1623 = vmatpush1.msra.mxu0 %v1586
  %1624 = vmatprep.subr.mxu0 0.0
  %1625 = vmatpush1.msra.mxu0 %v1587
  %1626 = vmatprep.subr.mxu0 0.0
  %1627 = vmatpush1.msra.mxu0 %v1588
  %1628 = vmatprep.subr.mxu0 0.0
  %1629 = vmatpush1.msra.mxu0 %v1589
  %1630 = vmatprep.subr.mxu0 0.0
  %1631 = vmatpush1.msra.mxu0 0.0
  %1632 = vmatprep.subr.mxu0 0.0
  %1633 = vmatpush1.msra.mxu0 0.0
  %1634 = vmatprep.subr.mxu0 0.0
  %1635 = vmatpush1.msra.mxu0 0.0
  %1636 = vmatprep.subr.mxu0 0.0
  %1637 = vmatpush1.msra.mxu0 0.0
  %1638 = vmatprep.subr.mxu0 0.0
  %1639 = vmatpush1.msra.mxu0 0.0
  %1640 = vmatprep.subr.mxu0 0.0
  %1641 = vmatpush1.msra.mxu0 0.0
  %1642 = vmatprep.subr.mxu0 0.0
  %1643 = vmatpush1.msra.mxu0 0.0
  %1644 = vmatprep.subr.mxu0 0.0
  %1645 = vmatpush1.msra.mxu0 0.0
  %1646 = vmatprep.subr.mxu0 0.0
  %1647 = vmatpush1.msra.mxu0 0.0
  %1648 = vmatprep.subr.mxu0 0.0
  %1649 = vmatpush1.msra.mxu0 0.0
  %1650 = vmatprep.subr.mxu0 0.0
  %1651 = vmatpush1.msra.mxu0 0.0
  %1652 = vmatprep.subr.mxu0 0.0
  %1653 = vmatpush1.msra.mxu0 0.0
  %1654 = vmatprep.subr.mxu0 0.0
  %1655 = vmatpush1.msra.mxu0 0.0
  %1656 = vmatprep.subr.mxu0 0.0
  %1657 = vmatpush1.msra.mxu0 0.0
  %1658 = vmatprep.subr.mxu0 0.0
  %1659 = vmatpush1.msra.mxu0 0.0
  %1660 = vmatprep.subr.mxu0 0.0
  %1661 = vmatpush1.msra.mxu0 0.0
  %1662 = vmatprep.subr.mxu0 0.0
  %1663 = vmatpush1.msra.mxu0 0.0
  %1664 = vmatprep.subr.mxu0 0.0
  %1665 = vmatpush1.msra.mxu0 0.0
  %1666 = vmatprep.subr.mxu0 0.0
  %1667 = vmatpush1.msra.mxu0 0.0
  %1668 = vmatprep.subr.mxu0 0.0
  %1669 = vmatpush1.msra.mxu0 0.0
  %1670 = vmatprep.subr.mxu0 0.0
  %1671 = vmatpush1.msra.mxu0 0.0
  %1672 = vmatprep.subr.mxu0 0.0
  %1673 = vmatpush1.msra.mxu0 0.0
  %1674 = vmatprep.subr.mxu0 0.0
  %1675 = vmatpush1.msra.mxu0 0.0
  %1676 = vmatprep.subr.mxu0 0.0
  %1677 = vmatpush1.msra.mxu0 0.0
  %1678 = vmatprep.subr.mxu0 0.0
  %1679 = vmatpush1.msra.mxu0 0.0
  %1680 = vmatprep.subr.mxu0 0.0
  %1681 = vmatpush1.msra.mxu0 0.0
  %1682 = vmatprep.subr.mxu0 0.0
  %1683 = vmatpush1.msra.mxu0 0.0
  %1684 = vmatprep.subr.mxu0 0.0
  %1685 = vmatpush1.msra.mxu0 0.0
  %1686 = vmatprep.mubr.f32.mxu0 0.0
  %1687 = vmatmul.mubr.f32.gmra.mrb[0].mxu0 %v1611
  %v1688 = vpop.f32.mrb[0].mxu0
  %v1689 = vadd.f32 %v1593, %v1688
  %v1690 = vpop.f32.mrb[0].mxu0
  %1691 = vmatprep.mubr.f32.mxu0 0.0
  %1692 = vmatmul.mubr.f32.gmra.mrb[0].mxu0 %v1614
  %v1693 = vpop.f32.mrb[0].mxu0
  %v1694 = vadd.f32 %v1598, %v1693
  %v1695 = vpop.f32.mrb[0].mxu0
  %1696 = vmatprep.mubr.f32.mxu0 0.0
  %1697 = vmatmul.mubr.f32.gmra.mrb[0].mxu0 %v1617
  %v1698 = vpop.f32.mrb[0].mxu0
  %v1699 = vadd.f32 %v1603, %v1698
  %v1700 = vpop.f32.mrb[0].mxu0
  %1701 = vmatprep.mubr.f32.mxu0 0.0
  %1702 = vmatmul.mubr.f32.gmra.mrb[0].mxu0 %v1620
  %v1703 = vpop.f32.mrb[0].mxu0
  %v1704 = vadd.f32 %v1608, %v1703
  %v1705 = vpop.f32.mrb[0].mxu0
  %1706 = vdwg.mxu0
  %v1707 = vadd.f32 %v1689, %v630
  %v1708 = vadd.f32 %v1694, %v631
  %v1709 = vadd.f32 %v1699, %v632
  %v1710 = vadd.f32 %v1704, %v633
  %v1712 = vsel %vm118, 1.0, 0
  %1714 = vmatprep.subr.mxu0 0.0
  %1715 = vmatpush1.msra.mxu0 %v1707
  %1716 = vmatprep.subr.mxu0 0.0
  %1717 = vmatpush1.msra.mxu0 %v1708
  %1718 = vmatprep.subr.mxu0 0.0
  %1719 = vmatpush1.msra.mxu0 %v1709
  %1720 = vmatprep.subr.mxu0 0.0
  %1721 = vmatpush1.msra.mxu0 %v1710
  %1722 = vmatprep.subr.mxu0 0.0
  %1723 = vmatpush1.msra.mxu0 0.0
  %1724 = vmatprep.subr.mxu0 0.0
  %1725 = vmatpush1.msra.mxu0 0.0
  %1726 = vmatprep.subr.mxu0 0.0
  %1727 = vmatpush1.msra.mxu0 0.0
  %1728 = vmatprep.subr.mxu0 0.0
  %1729 = vmatpush1.msra.mxu0 0.0
  %1730 = vmatprep.subr.mxu0 0.0
  %1731 = vmatpush1.msra.mxu0 0.0
  %1732 = vmatprep.subr.mxu0 0.0
  %1733 = vmatpush1.msra.mxu0 0.0
  %1734 = vmatprep.subr.mxu0 0.0
  %1735 = vmatpush1.msra.mxu0 0.0
  %1736 = vmatprep.subr.mxu0 0.0
  %1737 = vmatpush1.msra.mxu0 0.0
  %1738 = vmatprep.subr.mxu0 0.0
  %1739 = vmatpush1.msra.mxu0 0.0
  %1740 = vmatprep.subr.mxu0 0.0
  %1741 = vmatpush1.msra.mxu0 0.0
  %1742 = vmatprep.subr.mxu0 0.0
  %1743 = vmatpush1.msra.mxu0 0.0
  %1744 = vmatprep.subr.mxu0 0.0
  %1745 = vmatpush1.msra.mxu0 0.0
  %1746 = vmatprep.subr.mxu0 0.0
  %1747 = vmatpush1.msra.mxu0 0.0
  %1748 = vmatprep.subr.mxu0 0.0
  %1749 = vmatpush1.msra.mxu0 0.0
  %1750 = vmatprep.subr.mxu0 0.0
  %1751 = vmatpush1.msra.mxu0 0.0
  %1752 = vmatprep.subr.mxu0 0.0
  %1753 = vmatpush1.msra.mxu0 0.0
  %1754 = vmatprep.subr.mxu0 0.0
  %1755 = vmatpush1.msra.mxu0 0.0
  %1756 = vmatprep.subr.mxu0 0.0
  %1757 = vmatpush1.msra.mxu0 0.0
  %1758 = vmatprep.subr.mxu0 0.0
  %1759 = vmatpush1.msra.mxu0 0.0
  %1760 = vmatprep.subr.mxu0 0.0
  %1761 = vmatpush1.msra.mxu0 0.0
  %1762 = vmatprep.subr.mxu0 0.0
  %1763 = vmatpush1.msra.mxu0 0.0
  %1764 = vmatprep.subr.mxu0 0.0
  %1765 = vmatpush1.msra.mxu0 0.0
  %1766 = vmatprep.subr.mxu0 0.0
  %1767 = vmatpush1.msra.mxu0 0.0
  %1768 = vmatprep.subr.mxu0 0.0
  %1769 = vmatpush1.msra.mxu0 0.0
  %1770 = vmatprep.subr.mxu0 0.0
  %1771 = vmatpush1.msra.mxu0 0.0
  %1772 = vmatprep.subr.mxu0 0.0
  %1773 = vmatpush1.msra.mxu0 0.0
  %1774 = vmatprep.subr.mxu0 0.0
  %1775 = vmatpush1.msra.mxu0 0.0
  %1776 = vmatprep.subr.mxu0 0.0
  %1777 = vmatpush1.msra.mxu0 0.0
  %1778 = vmatprep.mubr.f32.mxu0 0.0
  %1779 = vmatmul.mubr.f32.gmra.mrb[0].mxu0 %v1712
  %v1780 = vpop.f32.mrb[0].mxu0
  %v1781 = vadd.f32 0.0, %v1780
  %v1782 = vpop.f32.mrb[0].mxu0
  %1783 = vdwg.mxu0
  %v1784 = vmul.f32 %v1781, 0.03125
  %v1785 = vmul.f32 %v1707, %v1707
  %v1786 = vmul.f32 %v1708, %v1708
  %v1787 = vmul.f32 %v1709, %v1709
  %v1788 = vmul.f32 %v1710, %v1710
  %1789 = vmatprep.subr.mxu0 0.0
  %1790 = vmatpush1.msra.mxu0 %v1785
  %1791 = vmatprep.subr.mxu0 0.0
  %1792 = vmatpush1.msra.mxu0 %v1786
  %1793 = vmatprep.subr.mxu0 0.0
  %1794 = vmatpush1.msra.mxu0 %v1787
  %1795 = vmatprep.subr.mxu0 0.0
  %1796 = vmatpush1.msra.mxu0 %v1788
  %1797 = vmatprep.subr.mxu0 0.0
  %1798 = vmatpush1.msra.mxu0 0.0
  %1799 = vmatprep.subr.mxu0 0.0
  %1800 = vmatpush1.msra.mxu0 0.0
  %1801 = vmatprep.subr.mxu0 0.0
  %1802 = vmatpush1.msra.mxu0 0.0
  %1803 = vmatprep.subr.mxu0 0.0
  %1804 = vmatpush1.msra.mxu0 0.0
  %1805 = vmatprep.subr.mxu0 0.0
  %1806 = vmatpush1.msra.mxu0 0.0
  %1807 = vmatprep.subr.mxu0 0.0
  %1808 = vmatpush1.msra.mxu0 0.0
  %1809 = vmatprep.subr.mxu0 0.0
  %1810 = vmatpush1.msra.mxu0 0.0
  %1811 = vmatprep.subr.mxu0 0.0
  %1812 = vmatpush1.msra.mxu0 0.0
  %1813 = vmatprep.subr.mxu0 0.0
  %1814 = vmatpush1.msra.mxu0 0.0
  %1815 = vmatprep.subr.mxu0 0.0
  %1816 = vmatpush1.msra.mxu0 0.0
  %1817 = vmatprep.subr.mxu0 0.0
  %1818 = vmatpush1.msra.mxu0 0.0
  %1819 = vmatprep.subr.mxu0 0.0
  %1820 = vmatpush1.msra.mxu0 0.0
  %1821 = vmatprep.subr.mxu0 0.0
  %1822 = vmatpush1.msra.mxu0 0.0
  %1823 = vmatprep.subr.mxu0 0.0
  %1824 = vmatpush1.msra.mxu0 0.0
  %1825 = vmatprep.subr.mxu0 0.0
  %1826 = vmatpush1.msra.mxu0 0.0
  %1827 = vmatprep.subr.mxu0 0.0
  %1828 = vmatpush1.msra.mxu0 0.0
  %1829 = vmatprep.subr.mxu0 0.0
  %1830 = vmatpush1.msra.mxu0 0.0
  %1831 = vmatprep.subr.mxu0 0.0
  %1832 = vmatpush1.msra.mxu0 0.0
  %1833 = vmatprep.subr.mxu0 0.0
  %1834 = vmatpush1.msra.mxu0 0.0
  %1835 = vmatprep.subr.mxu0 0.0
  %1836 = vmatpush1.msra.mxu0 0.0
  %1837 = vmatprep.subr.mxu0 0.0
  %1838 = vmatpush1.msra.mxu0 0.0
  %1839 = vmatprep.subr.mxu0 0.0
  %1840 = vmatpush1.msra.mxu0 0.0
  %1841 = vmatprep.subr.mxu0 0.0
  %1842 = vmatpush1.msra.mxu0 0.0
  %1843 = vmatprep.subr.mxu0 0.0
  %1844 = vmatpush1.msra.mxu0 0.0
  %1845 = vmatprep.subr.mxu0 0.0
  %1846 = vmatpush1.msra.mxu0 0.0
  %1847 = vmatprep.subr.mxu0 0.0
  %1848 = vmatpush1.msra.mxu0 0.0
  %1849 = vmatprep.subr.mxu0 0.0
  %1850 = vmatpush1.msra.mxu0 0.0
  %1851 = vmatprep.subr.mxu0 0.0
  %1852 = vmatpush1.msra.mxu0 0.0
  %1853 = vmatprep.mubr.f32.mxu0 0.0
  %1854 = vmatmul.mubr.f32.gmra.mrb[0].mxu0 %v1712
  %v1855 = vpop.f32.mrb[0].mxu0
  %v1856 = vadd.f32 0.0, %v1855
  %v1857 = vpop.f32.mrb[0].mxu0
  %1858 = vdwg.mxu0
  %v1859 = vmul.f32 %v1856, 0.03125
  %v1860 = vmul.f32 %v1784, %v1784
  %v1861 = vsub.f32 %v1859, %v1860
  %v1862 = vmax.f32 %v1861, 0.0
  %v1863 = vlaneseq
  %v1864 = vshrl.u32 %v1863, 7
  %v1865 = vsub.s32 0, %v1864
  %v1866 = vrot.slane %v1784, %v1865
  %v1867 = vsub.f32 %v1707, %v1866
  %v1868 = vsub.f32 %v1708, %v1866
  %v1869 = vsub.f32 %v1709, %v1866
  %v1870 = vsub.f32 %v1710, %v1866
  %v1871 = vadd.f32 %v1862, 1e-05
  %v1872 = vrsqrt.pop %v1871
  %v1873 = vlaneseq
  %v1874 = vshrl.u32 %v1873, 7
  %v1875 = vsub.s32 0, %v1874
  %v1876 = vrot.slane %v1872, %v1875
  %v1877 = vmul.f32 %v1867, %v1876
  %v1878 = vmul.f32 %v1868, %v1876
  %v1879 = vmul.f32 %v1869, %v1876
  %v1880 = vmul.f32 %v1870, %v1876
  %1881 = vset.pattern.permute.xlu0 1
  %1882 = vperm.xlu0 %1881, %v626
  %v1883 = vpop.permute.xlu0 %1882
  %1885 = vset.pattern.permute.xlu0 1
  %1886 = vperm.xlu0 %1885, %v627
  %v1887 = vpop.permute.xlu0 %1886
  %1889 = vset.pattern.permute.xlu0 1
  %1890 = vperm.xlu0 %1889, %v628
  %v1891 = vpop.permute.xlu0 %1890
  %1893 = vset.pattern.permute.xlu0 1
  %1894 = vperm.xlu0 %1893, %v629
  %v1895 = vpop.permute.xlu0 %1894
  %v1897 = vmul.f32 %v1877, %v1883
  %v1898 = vmul.f32 %v1878, %v1887
  %v1899 = vmul.f32 %v1879, %v1891
  %v1900 = vmul.f32 %v1880, %v1895
  %1901 = vset.pattern.permute.xlu0 2
  %1902 = vperm.xlu0 %1901, %v626
  %v1903 = vpop.permute.xlu0 %1902
  %1905 = vset.pattern.permute.xlu0 2
  %1906 = vperm.xlu0 %1905, %v627
  %v1907 = vpop.permute.xlu0 %1906
  %1909 = vset.pattern.permute.xlu0 2
  %1910 = vperm.xlu0 %1909, %v628
  %v1911 = vpop.permute.xlu0 %1910
  %1913 = vset.pattern.permute.xlu0 2
  %1914 = vperm.xlu0 %1913, %v629
  %v1915 = vpop.permute.xlu0 %1914
  %v1917 = vadd.f32 %v1897, %v1903
  %v1918 = vadd.f32 %v1898, %v1907
  %v1919 = vadd.f32 %v1899, %v1911
  %v1920 = vadd.f32 %v1900, %v1915
  %1921 = vst.msk [vmem:[%s5] sm:$0xff] %vm248, %v1917
  %1922 = vst.msk [vmem:[%s5 + $0x8] sm:$0xff] %vm248, %v1918
  %1923 = vst.msk [vmem:[%s5 + $0x10] sm:$0xff] %vm248, %v1919
  %1924 = vst.msk [vmem:[%s5 + $0x18] sm:$0xff] %vm248, %v1920
  %v1925 = vld [vmem:[%s257] sm:$0xff]
  %v1926 = vld [vmem:[%s257 + $0x8] sm:$0xff]
  %v1927 = vld [vmem:[%s257 + $0x10] sm:$0xff]
  %v1928 = vld [vmem:[%s257 + $0x18] sm:$0xff]
  %1929 = vmatprep.subr.mxu0 0.0
  %1930 = vmatpush1.msra.mxu0 %v1925
  %1931 = vmatprep.subr.mxu0 0.0
  %1932 = vmatpush1.msra.mxu0 %v1926
  %1933 = vmatprep.subr.mxu0 0.0
  %1934 = vmatpush1.msra.mxu0 %v1927
  %1935 = vmatprep.subr.mxu0 0.0
  %1936 = vmatpush1.msra.mxu0 %v1928
  %1937 = vmatprep.subr.mxu0 0.0
  %1938 = vmatpush1.msra.mxu0 0.0
  %1939 = vmatprep.subr.mxu0 0.0
  %1940 = vmatpush1.msra.mxu0 0.0
  %1941 = vmatprep.subr.mxu0 0.0
  %1942 = vmatpush1.msra.mxu0 0.0
  %1943 = vmatprep.subr.mxu0 0.0
  %1944 = vmatpush1.msra.mxu0 0.0
  %1945 = vmatprep.subr.mxu0 0.0
  %1946 = vmatpush1.msra.mxu0 0.0
  %1947 = vmatprep.subr.mxu0 0.0
  %1948 = vmatpush1.msra.mxu0 0.0
  %1949 = vmatprep.subr.mxu0 0.0
  %1950 = vmatpush1.msra.mxu0 0.0
  %1951 = vmatprep.subr.mxu0 0.0
  %1952 = vmatpush1.msra.mxu0 0.0
  %1953 = vmatprep.subr.mxu0 0.0
  %1954 = vmatpush1.msra.mxu0 0.0
  %1955 = vmatprep.subr.mxu0 0.0
  %1956 = vmatpush1.msra.mxu0 0.0
  %1957 = vmatprep.subr.mxu0 0.0
  %1958 = vmatpush1.msra.mxu0 0.0
  %1959 = vmatprep.subr.mxu0 0.0
  %1960 = vmatpush1.msra.mxu0 0.0
  %1961 = vmatprep.subr.mxu0 0.0
  %1962 = vmatpush1.msra.mxu0 0.0
  %1963 = vmatprep.subr.mxu0 0.0
  %1964 = vmatpush1.msra.mxu0 0.0
  %1965 = vmatprep.subr.mxu0 0.0
  %1966 = vmatpush1.msra.mxu0 0.0
  %1967 = vmatprep.subr.mxu0 0.0
  %1968 = vmatpush1.msra.mxu0 0.0
  %1969 = vmatprep.subr.mxu0 0.0
  %1970 = vmatpush1.msra.mxu0 0.0
  %1971 = vmatprep.subr.mxu0 0.0
  %1972 = vmatpush1.msra.mxu0 0.0
  %1973 = vmatprep.subr.mxu0 0.0
  %1974 = vmatpush1.msra.mxu0 0.0
  %1975 = vmatprep.subr.mxu0 0.0
  %1976 = vmatpush1.msra.mxu0 0.0
  %1977 = vmatprep.subr.mxu0 0.0
  %1978 = vmatpush1.msra.mxu0 0.0
  %1979 = vmatprep.subr.mxu0 0.0
  %1980 = vmatpush1.msra.mxu0 0.0
  %1981 = vmatprep.subr.mxu0 0.0
  %1982 = vmatpush1.msra.mxu0 0.0
  %1983 = vmatprep.subr.mxu0 0.0
  %1984 = vmatpush1.msra.mxu0 0.0
  %1985 = vmatprep.subr.mxu0 0.0
  %1986 = vmatpush1.msra.mxu0 0.0
  %1987 = vmatprep.subr.mxu0 0.0
  %1988 = vmatpush1.msra.mxu0 0.0
  %1989 = vmatprep.subr.mxu0 0.0
  %1990 = vmatpush1.msra.mxu0 0.0
  %1991 = vmatprep.subr.mxu0 0.0
  %1992 = vmatpush1.msra.mxu0 0.0
  %1993 = vmatprep.mubr.f32.mxu0 0.0
  %1994 = vmatmul.mubr.f32.gmra.mrb[0].mxu0 %v655
  %v1995 = vpop.f32.mrb[0].mxu0
  %v1996 = vadd.f32 %v637, %v1995
  %v1997 = vpop.f32.mrb[0].mxu0
  %1998 = vmatprep.mubr.f32.mxu0 0.0
  %1999 = vmatmul.mubr.f32.gmra.mrb[0].mxu0 %v658
  %v2000 = vpop.f32.mrb[0].mxu0
  %v2001 = vadd.f32 %v642, %v2000
  %v2002 = vpop.f32.mrb[0].mxu0
  %2003 = vmatprep.mubr.f32.mxu0 0.0
  %2004 = vmatmul.mubr.f32.gmra.mrb[0].mxu0 %v661
  %v2005 = vpop.f32.mrb[0].mxu0
  %v2006 = vadd.f32 %v647, %v2005
  %v2007 = vpop.f32.mrb[0].mxu0
  %2008 = vmatprep.mubr.f32.mxu0 0.0
  %2009 = vmatmul.mubr.f32.gmra.mrb[0].mxu0 %v664
  %v2010 = vpop.f32.mrb[0].mxu0
  %v2011 = vadd.f32 %v652, %v2010
  %v2012 = vpop.f32.mrb[0].mxu0
  %2013 = vdwg.mxu0
  %v2014 = vld [vmem:[#allocation2] sm:$0xff]
  %v2015 = vld [vmem:[#allocation2 + $0x8] sm:$0xff]
  %v2016 = vld [vmem:[#allocation2 + $0x10] sm:$0xff]
  %v2017 = vld [vmem:[#allocation2 + $0x18] sm:$0xff]
  %v2018 = vmul.f32 %v1996, %v2014
  %v2019 = vmul.f32 %v2001, %v2015
  %v2020 = vmul.f32 %v2006, %v2016
  %v2021 = vmul.f32 %v2011, %v2017
  %2022 = vmatprep.subr.mxu0 0.0
  %2023 = vmatpush1.msra.mxu0 %v2018
  %2024 = vmatprep.subr.mxu0 0.0
  %2025 = vmatpush1.msra.mxu0 %v2019
  %2026 = vmatprep.subr.mxu0 0.0
  %2027 = vmatpush1.msra.mxu0 %v2020
  %2028 = vmatprep.subr.mxu0 0.0
  %2029 = vmatpush1.msra.mxu0 %v2021
  %2030 = vmatprep.subr.mxu0 0.0
  %2031 = vmatpush1.msra.mxu0 0.0
  %2032 = vmatprep.subr.mxu0 0.0
  %2033 = vmatpush1.msra.mxu0 0.0
  %2034 = vmatprep.subr.mxu0 0.0
  %2035 = vmatpush1.msra.mxu0 0.0
  %2036 = vmatprep.subr.mxu0 0.0
  %2037 = vmatpush1.msra.mxu0 0.0
  %2038 = vmatprep.subr.mxu0 0.0
  %2039 = vmatpush1.msra.mxu0 0.0
  %2040 = vmatprep.subr.mxu0 0.0
  %2041 = vmatpush1.msra.mxu0 0.0
  %2042 = vmatprep.subr.mxu0 0.0
  %2043 = vmatpush1.msra.mxu0 0.0
  %2044 = vmatprep.subr.mxu0 0.0
  %2045 = vmatpush1.msra.mxu0 0.0
  %2046 = vmatprep.subr.mxu0 0.0
  %2047 = vmatpush1.msra.mxu0 0.0
  %2048 = vmatprep.subr.mxu0 0.0
  %2049 = vmatpush1.msra.mxu0 0.0
  %2050 = vmatprep.subr.mxu0 0.0
  %2051 = vmatpush1.msra.mxu0 0.0
  %2052 = vmatprep.subr.mxu0 0.0
  %2053 = vmatpush1.msra.mxu0 0.0
  %2054 = vmatprep.subr.mxu0 0.0
  %2055 = vmatpush1.msra.mxu0 0.0
  %2056 = vmatprep.subr.mxu0 0.0
  %2057 = vmatpush1.msra.mxu0 0.0
  %2058 = vmatprep.subr.mxu0 0.0
  %2059 = vmatpush1.msra.mxu0 0.0
  %2060 = vmatprep.subr.mxu0 0.0
  %2061 = vmatpush1.msra.mxu0 0.0
  %2062 = vmatprep.subr.mxu0 0.0
  %2063 = vmatpush1.msra.mxu0 0.0
  %2064 = vmatprep.subr.mxu0 0.0
  %2065 = vmatpush1.msra.mxu0 0.0
  %2066 = vmatprep.subr.mxu0 0.0
  %2067 = vmatpush1.msra.mxu0 0.0
  %2068 = vmatprep.subr.mxu0 0.0
  %2069 = vmatpush1.msra.mxu0 0.0
  %2070 = vmatprep.subr.mxu0 0.0
  %2071 = vmatpush1.msra.mxu0 0.0
  %2072 = vmatprep.subr.mxu0 0.0
  %2073 = vmatpush1.msra.mxu0 0.0
  %2074 = vmatprep.subr.mxu0 0.0
  %2075 = vmatpush1.msra.mxu0 0.0
  %2076 = vmatprep.subr.mxu0 0.0
  %2077 = vmatpush1.msra.mxu0 0.0
  %2078 = vmatprep.subr.mxu0 0.0
  %2079 = vmatpush1.msra.mxu0 0.0
  %2080 = vmatprep.subr.mxu0 0.0
  %2081 = vmatpush1.msra.mxu0 0.0
  %2082 = vmatprep.subr.mxu0 0.0
  %2083 = vmatpush1.msra.mxu0 0.0
  %2084 = vmatprep.subr.mxu0 0.0
  %2085 = vmatpush1.msra.mxu0 0.0
  %2086 = vmatprep.mubr.f32.mxu0 0.0
  %2087 = vmatmul.mubr.f32.gmra.mrb[0].mxu0 %v760
  %v2088 = vpop.f32.mrb[0].mxu0
  %v2089 = vadd.f32 0.0, %v2088
  %v2090 = vpop.f32.mrb[0].mxu0
  %2091 = vdwg.mxu0
  %v2092 = vld [vmem:[%s367] sm:$0xff]
  %v2093 = vld [vmem:[%s367 + $0x8] sm:$0xff]
  %v2094 = vld [vmem:[%s367 + $0x10] sm:$0xff]
  %v2095 = vld [vmem:[%s367 + $0x18] sm:$0xff]
  %v2096 = vmul.f32 %v1996, %v2092
  %v2097 = vmul.f32 %v2001, %v2093
  %v2098 = vmul.f32 %v2006, %v2094
  %v2099 = vmul.f32 %v2011, %v2095
  %2100 = vmatprep.subr.mxu0 0.0
  %2101 = vmatpush1.msra.mxu0 %v2096
  %2102 = vmatprep.subr.mxu0 0.0
  %2103 = vmatpush1.msra.mxu0 %v2097
  %2104 = vmatprep.subr.mxu0 0.0
  %2105 = vmatpush1.msra.mxu0 %v2098
  %2106 = vmatprep.subr.mxu0 0.0
  %2107 = vmatpush1.msra.mxu0 %v2099
  %2108 = vmatprep.subr.mxu0 0.0
  %2109 = vmatpush1.msra.mxu0 0.0
  %2110 = vmatprep.subr.mxu0 0.0
  %2111 = vmatpush1.msra.mxu0 0.0
  %2112 = vmatprep.subr.mxu0 0.0
  %2113 = vmatpush1.msra.mxu0 0.0
  %2114 = vmatprep.subr.mxu0 0.0
  %2115 = vmatpush1.msra.mxu0 0.0
  %2116 = vmatprep.subr.mxu0 0.0
  %2117 = vmatpush1.msra.mxu0 0.0
  %2118 = vmatprep.subr.mxu0 0.0
  %2119 = vmatpush1.msra.mxu0 0.0
  %2120 = vmatprep.subr.mxu0 0.0
  %2121 = vmatpush1.msra.mxu0 0.0
  %2122 = vmatprep.subr.mxu0 0.0
  %2123 = vmatpush1.msra.mxu0 0.0
  %2124 = vmatprep.subr.mxu0 0.0
  %2125 = vmatpush1.msra.mxu0 0.0
  %2126 = vmatprep.subr.mxu0 0.0
  %2127 = vmatpush1.msra.mxu0 0.0
  %2128 = vmatprep.subr.mxu0 0.0
  %2129 = vmatpush1.msra.mxu0 0.0
  %2130 = vmatprep.subr.mxu0 0.0
  %2131 = vmatpush1.msra.mxu0 0.0
  %2132 = vmatprep.subr.mxu0 0.0
  %2133 = vmatpush1.msra.mxu0 0.0
  %2134 = vmatprep.subr.mxu0 0.0
  %2135 = vmatpush1.msra.mxu0 0.0
  %2136 = vmatprep.subr.mxu0 0.0
  %2137 = vmatpush1.msra.mxu0 0.0
  %2138 = vmatprep.subr.mxu0 0.0
  %2139 = vmatpush1.msra.mxu0 0.0
  %2140 = vmatprep.subr.mxu0 0.0
  %2141 = vmatpush1.msra.mxu0 0.0
  %2142 = vmatprep.subr.mxu0 0.0
  %2143 = vmatpush1.msra.mxu0 0.0
  %2144 = vmatprep.subr.mxu0 0.0
  %2145 = vmatpush1.msra.mxu0 0.0
  %2146 = vmatprep.subr.mxu0 0.0
  %2147 = vmatpush1.msra.mxu0 0.0
  %2148 = vmatprep.subr.mxu0 0.0
  %2149 = vmatpush1.msra.mxu0 0.0
  %2150 = vmatprep.subr.mxu0 0.0
  %2151 = vmatpush1.msra.mxu0 0.0
  %2152 = vmatprep.subr.mxu0 0.0
  %2153 = vmatpush1.msra.mxu0 0.0
  %2154 = vmatprep.subr.mxu0 0.0
  %2155 = vmatpush1.msra.mxu0 0.0
  %2156 = vmatprep.subr.mxu0 0.0
  %2157 = vmatpush1.msra.mxu0 0.0
  %2158 = vmatprep.subr.mxu0 0.0
  %2159 = vmatpush1.msra.mxu0 0.0
  %2160 = vmatprep.subr.mxu0 0.0
  %2161 = vmatpush1.msra.mxu0 0.0
  %2162 = vmatprep.subr.mxu0 0.0
  %2163 = vmatpush1.msra.mxu0 0.0
  %2164 = vmatprep.mubr.f32.mxu0 0.0
  %2165 = vmatmul.mubr.f32.gmra.mrb[0].mxu0 %v760
  %v2166 = vpop.f32.mrb[0].mxu0
  %v2167 = vadd.f32 0.0, %v2166
  %v2168 = vpop.f32.mrb[0].mxu0
  %2169 = vdwg.mxu0
  %v2170 = vmax.f32 %v2089, %v2167
  %v2171 = vld [vmem:[%s486] sm:$0xff]
  %v2172 = vld [vmem:[%s486 + $0x8] sm:$0xff]
  %v2173 = vld [vmem:[%s486 + $0x10] sm:$0xff]
  %v2174 = vld [vmem:[%s486 + $0x18] sm:$0xff]
  %v2175 = vmul.f32 %v1996, %v2171
  %v2176 = vmul.f32 %v2001, %v2172
  %v2177 = vmul.f32 %v2006, %v2173
  %v2178 = vmul.f32 %v2011, %v2174
  %2179 = vmatprep.subr.mxu0 0.0
  %2180 = vmatpush1.msra.mxu0 %v2175
  %2181 = vmatprep.subr.mxu0 0.0
  %2182 = vmatpush1.msra.mxu0 %v2176
  %2183 = vmatprep.subr.mxu0 0.0
  %2184 = vmatpush1.msra.mxu0 %v2177
  %2185 = vmatprep.subr.mxu0 0.0
  %2186 = vmatpush1.msra.mxu0 %v2178
  %2187 = vmatprep.subr.mxu0 0.0
  %2188 = vmatpush1.msra.mxu0 0.0
  %2189 = vmatprep.subr.mxu0 0.0
  %2190 = vmatpush1.msra.mxu0 0.0
  %2191 = vmatprep.subr.mxu0 0.0
  %2192 = vmatpush1.msra.mxu0 0.0
  %2193 = vmatprep.subr.mxu0 0.0
  %2194 = vmatpush1.msra.mxu0 0.0
  %2195 = vmatprep.subr.mxu0 0.0
  %2196 = vmatpush1.msra.mxu0 0.0
  %2197 = vmatprep.subr.mxu0 0.0
  %2198 = vmatpush1.msra.mxu0 0.0
  %2199 = vmatprep.subr.mxu0 0.0
  %2200 = vmatpush1.msra.mxu0 0.0
  %2201 = vmatprep.subr.mxu0 0.0
  %2202 = vmatpush1.msra.mxu0 0.0
  %2203 = vmatprep.subr.mxu0 0.0
  %2204 = vmatpush1.msra.mxu0 0.0
  %2205 = vmatprep.subr.mxu0 0.0
  %2206 = vmatpush1.msra.mxu0 0.0
  %2207 = vmatprep.subr.mxu0 0.0
  %2208 = vmatpush1.msra.mxu0 0.0
  %2209 = vmatprep.subr.mxu0 0.0
  %2210 = vmatpush1.msra.mxu0 0.0
  %2211 = vmatprep.subr.mxu0 0.0
  %2212 = vmatpush1.msra.mxu0 0.0
  %2213 = vmatprep.subr.mxu0 0.0
  %2214 = vmatpush1.msra.mxu0 0.0
  %2215 = vmatprep.subr.mxu0 0.0
  %2216 = vmatpush1.msra.mxu0 0.0
  %2217 = vmatprep.subr.mxu0 0.0
  %2218 = vmatpush1.msra.mxu0 0.0
  %2219 = vmatprep.subr.mxu0 0.0
  %2220 = vmatpush1.msra.mxu0 0.0
  %2221 = vmatprep.subr.mxu0 0.0
  %2222 = vmatpush1.msra.mxu0 0.0
  %2223 = vmatprep.subr.mxu0 0.0
  %2224 = vmatpush1.msra.mxu0 0.0
  %2225 = vmatprep.subr.mxu0 0.0
  %2226 = vmatpush1.msra.mxu0 0.0
  %2227 = vmatprep.subr.mxu0 0.0
  %2228 = vmatpush1.msra.mxu0 0.0
  %2229 = vmatprep.subr.mxu0 0.0
  %2230 = vmatpush1.msra.mxu0 0.0
  %2231 = vmatprep.subr.mxu0 0.0
  %2232 = vmatpush1.msra.mxu0 0.0
  %2233 = vmatprep.subr.mxu0 0.0
  %2234 = vmatpush1.msra.mxu0 0.0
  %2235 = vmatprep.subr.mxu0 0.0
  %2236 = vmatpush1.msra.mxu0 0.0
  %2237 = vmatprep.subr.mxu0 0.0
  %2238 = vmatpush1.msra.mxu0 0.0
  %2239 = vmatprep.subr.mxu0 0.0
  %2240 = vmatpush1.msra.mxu0 0.0
  %2241 = vmatprep.subr.mxu0 0.0
  %2242 = vmatpush1.msra.mxu0 0.0
  %2243 = vmatprep.mubr.f32.mxu0 0.0
  %2244 = vmatmul.mubr.f32.gmra.mrb[0].mxu0 %v760
  %v2245 = vpop.f32.mrb[0].mxu0
  %v2246 = vadd.f32 0.0, %v2245
  %v2247 = vpop.f32.mrb[0].mxu0
  %2248 = vdwg.mxu0
  %v2249 = vmax.f32 %v2170, %v2246
  %v2250 = vld [vmem:[%s605] sm:$0xff]
  %v2251 = vld [vmem:[%s605 + $0x8] sm:$0xff]
  %v2252 = vld [vmem:[%s605 + $0x10] sm:$0xff]
  %v2253 = vld [vmem:[%s605 + $0x18] sm:$0xff]
  %v2254 = vmul.f32 %v1996, %v2250
  %v2255 = vmul.f32 %v2001, %v2251
  %v2256 = vmul.f32 %v2006, %v2252
  %v2257 = vmul.f32 %v2011, %v2253
  %2258 = vmatprep.subr.mxu0 0.0
  %2259 = vmatpush1.msra.mxu0 %v2254
  %2260 = vmatprep.subr.mxu0 0.0
  %2261 = vmatpush1.msra.mxu0 %v2255
  %2262 = vmatprep.subr.mxu0 0.0
  %2263 = vmatpush1.msra.mxu0 %v2256
  %2264 = vmatprep.subr.mxu0 0.0
  %2265 = vmatpush1.msra.mxu0 %v2257
  %2266 = vmatprep.subr.mxu0 0.0
  %2267 = vmatpush1.msra.mxu0 0.0
  %2268 = vmatprep.subr.mxu0 0.0
  %2269 = vmatpush1.msra.mxu0 0.0
  %2270 = vmatprep.subr.mxu0 0.0
  %2271 = vmatpush1.msra.mxu0 0.0
  %2272 = vmatprep.subr.mxu0 0.0
  %2273 = vmatpush1.msra.mxu0 0.0
  %2274 = vmatprep.subr.mxu0 0.0
  %2275 = vmatpush1.msra.mxu0 0.0
  %2276 = vmatprep.subr.mxu0 0.0
  %2277 = vmatpush1.msra.mxu0 0.0
  %2278 = vmatprep.subr.mxu0 0.0
  %2279 = vmatpush1.msra.mxu0 0.0
  %2280 = vmatprep.subr.mxu0 0.0
  %2281 = vmatpush1.msra.mxu0 0.0
  %2282 = vmatprep.subr.mxu0 0.0
  %2283 = vmatpush1.msra.mxu0 0.0
  %2284 = vmatprep.subr.mxu0 0.0
  %2285 = vmatpush1.msra.mxu0 0.0
  %2286 = vmatprep.subr.mxu0 0.0
  %2287 = vmatpush1.msra.mxu0 0.0
  %2288 = vmatprep.subr.mxu0 0.0
  %2289 = vmatpush1.msra.mxu0 0.0
  %2290 = vmatprep.subr.mxu0 0.0
  %2291 = vmatpush1.msra.mxu0 0.0
  %2292 = vmatprep.subr.mxu0 0.0
  %2293 = vmatpush1.msra.mxu0 0.0
  %2294 = vmatprep.subr.mxu0 0.0
  %2295 = vmatpush1.msra.mxu0 0.0
  %2296 = vmatprep.subr.mxu0 0.0
  %2297 = vmatpush1.msra.mxu0 0.0
  %2298 = vmatprep.subr.mxu0 0.0
  %2299 = vmatpush1.msra.mxu0 0.0
  %2300 = vmatprep.subr.mxu0 0.0
  %2301 = vmatpush1.msra.mxu0 0.0
  %2302 = vmatprep.subr.mxu0 0.0
  %2303 = vmatpush1.msra.mxu0 0.0
  %2304 = vmatprep.subr.mxu0 0.0
  %2305 = vmatpush1.msra.mxu0 0.0
  %2306 = vmatprep.subr.mxu0 0.0
  %2307 = vmatpush1.msra.mxu0 0.0
  %2308 = vmatprep.subr.mxu0 0.0
  %2309 = vmatpush1.msra.mxu0 0.0
  %2310 = vmatprep.subr.mxu0 0.0
  %2311 = vmatpush1.msra.mxu0 0.0
  %2312 = vmatprep.subr.mxu0 0.0
  %2313 = vmatpush1.msra.mxu0 0.0
  %2314 = vmatprep.subr.mxu0 0.0
  %2315 = vmatpush1.msra.mxu0 0.0
  %2316 = vmatprep.subr.mxu0 0.0
  %2317 = vmatpush1.msra.mxu0 0.0
  %2318 = vmatprep.subr.mxu0 0.0
  %2319 = vmatpush1.msra.mxu0 0.0
  %2320 = vmatprep.subr.mxu0 0.0
  %2321 = vmatpush1.msra.mxu0 0.0
  %2322 = vmatprep.mubr.f32.mxu0 0.0
  %2323 = vmatmul.mubr.f32.gmra.mrb[0].mxu0 %v760
  %v2324 = vpop.f32.mrb[0].mxu0
  %v2325 = vadd.f32 0.0, %v2324
  %v2326 = vpop.f32.mrb[0].mxu0
  %2327 = vdwg.mxu0
  %v2328 = vmax.f32 %v2249, %v2325
  %v2329 = vsub.f32 %v2089, %v2328
  %v2330 = vmul.f32 %v2329, 1.442695
  %v2331 = vpow.pop %v2330
  %v2333 = vsel %vm1085, %v2331, 0
  %2335 = vmatprep.subr.mxu0 0.0
  %2336 = vmatpush1.msra.mxu0 %v2333
  %2337 = vmatprep.subr.mxu0 0.0
  %2338 = vmatpush1.msra.mxu0 0.0
  %2339 = vmatprep.subr.mxu0 0.0
  %2340 = vmatpush1.msra.mxu0 0.0
  %2341 = vmatprep.subr.mxu0 0.0
  %2342 = vmatpush1.msra.mxu0 0.0
  %2343 = vmatprep.subr.mxu0 0.0
  %2344 = vmatpush1.msra.mxu0 0.0
  %2345 = vmatprep.subr.mxu0 0.0
  %2346 = vmatpush1.msra.mxu0 0.0
  %2347 = vmatprep.subr.mxu0 0.0
  %2348 = vmatpush1.msra.mxu0 0.0
  %2349 = vmatprep.subr.mxu0 0.0
  %2350 = vmatpush1.msra.mxu0 0.0
  %2351 = vmatprep.subr.mxu0 0.0
  %2352 = vmatpush1.msra.mxu0 0.0
  %2353 = vmatprep.subr.mxu0 0.0
  %2354 = vmatpush1.msra.mxu0 0.0
  %2355 = vmatprep.subr.mxu0 0.0
  %2356 = vmatpush1.msra.mxu0 0.0
  %2357 = vmatprep.subr.mxu0 0.0
  %2358 = vmatpush1.msra.mxu0 0.0
  %2359 = vmatprep.subr.mxu0 0.0
  %2360 = vmatpush1.msra.mxu0 0.0
  %2361 = vmatprep.subr.mxu0 0.0
  %2362 = vmatpush1.msra.mxu0 0.0
  %2363 = vmatprep.subr.mxu0 0.0
  %2364 = vmatpush1.msra.mxu0 0.0
  %2365 = vmatprep.subr.mxu0 0.0
  %2366 = vmatpush1.msra.mxu0 0.0
  %2367 = vmatprep.subr.mxu0 0.0
  %2368 = vmatpush1.msra.mxu0 0.0
  %2369 = vmatprep.subr.mxu0 0.0
  %2370 = vmatpush1.msra.mxu0 0.0
  %2371 = vmatprep.subr.mxu0 0.0
  %2372 = vmatpush1.msra.mxu0 0.0
  %2373 = vmatprep.subr.mxu0 0.0
  %2374 = vmatpush1.msra.mxu0 0.0
  %2375 = vmatprep.subr.mxu0 0.0
  %2376 = vmatpush1.msra.mxu0 0.0
  %2377 = vmatprep.subr.mxu0 0.0
  %2378 = vmatpush1.msra.mxu0 0.0
  %2379 = vmatprep.subr.mxu0 0.0
  %2380 = vmatpush1.msra.mxu0 0.0
  %2381 = vmatprep.subr.mxu0 0.0
  %2382 = vmatpush1.msra.mxu0 0.0
  %2383 = vmatprep.subr.mxu0 0.0
  %2384 = vmatpush1.msra.mxu0 0.0
  %2385 = vmatprep.subr.mxu0 0.0
  %2386 = vmatpush1.msra.mxu0 0.0
  %2387 = vmatprep.subr.mxu0 0.0
  %2388 = vmatpush1.msra.mxu0 0.0
  %2389 = vmatprep.subr.mxu0 0.0
  %2390 = vmatpush1.msra.mxu0 0.0
  %2391 = vmatprep.subr.mxu0 0.0
  %2392 = vmatpush1.msra.mxu0 0.0
  %2393 = vmatprep.subr.mxu0 0.0
  %2394 = vmatpush1.msra.mxu0 0.0
  %2395 = vmatprep.subr.mxu0 0.0
  %2396 = vmatpush1.msra.mxu0 0.0
  %2397 = vmatprep.subr.mxu0 0.0
  %2398 = vmatpush1.msra.mxu0 0.0
  %2399 = vmatprep.mubr.f32.mxu0 0.0
  %2400 = vmatmul.mubr.f32.gmra.mrb[0].mxu0 %v1074
  %v2401 = vpop.f32.mrb[0].mxu0
  %v2402 = vadd.f32 0.0, %v2401
  %v2403 = vpop.f32.mrb[0].mxu0
  %2404 = vmatprep.mubr.f32.mxu0 0.0
  %2405 = vmatmul.mubr.f32.gmra.mrb[0].mxu0 %v1077
  %v2406 = vpop.f32.mrb[0].mxu0
  %v2407 = vadd.f32 0.0, %v2406
  %v2408 = vpop.f32.mrb[0].mxu0
  %2409 = vmatprep.mubr.f32.mxu0 0.0
  %2410 = vmatmul.mubr.f32.gmra.mrb[0].mxu0 %v1080
  %v2411 = vpop.f32.mrb[0].mxu0
  %v2412 = vadd.f32 0.0, %v2411
  %v2413 = vpop.f32.mrb[0].mxu0
  %2414 = vmatprep.mubr.f32.mxu0 0.0
  %2415 = vmatmul.mubr.f32.gmra.mrb[0].mxu0 %v1083
  %v2416 = vpop.f32.mrb[0].mxu0
  %v2417 = vadd.f32 0.0, %v2416
  %v2418 = vpop.f32.mrb[0].mxu0
  %2419 = vdwg.mxu0
  %v2420 = vld [vmem:[#allocation2 + $0x20] sm:$0xff]
  %v2421 = vld [vmem:[#allocation2 + $0x28] sm:$0xff]
  %v2422 = vld [vmem:[#allocation2 + $0x30] sm:$0xff]
  %v2423 = vld [vmem:[#allocation2 + $0x38] sm:$0xff]
  %v2424 = vmul.f32 %v2402, %v2420
  %v2425 = vmul.f32 %v2407, %v2421
  %v2426 = vmul.f32 %v2412, %v2422
  %v2427 = vmul.f32 %v2417, %v2423
  %v2428 = vsub.f32 %v2167, %v2328
  %v2429 = vmul.f32 %v2428, 1.442695
  %v2430 = vpow.pop %v2429
  %v2431 = vadd.f32 %v2331, %v2430
  %v2433 = vsel %vm1085, %v2430, 0
  %2435 = vmatprep.subr.mxu0 0.0
  %2436 = vmatpush1.msra.mxu0 %v2433
  %2437 = vmatprep.subr.mxu0 0.0
  %2438 = vmatpush1.msra.mxu0 0.0
  %2439 = vmatprep.subr.mxu0 0.0
  %2440 = vmatpush1.msra.mxu0 0.0
  %2441 = vmatprep.subr.mxu0 0.0
  %2442 = vmatpush1.msra.mxu0 0.0
  %2443 = vmatprep.subr.mxu0 0.0
  %2444 = vmatpush1.msra.mxu0 0.0
  %2445 = vmatprep.subr.mxu0 0.0
  %2446 = vmatpush1.msra.mxu0 0.0
  %2447 = vmatprep.subr.mxu0 0.0
  %2448 = vmatpush1.msra.mxu0 0.0
  %2449 = vmatprep.subr.mxu0 0.0
  %2450 = vmatpush1.msra.mxu0 0.0
  %2451 = vmatprep.subr.mxu0 0.0
  %2452 = vmatpush1.msra.mxu0 0.0
  %2453 = vmatprep.subr.mxu0 0.0
  %2454 = vmatpush1.msra.mxu0 0.0
  %2455 = vmatprep.subr.mxu0 0.0
  %2456 = vmatpush1.msra.mxu0 0.0
  %2457 = vmatprep.subr.mxu0 0.0
  %2458 = vmatpush1.msra.mxu0 0.0
  %2459 = vmatprep.subr.mxu0 0.0
  %2460 = vmatpush1.msra.mxu0 0.0
  %2461 = vmatprep.subr.mxu0 0.0
  %2462 = vmatpush1.msra.mxu0 0.0
  %2463 = vmatprep.subr.mxu0 0.0
  %2464 = vmatpush1.msra.mxu0 0.0
  %2465 = vmatprep.subr.mxu0 0.0
  %2466 = vmatpush1.msra.mxu0 0.0
  %2467 = vmatprep.subr.mxu0 0.0
  %2468 = vmatpush1.msra.mxu0 0.0
  %2469 = vmatprep.subr.mxu0 0.0
  %2470 = vmatpush1.msra.mxu0 0.0
  %2471 = vmatprep.subr.mxu0 0.0
  %2472 = vmatpush1.msra.mxu0 0.0
  %2473 = vmatprep.subr.mxu0 0.0
  %2474 = vmatpush1.msra.mxu0 0.0
  %2475 = vmatprep.subr.mxu0 0.0
  %2476 = vmatpush1.msra.mxu0 0.0
  %2477 = vmatprep.subr.mxu0 0.0
  %2478 = vmatpush1.msra.mxu0 0.0
  %2479 = vmatprep.subr.mxu0 0.0
  %2480 = vmatpush1.msra.mxu0 0.0
  %2481 = vmatprep.subr.mxu0 0.0
  %2482 = vmatpush1.msra.mxu0 0.0
  %2483 = vmatprep.subr.mxu0 0.0
  %2484 = vmatpush1.msra.mxu0 0.0
  %2485 = vmatprep.subr.mxu0 0.0
  %2486 = vmatpush1.msra.mxu0 0.0
  %2487 = vmatprep.subr.mxu0 0.0
  %2488 = vmatpush1.msra.mxu0 0.0
  %2489 = vmatprep.subr.mxu0 0.0
  %2490 = vmatpush1.msra.mxu0 0.0
  %2491 = vmatprep.subr.mxu0 0.0
  %2492 = vmatpush1.msra.mxu0 0.0
  %2493 = vmatprep.subr.mxu0 0.0
  %2494 = vmatpush1.msra.mxu0 0.0
  %2495 = vmatprep.subr.mxu0 0.0
  %2496 = vmatpush1.msra.mxu0 0.0
  %2497 = vmatprep.subr.mxu0 0.0
  %2498 = vmatpush1.msra.mxu0 0.0
  %2499 = vmatprep.mubr.f32.mxu0 0.0
  %2500 = vmatmul.mubr.f32.gmra.mrb[0].mxu0 %v1074
  %v2501 = vpop.f32.mrb[0].mxu0
  %v2502 = vadd.f32 0.0, %v2501
  %v2503 = vpop.f32.mrb[0].mxu0
  %2504 = vmatprep.mubr.f32.mxu0 0.0
  %2505 = vmatmul.mubr.f32.gmra.mrb[0].mxu0 %v1077
  %v2506 = vpop.f32.mrb[0].mxu0
  %v2507 = vadd.f32 0.0, %v2506
  %v2508 = vpop.f32.mrb[0].mxu0
  %2509 = vmatprep.mubr.f32.mxu0 0.0
  %2510 = vmatmul.mubr.f32.gmra.mrb[0].mxu0 %v1080
  %v2511 = vpop.f32.mrb[0].mxu0
  %v2512 = vadd.f32 0.0, %v2511
  %v2513 = vpop.f32.mrb[0].mxu0
  %2514 = vmatprep.mubr.f32.mxu0 0.0
  %2515 = vmatmul.mubr.f32.gmra.mrb[0].mxu0 %v1083
  %v2516 = vpop.f32.mrb[0].mxu0
  %v2517 = vadd.f32 0.0, %v2516
  %v2518 = vpop.f32.mrb[0].mxu0
  %2519 = vdwg.mxu0
  %v2520 = vld [vmem:[%s367 + $0x20] sm:$0xff]
  %v2521 = vld [vmem:[%s367 + $0x28] sm:$0xff]
  %v2522 = vld [vmem:[%s367 + $0x30] sm:$0xff]
  %v2523 = vld [vmem:[%s367 + $0x38] sm:$0xff]
  %v2524 = vmul.f32 %v2502, %v2520
  %v2525 = vmul.f32 %v2507, %v2521
  %v2526 = vmul.f32 %v2512, %v2522
  %v2527 = vmul.f32 %v2517, %v2523
  %v2528 = vadd.f32 %v2424, %v2524
  %v2529 = vadd.f32 %v2425, %v2525
  %v2530 = vadd.f32 %v2426, %v2526
  %v2531 = vadd.f32 %v2427, %v2527
  %v2532 = vsub.f32 %v2246, %v2328
  %v2533 = vmul.f32 %v2532, 1.442695
  %v2534 = vpow.pop %v2533
  %v2535 = vadd.f32 %v2431, %v2534
  %v2537 = vsel %vm1085, %v2534, 0
  %2539 = vmatprep.subr.mxu0 0.0
  %2540 = vmatpush1.msra.mxu0 %v2537
  %2541 = vmatprep.subr.mxu0 0.0
  %2542 = vmatpush1.msra.mxu0 0.0
  %2543 = vmatprep.subr.mxu0 0.0
  %2544 = vmatpush1.msra.mxu0 0.0
  %2545 = vmatprep.subr.mxu0 0.0
  %2546 = vmatpush1.msra.mxu0 0.0
  %2547 = vmatprep.subr.mxu0 0.0
  %2548 = vmatpush1.msra.mxu0 0.0
  %2549 = vmatprep.subr.mxu0 0.0
  %2550 = vmatpush1.msra.mxu0 0.0
  %2551 = vmatprep.subr.mxu0 0.0
  %2552 = vmatpush1.msra.mxu0 0.0
  %2553 = vmatprep.subr.mxu0 0.0
  %2554 = vmatpush1.msra.mxu0 0.0
  %2555 = vmatprep.subr.mxu0 0.0
  %2556 = vmatpush1.msra.mxu0 0.0
  %2557 = vmatprep.subr.mxu0 0.0
  %2558 = vmatpush1.msra.mxu0 0.0
  %2559 = vmatprep.subr.mxu0 0.0
  %2560 = vmatpush1.msra.mxu0 0.0
  %2561 = vmatprep.subr.mxu0 0.0
  %2562 = vmatpush1.msra.mxu0 0.0
  %2563 = vmatprep.subr.mxu0 0.0
  %2564 = vmatpush1.msra.mxu0 0.0
  %2565 = vmatprep.subr.mxu0 0.0
  %2566 = vmatpush1.msra.mxu0 0.0
  %2567 = vmatprep.subr.mxu0 0.0
  %2568 = vmatpush1.msra.mxu0 0.0
  %2569 = vmatprep.subr.mxu0 0.0
  %2570 = vmatpush1.msra.mxu0 0.0
  %2571 = vmatprep.subr.mxu0 0.0
  %2572 = vmatpush1.msra.mxu0 0.0
  %2573 = vmatprep.subr.mxu0 0.0
  %2574 = vmatpush1.msra.mxu0 0.0
  %2575 = vmatprep.subr.mxu0 0.0
  %2576 = vmatpush1.msra.mxu0 0.0
  %2577 = vmatprep.subr.mxu0 0.0
  %2578 = vmatpush1.msra.mxu0 0.0
  %2579 = vmatprep.subr.mxu0 0.0
  %2580 = vmatpush1.msra.mxu0 0.0
  %2581 = vmatprep.subr.mxu0 0.0
  %2582 = vmatpush1.msra.mxu0 0.0
  %2583 = vmatprep.subr.mxu0 0.0
  %2584 = vmatpush1.msra.mxu0 0.0
  %2585 = vmatprep.subr.mxu0 0.0
  %2586 = vmatpush1.msra.mxu0 0.0
  %2587 = vmatprep.subr.mxu0 0.0
  %2588 = vmatpush1.msra.mxu0 0.0
  %2589 = vmatprep.subr.mxu0 0.0
  %2590 = vmatpush1.msra.mxu0 0.0
  %2591 = vmatprep.subr.mxu0 0.0
  %2592 = vmatpush1.msra.mxu0 0.0
  %2593 = vmatprep.subr.mxu0 0.0
  %2594 = vmatpush1.msra.mxu0 0.0
  %2595 = vmatprep.subr.mxu0 0.0
  %2596 = vmatpush1.msra.mxu0 0.0
  %2597 = vmatprep.subr.mxu0 0.0
  %2598 = vmatpush1.msra.mxu0 0.0
  %2599 = vmatprep.subr.mxu0 0.0
  %2600 = vmatpush1.msra.mxu0 0.0
  %2601 = vmatprep.subr.mxu0 0.0
  %2602 = vmatpush1.msra.mxu0 0.0
  %2603 = vmatprep.mubr.f32.mxu0 0.0
  %2604 = vmatmul.mubr.f32.gmra.mrb[0].mxu0 %v1074
  %v2605 = vpop.f32.mrb[0].mxu0
  %v2606 = vadd.f32 0.0, %v2605
  %v2607 = vpop.f32.mrb[0].mxu0
  %2608 = vmatprep.mubr.f32.mxu0 0.0
  %2609 = vmatmul.mubr.f32.gmra.mrb[0].mxu0 %v1077
  %v2610 = vpop.f32.mrb[0].mxu0
  %v2611 = vadd.f32 0.0, %v2610
  %v2612 = vpop.f32.mrb[0].mxu0
  %2613 = vmatprep.mubr.f32.mxu0 0.0
  %2614 = vmatmul.mubr.f32.gmra.mrb[0].mxu0 %v1080
  %v2615 = vpop.f32.mrb[0].mxu0
  %v2616 = vadd.f32 0.0, %v2615
  %v2617 = vpop.f32.mrb[0].mxu0
  %2618 = vmatprep.mubr.f32.mxu0 0.0
  %2619 = vmatmul.mubr.f32.gmra.mrb[0].mxu0 %v1083
  %v2620 = vpop.f32.mrb[0].mxu0
  %v2621 = vadd.f32 0.0, %v2620
  %v2622 = vpop.f32.mrb[0].mxu0
  %2623 = vdwg.mxu0
  %v2624 = vld [vmem:[%s486 + $0x20] sm:$0xff]
  %v2625 = vld [vmem:[%s486 + $0x28] sm:$0xff]
  %v2626 = vld [vmem:[%s486 + $0x30] sm:$0xff]
  %v2627 = vld [vmem:[%s486 + $0x38] sm:$0xff]
  %v2628 = vmul.f32 %v2606, %v2624
  %v2629 = vmul.f32 %v2611, %v2625
  %v2630 = vmul.f32 %v2616, %v2626
  %v2631 = vmul.f32 %v2621, %v2627
  %v2632 = vadd.f32 %v2528, %v2628
  %v2633 = vadd.f32 %v2529, %v2629
  %v2634 = vadd.f32 %v2530, %v2630
  %v2635 = vadd.f32 %v2531, %v2631
  %v2636 = vsub.f32 %v2325, %v2328
  %v2637 = vmul.f32 %v2636, 1.442695
  %v2638 = vpow.pop %v2637
  %v2639 = vadd.f32 %v2535, %v2638
  %v2641 = vsel %vm1085, %v2638, 0
  %2643 = vmatprep.subr.mxu0 0.0
  %2644 = vmatpush1.msra.mxu0 %v2641
  %2645 = vmatprep.subr.mxu0 0.0
  %2646 = vmatpush1.msra.mxu0 0.0
  %2647 = vmatprep.subr.mxu0 0.0
  %2648 = vmatpush1.msra.mxu0 0.0
  %2649 = vmatprep.subr.mxu0 0.0
  %2650 = vmatpush1.msra.mxu0 0.0
  %2651 = vmatprep.subr.mxu0 0.0
  %2652 = vmatpush1.msra.mxu0 0.0
  %2653 = vmatprep.subr.mxu0 0.0
  %2654 = vmatpush1.msra.mxu0 0.0
  %2655 = vmatprep.subr.mxu0 0.0
  %2656 = vmatpush1.msra.mxu0 0.0
  %2657 = vmatprep.subr.mxu0 0.0
  %2658 = vmatpush1.msra.mxu0 0.0
  %2659 = vmatprep.subr.mxu0 0.0
  %2660 = vmatpush1.msra.mxu0 0.0
  %2661 = vmatprep.subr.mxu0 0.0
  %2662 = vmatpush1.msra.mxu0 0.0
  %2663 = vmatprep.subr.mxu0 0.0
  %2664 = vmatpush1.msra.mxu0 0.0
  %2665 = vmatprep.subr.mxu0 0.0
  %2666 = vmatpush1.msra.mxu0 0.0
  %2667 = vmatprep.subr.mxu0 0.0
  %2668 = vmatpush1.msra.mxu0 0.0
  %2669 = vmatprep.subr.mxu0 0.0
  %2670 = vmatpush1.msra.mxu0 0.0
  %2671 = vmatprep.subr.mxu0 0.0
  %2672 = vmatpush1.msra.mxu0 0.0
  %2673 = vmatprep.subr.mxu0 0.0
  %2674 = vmatpush1.msra.mxu0 0.0
  %2675 = vmatprep.subr.mxu0 0.0
  %2676 = vmatpush1.msra.mxu0 0.0
  %2677 = vmatprep.subr.mxu0 0.0
  %2678 = vmatpush1.msra.mxu0 0.0
  %2679 = vmatprep.subr.mxu0 0.0
  %2680 = vmatpush1.msra.mxu0 0.0
  %2681 = vmatprep.subr.mxu0 0.0
  %2682 = vmatpush1.msra.mxu0 0.0
  %2683 = vmatprep.subr.mxu0 0.0
  %2684 = vmatpush1.msra.mxu0 0.0
  %2685 = vmatprep.subr.mxu0 0.0
  %2686 = vmatpush1.msra.mxu0 0.0
  %2687 = vmatprep.subr.mxu0 0.0
  %2688 = vmatpush1.msra.mxu0 0.0
  %2689 = vmatprep.subr.mxu0 0.0
  %2690 = vmatpush1.msra.mxu0 0.0
  %2691 = vmatprep.subr.mxu0 0.0
  %2692 = vmatpush1.msra.mxu0 0.0
  %2693 = vmatprep.subr.mxu0 0.0
  %2694 = vmatpush1.msra.mxu0 0.0
  %2695 = vmatprep.subr.mxu0 0.0
  %2696 = vmatpush1.msra.mxu0 0.0
  %2697 = vmatprep.subr.mxu0 0.0
  %2698 = vmatpush1.msra.mxu0 0.0
  %2699 = vmatprep.subr.mxu0 0.0
  %2700 = vmatpush1.msra.mxu0 0.0
  %2701 = vmatprep.subr.mxu0 0.0
  %2702 = vmatpush1.msra.mxu0 0.0
  %2703 = vmatprep.subr.mxu0 0.0
  %2704 = vmatpush1.msra.mxu0 0.0
  %2705 = vmatprep.subr.mxu0 0.0
  %2706 = vmatpush1.msra.mxu0 0.0
  %2707 = vmatprep.mubr.f32.mxu0 0.0
  %2708 = vmatmul.mubr.f32.gmra.mrb[0].mxu0 %v1074
  %v2709 = vpop.f32.mrb[0].mxu0
  %v2710 = vadd.f32 0.0, %v2709
  %v2711 = vpop.f32.mrb[0].mxu0
  %2712 = vmatprep.mubr.f32.mxu0 0.0
  %2713 = vmatmul.mubr.f32.gmra.mrb[0].mxu0 %v1077
  %v2714 = vpop.f32.mrb[0].mxu0
  %v2715 = vadd.f32 0.0, %v2714
  %v2716 = vpop.f32.mrb[0].mxu0
  %2717 = vmatprep.mubr.f32.mxu0 0.0
  %2718 = vmatmul.mubr.f32.gmra.mrb[0].mxu0 %v1080
  %v2719 = vpop.f32.mrb[0].mxu0
  %v2720 = vadd.f32 0.0, %v2719
  %v2721 = vpop.f32.mrb[0].mxu0
  %2722 = vmatprep.mubr.f32.mxu0 0.0
  %2723 = vmatmul.mubr.f32.gmra.mrb[0].mxu0 %v1083
  %v2724 = vpop.f32.mrb[0].mxu0
  %v2725 = vadd.f32 0.0, %v2724
  %v2726 = vpop.f32.mrb[0].mxu0
  %2727 = vdwg.mxu0
  %v2728 = vld [vmem:[%s605 + $0x20] sm:$0xff]
  %v2729 = vld [vmem:[%s605 + $0x28] sm:$0xff]
  %v2730 = vld [vmem:[%s605 + $0x30] sm:$0xff]
  %v2731 = vld [vmem:[%s605 + $0x38] sm:$0xff]
  %v2732 = vmul.f32 %v2710, %v2728
  %v2733 = vmul.f32 %v2715, %v2729
  %v2734 = vmul.f32 %v2720, %v2730
  %v2735 = vmul.f32 %v2725, %v2731
  %v2736 = vadd.f32 %v2632, %v2732
  %v2737 = vadd.f32 %v2633, %v2733
  %v2738 = vadd.f32 %v2634, %v2734
  %v2739 = vadd.f32 %v2635, %v2735
  %v2740 = vrcp.pop %v2639
  %v2741 = vmul.f32 %v2639, %v2740
  %v2742 = vsub.f32 2.0, %v2741
  %v2743 = vmul.f32 %v2740, %v2742
  %v2745 = vsel %vm1085, %v2743, 0
  %2747 = vmatprep.subr.mxu0 0.0
  %2748 = vmatpush1.msra.mxu0 %v2745
  %2749 = vmatprep.subr.mxu0 0.0
  %2750 = vmatpush1.msra.mxu0 0.0
  %2751 = vmatprep.subr.mxu0 0.0
  %2752 = vmatpush1.msra.mxu0 0.0
  %2753 = vmatprep.subr.mxu0 0.0
  %2754 = vmatpush1.msra.mxu0 0.0
  %2755 = vmatprep.subr.mxu0 0.0
  %2756 = vmatpush1.msra.mxu0 0.0
  %2757 = vmatprep.subr.mxu0 0.0
  %2758 = vmatpush1.msra.mxu0 0.0
  %2759 = vmatprep.subr.mxu0 0.0
  %2760 = vmatpush1.msra.mxu0 0.0
  %2761 = vmatprep.subr.mxu0 0.0
  %2762 = vmatpush1.msra.mxu0 0.0
  %2763 = vmatprep.subr.mxu0 0.0
  %2764 = vmatpush1.msra.mxu0 0.0
  %2765 = vmatprep.subr.mxu0 0.0
  %2766 = vmatpush1.msra.mxu0 0.0
  %2767 = vmatprep.subr.mxu0 0.0
  %2768 = vmatpush1.msra.mxu0 0.0
  %2769 = vmatprep.subr.mxu0 0.0
  %2770 = vmatpush1.msra.mxu0 0.0
  %2771 = vmatprep.subr.mxu0 0.0
  %2772 = vmatpush1.msra.mxu0 0.0
  %2773 = vmatprep.subr.mxu0 0.0
  %2774 = vmatpush1.msra.mxu0 0.0
  %2775 = vmatprep.subr.mxu0 0.0
  %2776 = vmatpush1.msra.mxu0 0.0
  %2777 = vmatprep.subr.mxu0 0.0
  %2778 = vmatpush1.msra.mxu0 0.0
  %2779 = vmatprep.subr.mxu0 0.0
  %2780 = vmatpush1.msra.mxu0 0.0
  %2781 = vmatprep.subr.mxu0 0.0
  %2782 = vmatpush1.msra.mxu0 0.0
  %2783 = vmatprep.subr.mxu0 0.0
  %2784 = vmatpush1.msra.mxu0 0.0
  %2785 = vmatprep.subr.mxu0 0.0
  %2786 = vmatpush1.msra.mxu0 0.0
  %2787 = vmatprep.subr.mxu0 0.0
  %2788 = vmatpush1.msra.mxu0 0.0
  %2789 = vmatprep.subr.mxu0 0.0
  %2790 = vmatpush1.msra.mxu0 0.0
  %2791 = vmatprep.subr.mxu0 0.0
  %2792 = vmatpush1.msra.mxu0 0.0
  %2793 = vmatprep.subr.mxu0 0.0
  %2794 = vmatpush1.msra.mxu0 0.0
  %2795 = vmatprep.subr.mxu0 0.0
  %2796 = vmatpush1.msra.mxu0 0.0
  %2797 = vmatprep.subr.mxu0 0.0
  %2798 = vmatpush1.msra.mxu0 0.0
  %2799 = vmatprep.subr.mxu0 0.0
  %2800 = vmatpush1.msra.mxu0 0.0
  %2801 = vmatprep.subr.mxu0 0.0
  %2802 = vmatpush1.msra.mxu0 0.0
  %2803 = vmatprep.subr.mxu0 0.0
  %2804 = vmatpush1.msra.mxu0 0.0
  %2805 = vmatprep.subr.mxu0 0.0
  %2806 = vmatpush1.msra.mxu0 0.0
  %2807 = vmatprep.subr.mxu0 0.0
  %2808 = vmatpush1.msra.mxu0 0.0
  %2809 = vmatprep.subr.mxu0 0.0
  %2810 = vmatpush1.msra.mxu0 0.0
  %2811 = vmatprep.mubr.f32.mxu0 0.0
  %2812 = vmatmul.mubr.f32.gmra.mrb[0].mxu0 %v1074
  %v2813 = vpop.f32.mrb[0].mxu0
  %v2814 = vadd.f32 0.0, %v2813
  %v2815 = vpop.f32.mrb[0].mxu0
  %2816 = vmatprep.mubr.f32.mxu0 0.0
  %2817 = vmatmul.mubr.f32.gmra.mrb[0].mxu0 %v1077
  %v2818 = vpop.f32.mrb[0].mxu0
  %v2819 = vadd.f32 0.0, %v2818
  %v2820 = vpop.f32.mrb[0].mxu0
  %2821 = vmatprep.mubr.f32.mxu0 0.0
  %2822 = vmatmul.mubr.f32.gmra.mrb[0].mxu0 %v1080
  %v2823 = vpop.f32.mrb[0].mxu0
  %v2824 = vadd.f32 0.0, %v2823
  %v2825 = vpop.f32.mrb[0].mxu0
  %2826 = vmatprep.mubr.f32.mxu0 0.0
  %2827 = vmatmul.mubr.f32.gmra.mrb[0].mxu0 %v1083
  %v2828 = vpop.f32.mrb[0].mxu0
  %v2829 = vadd.f32 0.0, %v2828
  %v2830 = vpop.f32.mrb[0].mxu0
  %2831 = vdwg.mxu0
  %v2832 = vmul.f32 %v2736, %v2814
  %v2833 = vmul.f32 %v2737, %v2819
  %v2834 = vmul.f32 %v2738, %v2824
  %v2835 = vmul.f32 %v2739, %v2829
  %2836 = vmatprep.subr.mxu0 0.0
  %2837 = vmatpush1.msra.mxu0 %v2832
  %2838 = vmatprep.subr.mxu0 0.0
  %2839 = vmatpush1.msra.mxu0 %v2833
  %2840 = vmatprep.subr.mxu0 0.0
  %2841 = vmatpush1.msra.mxu0 %v2834
  %2842 = vmatprep.subr.mxu0 0.0
  %2843 = vmatpush1.msra.mxu0 %v2835
  %2844 = vmatprep.subr.mxu0 0.0
  %2845 = vmatpush1.msra.mxu0 0.0
  %2846 = vmatprep.subr.mxu0 0.0
  %2847 = vmatpush1.msra.mxu0 0.0
  %2848 = vmatprep.subr.mxu0 0.0
  %2849 = vmatpush1.msra.mxu0 0.0
  %2850 = vmatprep.subr.mxu0 0.0
  %2851 = vmatpush1.msra.mxu0 0.0
  %2852 = vmatprep.subr.mxu0 0.0
  %2853 = vmatpush1.msra.mxu0 0.0
  %2854 = vmatprep.subr.mxu0 0.0
  %2855 = vmatpush1.msra.mxu0 0.0
  %2856 = vmatprep.subr.mxu0 0.0
  %2857 = vmatpush1.msra.mxu0 0.0
  %2858 = vmatprep.subr.mxu0 0.0
  %2859 = vmatpush1.msra.mxu0 0.0
  %2860 = vmatprep.subr.mxu0 0.0
  %2861 = vmatpush1.msra.mxu0 0.0
  %2862 = vmatprep.subr.mxu0 0.0
  %2863 = vmatpush1.msra.mxu0 0.0
  %2864 = vmatprep.subr.mxu0 0.0
  %2865 = vmatpush1.msra.mxu0 0.0
  %2866 = vmatprep.subr.mxu0 0.0
  %2867 = vmatpush1.msra.mxu0 0.0
  %2868 = vmatprep.subr.mxu0 0.0
  %2869 = vmatpush1.msra.mxu0 0.0
  %2870 = vmatprep.subr.mxu0 0.0
  %2871 = vmatpush1.msra.mxu0 0.0
  %2872 = vmatprep.subr.mxu0 0.0
  %2873 = vmatpush1.msra.mxu0 0.0
  %2874 = vmatprep.subr.mxu0 0.0
  %2875 = vmatpush1.msra.mxu0 0.0
  %2876 = vmatprep.subr.mxu0 0.0
  %2877 = vmatpush1.msra.mxu0 0.0
  %2878 = vmatprep.subr.mxu0 0.0
  %2879 = vmatpush1.msra.mxu0 0.0
  %2880 = vmatprep.subr.mxu0 0.0
  %2881 = vmatpush1.msra.mxu0 0.0
  %2882 = vmatprep.subr.mxu0 0.0
  %2883 = vmatpush1.msra.mxu0 0.0
  %2884 = vmatprep.subr.mxu0 0.0
  %2885 = vmatpush1.msra.mxu0 0.0
  %2886 = vmatprep.subr.mxu0 0.0
  %2887 = vmatpush1.msra.mxu0 0.0
  %2888 = vmatprep.subr.mxu0 0.0
  %2889 = vmatpush1.msra.mxu0 0.0
  %2890 = vmatprep.subr.mxu0 0.0
  %2891 = vmatpush1.msra.mxu0 0.0
  %2892 = vmatprep.subr.mxu0 0.0
  %2893 = vmatpush1.msra.mxu0 0.0
  %2894 = vmatprep.subr.mxu0 0.0
  %2895 = vmatpush1.msra.mxu0 0.0
  %2896 = vmatprep.subr.mxu0 0.0
  %2897 = vmatpush1.msra.mxu0 0.0
  %2898 = vmatprep.subr.mxu0 0.0
  %2899 = vmatpush1.msra.mxu0 0.0
  %2900 = vmatprep.mubr.f32.mxu0 0.0
  %2901 = vmatmul.mubr.f32.gmra.mrb[0].mxu0 %v1611
  %v2902 = vpop.f32.mrb[0].mxu0
  %v2903 = vadd.f32 %v1593, %v2902
  %v2904 = vpop.f32.mrb[0].mxu0
  %2905 = vmatprep.mubr.f32.mxu0 0.0
  %2906 = vmatmul.mubr.f32.gmra.mrb[0].mxu0 %v1614
  %v2907 = vpop.f32.mrb[0].mxu0
  %v2908 = vadd.f32 %v1598, %v2907
  %v2909 = vpop.f32.mrb[0].mxu0
  %2910 = vmatprep.mubr.f32.mxu0 0.0
  %2911 = vmatmul.mubr.f32.gmra.mrb[0].mxu0 %v1617
  %v2912 = vpop.f32.mrb[0].mxu0
  %v2913 = vadd.f32 %v1603, %v2912
  %v2914 = vpop.f32.mrb[0].mxu0
  %2915 = vmatprep.mubr.f32.mxu0 0.0
  %2916 = vmatmul.mubr.f32.gmra.mrb[0].mxu0 %v1620
  %v2917 = vpop.f32.mrb[0].mxu0
  %v2918 = vadd.f32 %v1608, %v2917
  %v2919 = vpop.f32.mrb[0].mxu0
  %2920 = vdwg.mxu0
  %v2921 = vadd.f32 %v2903, %v1925
  %v2922 = vadd.f32 %v2908, %v1926
  %v2923 = vadd.f32 %v2913, %v1927
  %v2924 = vadd.f32 %v2918, %v1928
  %2925 = vmatprep.subr.mxu0 0.0
  %2926 = vmatpush1.msra.mxu0 %v2921
  %2927 = vmatprep.subr.mxu0 0.0
  %2928 = vmatpush1.msra.mxu0 %v2922
  %2929 = vmatprep.subr.mxu0 0.0
  %2930 = vmatpush1.msra.mxu0 %v2923
  %2931 = vmatprep.subr.mxu0 0.0
  %2932 = vmatpush1.msra.mxu0 %v2924
  %2933 = vmatprep.subr.mxu0 0.0
  %2934 = vmatpush1.msra.mxu0 0.0
  %2935 = vmatprep.subr.mxu0 0.0
  %2936 = vmatpush1.msra.mxu0 0.0
  %2937 = vmatprep.subr.mxu0 0.0
  %2938 = vmatpush1.msra.mxu0 0.0
  %2939 = vmatprep.subr.mxu0 0.0
  %2940 = vmatpush1.msra.mxu0 0.0
  %2941 = vmatprep.subr.mxu0 0.0
  %2942 = vmatpush1.msra.mxu0 0.0
  %2943 = vmatprep.subr.mxu0 0.0
  %2944 = vmatpush1.msra.mxu0 0.0
  %2945 = vmatprep.subr.mxu0 0.0
  %2946 = vmatpush1.msra.mxu0 0.0
  %2947 = vmatprep.subr.mxu0 0.0
  %2948 = vmatpush1.msra.mxu0 0.0
  %2949 = vmatprep.subr.mxu0 0.0
  %2950 = vmatpush1.msra.mxu0 0.0
  %2951 = vmatprep.subr.mxu0 0.0
  %2952 = vmatpush1.msra.mxu0 0.0
  %2953 = vmatprep.subr.mxu0 0.0
  %2954 = vmatpush1.msra.mxu0 0.0
  %2955 = vmatprep.subr.mxu0 0.0
  %2956 = vmatpush1.msra.mxu0 0.0
  %2957 = vmatprep.subr.mxu0 0.0
  %2958 = vmatpush1.msra.mxu0 0.0
  %2959 = vmatprep.subr.mxu0 0.0
  %2960 = vmatpush1.msra.mxu0 0.0
  %2961 = vmatprep.subr.mxu0 0.0
  %2962 = vmatpush1.msra.mxu0 0.0
  %2963 = vmatprep.subr.mxu0 0.0
  %2964 = vmatpush1.msra.mxu0 0.0
  %2965 = vmatprep.subr.mxu0 0.0
  %2966 = vmatpush1.msra.mxu0 0.0
  %2967 = vmatprep.subr.mxu0 0.0
  %2968 = vmatpush1.msra.mxu0 0.0
  %2969 = vmatprep.subr.mxu0 0.0
  %2970 = vmatpush1.msra.mxu0 0.0
  %2971 = vmatprep.subr.mxu0 0.0
  %2972 = vmatpush1.msra.mxu0 0.0
  %2973 = vmatprep.subr.mxu0 0.0
  %2974 = vmatpush1.msra.mxu0 0.0
  %2975 = vmatprep.subr.mxu0 0.0
  %2976 = vmatpush1.msra.mxu0 0.0
  %2977 = vmatprep.subr.mxu0 0.0
  %2978 = vmatpush1.msra.mxu0 0.0
  %2979 = vmatprep.subr.mxu0 0.0
  %2980 = vmatpush1.msra.mxu0 0.0
  %2981 = vmatprep.subr.mxu0 0.0
  %2982 = vmatpush1.msra.mxu0 0.0
  %2983 = vmatprep.subr.mxu0 0.0
  %2984 = vmatpush1.msra.mxu0 0.0
  %2985 = vmatprep.subr.mxu0 0.0
  %2986 = vmatpush1.msra.mxu0 0.0
  %2987 = vmatprep.subr.mxu0 0.0
  %2988 = vmatpush1.msra.mxu0 0.0
  %2989 = vmatprep.mubr.f32.mxu0 0.0
  %2990 = vmatmul.mubr.f32.gmra.mrb[0].mxu0 %v1712
  %v2991 = vpop.f32.mrb[0].mxu0
  %v2992 = vadd.f32 0.0, %v2991
  %v2993 = vpop.f32.mrb[0].mxu0
  %2994 = vdwg.mxu0
  %v2995 = vmul.f32 %v2992, 0.03125
  %v2996 = vmul.f32 %v2921, %v2921
  %v2997 = vmul.f32 %v2922, %v2922
  %v2998 = vmul.f32 %v2923, %v2923
  %v2999 = vmul.f32 %v2924, %v2924
  %3000 = vmatprep.subr.mxu0 0.0
  %3001 = vmatpush1.msra.mxu0 %v2996
  %3002 = vmatprep.subr.mxu0 0.0
  %3003 = vmatpush1.msra.mxu0 %v2997
  %3004 = vmatprep.subr.mxu0 0.0
  %3005 = vmatpush1.msra.mxu0 %v2998
  %3006 = vmatprep.subr.mxu0 0.0
  %3007 = vmatpush1.msra.mxu0 %v2999
  %3008 = vmatprep.subr.mxu0 0.0
  %3009 = vmatpush1.msra.mxu0 0.0
  %3010 = vmatprep.subr.mxu0 0.0
  %3011 = vmatpush1.msra.mxu0 0.0
  %3012 = vmatprep.subr.mxu0 0.0
  %3013 = vmatpush1.msra.mxu0 0.0
  %3014 = vmatprep.subr.mxu0 0.0
  %3015 = vmatpush1.msra.mxu0 0.0
  %3016 = vmatprep.subr.mxu0 0.0
  %3017 = vmatpush1.msra.mxu0 0.0
  %3018 = vmatprep.subr.mxu0 0.0
  %3019 = vmatpush1.msra.mxu0 0.0
  %3020 = vmatprep.subr.mxu0 0.0
  %3021 = vmatpush1.msra.mxu0 0.0
  %3022 = vmatprep.subr.mxu0 0.0
  %3023 = vmatpush1.msra.mxu0 0.0
  %3024 = vmatprep.subr.mxu0 0.0
  %3025 = vmatpush1.msra.mxu0 0.0
  %3026 = vmatprep.subr.mxu0 0.0
  %3027 = vmatpush1.msra.mxu0 0.0
  %3028 = vmatprep.subr.mxu0 0.0
  %3029 = vmatpush1.msra.mxu0 0.0
  %3030 = vmatprep.subr.mxu0 0.0
  %3031 = vmatpush1.msra.mxu0 0.0
  %3032 = vmatprep.subr.mxu0 0.0
  %3033 = vmatpush1.msra.mxu0 0.0
  %3034 = vmatprep.subr.mxu0 0.0
  %3035 = vmatpush1.msra.mxu0 0.0
  %3036 = vmatprep.subr.mxu0 0.0
  %3037 = vmatpush1.msra.mxu0 0.0
  %3038 = vmatprep.subr.mxu0 0.0
  %3039 = vmatpush1.msra.mxu0 0.0
  %3040 = vmatprep.subr.mxu0 0.0
  %3041 = vmatpush1.msra.mxu0 0.0
  %3042 = vmatprep.subr.mxu0 0.0
  %3043 = vmatpush1.msra.mxu0 0.0
  %3044 = vmatprep.subr.mxu0 0.0
  %3045 = vmatpush1.msra.mxu0 0.0
  %3046 = vmatprep.subr.mxu0 0.0
  %3047 = vmatpush1.msra.mxu0 0.0
  %3048 = vmatprep.subr.mxu0 0.0
  %3049 = vmatpush1.msra.mxu0 0.0
  %3050 = vmatprep.subr.mxu0 0.0
  %3051 = vmatpush1.msra.mxu0 0.0
  %3052 = vmatprep.subr.mxu0 0.0
  %3053 = vmatpush1.msra.mxu0 0.0
  %3054 = vmatprep.subr.mxu0 0.0
  %3055 = vmatpush1.msra.mxu0 0.0
  %3056 = vmatprep.subr.mxu0 0.0
  %3057 = vmatpush1.msra.mxu0 0.0
  %3058 = vmatprep.subr.mxu0 0.0
  %3059 = vmatpush1.msra.mxu0 0.0
  %3060 = vmatprep.subr.mxu0 0.0
  %3061 = vmatpush1.msra.mxu0 0.0
  %3062 = vmatprep.subr.mxu0 0.0
  %3063 = vmatpush1.msra.mxu0 0.0
  %3064 = vmatprep.mubr.f32.mxu0 0.0
  %3065 = vmatmul.mubr.f32.gmra.mrb[0].mxu0 %v1712
  %v3066 = vpop.f32.mrb[0].mxu0
  %v3067 = vadd.f32 0.0, %v3066
  %v3068 = vpop.f32.mrb[0].mxu0
  %3069 = vdwg.mxu0
  %v3070 = vmul.f32 %v3067, 0.03125
  %v3071 = vmul.f32 %v2995, %v2995
  %v3072 = vsub.f32 %v3070, %v3071
  %v3073 = vmax.f32 %v3072, 0.0
  %v3074 = vlaneseq
  %v3075 = vshrl.u32 %v3074, 7
  %v3076 = vsub.s32 0, %v3075
  %v3077 = vrot.slane %v2995, %v3076
  %v3078 = vsub.f32 %v2921, %v3077
  %v3079 = vsub.f32 %v2922, %v3077
  %v3080 = vsub.f32 %v2923, %v3077
  %v3081 = vsub.f32 %v2924, %v3077
  %v3082 = vadd.f32 %v3073, 1e-05
  %v3083 = vrsqrt.pop %v3082
  %v3084 = vlaneseq
  %v3085 = vshrl.u32 %v3084, 7
  %v3086 = vsub.s32 0, %v3085
  %v3087 = vrot.slane %v3083, %v3086
  %v3088 = vmul.f32 %v3078, %v3087
  %v3089 = vmul.f32 %v3079, %v3087
  %v3090 = vmul.f32 %v3080, %v3087
  %v3091 = vmul.f32 %v3081, %v3087
  %v3092 = vmul.f32 %v3088, %v1883
  %v3093 = vmul.f32 %v3089, %v1887
  %v3094 = vmul.f32 %v3090, %v1891
  %v3095 = vmul.f32 %v3091, %v1895
  %v3096 = vadd.f32 %v3092, %v1903
  %v3097 = vadd.f32 %v3093, %v1907
  %v3098 = vadd.f32 %v3094, %v1911
  %v3099 = vadd.f32 %v3095, %v1915
  %s3100 = scalar_lea.vmem %s5, 32
  %3101 = vst.msk [vmem:[%s3100] sm:$0xff] %vm248, %v3096
  %3102 = vst.msk [vmem:[%s3100 + $0x8] sm:$0xff] %vm248, %v3097
  %3103 = vst.msk [vmem:[%s3100 + $0x10] sm:$0xff] %vm248, %v3098
  %3104 = vst.msk [vmem:[%s3100 + $0x18] sm:$0xff] %vm248, %v3099
  %v3105 = vld [vmem:[%s376] sm:$0xff]
  %v3106 = vld [vmem:[%s376 + $0x8] sm:$0xff]
  %v3107 = vld [vmem:[%s376 + $0x10] sm:$0xff]
  %v3108 = vld [vmem:[%s376 + $0x18] sm:$0xff]
  %3109 = vmatprep.subr.mxu0 0.0
  %3110 = vmatpush1.msra.mxu0 %v3105
  %3111 = vmatprep.subr.mxu0 0.0
  %3112 = vmatpush1.msra.mxu0 %v3106
  %3113 = vmatprep.subr.mxu0 0.0
  %3114 = vmatpush1.msra.mxu0 %v3107
  %3115 = vmatprep.subr.mxu0 0.0
  %3116 = vmatpush1.msra.mxu0 %v3108
  %3117 = vmatprep.subr.mxu0 0.0
  %3118 = vmatpush1.msra.mxu0 0.0
  %3119 = vmatprep.subr.mxu0 0.0
  %3120 = vmatpush1.msra.mxu0 0.0
  %3121 = vmatprep.subr.mxu0 0.0
  %3122 = vmatpush1.msra.mxu0 0.0
  %3123 = vmatprep.subr.mxu0 0.0
  %3124 = vmatpush1.msra.mxu0 0.0
  %3125 = vmatprep.subr.mxu0 0.0
  %3126 = vmatpush1.msra.mxu0 0.0
  %3127 = vmatprep.subr.mxu0 0.0
  %3128 = vmatpush1.msra.mxu0 0.0
  %3129 = vmatprep.subr.mxu0 0.0
  %3130 = vmatpush1.msra.mxu0 0.0
  %3131 = vmatprep.subr.mxu0 0.0
  %3132 = vmatpush1.msra.mxu0 0.0
  %3133 = vmatprep.subr.mxu0 0.0
  %3134 = vmatpush1.msra.mxu0 0.0
  %3135 = vmatprep.subr.mxu0 0.0
  %3136 = vmatpush1.msra.mxu0 0.0
  %3137 = vmatprep.subr.mxu0 0.0
  %3138 = vmatpush1.msra.mxu0 0.0
  %3139 = vmatprep.subr.mxu0 0.0
  %3140 = vmatpush1.msra.mxu0 0.0
  %3141 = vmatprep.subr.mxu0 0.0
  %3142 = vmatpush1.msra.mxu0 0.0
  %3143 = vmatprep.subr.mxu0 0.0
  %3144 = vmatpush1.msra.mxu0 0.0
  %3145 = vmatprep.subr.mxu0 0.0
  %3146 = vmatpush1.msra.mxu0 0.0
  %3147 = vmatprep.subr.mxu0 0.0
  %3148 = vmatpush1.msra.mxu0 0.0
  %3149 = vmatprep.subr.mxu0 0.0
  %3150 = vmatpush1.msra.mxu0 0.0
  %3151 = vmatprep.subr.mxu0 0.0
  %3152 = vmatpush1.msra.mxu0 0.0
  %3153 = vmatprep.subr.mxu0 0.0
  %3154 = vmatpush1.msra.mxu0 0.0
  %3155 = vmatprep.subr.mxu0 0.0
  %3156 = vmatpush1.msra.mxu0 0.0
  %3157 = vmatprep.subr.mxu0 0.0
  %3158 = vmatpush1.msra.mxu0 0.0
  %3159 = vmatprep.subr.mxu0 0.0
  %3160 = vmatpush1.msra.mxu0 0.0
  %3161 = vmatprep.subr.mxu0 0.0
  %3162 = vmatpush1.msra.mxu0 0.0
  %3163 = vmatprep.subr.mxu0 0.0
  %3164 = vmatpush1.msra.mxu0 0.0
  %3165 = vmatprep.subr.mxu0 0.0
  %3166 = vmatpush1.msra.mxu0 0.0
  %3167 = vmatprep.subr.mxu0 0.0
  %3168 = vmatpush1.msra.mxu0 0.0
  %3169 = vmatprep.subr.mxu0 0.0
  %3170 = vmatpush1.msra.mxu0 0.0
  %3171 = vmatprep.subr.mxu0 0.0
  %3172 = vmatpush1.msra.mxu0 0.0
  %3173 = vmatprep.mubr.f32.mxu0 0.0
  %3174 = vmatmul.mubr.f32.gmra.mrb[0].mxu0 %v655
  %v3175 = vpop.f32.mrb[0].mxu0
  %v3176 = vadd.f32 %v637, %v3175
  %v3177 = vpop.f32.mrb[0].mxu0
  %3178 = vmatprep.mubr.f32.mxu0 0.0
  %3179 = vmatmul.mubr.f32.gmra.mrb[0].mxu0 %v658
  %v3180 = vpop.f32.mrb[0].mxu0
  %v3181 = vadd.f32 %v642, %v3180
  %v3182 = vpop.f32.mrb[0].mxu0
  %3183 = vmatprep.mubr.f32.mxu0 0.0
  %3184 = vmatmul.mubr.f32.gmra.mrb[0].mxu0 %v661
  %v3185 = vpop.f32.mrb[0].mxu0
  %v3186 = vadd.f32 %v647, %v3185
  %v3187 = vpop.f32.mrb[0].mxu0
  %3188 = vmatprep.mubr.f32.mxu0 0.0
  %3189 = vmatmul.mubr.f32.gmra.mrb[0].mxu0 %v664
  %v3190 = vpop.f32.mrb[0].mxu0
  %v3191 = vadd.f32 %v652, %v3190
  %v3192 = vpop.f32.mrb[0].mxu0
  %3193 = vdwg.mxu0
  %v3194 = vld [vmem:[#allocation2] sm:$0xff]
  %v3195 = vld [vmem:[#allocation2 + $0x8] sm:$0xff]
  %v3196 = vld [vmem:[#allocation2 + $0x10] sm:$0xff]
  %v3197 = vld [vmem:[#allocation2 + $0x18] sm:$0xff]
  %v3198 = vmul.f32 %v3176, %v3194
  %v3199 = vmul.f32 %v3181, %v3195
  %v3200 = vmul.f32 %v3186, %v3196
  %v3201 = vmul.f32 %v3191, %v3197
  %3202 = vmatprep.subr.mxu0 0.0
  %3203 = vmatpush1.msra.mxu0 %v3198
  %3204 = vmatprep.subr.mxu0 0.0
  %3205 = vmatpush1.msra.mxu0 %v3199
  %3206 = vmatprep.subr.mxu0 0.0
  %3207 = vmatpush1.msra.mxu0 %v3200
  %3208 = vmatprep.subr.mxu0 0.0
  %3209 = vmatpush1.msra.mxu0 %v3201
  %3210 = vmatprep.subr.mxu0 0.0
  %3211 = vmatpush1.msra.mxu0 0.0
  %3212 = vmatprep.subr.mxu0 0.0
  %3213 = vmatpush1.msra.mxu0 0.0
  %3214 = vmatprep.subr.mxu0 0.0
  %3215 = vmatpush1.msra.mxu0 0.0
  %3216 = vmatprep.subr.mxu0 0.0
  %3217 = vmatpush1.msra.mxu0 0.0
  %3218 = vmatprep.subr.mxu0 0.0
  %3219 = vmatpush1.msra.mxu0 0.0
  %3220 = vmatprep.subr.mxu0 0.0
  %3221 = vmatpush1.msra.mxu0 0.0
  %3222 = vmatprep.subr.mxu0 0.0
  %3223 = vmatpush1.msra.mxu0 0.0
  %3224 = vmatprep.subr.mxu0 0.0
  %3225 = vmatpush1.msra.mxu0 0.0
  %3226 = vmatprep.subr.mxu0 0.0
  %3227 = vmatpush1.msra.mxu0 0.0
  %3228 = vmatprep.subr.mxu0 0.0
  %3229 = vmatpush1.msra.mxu0 0.0
  %3230 = vmatprep.subr.mxu0 0.0
  %3231 = vmatpush1.msra.mxu0 0.0
  %3232 = vmatprep.subr.mxu0 0.0
  %3233 = vmatpush1.msra.mxu0 0.0
  %3234 = vmatprep.subr.mxu0 0.0
  %3235 = vmatpush1.msra.mxu0 0.0
  %3236 = vmatprep.subr.mxu0 0.0
  %3237 = vmatpush1.msra.mxu0 0.0
  %3238 = vmatprep.subr.mxu0 0.0
  %3239 = vmatpush1.msra.mxu0 0.0
  %3240 = vmatprep.subr.mxu0 0.0
  %3241 = vmatpush1.msra.mxu0 0.0
  %3242 = vmatprep.subr.mxu0 0.0
  %3243 = vmatpush1.msra.mxu0 0.0
  %3244 = vmatprep.subr.mxu0 0.0
  %3245 = vmatpush1.msra.mxu0 0.0
  %3246 = vmatprep.subr.mxu0 0.0
  %3247 = vmatpush1.msra.mxu0 0.0
  %3248 = vmatprep.subr.mxu0 0.0
  %3249 = vmatpush1.msra.mxu0 0.0
  %3250 = vmatprep.subr.mxu0 0.0
  %3251 = vmatpush1.msra.mxu0 0.0
  %3252 = vmatprep.subr.mxu0 0.0
  %3253 = vmatpush1.msra.mxu0 0.0
  %3254 = vmatprep.subr.mxu0 0.0
  %3255 = vmatpush1.msra.mxu0 0.0
  %3256 = vmatprep.subr.mxu0 0.0
  %3257 = vmatpush1.msra.mxu0 0.0
  %3258 = vmatprep.subr.mxu0 0.0
  %3259 = vmatpush1.msra.mxu0 0.0
  %3260 = vmatprep.subr.mxu0 0.0
  %3261 = vmatpush1.msra.mxu0 0.0
  %3262 = vmatprep.subr.mxu0 0.0
  %3263 = vmatpush1.msra.mxu0 0.0
  %3264 = vmatprep.subr.mxu0 0.0
  %3265 = vmatpush1.msra.mxu0 0.0
  %3266 = vmatprep.mubr.f32.mxu0 0.0
  %3267 = vmatmul.mubr.f32.gmra.mrb[0].mxu0 %v760
  %v3268 = vpop.f32.mrb[0].mxu0
  %v3269 = vadd.f32 0.0, %v3268
  %v3270 = vpop.f32.mrb[0].mxu0
  %3271 = vdwg.mxu0
  %v3272 = vld [vmem:[%s367] sm:$0xff]
  %v3273 = vld [vmem:[%s367 + $0x8] sm:$0xff]
  %v3274 = vld [vmem:[%s367 + $0x10] sm:$0xff]
  %v3275 = vld [vmem:[%s367 + $0x18] sm:$0xff]
  %v3276 = vmul.f32 %v3176, %v3272
  %v3277 = vmul.f32 %v3181, %v3273
  %v3278 = vmul.f32 %v3186, %v3274
  %v3279 = vmul.f32 %v3191, %v3275
  %3280 = vmatprep.subr.mxu0 0.0
  %3281 = vmatpush1.msra.mxu0 %v3276
  %3282 = vmatprep.subr.mxu0 0.0
  %3283 = vmatpush1.msra.mxu0 %v3277
  %3284 = vmatprep.subr.mxu0 0.0
  %3285 = vmatpush1.msra.mxu0 %v3278
  %3286 = vmatprep.subr.mxu0 0.0
  %3287 = vmatpush1.msra.mxu0 %v3279
  %3288 = vmatprep.subr.mxu0 0.0
  %3289 = vmatpush1.msra.mxu0 0.0
  %3290 = vmatprep.subr.mxu0 0.0
  %3291 = vmatpush1.msra.mxu0 0.0
  %3292 = vmatprep.subr.mxu0 0.0
  %3293 = vmatpush1.msra.mxu0 0.0
  %3294 = vmatprep.subr.mxu0 0.0
  %3295 = vmatpush1.msra.mxu0 0.0
  %3296 = vmatprep.subr.mxu0 0.0
  %3297 = vmatpush1.msra.mxu0 0.0
  %3298 = vmatprep.subr.mxu0 0.0
  %3299 = vmatpush1.msra.mxu0 0.0
  %3300 = vmatprep.subr.mxu0 0.0
  %3301 = vmatpush1.msra.mxu0 0.0
  %3302 = vmatprep.subr.mxu0 0.0
  %3303 = vmatpush1.msra.mxu0 0.0
  %3304 = vmatprep.subr.mxu0 0.0
  %3305 = vmatpush1.msra.mxu0 0.0
  %3306 = vmatprep.subr.mxu0 0.0
  %3307 = vmatpush1.msra.mxu0 0.0
  %3308 = vmatprep.subr.mxu0 0.0
  %3309 = vmatpush1.msra.mxu0 0.0
  %3310 = vmatprep.subr.mxu0 0.0
  %3311 = vmatpush1.msra.mxu0 0.0
  %3312 = vmatprep.subr.mxu0 0.0
  %3313 = vmatpush1.msra.mxu0 0.0
  %3314 = vmatprep.subr.mxu0 0.0
  %3315 = vmatpush1.msra.mxu0 0.0
  %3316 = vmatprep.subr.mxu0 0.0
  %3317 = vmatpush1.msra.mxu0 0.0
  %3318 = vmatprep.subr.mxu0 0.0
  %3319 = vmatpush1.msra.mxu0 0.0
  %3320 = vmatprep.subr.mxu0 0.0
  %3321 = vmatpush1.msra.mxu0 0.0
  %3322 = vmatprep.subr.mxu0 0.0
  %3323 = vmatpush1.msra.mxu0 0.0
  %3324 = vmatprep.subr.mxu0 0.0
  %3325 = vmatpush1.msra.mxu0 0.0
  %3326 = vmatprep.subr.mxu0 0.0
  %3327 = vmatpush1.msra.mxu0 0.0
  %3328 = vmatprep.subr.mxu0 0.0
  %3329 = vmatpush1.msra.mxu0 0.0
  %3330 = vmatprep.subr.mxu0 0.0
  %3331 = vmatpush1.msra.mxu0 0.0
  %3332 = vmatprep.subr.mxu0 0.0
  %3333 = vmatpush1.msra.mxu0 0.0
  %3334 = vmatprep.subr.mxu0 0.0
  %3335 = vmatpush1.msra.mxu0 0.0
  %3336 = vmatprep.subr.mxu0 0.0
  %3337 = vmatpush1.msra.mxu0 0.0
  %3338 = vmatprep.subr.mxu0 0.0
  %3339 = vmatpush1.msra.mxu0 0.0
  %3340 = vmatprep.subr.mxu0 0.0
  %3341 = vmatpush1.msra.mxu0 0.0
  %3342 = vmatprep.subr.mxu0 0.0
  %3343 = vmatpush1.msra.mxu0 0.0
  %3344 = vmatprep.mubr.f32.mxu0 0.0
  %3345 = vmatmul.mubr.f32.gmra.mrb[0].mxu0 %v760
  %v3346 = vpop.f32.mrb[0].mxu0
  %v3347 = vadd.f32 0.0, %v3346
  %v3348 = vpop.f32.mrb[0].mxu0
  %3349 = vdwg.mxu0
  %v3350 = vmax.f32 %v3269, %v3347
  %v3351 = vld [vmem:[%s486] sm:$0xff]
  %v3352 = vld [vmem:[%s486 + $0x8] sm:$0xff]
  %v3353 = vld [vmem:[%s486 + $0x10] sm:$0xff]
  %v3354 = vld [vmem:[%s486 + $0x18] sm:$0xff]
  %v3355 = vmul.f32 %v3176, %v3351
  %v3356 = vmul.f32 %v3181, %v3352
  %v3357 = vmul.f32 %v3186, %v3353
  %v3358 = vmul.f32 %v3191, %v3354
  %3359 = vmatprep.subr.mxu0 0.0
  %3360 = vmatpush1.msra.mxu0 %v3355
  %3361 = vmatprep.subr.mxu0 0.0
  %3362 = vmatpush1.msra.mxu0 %v3356
  %3363 = vmatprep.subr.mxu0 0.0
  %3364 = vmatpush1.msra.mxu0 %v3357
  %3365 = vmatprep.subr.mxu0 0.0
  %3366 = vmatpush1.msra.mxu0 %v3358
  %3367 = vmatprep.subr.mxu0 0.0
  %3368 = vmatpush1.msra.mxu0 0.0
  %3369 = vmatprep.subr.mxu0 0.0
  %3370 = vmatpush1.msra.mxu0 0.0
  %3371 = vmatprep.subr.mxu0 0.0
  %3372 = vmatpush1.msra.mxu0 0.0
  %3373 = vmatprep.subr.mxu0 0.0
  %3374 = vmatpush1.msra.mxu0 0.0
  %3375 = vmatprep.subr.mxu0 0.0
  %3376 = vmatpush1.msra.mxu0 0.0
  %3377 = vmatprep.subr.mxu0 0.0
  %3378 = vmatpush1.msra.mxu0 0.0
  %3379 = vmatprep.subr.mxu0 0.0
  %3380 = vmatpush1.msra.mxu0 0.0
  %3381 = vmatprep.subr.mxu0 0.0
  %3382 = vmatpush1.msra.mxu0 0.0
  %3383 = vmatprep.subr.mxu0 0.0
  %3384 = vmatpush1.msra.mxu0 0.0
  %3385 = vmatprep.subr.mxu0 0.0
  %3386 = vmatpush1.msra.mxu0 0.0
  %3387 = vmatprep.subr.mxu0 0.0
  %3388 = vmatpush1.msra.mxu0 0.0
  %3389 = vmatprep.subr.mxu0 0.0
  %3390 = vmatpush1.msra.mxu0 0.0
  %3391 = vmatprep.subr.mxu0 0.0
  %3392 = vmatpush1.msra.mxu0 0.0
  %3393 = vmatprep.subr.mxu0 0.0
  %3394 = vmatpush1.msra.mxu0 0.0
  %3395 = vmatprep.subr.mxu0 0.0
  %3396 = vmatpush1.msra.mxu0 0.0
  %3397 = vmatprep.subr.mxu0 0.0
  %3398 = vmatpush1.msra.mxu0 0.0
  %3399 = vmatprep.subr.mxu0 0.0
  %3400 = vmatpush1.msra.mxu0 0.0
  %3401 = vmatprep.subr.mxu0 0.0
  %3402 = vmatpush1.msra.mxu0 0.0
  %3403 = vmatprep.subr.mxu0 0.0
  %3404 = vmatpush1.msra.mxu0 0.0
  %3405 = vmatprep.subr.mxu0 0.0
  %3406 = vmatpush1.msra.mxu0 0.0
  %3407 = vmatprep.subr.mxu0 0.0
  %3408 = vmatpush1.msra.mxu0 0.0
  %3409 = vmatprep.subr.mxu0 0.0
  %3410 = vmatpush1.msra.mxu0 0.0
  %3411 = vmatprep.subr.mxu0 0.0
  %3412 = vmatpush1.msra.mxu0 0.0
  %3413 = vmatprep.subr.mxu0 0.0
  %3414 = vmatpush1.msra.mxu0 0.0
  %3415 = vmatprep.subr.mxu0 0.0
  %3416 = vmatpush1.msra.mxu0 0.0
  %3417 = vmatprep.subr.mxu0 0.0
  %3418 = vmatpush1.msra.mxu0 0.0
  %3419 = vmatprep.subr.mxu0 0.0
  %3420 = vmatpush1.msra.mxu0 0.0
  %3421 = vmatprep.subr.mxu0 0.0
  %3422 = vmatpush1.msra.mxu0 0.0
  %3423 = vmatprep.mubr.f32.mxu0 0.0
  %3424 = vmatmul.mubr.f32.gmra.mrb[0].mxu0 %v760
  %v3425 = vpop.f32.mrb[0].mxu0
  %v3426 = vadd.f32 0.0, %v3425
  %v3427 = vpop.f32.mrb[0].mxu0
  %3428 = vdwg.mxu0
  %v3429 = vmax.f32 %v3350, %v3426
  %v3430 = vld [vmem:[%s605] sm:$0xff]
  %v3431 = vld [vmem:[%s605 + $0x8] sm:$0xff]
  %v3432 = vld [vmem:[%s605 + $0x10] sm:$0xff]
  %v3433 = vld [vmem:[%s605 + $0x18] sm:$0xff]
  %v3434 = vmul.f32 %v3176, %v3430
  %v3435 = vmul.f32 %v3181, %v3431
  %v3436 = vmul.f32 %v3186, %v3432
  %v3437 = vmul.f32 %v3191, %v3433
  %3438 = vmatprep.subr.mxu0 0.0
  %3439 = vmatpush1.msra.mxu0 %v3434
  %3440 = vmatprep.subr.mxu0 0.0
  %3441 = vmatpush1.msra.mxu0 %v3435
  %3442 = vmatprep.subr.mxu0 0.0
  %3443 = vmatpush1.msra.mxu0 %v3436
  %3444 = vmatprep.subr.mxu0 0.0
  %3445 = vmatpush1.msra.mxu0 %v3437
  %3446 = vmatprep.subr.mxu0 0.0
  %3447 = vmatpush1.msra.mxu0 0.0
  %3448 = vmatprep.subr.mxu0 0.0
  %3449 = vmatpush1.msra.mxu0 0.0
  %3450 = vmatprep.subr.mxu0 0.0
  %3451 = vmatpush1.msra.mxu0 0.0
  %3452 = vmatprep.subr.mxu0 0.0
  %3453 = vmatpush1.msra.mxu0 0.0
  %3454 = vmatprep.subr.mxu0 0.0
  %3455 = vmatpush1.msra.mxu0 0.0
  %3456 = vmatprep.subr.mxu0 0.0
  %3457 = vmatpush1.msra.mxu0 0.0
  %3458 = vmatprep.subr.mxu0 0.0
  %3459 = vmatpush1.msra.mxu0 0.0
  %3460 = vmatprep.subr.mxu0 0.0
  %3461 = vmatpush1.msra.mxu0 0.0
  %3462 = vmatprep.subr.mxu0 0.0
  %3463 = vmatpush1.msra.mxu0 0.0
  %3464 = vmatprep.subr.mxu0 0.0
  %3465 = vmatpush1.msra.mxu0 0.0
  %3466 = vmatprep.subr.mxu0 0.0
  %3467 = vmatpush1.msra.mxu0 0.0
  %3468 = vmatprep.subr.mxu0 0.0
  %3469 = vmatpush1.msra.mxu0 0.0
  %3470 = vmatprep.subr.mxu0 0.0
  %3471 = vmatpush1.msra.mxu0 0.0
  %3472 = vmatprep.subr.mxu0 0.0
  %3473 = vmatpush1.msra.mxu0 0.0
  %3474 = vmatprep.subr.mxu0 0.0
  %3475 = vmatpush1.msra.mxu0 0.0
  %3476 = vmatprep.subr.mxu0 0.0
  %3477 = vmatpush1.msra.mxu0 0.0
  %3478 = vmatprep.subr.mxu0 0.0
  %3479 = vmatpush1.msra.mxu0 0.0
  %3480 = vmatprep.subr.mxu0 0.0
  %3481 = vmatpush1.msra.mxu0 0.0
  %3482 = vmatprep.subr.mxu0 0.0
  %3483 = vmatpush1.msra.mxu0 0.0
  %3484 = vmatprep.subr.mxu0 0.0
  %3485 = vmatpush1.msra.mxu0 0.0
  %3486 = vmatprep.subr.mxu0 0.0
  %3487 = vmatpush1.msra.mxu0 0.0
  %3488 = vmatprep.subr.mxu0 0.0
  %3489 = vmatpush1.msra.mxu0 0.0
  %3490 = vmatprep.subr.mxu0 0.0
  %3491 = vmatpush1.msra.mxu0 0.0
  %3492 = vmatprep.subr.mxu0 0.0
  %3493 = vmatpush1.msra.mxu0 0.0
  %3494 = vmatprep.subr.mxu0 0.0
  %3495 = vmatpush1.msra.mxu0 0.0
  %3496 = vmatprep.subr.mxu0 0.0
  %3497 = vmatpush1.msra.mxu0 0.0
  %3498 = vmatprep.subr.mxu0 0.0
  %3499 = vmatpush1.msra.mxu0 0.0
  %3500 = vmatprep.subr.mxu0 0.0
  %3501 = vmatpush1.msra.mxu0 0.0
  %3502 = vmatprep.mubr.f32.mxu0 0.0
  %3503 = vmatmul.mubr.f32.gmra.mrb[0].mxu0 %v760
  %v3504 = vpop.f32.mrb[0].mxu0
  %v3505 = vadd.f32 0.0, %v3504
  %v3506 = vpop.f32.mrb[0].mxu0
  %3507 = vdwg.mxu0
  %v3508 = vmax.f32 %v3429, %v3505
  %v3509 = vsub.f32 %v3269, %v3508
  %v3510 = vmul.f32 %v3509, 1.442695
  %v3511 = vpow.pop %v3510
  %v3513 = vsel %vm1085, %v3511, 0
  %3515 = vmatprep.subr.mxu0 0.0
  %3516 = vmatpush1.msra.mxu0 %v3513
  %3517 = vmatprep.subr.mxu0 0.0
  %3518 = vmatpush1.msra.mxu0 0.0
  %3519 = vmatprep.subr.mxu0 0.0
  %3520 = vmatpush1.msra.mxu0 0.0
  %3521 = vmatprep.subr.mxu0 0.0
  %3522 = vmatpush1.msra.mxu0 0.0
  %3523 = vmatprep.subr.mxu0 0.0
  %3524 = vmatpush1.msra.mxu0 0.0
  %3525 = vmatprep.subr.mxu0 0.0
  %3526 = vmatpush1.msra.mxu0 0.0
  %3527 = vmatprep.subr.mxu0 0.0
  %3528 = vmatpush1.msra.mxu0 0.0
  %3529 = vmatprep.subr.mxu0 0.0
  %3530 = vmatpush1.msra.mxu0 0.0
  %3531 = vmatprep.subr.mxu0 0.0
  %3532 = vmatpush1.msra.mxu0 0.0
  %3533 = vmatprep.subr.mxu0 0.0
  %3534 = vmatpush1.msra.mxu0 0.0
  %3535 = vmatprep.subr.mxu0 0.0
  %3536 = vmatpush1.msra.mxu0 0.0
  %3537 = vmatprep.subr.mxu0 0.0
  %3538 = vmatpush1.msra.mxu0 0.0
  %3539 = vmatprep.subr.mxu0 0.0
  %3540 = vmatpush1.msra.mxu0 0.0
  %3541 = vmatprep.subr.mxu0 0.0
  %3542 = vmatpush1.msra.mxu0 0.0
  %3543 = vmatprep.subr.mxu0 0.0
  %3544 = vmatpush1.msra.mxu0 0.0
  %3545 = vmatprep.subr.mxu0 0.0
  %3546 = vmatpush1.msra.mxu0 0.0
  %3547 = vmatprep.subr.mxu0 0.0
  %3548 = vmatpush1.msra.mxu0 0.0
  %3549 = vmatprep.subr.mxu0 0.0
  %3550 = vmatpush1.msra.mxu0 0.0
  %3551 = vmatprep.subr.mxu0 0.0
  %3552 = vmatpush1.msra.mxu0 0.0
  %3553 = vmatprep.subr.mxu0 0.0
  %3554 = vmatpush1.msra.mxu0 0.0
  %3555 = vmatprep.subr.mxu0 0.0
  %3556 = vmatpush1.msra.mxu0 0.0
  %3557 = vmatprep.subr.mxu0 0.0
  %3558 = vmatpush1.msra.mxu0 0.0
  %3559 = vmatprep.subr.mxu0 0.0
  %3560 = vmatpush1.msra.mxu0 0.0
  %3561 = vmatprep.subr.mxu0 0.0
  %3562 = vmatpush1.msra.mxu0 0.0
  %3563 = vmatprep.subr.mxu0 0.0
  %3564 = vmatpush1.msra.mxu0 0.0
  %3565 = vmatprep.subr.mxu0 0.0
  %3566 = vmatpush1.msra.mxu0 0.0
  %3567 = vmatprep.subr.mxu0 0.0
  %3568 = vmatpush1.msra.mxu0 0.0
  %3569 = vmatprep.subr.mxu0 0.0
  %3570 = vmatpush1.msra.mxu0 0.0
  %3571 = vmatprep.subr.mxu0 0.0
  %3572 = vmatpush1.msra.mxu0 0.0
  %3573 = vmatprep.subr.mxu0 0.0
  %3574 = vmatpush1.msra.mxu0 0.0
  %3575 = vmatprep.subr.mxu0 0.0
  %3576 = vmatpush1.msra.mxu0 0.0
  %3577 = vmatprep.subr.mxu0 0.0
  %3578 = vmatpush1.msra.mxu0 0.0
  %3579 = vmatprep.mubr.f32.mxu0 0.0
  %3580 = vmatmul.mubr.f32.gmra.mrb[0].mxu0 %v1074
  %v3581 = vpop.f32.mrb[0].mxu0
  %v3582 = vadd.f32 0.0, %v3581
  %v3583 = vpop.f32.mrb[0].mxu0
  %3584 = vmatprep.mubr.f32.mxu0 0.0
  %3585 = vmatmul.mubr.f32.gmra.mrb[0].mxu0 %v1077
  %v3586 = vpop.f32.mrb[0].mxu0
  %v3587 = vadd.f32 0.0, %v3586
  %v3588 = vpop.f32.mrb[0].mxu0
  %3589 = vmatprep.mubr.f32.mxu0 0.0
  %3590 = vmatmul.mubr.f32.gmra.mrb[0].mxu0 %v1080
  %v3591 = vpop.f32.mrb[0].mxu0
  %v3592 = vadd.f32 0.0, %v3591
  %v3593 = vpop.f32.mrb[0].mxu0
  %3594 = vmatprep.mubr.f32.mxu0 0.0
  %3595 = vmatmul.mubr.f32.gmra.mrb[0].mxu0 %v1083
  %v3596 = vpop.f32.mrb[0].mxu0
  %v3597 = vadd.f32 0.0, %v3596
  %v3598 = vpop.f32.mrb[0].mxu0
  %3599 = vdwg.mxu0
  %v3600 = vld [vmem:[#allocation2 + $0x20] sm:$0xff]
  %v3601 = vld [vmem:[#allocation2 + $0x28] sm:$0xff]
  %v3602 = vld [vmem:[#allocation2 + $0x30] sm:$0xff]
  %v3603 = vld [vmem:[#allocation2 + $0x38] sm:$0xff]
  %v3604 = vmul.f32 %v3582, %v3600
  %v3605 = vmul.f32 %v3587, %v3601
  %v3606 = vmul.f32 %v3592, %v3602
  %v3607 = vmul.f32 %v3597, %v3603
  %v3608 = vsub.f32 %v3347, %v3508
  %v3609 = vmul.f32 %v3608, 1.442695
  %v3610 = vpow.pop %v3609
  %v3611 = vadd.f32 %v3511, %v3610
  %v3613 = vsel %vm1085, %v3610, 0
  %3615 = vmatprep.subr.mxu0 0.0
  %3616 = vmatpush1.msra.mxu0 %v3613
  %3617 = vmatprep.subr.mxu0 0.0
  %3618 = vmatpush1.msra.mxu0 0.0
  %3619 = vmatprep.subr.mxu0 0.0
  %3620 = vmatpush1.msra.mxu0 0.0
  %3621 = vmatprep.subr.mxu0 0.0
  %3622 = vmatpush1.msra.mxu0 0.0
  %3623 = vmatprep.subr.mxu0 0.0
  %3624 = vmatpush1.msra.mxu0 0.0
  %3625 = vmatprep.subr.mxu0 0.0
  %3626 = vmatpush1.msra.mxu0 0.0
  %3627 = vmatprep.subr.mxu0 0.0
  %3628 = vmatpush1.msra.mxu0 0.0
  %3629 = vmatprep.subr.mxu0 0.0
  %3630 = vmatpush1.msra.mxu0 0.0
  %3631 = vmatprep.subr.mxu0 0.0
  %3632 = vmatpush1.msra.mxu0 0.0
  %3633 = vmatprep.subr.mxu0 0.0
  %3634 = vmatpush1.msra.mxu0 0.0
  %3635 = vmatprep.subr.mxu0 0.0
  %3636 = vmatpush1.msra.mxu0 0.0
  %3637 = vmatprep.subr.mxu0 0.0
  %3638 = vmatpush1.msra.mxu0 0.0
  %3639 = vmatprep.subr.mxu0 0.0
  %3640 = vmatpush1.msra.mxu0 0.0
  %3641 = vmatprep.subr.mxu0 0.0
  %3642 = vmatpush1.msra.mxu0 0.0
  %3643 = vmatprep.subr.mxu0 0.0
  %3644 = vmatpush1.msra.mxu0 0.0
  %3645 = vmatprep.subr.mxu0 0.0
  %3646 = vmatpush1.msra.mxu0 0.0
  %3647 = vmatprep.subr.mxu0 0.0
  %3648 = vmatpush1.msra.mxu0 0.0
  %3649 = vmatprep.subr.mxu0 0.0
  %3650 = vmatpush1.msra.mxu0 0.0
  %3651 = vmatprep.subr.mxu0 0.0
  %3652 = vmatpush1.msra.mxu0 0.0
  %3653 = vmatprep.subr.mxu0 0.0
  %3654 = vmatpush1.msra.mxu0 0.0
  %3655 = vmatprep.subr.mxu0 0.0
  %3656 = vmatpush1.msra.mxu0 0.0
  %3657 = vmatprep.subr.mxu0 0.0
  %3658 = vmatpush1.msra.mxu0 0.0
  %3659 = vmatprep.subr.mxu0 0.0
  %3660 = vmatpush1.msra.mxu0 0.0
  %3661 = vmatprep.subr.mxu0 0.0
  %3662 = vmatpush1.msra.mxu0 0.0
  %3663 = vmatprep.subr.mxu0 0.0
  %3664 = vmatpush1.msra.mxu0 0.0
  %3665 = vmatprep.subr.mxu0 0.0
  %3666 = vmatpush1.msra.mxu0 0.0
  %3667 = vmatprep.subr.mxu0 0.0
  %3668 = vmatpush1.msra.mxu0 0.0
  %3669 = vmatprep.subr.mxu0 0.0
  %3670 = vmatpush1.msra.mxu0 0.0
  %3671 = vmatprep.subr.mxu0 0.0
  %3672 = vmatpush1.msra.mxu0 0.0
  %3673 = vmatprep.subr.mxu0 0.0
  %3674 = vmatpush1.msra.mxu0 0.0
  %3675 = vmatprep.subr.mxu0 0.0
  %3676 = vmatpush1.msra.mxu0 0.0
  %3677 = vmatprep.subr.mxu0 0.0
  %3678 = vmatpush1.msra.mxu0 0.0
  %3679 = vmatprep.mubr.f32.mxu0 0.0
  %3680 = vmatmul.mubr.f32.gmra.mrb[0].mxu0 %v1074
  %v3681 = vpop.f32.mrb[0].mxu0
  %v3682 = vadd.f32 0.0, %v3681
  %v3683 = vpop.f32.mrb[0].mxu0
  %3684 = vmatprep.mubr.f32.mxu0 0.0
  %3685 = vmatmul.mubr.f32.gmra.mrb[0].mxu0 %v1077
  %v3686 = vpop.f32.mrb[0].mxu0
  %v3687 = vadd.f32 0.0, %v3686
  %v3688 = vpop.f32.mrb[0].mxu0
  %3689 = vmatprep.mubr.f32.mxu0 0.0
  %3690 = vmatmul.mubr.f32.gmra.mrb[0].mxu0 %v1080
  %v3691 = vpop.f32.mrb[0].mxu0
  %v3692 = vadd.f32 0.0, %v3691
  %v3693 = vpop.f32.mrb[0].mxu0
  %3694 = vmatprep.mubr.f32.mxu0 0.0
  %3695 = vmatmul.mubr.f32.gmra.mrb[0].mxu0 %v1083
  %v3696 = vpop.f32.mrb[0].mxu0
  %v3697 = vadd.f32 0.0, %v3696
  %v3698 = vpop.f32.mrb[0].mxu0
  %3699 = vdwg.mxu0
  %v3700 = vld [vmem:[%s367 + $0x20] sm:$0xff]
  %v3701 = vld [vmem:[%s367 + $0x28] sm:$0xff]
  %v3702 = vld [vmem:[%s367 + $0x30] sm:$0xff]
  %v3703 = vld [vmem:[%s367 + $0x38] sm:$0xff]
  %v3704 = vmul.f32 %v3682, %v3700
  %v3705 = vmul.f32 %v3687, %v3701
  %v3706 = vmul.f32 %v3692, %v3702
  %v3707 = vmul.f32 %v3697, %v3703
  %v3708 = vadd.f32 %v3604, %v3704
  %v3709 = vadd.f32 %v3605, %v3705
  %v3710 = vadd.f32 %v3606, %v3706
  %v3711 = vadd.f32 %v3607, %v3707
  %v3712 = vsub.f32 %v3426, %v3508
  %v3713 = vmul.f32 %v3712, 1.442695
  %v3714 = vpow.pop %v3713
  %v3715 = vadd.f32 %v3611, %v3714
  %v3717 = vsel %vm1085, %v3714, 0
  %3719 = vmatprep.subr.mxu0 0.0
  %3720 = vmatpush1.msra.mxu0 %v3717
  %3721 = vmatprep.subr.mxu0 0.0
  %3722 = vmatpush1.msra.mxu0 0.0
  %3723 = vmatprep.subr.mxu0 0.0
  %3724 = vmatpush1.msra.mxu0 0.0
  %3725 = vmatprep.subr.mxu0 0.0
  %3726 = vmatpush1.msra.mxu0 0.0
  %3727 = vmatprep.subr.mxu0 0.0
  %3728 = vmatpush1.msra.mxu0 0.0
  %3729 = vmatprep.subr.mxu0 0.0
  %3730 = vmatpush1.msra.mxu0 0.0
  %3731 = vmatprep.subr.mxu0 0.0
  %3732 = vmatpush1.msra.mxu0 0.0
  %3733 = vmatprep.subr.mxu0 0.0
  %3734 = vmatpush1.msra.mxu0 0.0
  %3735 = vmatprep.subr.mxu0 0.0
  %3736 = vmatpush1.msra.mxu0 0.0
  %3737 = vmatprep.subr.mxu0 0.0
  %3738 = vmatpush1.msra.mxu0 0.0
  %3739 = vmatprep.subr.mxu0 0.0
  %3740 = vmatpush1.msra.mxu0 0.0
  %3741 = vmatprep.subr.mxu0 0.0
  %3742 = vmatpush1.msra.mxu0 0.0
  %3743 = vmatprep.subr.mxu0 0.0
  %3744 = vmatpush1.msra.mxu0 0.0
  %3745 = vmatprep.subr.mxu0 0.0
  %3746 = vmatpush1.msra.mxu0 0.0
  %3747 = vmatprep.subr.mxu0 0.0
  %3748 = vmatpush1.msra.mxu0 0.0
  %3749 = vmatprep.subr.mxu0 0.0
  %3750 = vmatpush1.msra.mxu0 0.0
  %3751 = vmatprep.subr.mxu0 0.0
  %3752 = vmatpush1.msra.mxu0 0.0
  %3753 = vmatprep.subr.mxu0 0.0
  %3754 = vmatpush1.msra.mxu0 0.0
  %3755 = vmatprep.subr.mxu0 0.0
  %3756 = vmatpush1.msra.mxu0 0.0
  %3757 = vmatprep.subr.mxu0 0.0
  %3758 = vmatpush1.msra.mxu0 0.0
  %3759 = vmatprep.subr.mxu0 0.0
  %3760 = vmatpush1.msra.mxu0 0.0
  %3761 = vmatprep.subr.mxu0 0.0
  %3762 = vmatpush1.msra.mxu0 0.0
  %3763 = vmatprep.subr.mxu0 0.0
  %3764 = vmatpush1.msra.mxu0 0.0
  %3765 = vmatprep.subr.mxu0 0.0
  %3766 = vmatpush1.msra.mxu0 0.0
  %3767 = vmatprep.subr.mxu0 0.0
  %3768 = vmatpush1.msra.mxu0 0.0
  %3769 = vmatprep.subr.mxu0 0.0
  %3770 = vmatpush1.msra.mxu0 0.0
  %3771 = vmatprep.subr.mxu0 0.0
  %3772 = vmatpush1.msra.mxu0 0.0
  %3773 = vmatprep.subr.mxu0 0.0
  %3774 = vmatpush1.msra.mxu0 0.0
  %3775 = vmatprep.subr.mxu0 0.0
  %3776 = vmatpush1.msra.mxu0 0.0
  %3777 = vmatprep.subr.mxu0 0.0
  %3778 = vmatpush1.msra.mxu0 0.0
  %3779 = vmatprep.subr.mxu0 0.0
  %3780 = vmatpush1.msra.mxu0 0.0
  %3781 = vmatprep.subr.mxu0 0.0
  %3782 = vmatpush1.msra.mxu0 0.0
  %3783 = vmatprep.mubr.f32.mxu0 0.0
  %3784 = vmatmul.mubr.f32.gmra.mrb[0].mxu0 %v1074
  %v3785 = vpop.f32.mrb[0].mxu0
  %v3786 = vadd.f32 0.0, %v3785
  %v3787 = vpop.f32.mrb[0].mxu0
  %3788 = vmatprep.mubr.f32.mxu0 0.0
  %3789 = vmatmul.mubr.f32.gmra.mrb[0].mxu0 %v1077
  %v3790 = vpop.f32.mrb[0].mxu0
  %v3791 = vadd.f32 0.0, %v3790
  %v3792 = vpop.f32.mrb[0].mxu0
  %3793 = vmatprep.mubr.f32.mxu0 0.0
  %3794 = vmatmul.mubr.f32.gmra.mrb[0].mxu0 %v1080
  %v3795 = vpop.f32.mrb[0].mxu0
  %v3796 = vadd.f32 0.0, %v3795
  %v3797 = vpop.f32.mrb[0].mxu0
  %3798 = vmatprep.mubr.f32.mxu0 0.0
  %3799 = vmatmul.mubr.f32.gmra.mrb[0].mxu0 %v1083
  %v3800 = vpop.f32.mrb[0].mxu0
  %v3801 = vadd.f32 0.0, %v3800
  %v3802 = vpop.f32.mrb[0].mxu0
  %3803 = vdwg.mxu0
  %v3804 = vld [vmem:[%s486 + $0x20] sm:$0xff]
  %v3805 = vld [vmem:[%s486 + $0x28] sm:$0xff]
  %v3806 = vld [vmem:[%s486 + $0x30] sm:$0xff]
  %v3807 = vld [vmem:[%s486 + $0x38] sm:$0xff]
  %v3808 = vmul.f32 %v3786, %v3804
  %v3809 = vmul.f32 %v3791, %v3805
  %v3810 = vmul.f32 %v3796, %v3806
  %v3811 = vmul.f32 %v3801, %v3807
  %v3812 = vadd.f32 %v3708, %v3808
  %v3813 = vadd.f32 %v3709, %v3809
  %v3814 = vadd.f32 %v3710, %v3810
  %v3815 = vadd.f32 %v3711, %v3811
  %v3816 = vsub.f32 %v3505, %v3508
  %v3817 = vmul.f32 %v3816, 1.442695
  %v3818 = vpow.pop %v3817
  %v3819 = vadd.f32 %v3715, %v3818
  %v3821 = vsel %vm1085, %v3818, 0
  %3823 = vmatprep.subr.mxu0 0.0
  %3824 = vmatpush1.msra.mxu0 %v3821
  %3825 = vmatprep.subr.mxu0 0.0
  %3826 = vmatpush1.msra.mxu0 0.0
  %3827 = vmatprep.subr.mxu0 0.0
  %3828 = vmatpush1.msra.mxu0 0.0
  %3829 = vmatprep.subr.mxu0 0.0
  %3830 = vmatpush1.msra.mxu0 0.0
  %3831 = vmatprep.subr.mxu0 0.0
  %3832 = vmatpush1.msra.mxu0 0.0
  %3833 = vmatprep.subr.mxu0 0.0
  %3834 = vmatpush1.msra.mxu0 0.0
  %3835 = vmatprep.subr.mxu0 0.0
  %3836 = vmatpush1.msra.mxu0 0.0
  %3837 = vmatprep.subr.mxu0 0.0
  %3838 = vmatpush1.msra.mxu0 0.0
  %3839 = vmatprep.subr.mxu0 0.0
  %3840 = vmatpush1.msra.mxu0 0.0
  %3841 = vmatprep.subr.mxu0 0.0
  %3842 = vmatpush1.msra.mxu0 0.0
  %3843 = vmatprep.subr.mxu0 0.0
  %3844 = vmatpush1.msra.mxu0 0.0
  %3845 = vmatprep.subr.mxu0 0.0
  %3846 = vmatpush1.msra.mxu0 0.0
  %3847 = vmatprep.subr.mxu0 0.0
  %3848 = vmatpush1.msra.mxu0 0.0
  %3849 = vmatprep.subr.mxu0 0.0
  %3850 = vmatpush1.msra.mxu0 0.0
  %3851 = vmatprep.subr.mxu0 0.0
  %3852 = vmatpush1.msra.mxu0 0.0
  %3853 = vmatprep.subr.mxu0 0.0
  %3854 = vmatpush1.msra.mxu0 0.0
  %3855 = vmatprep.subr.mxu0 0.0
  %3856 = vmatpush1.msra.mxu0 0.0
  %3857 = vmatprep.subr.mxu0 0.0
  %3858 = vmatpush1.msra.mxu0 0.0
  %3859 = vmatprep.subr.mxu0 0.0
  %3860 = vmatpush1.msra.mxu0 0.0
  %3861 = vmatprep.subr.mxu0 0.0
  %3862 = vmatpush1.msra.mxu0 0.0
  %3863 = vmatprep.subr.mxu0 0.0
  %3864 = vmatpush1.msra.mxu0 0.0
  %3865 = vmatprep.subr.mxu0 0.0
  %3866 = vmatpush1.msra.mxu0 0.0
  %3867 = vmatprep.subr.mxu0 0.0
  %3868 = vmatpush1.msra.mxu0 0.0
  %3869 = vmatprep.subr.mxu0 0.0
  %3870 = vmatpush1.msra.mxu0 0.0
  %3871 = vmatprep.subr.mxu0 0.0
  %3872 = vmatpush1.msra.mxu0 0.0
  %3873 = vmatprep.subr.mxu0 0.0
  %3874 = vmatpush1.msra.mxu0 0.0
  %3875 = vmatprep.subr.mxu0 0.0
  %3876 = vmatpush1.msra.mxu0 0.0
  %3877 = vmatprep.subr.mxu0 0.0
  %3878 = vmatpush1.msra.mxu0 0.0
  %3879 = vmatprep.subr.mxu0 0.0
  %3880 = vmatpush1.msra.mxu0 0.0
  %3881 = vmatprep.subr.mxu0 0.0
  %3882 = vmatpush1.msra.mxu0 0.0
  %3883 = vmatprep.subr.mxu0 0.0
  %3884 = vmatpush1.msra.mxu0 0.0
  %3885 = vmatprep.subr.mxu0 0.0
  %3886 = vmatpush1.msra.mxu0 0.0
  %3887 = vmatprep.mubr.f32.mxu0 0.0
  %3888 = vmatmul.mubr.f32.gmra.mrb[0].mxu0 %v1074
  %v3889 = vpop.f32.mrb[0].mxu0
  %v3890 = vadd.f32 0.0, %v3889
  %v3891 = vpop.f32.mrb[0].mxu0
  %3892 = vmatprep.mubr.f32.mxu0 0.0
  %3893 = vmatmul.mubr.f32.gmra.mrb[0].mxu0 %v1077
  %v3894 = vpop.f32.mrb[0].mxu0
  %v3895 = vadd.f32 0.0, %v3894
  %v3896 = vpop.f32.mrb[0].mxu0
  %3897 = vmatprep.mubr.f32.mxu0 0.0
  %3898 = vmatmul.mubr.f32.gmra.mrb[0].mxu0 %v1080
  %v3899 = vpop.f32.mrb[0].mxu0
  %v3900 = vadd.f32 0.0, %v3899
  %v3901 = vpop.f32.mrb[0].mxu0
  %3902 = vmatprep.mubr.f32.mxu0 0.0
  %3903 = vmatmul.mubr.f32.gmra.mrb[0].mxu0 %v1083
  %v3904 = vpop.f32.mrb[0].mxu0
  %v3905 = vadd.f32 0.0, %v3904
  %v3906 = vpop.f32.mrb[0].mxu0
  %3907 = vdwg.mxu0
  %v3908 = vld [vmem:[%s605 + $0x20] sm:$0xff]
  %v3909 = vld [vmem:[%s605 + $0x28] sm:$0xff]
  %v3910 = vld [vmem:[%s605 + $0x30] sm:$0xff]
  %v3911 = vld [vmem:[%s605 + $0x38] sm:$0xff]
  %v3912 = vmul.f32 %v3890, %v3908
  %v3913 = vmul.f32 %v3895, %v3909
  %v3914 = vmul.f32 %v3900, %v3910
  %v3915 = vmul.f32 %v3905, %v3911
  %v3916 = vadd.f32 %v3812, %v3912
  %v3917 = vadd.f32 %v3813, %v3913
  %v3918 = vadd.f32 %v3814, %v3914
  %v3919 = vadd.f32 %v3815, %v3915
  %v3920 = vrcp.pop %v3819
  %v3921 = vmul.f32 %v3819, %v3920
  %v3922 = vsub.f32 2.0, %v3921
  %v3923 = vmul.f32 %v3920, %v3922
  %v3925 = vsel %vm1085, %v3923, 0
  %3927 = vmatprep.subr.mxu0 0.0
  %3928 = vmatpush1.msra.mxu0 %v3925
  %3929 = vmatprep.subr.mxu0 0.0
  %3930 = vmatpush1.msra.mxu0 0.0
  %3931 = vmatprep.subr.mxu0 0.0
  %3932 = vmatpush1.msra.mxu0 0.0
  %3933 = vmatprep.subr.mxu0 0.0
  %3934 = vmatpush1.msra.mxu0 0.0
  %3935 = vmatprep.subr.mxu0 0.0
  %3936 = vmatpush1.msra.mxu0 0.0
  %3937 = vmatprep.subr.mxu0 0.0
  %3938 = vmatpush1.msra.mxu0 0.0
  %3939 = vmatprep.subr.mxu0 0.0
  %3940 = vmatpush1.msra.mxu0 0.0
  %3941 = vmatprep.subr.mxu0 0.0
  %3942 = vmatpush1.msra.mxu0 0.0
  %3943 = vmatprep.subr.mxu0 0.0
  %3944 = vmatpush1.msra.mxu0 0.0
  %3945 = vmatprep.subr.mxu0 0.0
  %3946 = vmatpush1.msra.mxu0 0.0
  %3947 = vmatprep.subr.mxu0 0.0
  %3948 = vmatpush1.msra.mxu0 0.0
  %3949 = vmatprep.subr.mxu0 0.0
  %3950 = vmatpush1.msra.mxu0 0.0
  %3951 = vmatprep.subr.mxu0 0.0
  %3952 = vmatpush1.msra.mxu0 0.0
  %3953 = vmatprep.subr.mxu0 0.0
  %3954 = vmatpush1.msra.mxu0 0.0
  %3955 = vmatprep.subr.mxu0 0.0
  %3956 = vmatpush1.msra.mxu0 0.0
  %3957 = vmatprep.subr.mxu0 0.0
  %3958 = vmatpush1.msra.mxu0 0.0
  %3959 = vmatprep.subr.mxu0 0.0
  %3960 = vmatpush1.msra.mxu0 0.0
  %3961 = vmatprep.subr.mxu0 0.0
  %3962 = vmatpush1.msra.mxu0 0.0
  %3963 = vmatprep.subr.mxu0 0.0
  %3964 = vmatpush1.msra.mxu0 0.0
  %3965 = vmatprep.subr.mxu0 0.0
  %3966 = vmatpush1.msra.mxu0 0.0
  %3967 = vmatprep.subr.mxu0 0.0
  %3968 = vmatpush1.msra.mxu0 0.0
  %3969 = vmatprep.subr.mxu0 0.0
  %3970 = vmatpush1.msra.mxu0 0.0
  %3971 = vmatprep.subr.mxu0 0.0
  %3972 = vmatpush1.msra.mxu0 0.0
  %3973 = vmatprep.subr.mxu0 0.0
  %3974 = vmatpush1.msra.mxu0 0.0
  %3975 = vmatprep.subr.mxu0 0.0
  %3976 = vmatpush1.msra.mxu0 0.0
  %3977 = vmatprep.subr.mxu0 0.0
  %3978 = vmatpush1.msra.mxu0 0.0
  %3979 = vmatprep.subr.mxu0 0.0
  %3980 = vmatpush1.msra.mxu0 0.0
  %3981 = vmatprep.subr.mxu0 0.0
  %3982 = vmatpush1.msra.mxu0 0.0
  %3983 = vmatprep.subr.mxu0 0.0
  %3984 = vmatpush1.msra.mxu0 0.0
  %3985 = vmatprep.subr.mxu0 0.0
  %3986 = vmatpush1.msra.mxu0 0.0
  %3987 = vmatprep.subr.mxu0 0.0
  %3988 = vmatpush1.msra.mxu0 0.0
  %3989 = vmatprep.subr.mxu0 0.0
  %3990 = vmatpush1.msra.mxu0 0.0
  %3991 = vmatprep.mubr.f32.mxu0 0.0
  %3992 = vmatmul.mubr.f32.gmra.mrb[0].mxu0 %v1074
  %v3993 = vpop.f32.mrb[0].mxu0
  %v3994 = vadd.f32 0.0, %v3993
  %v3995 = vpop.f32.mrb[0].mxu0
  %3996 = vmatprep.mubr.f32.mxu0 0.0
  %3997 = vmatmul.mubr.f32.gmra.mrb[0].mxu0 %v1077
  %v3998 = vpop.f32.mrb[0].mxu0
  %v3999 = vadd.f32 0.0, %v3998
  %v4000 = vpop.f32.mrb[0].mxu0
  %4001 = vmatprep.mubr.f32.mxu0 0.0
  %4002 = vmatmul.mubr.f32.gmra.mrb[0].mxu0 %v1080
  %v4003 = vpop.f32.mrb[0].mxu0
  %v4004 = vadd.f32 0.0, %v4003
  %v4005 = vpop.f32.mrb[0].mxu0
  %4006 = vmatprep.mubr.f32.mxu0 0.0
  %4007 = vmatmul.mubr.f32.gmra.mrb[0].mxu0 %v1083
  %v4008 = vpop.f32.mrb[0].mxu0
  %v4009 = vadd.f32 0.0, %v4008
  %v4010 = vpop.f32.mrb[0].mxu0
  %4011 = vdwg.mxu0
  %v4012 = vmul.f32 %v3916, %v3994
  %v4013 = vmul.f32 %v3917, %v3999
  %v4014 = vmul.f32 %v3918, %v4004
  %v4015 = vmul.f32 %v3919, %v4009
  %4016 = vmatprep.subr.mxu0 0.0
  %4017 = vmatpush1.msra.mxu0 %v4012
  %4018 = vmatprep.subr.mxu0 0.0
  %4019 = vmatpush1.msra.mxu0 %v4013
  %4020 = vmatprep.subr.mxu0 0.0
  %4021 = vmatpush1.msra.mxu0 %v4014
  %4022 = vmatprep.subr.mxu0 0.0
  %4023 = vmatpush1.msra.mxu0 %v4015
  %4024 = vmatprep.subr.mxu0 0.0
  %4025 = vmatpush1.msra.mxu0 0.0
  %4026 = vmatprep.subr.mxu0 0.0
  %4027 = vmatpush1.msra.mxu0 0.0
  %4028 = vmatprep.subr.mxu0 0.0
  %4029 = vmatpush1.msra.mxu0 0.0
  %4030 = vmatprep.subr.mxu0 0.0
  %4031 = vmatpush1.msra.mxu0 0.0
  %4032 = vmatprep.subr.mxu0 0.0
  %4033 = vmatpush1.msra.mxu0 0.0
  %4034 = vmatprep.subr.mxu0 0.0
  %4035 = vmatpush1.msra.mxu0 0.0
  %4036 = vmatprep.subr.mxu0 0.0
  %4037 = vmatpush1.msra.mxu0 0.0
  %4038 = vmatprep.subr.mxu0 0.0
  %4039 = vmatpush1.msra.mxu0 0.0
  %4040 = vmatprep.subr.mxu0 0.0
  %4041 = vmatpush1.msra.mxu0 0.0
  %4042 = vmatprep.subr.mxu0 0.0
  %4043 = vmatpush1.msra.mxu0 0.0
  %4044 = vmatprep.subr.mxu0 0.0
  %4045 = vmatpush1.msra.mxu0 0.0
  %4046 = vmatprep.subr.mxu0 0.0
  %4047 = vmatpush1.msra.mxu0 0.0
  %4048 = vmatprep.subr.mxu0 0.0
  %4049 = vmatpush1.msra.mxu0 0.0
  %4050 = vmatprep.subr.mxu0 0.0
  %4051 = vmatpush1.msra.mxu0 0.0
  %4052 = vmatprep.subr.mxu0 0.0
  %4053 = vmatpush1.msra.mxu0 0.0
  %4054 = vmatprep.subr.mxu0 0.0
  %4055 = vmatpush1.msra.mxu0 0.0
  %4056 = vmatprep.subr.mxu0 0.0
  %4057 = vmatpush1.msra.mxu0 0.0
  %4058 = vmatprep.subr.mxu0 0.0
  %4059 = vmatpush1.msra.mxu0 0.0
  %4060 = vmatprep.subr.mxu0 0.0
  %4061 = vmatpush1.msra.mxu0 0.0
  %4062 = vmatprep.subr.mxu0 0.0
  %4063 = vmatpush1.msra.mxu0 0.0
  %4064 = vmatprep.subr.mxu0 0.0
  %4065 = vmatpush1.msra.mxu0 0.0
  %4066 = vmatprep.subr.mxu0 0.0
  %4067 = vmatpush1.msra.mxu0 0.0
  %4068 = vmatprep.subr.mxu0 0.0
  %4069 = vmatpush1.msra.mxu0 0.0
  %4070 = vmatprep.subr.mxu0 0.0
  %4071 = vmatpush1.msra.mxu0 0.0
  %4072 = vmatprep.subr.mxu0 0.0
  %4073 = vmatpush1.msra.mxu0 0.0
  %4074 = vmatprep.subr.mxu0 0.0
  %4075 = vmatpush1.msra.mxu0 0.0
  %4076 = vmatprep.subr.mxu0 0.0
  %4077 = vmatpush1.msra.mxu0 0.0
  %4078 = vmatprep.subr.mxu0 0.0
  %4079 = vmatpush1.msra.mxu0 0.0
  %4080 = vmatprep.mubr.f32.mxu0 0.0
  %4081 = vmatmul.mubr.f32.gmra.mrb[0].mxu0 %v1611
  %v4082 = vpop.f32.mrb[0].mxu0
  %v4083 = vadd.f32 %v1593, %v4082
  %v4084 = vpop.f32.mrb[0].mxu0
  %4085 = vmatprep.mubr.f32.mxu0 0.0
  %4086 = vmatmul.mubr.f32.gmra.mrb[0].mxu0 %v1614
  %v4087 = vpop.f32.mrb[0].mxu0
  %v4088 = vadd.f32 %v1598, %v4087
  %v4089 = vpop.f32.mrb[0].mxu0
  %4090 = vmatprep.mubr.f32.mxu0 0.0
  %4091 = vmatmul.mubr.f32.gmra.mrb[0].mxu0 %v1617
  %v4092 = vpop.f32.mrb[0].mxu0
  %v4093 = vadd.f32 %v1603, %v4092
  %v4094 = vpop.f32.mrb[0].mxu0
  %4095 = vmatprep.mubr.f32.mxu0 0.0
  %4096 = vmatmul.mubr.f32.gmra.mrb[0].mxu0 %v1620
  %v4097 = vpop.f32.mrb[0].mxu0
  %v4098 = vadd.f32 %v1608, %v4097
  %v4099 = vpop.f32.mrb[0].mxu0
  %4100 = vdwg.mxu0
  %v4101 = vadd.f32 %v4083, %v3105
  %v4102 = vadd.f32 %v4088, %v3106
  %v4103 = vadd.f32 %v4093, %v3107
  %v4104 = vadd.f32 %v4098, %v3108
  %4105 = vmatprep.subr.mxu0 0.0
  %4106 = vmatpush1.msra.mxu0 %v4101
  %4107 = vmatprep.subr.mxu0 0.0
  %4108 = vmatpush1.msra.mxu0 %v4102
  %4109 = vmatprep.subr.mxu0 0.0
  %4110 = vmatpush1.msra.mxu0 %v4103
  %4111 = vmatprep.subr.mxu0 0.0
  %4112 = vmatpush1.msra.mxu0 %v4104
  %4113 = vmatprep.subr.mxu0 0.0
  %4114 = vmatpush1.msra.mxu0 0.0
  %4115 = vmatprep.subr.mxu0 0.0
  %4116 = vmatpush1.msra.mxu0 0.0
  %4117 = vmatprep.subr.mxu0 0.0
  %4118 = vmatpush1.msra.mxu0 0.0
  %4119 = vmatprep.subr.mxu0 0.0
  %4120 = vmatpush1.msra.mxu0 0.0
  %4121 = vmatprep.subr.mxu0 0.0
  %4122 = vmatpush1.msra.mxu0 0.0
  %4123 = vmatprep.subr.mxu0 0.0
  %4124 = vmatpush1.msra.mxu0 0.0
  %4125 = vmatprep.subr.mxu0 0.0
  %4126 = vmatpush1.msra.mxu0 0.0
  %4127 = vmatprep.subr.mxu0 0.0
  %4128 = vmatpush1.msra.mxu0 0.0
  %4129 = vmatprep.subr.mxu0 0.0
  %4130 = vmatpush1.msra.mxu0 0.0
  %4131 = vmatprep.subr.mxu0 0.0
  %4132 = vmatpush1.msra.mxu0 0.0
  %4133 = vmatprep.subr.mxu0 0.0
  %4134 = vmatpush1.msra.mxu0 0.0
  %4135 = vmatprep.subr.mxu0 0.0
  %4136 = vmatpush1.msra.mxu0 0.0
  %4137 = vmatprep.subr.mxu0 0.0
  %4138 = vmatpush1.msra.mxu0 0.0
  %4139 = vmatprep.subr.mxu0 0.0
  %4140 = vmatpush1.msra.mxu0 0.0
  %4141 = vmatprep.subr.mxu0 0.0
  %4142 = vmatpush1.msra.mxu0 0.0
  %4143 = vmatprep.subr.mxu0 0.0
  %4144 = vmatpush1.msra.mxu0 0.0
  %4145 = vmatprep.subr.mxu0 0.0
  %4146 = vmatpush1.msra.mxu0 0.0
  %4147 = vmatprep.subr.mxu0 0.0
  %4148 = vmatpush1.msra.mxu0 0.0
  %4149 = vmatprep.subr.mxu0 0.0
  %4150 = vmatpush1.msra.mxu0 0.0
  %4151 = vmatprep.subr.mxu0 0.0
  %4152 = vmatpush1.msra.mxu0 0.0
  %4153 = vmatprep.subr.mxu0 0.0
  %4154 = vmatpush1.msra.mxu0 0.0
  %4155 = vmatprep.subr.mxu0 0.0
  %4156 = vmatpush1.msra.mxu0 0.0
  %4157 = vmatprep.subr.mxu0 0.0
  %4158 = vmatpush1.msra.mxu0 0.0
  %4159 = vmatprep.subr.mxu0 0.0
  %4160 = vmatpush1.msra.mxu0 0.0
  %4161 = vmatprep.subr.mxu0 0.0
  %4162 = vmatpush1.msra.mxu0 0.0
  %4163 = vmatprep.subr.mxu0 0.0
  %4164 = vmatpush1.msra.mxu0 0.0
  %4165 = vmatprep.subr.mxu0 0.0
  %4166 = vmatpush1.msra.mxu0 0.0
  %4167 = vmatprep.subr.mxu0 0.0
  %4168 = vmatpush1.msra.mxu0 0.0
  %4169 = vmatprep.mubr.f32.mxu0 0.0
  %4170 = vmatmul.mubr.f32.gmra.mrb[0].mxu0 %v1712
  %v4171 = vpop.f32.mrb[0].mxu0
  %v4172 = vadd.f32 0.0, %v4171
  %v4173 = vpop.f32.mrb[0].mxu0
  %4174 = vdwg.mxu0
  %v4175 = vmul.f32 %v4172, 0.03125
  %v4176 = vmul.f32 %v4101, %v4101
  %v4177 = vmul.f32 %v4102, %v4102
  %v4178 = vmul.f32 %v4103, %v4103
  %v4179 = vmul.f32 %v4104, %v4104
  %4180 = vmatprep.subr.mxu0 0.0
  %4181 = vmatpush1.msra.mxu0 %v4176
  %4182 = vmatprep.subr.mxu0 0.0
  %4183 = vmatpush1.msra.mxu0 %v4177
  %4184 = vmatprep.subr.mxu0 0.0
  %4185 = vmatpush1.msra.mxu0 %v4178
  %4186 = vmatprep.subr.mxu0 0.0
  %4187 = vmatpush1.msra.mxu0 %v4179
  %4188 = vmatprep.subr.mxu0 0.0
  %4189 = vmatpush1.msra.mxu0 0.0
  %4190 = vmatprep.subr.mxu0 0.0
  %4191 = vmatpush1.msra.mxu0 0.0
  %4192 = vmatprep.subr.mxu0 0.0
  %4193 = vmatpush1.msra.mxu0 0.0
  %4194 = vmatprep.subr.mxu0 0.0
  %4195 = vmatpush1.msra.mxu0 0.0
  %4196 = vmatprep.subr.mxu0 0.0
  %4197 = vmatpush1.msra.mxu0 0.0
  %4198 = vmatprep.subr.mxu0 0.0
  %4199 = vmatpush1.msra.mxu0 0.0
  %4200 = vmatprep.subr.mxu0 0.0
  %4201 = vmatpush1.msra.mxu0 0.0
  %4202 = vmatprep.subr.mxu0 0.0
  %4203 = vmatpush1.msra.mxu0 0.0
  %4204 = vmatprep.subr.mxu0 0.0
  %4205 = vmatpush1.msra.mxu0 0.0
  %4206 = vmatprep.subr.mxu0 0.0
  %4207 = vmatpush1.msra.mxu0 0.0
  %4208 = vmatprep.subr.mxu0 0.0
  %4209 = vmatpush1.msra.mxu0 0.0
  %4210 = vmatprep.subr.mxu0 0.0
  %4211 = vmatpush1.msra.mxu0 0.0
  %4212 = vmatprep.subr.mxu0 0.0
  %4213 = vmatpush1.msra.mxu0 0.0
  %4214 = vmatprep.subr.mxu0 0.0
  %4215 = vmatpush1.msra.mxu0 0.0
  %4216 = vmatprep.subr.mxu0 0.0
  %4217 = vmatpush1.msra.mxu0 0.0
  %4218 = vmatprep.subr.mxu0 0.0
  %4219 = vmatpush1.msra.mxu0 0.0
  %4220 = vmatprep.subr.mxu0 0.0
  %4221 = vmatpush1.msra.mxu0 0.0
  %4222 = vmatprep.subr.mxu0 0.0
  %4223 = vmatpush1.msra.mxu0 0.0
  %4224 = vmatprep.subr.mxu0 0.0
  %4225 = vmatpush1.msra.mxu0 0.0
  %4226 = vmatprep.subr.mxu0 0.0
  %4227 = vmatpush1.msra.mxu0 0.0
  %4228 = vmatprep.subr.mxu0 0.0
  %4229 = vmatpush1.msra.mxu0 0.0
  %4230 = vmatprep.subr.mxu0 0.0
  %4231 = vmatpush1.msra.mxu0 0.0
  %4232 = vmatprep.subr.mxu0 0.0
  %4233 = vmatpush1.msra.mxu0 0.0
  %4234 = vmatprep.subr.mxu0 0.0
  %4235 = vmatpush1.msra.mxu0 0.0
  %4236 = vmatprep.subr.mxu0 0.0
  %4237 = vmatpush1.msra.mxu0 0.0
  %4238 = vmatprep.subr.mxu0 0.0
  %4239 = vmatpush1.msra.mxu0 0.0
  %4240 = vmatprep.subr.mxu0 0.0
  %4241 = vmatpush1.msra.mxu0 0.0
  %4242 = vmatprep.subr.mxu0 0.0
  %4243 = vmatpush1.msra.mxu0 0.0
  %4244 = vmatprep.mubr.f32.mxu0 0.0
  %4245 = vmatmul.mubr.f32.gmra.mrb[0].mxu0 %v1712
  %v4246 = vpop.f32.mrb[0].mxu0
  %v4247 = vadd.f32 0.0, %v4246
  %v4248 = vpop.f32.mrb[0].mxu0
  %4249 = vdwg.mxu0
  %v4250 = vmul.f32 %v4247, 0.03125
  %v4251 = vmul.f32 %v4175, %v4175
  %v4252 = vsub.f32 %v4250, %v4251
  %v4253 = vmax.f32 %v4252, 0.0
  %v4254 = vlaneseq
  %v4255 = vshrl.u32 %v4254, 7
  %v4256 = vsub.s32 0, %v4255
  %v4257 = vrot.slane %v4175, %v4256
  %v4258 = vsub.f32 %v4101, %v4257
  %v4259 = vsub.f32 %v4102, %v4257
  %v4260 = vsub.f32 %v4103, %v4257
  %v4261 = vsub.f32 %v4104, %v4257
  %v4262 = vadd.f32 %v4253, 1e-05
  %v4263 = vrsqrt.pop %v4262
  %v4264 = vlaneseq
  %v4265 = vshrl.u32 %v4264, 7
  %v4266 = vsub.s32 0, %v4265
  %v4267 = vrot.slane %v4263, %v4266
  %v4268 = vmul.f32 %v4258, %v4267
  %v4269 = vmul.f32 %v4259, %v4267
  %v4270 = vmul.f32 %v4260, %v4267
  %v4271 = vmul.f32 %v4261, %v4267
  %v4272 = vmul.f32 %v4268, %v1883
  %v4273 = vmul.f32 %v4269, %v1887
  %v4274 = vmul.f32 %v4270, %v1891
  %v4275 = vmul.f32 %v4271, %v1895
  %v4276 = vadd.f32 %v4272, %v1903
  %v4277 = vadd.f32 %v4273, %v1907
  %v4278 = vadd.f32 %v4274, %v1911
  %v4279 = vadd.f32 %v4275, %v1915
  %s4280 = scalar_lea.vmem %s5, 64
  %4281 = vst.msk [vmem:[%s4280] sm:$0xff] %vm248, %v4276
  %4282 = vst.msk [vmem:[%s4280 + $0x8] sm:$0xff] %vm248, %v4277
  %4283 = vst.msk [vmem:[%s4280 + $0x10] sm:$0xff] %vm248, %v4278
  %4284 = vst.msk [vmem:[%s4280 + $0x18] sm:$0xff] %vm248, %v4279
  %v4285 = vld [vmem:[%s495] sm:$0xff]
  %v4286 = vld [vmem:[%s495 + $0x8] sm:$0xff]
  %v4287 = vld [vmem:[%s495 + $0x10] sm:$0xff]
  %v4288 = vld [vmem:[%s495 + $0x18] sm:$0xff]
  %4289 = vmatprep.subr.mxu0 0.0
  %4290 = vmatpush1.msra.mxu0 %v4285
  %4291 = vmatprep.subr.mxu0 0.0
  %4292 = vmatpush1.msra.mxu0 %v4286
  %4293 = vmatprep.subr.mxu0 0.0
  %4294 = vmatpush1.msra.mxu0 %v4287
  %4295 = vmatprep.subr.mxu0 0.0
  %4296 = vmatpush1.msra.mxu0 %v4288
  %4297 = vmatprep.subr.mxu0 0.0
  %4298 = vmatpush1.msra.mxu0 0.0
  %4299 = vmatprep.subr.mxu0 0.0
  %4300 = vmatpush1.msra.mxu0 0.0
  %4301 = vmatprep.subr.mxu0 0.0
  %4302 = vmatpush1.msra.mxu0 0.0
  %4303 = vmatprep.subr.mxu0 0.0
  %4304 = vmatpush1.msra.mxu0 0.0
  %4305 = vmatprep.subr.mxu0 0.0
  %4306 = vmatpush1.msra.mxu0 0.0
  %4307 = vmatprep.subr.mxu0 0.0
  %4308 = vmatpush1.msra.mxu0 0.0
  %4309 = vmatprep.subr.mxu0 0.0
  %4310 = vmatpush1.msra.mxu0 0.0
  %4311 = vmatprep.subr.mxu0 0.0
  %4312 = vmatpush1.msra.mxu0 0.0
  %4313 = vmatprep.subr.mxu0 0.0
  %4314 = vmatpush1.msra.mxu0 0.0
  %4315 = vmatprep.subr.mxu0 0.0
  %4316 = vmatpush1.msra.mxu0 0.0
  %4317 = vmatprep.subr.mxu0 0.0
  %4318 = vmatpush1.msra.mxu0 0.0
  %4319 = vmatprep.subr.mxu0 0.0
  %4320 = vmatpush1.msra.mxu0 0.0
  %4321 = vmatprep.subr.mxu0 0.0
  %4322 = vmatpush1.msra.mxu0 0.0
  %4323 = vmatprep.subr.mxu0 0.0
  %4324 = vmatpush1.msra.mxu0 0.0
  %4325 = vmatprep.subr.mxu0 0.0
  %4326 = vmatpush1.msra.mxu0 0.0
  %4327 = vmatprep.subr.mxu0 0.0
  %4328 = vmatpush1.msra.mxu0 0.0
  %4329 = vmatprep.subr.mxu0 0.0
  %4330 = vmatpush1.msra.mxu0 0.0
  %4331 = vmatprep.subr.mxu0 0.0
  %4332 = vmatpush1.msra.mxu0 0.0
  %4333 = vmatprep.subr.mxu0 0.0
  %4334 = vmatpush1.msra.mxu0 0.0
  %4335 = vmatprep.subr.mxu0 0.0
  %4336 = vmatpush1.msra.mxu0 0.0
  %4337 = vmatprep.subr.mxu0 0.0
  %4338 = vmatpush1.msra.mxu0 0.0
  %4339 = vmatprep.subr.mxu0 0.0
  %4340 = vmatpush1.msra.mxu0 0.0
  %4341 = vmatprep.subr.mxu0 0.0
  %4342 = vmatpush1.msra.mxu0 0.0
  %4343 = vmatprep.subr.mxu0 0.0
  %4344 = vmatpush1.msra.mxu0 0.0
  %4345 = vmatprep.subr.mxu0 0.0
  %4346 = vmatpush1.msra.mxu0 0.0
  %4347 = vmatprep.subr.mxu0 0.0
  %4348 = vmatpush1.msra.mxu0 0.0
  %4349 = vmatprep.subr.mxu0 0.0
  %4350 = vmatpush1.msra.mxu0 0.0
  %4351 = vmatprep.subr.mxu0 0.0
  %4352 = vmatpush1.msra.mxu0 0.0
  %4353 = vmatprep.mubr.f32.mxu0 0.0
  %4354 = vmatmul.mubr.f32.gmra.mrb[0].mxu0 %v655
  %v4355 = vpop.f32.mrb[0].mxu0
  %v4356 = vadd.f32 %v637, %v4355
  %v4357 = vpop.f32.mrb[0].mxu0
  %4358 = vmatprep.mubr.f32.mxu0 0.0
  %4359 = vmatmul.mubr.f32.gmra.mrb[0].mxu0 %v658
  %v4360 = vpop.f32.mrb[0].mxu0
  %v4361 = vadd.f32 %v642, %v4360
  %v4362 = vpop.f32.mrb[0].mxu0
  %4363 = vmatprep.mubr.f32.mxu0 0.0
  %4364 = vmatmul.mubr.f32.gmra.mrb[0].mxu0 %v661
  %v4365 = vpop.f32.mrb[0].mxu0
  %v4366 = vadd.f32 %v647, %v4365
  %v4367 = vpop.f32.mrb[0].mxu0
  %4368 = vmatprep.mubr.f32.mxu0 0.0
  %4369 = vmatmul.mubr.f32.gmra.mrb[0].mxu0 %v664
  %v4370 = vpop.f32.mrb[0].mxu0
  %v4371 = vadd.f32 %v652, %v4370
  %v4372 = vpop.f32.mrb[0].mxu0
  %4373 = vdwg.mxu0
  %v4374 = vld [vmem:[#allocation2] sm:$0xff]
  %v4375 = vld [vmem:[#allocation2 + $0x8] sm:$0xff]
  %v4376 = vld [vmem:[#allocation2 + $0x10] sm:$0xff]
  %v4377 = vld [vmem:[#allocation2 + $0x18] sm:$0xff]
  %v4378 = vmul.f32 %v4356, %v4374
  %v4379 = vmul.f32 %v4361, %v4375
  %v4380 = vmul.f32 %v4366, %v4376
  %v4381 = vmul.f32 %v4371, %v4377
  %4382 = vmatprep.subr.mxu0 0.0
  %4383 = vmatpush1.msra.mxu0 %v4378
  %4384 = vmatprep.subr.mxu0 0.0
  %4385 = vmatpush1.msra.mxu0 %v4379
  %4386 = vmatprep.subr.mxu0 0.0
  %4387 = vmatpush1.msra.mxu0 %v4380
  %4388 = vmatprep.subr.mxu0 0.0
  %4389 = vmatpush1.msra.mxu0 %v4381
  %4390 = vmatprep.subr.mxu0 0.0
  %4391 = vmatpush1.msra.mxu0 0.0
  %4392 = vmatprep.subr.mxu0 0.0
  %4393 = vmatpush1.msra.mxu0 0.0
  %4394 = vmatprep.subr.mxu0 0.0
  %4395 = vmatpush1.msra.mxu0 0.0
  %4396 = vmatprep.subr.mxu0 0.0
  %4397 = vmatpush1.msra.mxu0 0.0
  %4398 = vmatprep.subr.mxu0 0.0
  %4399 = vmatpush1.msra.mxu0 0.0
  %4400 = vmatprep.subr.mxu0 0.0
  %4401 = vmatpush1.msra.mxu0 0.0
  %4402 = vmatprep.subr.mxu0 0.0
  %4403 = vmatpush1.msra.mxu0 0.0
  %4404 = vmatprep.subr.mxu0 0.0
  %4405 = vmatpush1.msra.mxu0 0.0
  %4406 = vmatprep.subr.mxu0 0.0
  %4407 = vmatpush1.msra.mxu0 0.0
  %4408 = vmatprep.subr.mxu0 0.0
  %4409 = vmatpush1.msra.mxu0 0.0
  %4410 = vmatprep.subr.mxu0 0.0
  %4411 = vmatpush1.msra.mxu0 0.0
  %4412 = vmatprep.subr.mxu0 0.0
  %4413 = vmatpush1.msra.mxu0 0.0
  %4414 = vmatprep.subr.mxu0 0.0
  %4415 = vmatpush1.msra.mxu0 0.0
  %4416 = vmatprep.subr.mxu0 0.0
  %4417 = vmatpush1.msra.mxu0 0.0
  %4418 = vmatprep.subr.mxu0 0.0
  %4419 = vmatpush1.msra.mxu0 0.0
  %4420 = vmatprep.subr.mxu0 0.0
  %4421 = vmatpush1.msra.mxu0 0.0
  %4422 = vmatprep.subr.mxu0 0.0
  %4423 = vmatpush1.msra.mxu0 0.0
  %4424 = vmatprep.subr.mxu0 0.0
  %4425 = vmatpush1.msra.mxu0 0.0
  %4426 = vmatprep.subr.mxu0 0.0
  %4427 = vmatpush1.msra.mxu0 0.0
  %4428 = vmatprep.subr.mxu0 0.0
  %4429 = vmatpush1.msra.mxu0 0.0
  %4430 = vmatprep.subr.mxu0 0.0
  %4431 = vmatpush1.msra.mxu0 0.0
  %4432 = vmatprep.subr.mxu0 0.0
  %4433 = vmatpush1.msra.mxu0 0.0
  %4434 = vmatprep.subr.mxu0 0.0
  %4435 = vmatpush1.msra.mxu0 0.0
  %4436 = vmatprep.subr.mxu0 0.0
  %4437 = vmatpush1.msra.mxu0 0.0
  %4438 = vmatprep.subr.mxu0 0.0
  %4439 = vmatpush1.msra.mxu0 0.0
  %4440 = vmatprep.subr.mxu0 0.0
  %4441 = vmatpush1.msra.mxu0 0.0
  %4442 = vmatprep.subr.mxu0 0.0
  %4443 = vmatpush1.msra.mxu0 0.0
  %4444 = vmatprep.subr.mxu0 0.0
  %4445 = vmatpush1.msra.mxu0 0.0
  %4446 = vmatprep.mubr.f32.mxu0 0.0
  %4447 = vmatmul.mubr.f32.gmra.mrb[0].mxu0 %v760
  %v4448 = vpop.f32.mrb[0].mxu0
  %v4449 = vadd.f32 0.0, %v4448
  %v4450 = vpop.f32.mrb[0].mxu0
  %4451 = vdwg.mxu0
  %v4452 = vld [vmem:[%s367] sm:$0xff]
  %v4453 = vld [vmem:[%s367 + $0x8] sm:$0xff]
  %v4454 = vld [vmem:[%s367 + $0x10] sm:$0xff]
  %v4455 = vld [vmem:[%s367 + $0x18] sm:$0xff]
  %v4456 = vmul.f32 %v4356, %v4452
  %v4457 = vmul.f32 %v4361, %v4453
  %v4458 = vmul.f32 %v4366, %v4454
  %v4459 = vmul.f32 %v4371, %v4455
  %4460 = vmatprep.subr.mxu0 0.0
  %4461 = vmatpush1.msra.mxu0 %v4456
  %4462 = vmatprep.subr.mxu0 0.0
  %4463 = vmatpush1.msra.mxu0 %v4457
  %4464 = vmatprep.subr.mxu0 0.0
  %4465 = vmatpush1.msra.mxu0 %v4458
  %4466 = vmatprep.subr.mxu0 0.0
  %4467 = vmatpush1.msra.mxu0 %v4459
  %4468 = vmatprep.subr.mxu0 0.0
  %4469 = vmatpush1.msra.mxu0 0.0
  %4470 = vmatprep.subr.mxu0 0.0
  %4471 = vmatpush1.msra.mxu0 0.0
  %4472 = vmatprep.subr.mxu0 0.0
  %4473 = vmatpush1.msra.mxu0 0.0
  %4474 = vmatprep.subr.mxu0 0.0
  %4475 = vmatpush1.msra.mxu0 0.0
  %4476 = vmatprep.subr.mxu0 0.0
  %4477 = vmatpush1.msra.mxu0 0.0
  %4478 = vmatprep.subr.mxu0 0.0
  %4479 = vmatpush1.msra.mxu0 0.0
  %4480 = vmatprep.subr.mxu0 0.0
  %4481 = vmatpush1.msra.mxu0 0.0
  %4482 = vmatprep.subr.mxu0 0.0
  %4483 = vmatpush1.msra.mxu0 0.0
  %4484 = vmatprep.subr.mxu0 0.0
  %4485 = vmatpush1.msra.mxu0 0.0
  %4486 = vmatprep.subr.mxu0 0.0
  %4487 = vmatpush1.msra.mxu0 0.0
  %4488 = vmatprep.subr.mxu0 0.0
  %4489 = vmatpush1.msra.mxu0 0.0
  %4490 = vmatprep.subr.mxu0 0.0
  %4491 = vmatpush1.msra.mxu0 0.0
  %4492 = vmatprep.subr.mxu0 0.0
  %4493 = vmatpush1.msra.mxu0 0.0
  %4494 = vmatprep.subr.mxu0 0.0
  %4495 = vmatpush1.msra.mxu0 0.0
  %4496 = vmatprep.subr.mxu0 0.0
  %4497 = vmatpush1.msra.mxu0 0.0
  %4498 = vmatprep.subr.mxu0 0.0
  %4499 = vmatpush1.msra.mxu0 0.0
  %4500 = vmatprep.subr.mxu0 0.0
  %4501 = vmatpush1.msra.mxu0 0.0
  %4502 = vmatprep.subr.mxu0 0.0
  %4503 = vmatpush1.msra.mxu0 0.0
  %4504 = vmatprep.subr.mxu0 0.0
  %4505 = vmatpush1.msra.mxu0 0.0
  %4506 = vmatprep.subr.mxu0 0.0
  %4507 = vmatpush1.msra.mxu0 0.0
  %4508 = vmatprep.subr.mxu0 0.0
  %4509 = vmatpush1.msra.mxu0 0.0
  %4510 = vmatprep.subr.mxu0 0.0
  %4511 = vmatpush1.msra.mxu0 0.0
  %4512 = vmatprep.subr.mxu0 0.0
  %4513 = vmatpush1.msra.mxu0 0.0
  %4514 = vmatprep.subr.mxu0 0.0
  %4515 = vmatpush1.msra.mxu0 0.0
  %4516 = vmatprep.subr.mxu0 0.0
  %4517 = vmatpush1.msra.mxu0 0.0
  %4518 = vmatprep.subr.mxu0 0.0
  %4519 = vmatpush1.msra.mxu0 0.0
  %4520 = vmatprep.subr.mxu0 0.0
  %4521 = vmatpush1.msra.mxu0 0.0
  %4522 = vmatprep.subr.mxu0 0.0
  %4523 = vmatpush1.msra.mxu0 0.0
  %4524 = vmatprep.mubr.f32.mxu0 0.0
  %4525 = vmatmul.mubr.f32.gmra.mrb[0].mxu0 %v760
  %v4526 = vpop.f32.mrb[0].mxu0
  %v4527 = vadd.f32 0.0, %v4526
  %v4528 = vpop.f32.mrb[0].mxu0
  %4529 = vdwg.mxu0
  %v4530 = vmax.f32 %v4449, %v4527
  %v4531 = vld [vmem:[%s486] sm:$0xff]
  %v4532 = vld [vmem:[%s486 + $0x8] sm:$0xff]
  %v4533 = vld [vmem:[%s486 + $0x10] sm:$0xff]
  %v4534 = vld [vmem:[%s486 + $0x18] sm:$0xff]
  %v4535 = vmul.f32 %v4356, %v4531
  %v4536 = vmul.f32 %v4361, %v4532
  %v4537 = vmul.f32 %v4366, %v4533
  %v4538 = vmul.f32 %v4371, %v4534
  %4539 = vmatprep.subr.mxu0 0.0
  %4540 = vmatpush1.msra.mxu0 %v4535
  %4541 = vmatprep.subr.mxu0 0.0
  %4542 = vmatpush1.msra.mxu0 %v4536
  %4543 = vmatprep.subr.mxu0 0.0
  %4544 = vmatpush1.msra.mxu0 %v4537
  %4545 = vmatprep.subr.mxu0 0.0
  %4546 = vmatpush1.msra.mxu0 %v4538
  %4547 = vmatprep.subr.mxu0 0.0
  %4548 = vmatpush1.msra.mxu0 0.0
  %4549 = vmatprep.subr.mxu0 0.0
  %4550 = vmatpush1.msra.mxu0 0.0
  %4551 = vmatprep.subr.mxu0 0.0
  %4552 = vmatpush1.msra.mxu0 0.0
  %4553 = vmatprep.subr.mxu0 0.0
  %4554 = vmatpush1.msra.mxu0 0.0
  %4555 = vmatprep.subr.mxu0 0.0
  %4556 = vmatpush1.msra.mxu0 0.0
  %4557 = vmatprep.subr.mxu0 0.0
  %4558 = vmatpush1.msra.mxu0 0.0
  %4559 = vmatprep.subr.mxu0 0.0
  %4560 = vmatpush1.msra.mxu0 0.0
  %4561 = vmatprep.subr.mxu0 0.0
  %4562 = vmatpush1.msra.mxu0 0.0
  %4563 = vmatprep.subr.mxu0 0.0
  %4564 = vmatpush1.msra.mxu0 0.0
  %4565 = vmatprep.subr.mxu0 0.0
  %4566 = vmatpush1.msra.mxu0 0.0
  %4567 = vmatprep.subr.mxu0 0.0
  %4568 = vmatpush1.msra.mxu0 0.0
  %4569 = vmatprep.subr.mxu0 0.0
  %4570 = vmatpush1.msra.mxu0 0.0
  %4571 = vmatprep.subr.mxu0 0.0
  %4572 = vmatpush1.msra.mxu0 0.0
  %4573 = vmatprep.subr.mxu0 0.0
  %4574 = vmatpush1.msra.mxu0 0.0
  %4575 = vmatprep.subr.mxu0 0.0
  %4576 = vmatpush1.msra.mxu0 0.0
  %4577 = vmatprep.subr.mxu0 0.0
  %4578 = vmatpush1.msra.mxu0 0.0
  %4579 = vmatprep.subr.mxu0 0.0
  %4580 = vmatpush1.msra.mxu0 0.0
  %4581 = vmatprep.subr.mxu0 0.0
  %4582 = vmatpush1.msra.mxu0 0.0
  %4583 = vmatprep.subr.mxu0 0.0
  %4584 = vmatpush1.msra.mxu0 0.0
  %4585 = vmatprep.subr.mxu0 0.0
  %4586 = vmatpush1.msra.mxu0 0.0
  %4587 = vmatprep.subr.mxu0 0.0
  %4588 = vmatpush1.msra.mxu0 0.0
  %4589 = vmatprep.subr.mxu0 0.0
  %4590 = vmatpush1.msra.mxu0 0.0
  %4591 = vmatprep.subr.mxu0 0.0
  %4592 = vmatpush1.msra.mxu0 0.0
  %4593 = vmatprep.subr.mxu0 0.0
  %4594 = vmatpush1.msra.mxu0 0.0
  %4595 = vmatprep.subr.mxu0 0.0
  %4596 = vmatpush1.msra.mxu0 0.0
  %4597 = vmatprep.subr.mxu0 0.0
  %4598 = vmatpush1.msra.mxu0 0.0
  %4599 = vmatprep.subr.mxu0 0.0
  %4600 = vmatpush1.msra.mxu0 0.0
  %4601 = vmatprep.subr.mxu0 0.0
  %4602 = vmatpush1.msra.mxu0 0.0
  %4603 = vmatprep.mubr.f32.mxu0 0.0
  %4604 = vmatmul.mubr.f32.gmra.mrb[0].mxu0 %v760
  %v4605 = vpop.f32.mrb[0].mxu0
  %v4606 = vadd.f32 0.0, %v4605
  %v4607 = vpop.f32.mrb[0].mxu0
  %4608 = vdwg.mxu0
  %v4609 = vmax.f32 %v4530, %v4606
  %v4610 = vld [vmem:[%s605] sm:$0xff]
  %v4611 = vld [vmem:[%s605 + $0x8] sm:$0xff]
  %v4612 = vld [vmem:[%s605 + $0x10] sm:$0xff]
  %v4613 = vld [vmem:[%s605 + $0x18] sm:$0xff]
  %v4614 = vmul.f32 %v4356, %v4610
  %v4615 = vmul.f32 %v4361, %v4611
  %v4616 = vmul.f32 %v4366, %v4612
  %v4617 = vmul.f32 %v4371, %v4613
  %4618 = vmatprep.subr.mxu0 0.0
  %4619 = vmatpush1.msra.mxu0 %v4614
  %4620 = vmatprep.subr.mxu0 0.0
  %4621 = vmatpush1.msra.mxu0 %v4615
  %4622 = vmatprep.subr.mxu0 0.0
  %4623 = vmatpush1.msra.mxu0 %v4616
  %4624 = vmatprep.subr.mxu0 0.0
  %4625 = vmatpush1.msra.mxu0 %v4617
  %4626 = vmatprep.subr.mxu0 0.0
  %4627 = vmatpush1.msra.mxu0 0.0
  %4628 = vmatprep.subr.mxu0 0.0
  %4629 = vmatpush1.msra.mxu0 0.0
  %4630 = vmatprep.subr.mxu0 0.0
  %4631 = vmatpush1.msra.mxu0 0.0
  %4632 = vmatprep.subr.mxu0 0.0
  %4633 = vmatpush1.msra.mxu0 0.0
  %4634 = vmatprep.subr.mxu0 0.0
  %4635 = vmatpush1.msra.mxu0 0.0
  %4636 = vmatprep.subr.mxu0 0.0
  %4637 = vmatpush1.msra.mxu0 0.0
  %4638 = vmatprep.subr.mxu0 0.0
  %4639 = vmatpush1.msra.mxu0 0.0
  %4640 = vmatprep.subr.mxu0 0.0
  %4641 = vmatpush1.msra.mxu0 0.0
  %4642 = vmatprep.subr.mxu0 0.0
  %4643 = vmatpush1.msra.mxu0 0.0
  %4644 = vmatprep.subr.mxu0 0.0
  %4645 = vmatpush1.msra.mxu0 0.0
  %4646 = vmatprep.subr.mxu0 0.0
  %4647 = vmatpush1.msra.mxu0 0.0
  %4648 = vmatprep.subr.mxu0 0.0
  %4649 = vmatpush1.msra.mxu0 0.0
  %4650 = vmatprep.subr.mxu0 0.0
  %4651 = vmatpush1.msra.mxu0 0.0
  %4652 = vmatprep.subr.mxu0 0.0
  %4653 = vmatpush1.msra.mxu0 0.0
  %4654 = vmatprep.subr.mxu0 0.0
  %4655 = vmatpush1.msra.mxu0 0.0
  %4656 = vmatprep.subr.mxu0 0.0
  %4657 = vmatpush1.msra.mxu0 0.0
  %4658 = vmatprep.subr.mxu0 0.0
  %4659 = vmatpush1.msra.mxu0 0.0
  %4660 = vmatprep.subr.mxu0 0.0
  %4661 = vmatpush1.msra.mxu0 0.0
  %4662 = vmatprep.subr.mxu0 0.0
  %4663 = vmatpush1.msra.mxu0 0.0
  %4664 = vmatprep.subr.mxu0 0.0
  %4665 = vmatpush1.msra.mxu0 0.0
  %4666 = vmatprep.subr.mxu0 0.0
  %4667 = vmatpush1.msra.mxu0 0.0
  %4668 = vmatprep.subr.mxu0 0.0
  %4669 = vmatpush1.msra.mxu0 0.0
  %4670 = vmatprep.subr.mxu0 0.0
  %4671 = vmatpush1.msra.mxu0 0.0
  %4672 = vmatprep.subr.mxu0 0.0
  %4673 = vmatpush1.msra.mxu0 0.0
  %4674 = vmatprep.subr.mxu0 0.0
  %4675 = vmatpush1.msra.mxu0 0.0
  %4676 = vmatprep.subr.mxu0 0.0
  %4677 = vmatpush1.msra.mxu0 0.0
  %4678 = vmatprep.subr.mxu0 0.0
  %4679 = vmatpush1.msra.mxu0 0.0
  %4680 = vmatprep.subr.mxu0 0.0
  %4681 = vmatpush1.msra.mxu0 0.0
  %4682 = vmatprep.mubr.f32.mxu0 0.0
  %4683 = vmatmul.mubr.f32.gmra.mrb[0].mxu0 %v760
  %v4684 = vpop.f32.mrb[0].mxu0
  %v4685 = vadd.f32 0.0, %v4684
  %v4686 = vpop.f32.mrb[0].mxu0
  %4687 = vdwg.mxu0
  %v4688 = vmax.f32 %v4609, %v4685
  %v4689 = vsub.f32 %v4449, %v4688
  %v4690 = vmul.f32 %v4689, 1.442695
  %v4691 = vpow.pop %v4690
  %v4693 = vsel %vm1085, %v4691, 0
  %4695 = vmatprep.subr.mxu0 0.0
  %4696 = vmatpush1.msra.mxu0 %v4693
  %4697 = vmatprep.subr.mxu0 0.0
  %4698 = vmatpush1.msra.mxu0 0.0
  %4699 = vmatprep.subr.mxu0 0.0
  %4700 = vmatpush1.msra.mxu0 0.0
  %4701 = vmatprep.subr.mxu0 0.0
  %4702 = vmatpush1.msra.mxu0 0.0
  %4703 = vmatprep.subr.mxu0 0.0
  %4704 = vmatpush1.msra.mxu0 0.0
  %4705 = vmatprep.subr.mxu0 0.0
  %4706 = vmatpush1.msra.mxu0 0.0
  %4707 = vmatprep.subr.mxu0 0.0
  %4708 = vmatpush1.msra.mxu0 0.0
  %4709 = vmatprep.subr.mxu0 0.0
  %4710 = vmatpush1.msra.mxu0 0.0
  %4711 = vmatprep.subr.mxu0 0.0
  %4712 = vmatpush1.msra.mxu0 0.0
  %4713 = vmatprep.subr.mxu0 0.0
  %4714 = vmatpush1.msra.mxu0 0.0
  %4715 = vmatprep.subr.mxu0 0.0
  %4716 = vmatpush1.msra.mxu0 0.0
  %4717 = vmatprep.subr.mxu0 0.0
  %4718 = vmatpush1.msra.mxu0 0.0
  %4719 = vmatprep.subr.mxu0 0.0
  %4720 = vmatpush1.msra.mxu0 0.0
  %4721 = vmatprep.subr.mxu0 0.0
  %4722 = vmatpush1.msra.mxu0 0.0
  %4723 = vmatprep.subr.mxu0 0.0
  %4724 = vmatpush1.msra.mxu0 0.0
  %4725 = vmatprep.subr.mxu0 0.0
  %4726 = vmatpush1.msra.mxu0 0.0
  %4727 = vmatprep.subr.mxu0 0.0
  %4728 = vmatpush1.msra.mxu0 0.0
  %4729 = vmatprep.subr.mxu0 0.0
  %4730 = vmatpush1.msra.mxu0 0.0
  %4731 = vmatprep.subr.mxu0 0.0
  %4732 = vmatpush1.msra.mxu0 0.0
  %4733 = vmatprep.subr.mxu0 0.0
  %4734 = vmatpush1.msra.mxu0 0.0
  %4735 = vmatprep.subr.mxu0 0.0
  %4736 = vmatpush1.msra.mxu0 0.0
  %4737 = vmatprep.subr.mxu0 0.0
  %4738 = vmatpush1.msra.mxu0 0.0
  %4739 = vmatprep.subr.mxu0 0.0
  %4740 = vmatpush1.msra.mxu0 0.0
  %4741 = vmatprep.subr.mxu0 0.0
  %4742 = vmatpush1.msra.mxu0 0.0
  %4743 = vmatprep.subr.mxu0 0.0
  %4744 = vmatpush1.msra.mxu0 0.0
  %4745 = vmatprep.subr.mxu0 0.0
  %4746 = vmatpush1.msra.mxu0 0.0
  %4747 = vmatprep.subr.mxu0 0.0
  %4748 = vmatpush1.msra.mxu0 0.0
  %4749 = vmatprep.subr.mxu0 0.0
  %4750 = vmatpush1.msra.mxu0 0.0
  %4751 = vmatprep.subr.mxu0 0.0
  %4752 = vmatpush1.msra.mxu0 0.0
  %4753 = vmatprep.subr.mxu0 0.0
  %4754 = vmatpush1.msra.mxu0 0.0
  %4755 = vmatprep.subr.mxu0 0.0
  %4756 = vmatpush1.msra.mxu0 0.0
  %4757 = vmatprep.subr.mxu0 0.0
  %4758 = vmatpush1.msra.mxu0 0.0
  %4759 = vmatprep.mubr.f32.mxu0 0.0
  %4760 = vmatmul.mubr.f32.gmra.mrb[0].mxu0 %v1074
  %v4761 = vpop.f32.mrb[0].mxu0
  %v4762 = vadd.f32 0.0, %v4761
  %v4763 = vpop.f32.mrb[0].mxu0
  %4764 = vmatprep.mubr.f32.mxu0 0.0
  %4765 = vmatmul.mubr.f32.gmra.mrb[0].mxu0 %v1077
  %v4766 = vpop.f32.mrb[0].mxu0
  %v4767 = vadd.f32 0.0, %v4766
  %v4768 = vpop.f32.mrb[0].mxu0
  %4769 = vmatprep.mubr.f32.mxu0 0.0
  %4770 = vmatmul.mubr.f32.gmra.mrb[0].mxu0 %v1080
  %v4771 = vpop.f32.mrb[0].mxu0
  %v4772 = vadd.f32 0.0, %v4771
  %v4773 = vpop.f32.mrb[0].mxu0
  %4774 = vmatprep.mubr.f32.mxu0 0.0
  %4775 = vmatmul.mubr.f32.gmra.mrb[0].mxu0 %v1083
  %v4776 = vpop.f32.mrb[0].mxu0
  %v4777 = vadd.f32 0.0, %v4776
  %v4778 = vpop.f32.mrb[0].mxu0
  %4779 = vdwg.mxu0
  %v4780 = vld [vmem:[#allocation2 + $0x20] sm:$0xff]
  %v4781 = vld [vmem:[#allocation2 + $0x28] sm:$0xff]
  %v4782 = vld [vmem:[#allocation2 + $0x30] sm:$0xff]
  %v4783 = vld [vmem:[#allocation2 + $0x38] sm:$0xff]
  %v4784 = vmul.f32 %v4762, %v4780
  %v4785 = vmul.f32 %v4767, %v4781
  %v4786 = vmul.f32 %v4772, %v4782
  %v4787 = vmul.f32 %v4777, %v4783
  %v4788 = vsub.f32 %v4527, %v4688
  %v4789 = vmul.f32 %v4788, 1.442695
  %v4790 = vpow.pop %v4789
  %v4791 = vadd.f32 %v4691, %v4790
  %v4793 = vsel %vm1085, %v4790, 0
  %4795 = vmatprep.subr.mxu0 0.0
  %4796 = vmatpush1.msra.mxu0 %v4793
  %4797 = vmatprep.subr.mxu0 0.0
  %4798 = vmatpush1.msra.mxu0 0.0
  %4799 = vmatprep.subr.mxu0 0.0
  %4800 = vmatpush1.msra.mxu0 0.0
  %4801 = vmatprep.subr.mxu0 0.0
  %4802 = vmatpush1.msra.mxu0 0.0
  %4803 = vmatprep.subr.mxu0 0.0
  %4804 = vmatpush1.msra.mxu0 0.0
  %4805 = vmatprep.subr.mxu0 0.0
  %4806 = vmatpush1.msra.mxu0 0.0
  %4807 = vmatprep.subr.mxu0 0.0
  %4808 = vmatpush1.msra.mxu0 0.0
  %4809 = vmatprep.subr.mxu0 0.0
  %4810 = vmatpush1.msra.mxu0 0.0
  %4811 = vmatprep.subr.mxu0 0.0
  %4812 = vmatpush1.msra.mxu0 0.0
  %4813 = vmatprep.subr.mxu0 0.0
  %4814 = vmatpush1.msra.mxu0 0.0
  %4815 = vmatprep.subr.mxu0 0.0
  %4816 = vmatpush1.msra.mxu0 0.0
  %4817 = vmatprep.subr.mxu0 0.0
  %4818 = vmatpush1.msra.mxu0 0.0
  %4819 = vmatprep.subr.mxu0 0.0
  %4820 = vmatpush1.msra.mxu0 0.0
  %4821 = vmatprep.subr.mxu0 0.0
  %4822 = vmatpush1.msra.mxu0 0.0
  %4823 = vmatprep.subr.mxu0 0.0
  %4824 = vmatpush1.msra.mxu0 0.0
  %4825 = vmatprep.subr.mxu0 0.0
  %4826 = vmatpush1.msra.mxu0 0.0
  %4827 = vmatprep.subr.mxu0 0.0
  %4828 = vmatpush1.msra.mxu0 0.0
  %4829 = vmatprep.subr.mxu0 0.0
  %4830 = vmatpush1.msra.mxu0 0.0
  %4831 = vmatprep.subr.mxu0 0.0
  %4832 = vmatpush1.msra.mxu0 0.0
  %4833 = vmatprep.subr.mxu0 0.0
  %4834 = vmatpush1.msra.mxu0 0.0
  %4835 = vmatprep.subr.mxu0 0.0
  %4836 = vmatpush1.msra.mxu0 0.0
  %4837 = vmatprep.subr.mxu0 0.0
  %4838 = vmatpush1.msra.mxu0 0.0
  %4839 = vmatprep.subr.mxu0 0.0
  %4840 = vmatpush1.msra.mxu0 0.0
  %4841 = vmatprep.subr.mxu0 0.0
  %4842 = vmatpush1.msra.mxu0 0.0
  %4843 = vmatprep.subr.mxu0 0.0
  %4844 = vmatpush1.msra.mxu0 0.0
  %4845 = vmatprep.subr.mxu0 0.0
  %4846 = vmatpush1.msra.mxu0 0.0
  %4847 = vmatprep.subr.mxu0 0.0
  %4848 = vmatpush1.msra.mxu0 0.0
  %4849 = vmatprep.subr.mxu0 0.0
  %4850 = vmatpush1.msra.mxu0 0.0
  %4851 = vmatprep.subr.mxu0 0.0
  %4852 = vmatpush1.msra.mxu0 0.0
  %4853 = vmatprep.subr.mxu0 0.0
  %4854 = vmatpush1.msra.mxu0 0.0
  %4855 = vmatprep.subr.mxu0 0.0
  %4856 = vmatpush1.msra.mxu0 0.0
  %4857 = vmatprep.subr.mxu0 0.0
  %4858 = vmatpush1.msra.mxu0 0.0
  %4859 = vmatprep.mubr.f32.mxu0 0.0
  %4860 = vmatmul.mubr.f32.gmra.mrb[0].mxu0 %v1074
  %v4861 = vpop.f32.mrb[0].mxu0
  %v4862 = vadd.f32 0.0, %v4861
  %v4863 = vpop.f32.mrb[0].mxu0
  %4864 = vmatprep.mubr.f32.mxu0 0.0
  %4865 = vmatmul.mubr.f32.gmra.mrb[0].mxu0 %v1077
  %v4866 = vpop.f32.mrb[0].mxu0
  %v4867 = vadd.f32 0.0, %v4866
  %v4868 = vpop.f32.mrb[0].mxu0
  %4869 = vmatprep.mubr.f32.mxu0 0.0
  %4870 = vmatmul.mubr.f32.gmra.mrb[0].mxu0 %v1080
  %v4871 = vpop.f32.mrb[0].mxu0
  %v4872 = vadd.f32 0.0, %v4871
  %v4873 = vpop.f32.mrb[0].mxu0
  %4874 = vmatprep.mubr.f32.mxu0 0.0
  %4875 = vmatmul.mubr.f32.gmra.mrb[0].mxu0 %v1083
  %v4876 = vpop.f32.mrb[0].mxu0
  %v4877 = vadd.f32 0.0, %v4876
  %v4878 = vpop.f32.mrb[0].mxu0
  %4879 = vdwg.mxu0
  %v4880 = vld [vmem:[%s367 + $0x20] sm:$0xff]
  %v4881 = vld [vmem:[%s367 + $0x28] sm:$0xff]
  %v4882 = vld [vmem:[%s367 + $0x30] sm:$0xff]
  %v4883 = vld [vmem:[%s367 + $0x38] sm:$0xff]
  %v4884 = vmul.f32 %v4862, %v4880
  %v4885 = vmul.f32 %v4867, %v4881
  %v4886 = vmul.f32 %v4872, %v4882
  %v4887 = vmul.f32 %v4877, %v4883
  %v4888 = vadd.f32 %v4784, %v4884
  %v4889 = vadd.f32 %v4785, %v4885
  %v4890 = vadd.f32 %v4786, %v4886
  %v4891 = vadd.f32 %v4787, %v4887
  %v4892 = vsub.f32 %v4606, %v4688
  %v4893 = vmul.f32 %v4892, 1.442695
  %v4894 = vpow.pop %v4893
  %v4895 = vadd.f32 %v4791, %v4894
  %v4897 = vsel %vm1085, %v4894, 0
  %4899 = vmatprep.subr.mxu0 0.0
  %4900 = vmatpush1.msra.mxu0 %v4897
  %4901 = vmatprep.subr.mxu0 0.0
  %4902 = vmatpush1.msra.mxu0 0.0
  %4903 = vmatprep.subr.mxu0 0.0
  %4904 = vmatpush1.msra.mxu0 0.0
  %4905 = vmatprep.subr.mxu0 0.0
  %4906 = vmatpush1.msra.mxu0 0.0
  %4907 = vmatprep.subr.mxu0 0.0
  %4908 = vmatpush1.msra.mxu0 0.0
  %4909 = vmatprep.subr.mxu0 0.0
  %4910 = vmatpush1.msra.mxu0 0.0
  %4911 = vmatprep.subr.mxu0 0.0
  %4912 = vmatpush1.msra.mxu0 0.0
  %4913 = vmatprep.subr.mxu0 0.0
  %4914 = vmatpush1.msra.mxu0 0.0
  %4915 = vmatprep.subr.mxu0 0.0
  %4916 = vmatpush1.msra.mxu0 0.0
  %4917 = vmatprep.subr.mxu0 0.0
  %4918 = vmatpush1.msra.mxu0 0.0
  %4919 = vmatprep.subr.mxu0 0.0
  %4920 = vmatpush1.msra.mxu0 0.0
  %4921 = vmatprep.subr.mxu0 0.0
  %4922 = vmatpush1.msra.mxu0 0.0
  %4923 = vmatprep.subr.mxu0 0.0
  %4924 = vmatpush1.msra.mxu0 0.0
  %4925 = vmatprep.subr.mxu0 0.0
  %4926 = vmatpush1.msra.mxu0 0.0
  %4927 = vmatprep.subr.mxu0 0.0
  %4928 = vmatpush1.msra.mxu0 0.0
  %4929 = vmatprep.subr.mxu0 0.0
  %4930 = vmatpush1.msra.mxu0 0.0
  %4931 = vmatprep.subr.mxu0 0.0
  %4932 = vmatpush1.msra.mxu0 0.0
  %4933 = vmatprep.subr.mxu0 0.0
  %4934 = vmatpush1.msra.mxu0 0.0
  %4935 = vmatprep.subr.mxu0 0.0
  %4936 = vmatpush1.msra.mxu0 0.0
  %4937 = vmatprep.subr.mxu0 0.0
  %4938 = vmatpush1.msra.mxu0 0.0
  %4939 = vmatprep.subr.mxu0 0.0
  %4940 = vmatpush1.msra.mxu0 0.0
  %4941 = vmatprep.subr.mxu0 0.0
  %4942 = vmatpush1.msra.mxu0 0.0
  %4943 = vmatprep.subr.mxu0 0.0
  %4944 = vmatpush1.msra.mxu0 0.0
  %4945 = vmatprep.subr.mxu0 0.0
  %4946 = vmatpush1.msra.mxu0 0.0
  %4947 = vmatprep.subr.mxu0 0.0
  %4948 = vmatpush1.msra.mxu0 0.0
  %4949 = vmatprep.subr.mxu0 0.0
  %4950 = vmatpush1.msra.mxu0 0.0
  %4951 = vmatprep.subr.mxu0 0.0
  %4952 = vmatpush1.msra.mxu0 0.0
  %4953 = vmatprep.subr.mxu0 0.0
  %4954 = vmatpush1.msra.mxu0 0.0
  %4955 = vmatprep.subr.mxu0 0.0
  %4956 = vmatpush1.msra.mxu0 0.0
  %4957 = vmatprep.subr.mxu0 0.0
  %4958 = vmatpush1.msra.mxu0 0.0
  %4959 = vmatprep.subr.mxu0 0.0
  %4960 = vmatpush1.msra.mxu0 0.0
  %4961 = vmatprep.subr.mxu0 0.0
  %4962 = vmatpush1.msra.mxu0 0.0
  %4963 = vmatprep.mubr.f32.mxu0 0.0
  %4964 = vmatmul.mubr.f32.gmra.mrb[0].mxu0 %v1074
  %v4965 = vpop.f32.mrb[0].mxu0
  %v4966 = vadd.f32 0.0, %v4965
  %v4967 = vpop.f32.mrb[0].mxu0
  %4968 = vmatprep.mubr.f32.mxu0 0.0
  %4969 = vmatmul.mubr.f32.gmra.mrb[0].mxu0 %v1077
  %v4970 = vpop.f32.mrb[0].mxu0
  %v4971 = vadd.f32 0.0, %v4970
  %v4972 = vpop.f32.mrb[0].mxu0
  %4973 = vmatprep.mubr.f32.mxu0 0.0
  %4974 = vmatmul.mubr.f32.gmra.mrb[0].mxu0 %v1080
  %v4975 = vpop.f32.mrb[0].mxu0
  %v4976 = vadd.f32 0.0, %v4975
  %v4977 = vpop.f32.mrb[0].mxu0
  %4978 = vmatprep.mubr.f32.mxu0 0.0
  %4979 = vmatmul.mubr.f32.gmra.mrb[0].mxu0 %v1083
  %v4980 = vpop.f32.mrb[0].mxu0
  %v4981 = vadd.f32 0.0, %v4980
  %v4982 = vpop.f32.mrb[0].mxu0
  %4983 = vdwg.mxu0
  %v4984 = vld [vmem:[%s486 + $0x20] sm:$0xff]
  %v4985 = vld [vmem:[%s486 + $0x28] sm:$0xff]
  %v4986 = vld [vmem:[%s486 + $0x30] sm:$0xff]
  %v4987 = vld [vmem:[%s486 + $0x38] sm:$0xff]
  %v4988 = vmul.f32 %v4966, %v4984
  %v4989 = vmul.f32 %v4971, %v4985
  %v4990 = vmul.f32 %v4976, %v4986
  %v4991 = vmul.f32 %v4981, %v4987
  %v4992 = vadd.f32 %v4888, %v4988
  %v4993 = vadd.f32 %v4889, %v4989
  %v4994 = vadd.f32 %v4890, %v4990
  %v4995 = vadd.f32 %v4891, %v4991
  %v4996 = vsub.f32 %v4685, %v4688
  %v4997 = vmul.f32 %v4996, 1.442695
  %v4998 = vpow.pop %v4997
  %v4999 = vadd.f32 %v4895, %v4998
  %v5001 = vsel %vm1085, %v4998, 0
  %5003 = vmatprep.subr.mxu0 0.0
  %5004 = vmatpush1.msra.mxu0 %v5001
  %5005 = vmatprep.subr.mxu0 0.0
  %5006 = vmatpush1.msra.mxu0 0.0
  %5007 = vmatprep.subr.mxu0 0.0
  %5008 = vmatpush1.msra.mxu0 0.0
  %5009 = vmatprep.subr.mxu0 0.0
  %5010 = vmatpush1.msra.mxu0 0.0
  %5011 = vmatprep.subr.mxu0 0.0
  %5012 = vmatpush1.msra.mxu0 0.0
  %5013 = vmatprep.subr.mxu0 0.0
  %5014 = vmatpush1.msra.mxu0 0.0
  %5015 = vmatprep.subr.mxu0 0.0
  %5016 = vmatpush1.msra.mxu0 0.0
  %5017 = vmatprep.subr.mxu0 0.0
  %5018 = vmatpush1.msra.mxu0 0.0
  %5019 = vmatprep.subr.mxu0 0.0
  %5020 = vmatpush1.msra.mxu0 0.0
  %5021 = vmatprep.subr.mxu0 0.0
  %5022 = vmatpush1.msra.mxu0 0.0
  %5023 = vmatprep.subr.mxu0 0.0
  %5024 = vmatpush1.msra.mxu0 0.0
  %5025 = vmatprep.subr.mxu0 0.0
  %5026 = vmatpush1.msra.mxu0 0.0
  %5027 = vmatprep.subr.mxu0 0.0
  %5028 = vmatpush1.msra.mxu0 0.0
  %5029 = vmatprep.subr.mxu0 0.0
  %5030 = vmatpush1.msra.mxu0 0.0
  %5031 = vmatprep.subr.mxu0 0.0
  %5032 = vmatpush1.msra.mxu0 0.0
  %5033 = vmatprep.subr.mxu0 0.0
  %5034 = vmatpush1.msra.mxu0 0.0
  %5035 = vmatprep.subr.mxu0 0.0
  %5036 = vmatpush1.msra.mxu0 0.0
  %5037 = vmatprep.subr.mxu0 0.0
  %5038 = vmatpush1.msra.mxu0 0.0
  %5039 = vmatprep.subr.mxu0 0.0
  %5040 = vmatpush1.msra.mxu0 0.0
  %5041 = vmatprep.subr.mxu0 0.0
  %5042 = vmatpush1.msra.mxu0 0.0
  %5043 = vmatprep.subr.mxu0 0.0
  %5044 = vmatpush1.msra.mxu0 0.0
  %5045 = vmatprep.subr.mxu0 0.0
  %5046 = vmatpush1.msra.mxu0 0.0
  %5047 = vmatprep.subr.mxu0 0.0
  %5048 = vmatpush1.msra.mxu0 0.0
  %5049 = vmatprep.subr.mxu0 0.0
  %5050 = vmatpush1.msra.mxu0 0.0
  %5051 = vmatprep.subr.mxu0 0.0
  %5052 = vmatpush1.msra.mxu0 0.0
  %5053 = vmatprep.subr.mxu0 0.0
  %5054 = vmatpush1.msra.mxu0 0.0
  %5055 = vmatprep.subr.mxu0 0.0
  %5056 = vmatpush1.msra.mxu0 0.0
  %5057 = vmatprep.subr.mxu0 0.0
  %5058 = vmatpush1.msra.mxu0 0.0
  %5059 = vmatprep.subr.mxu0 0.0
  %5060 = vmatpush1.msra.mxu0 0.0
  %5061 = vmatprep.subr.mxu0 0.0
  %5062 = vmatpush1.msra.mxu0 0.0
  %5063 = vmatprep.subr.mxu0 0.0
  %5064 = vmatpush1.msra.mxu0 0.0
  %5065 = vmatprep.subr.mxu0 0.0
  %5066 = vmatpush1.msra.mxu0 0.0
  %5067 = vmatprep.mubr.f32.mxu0 0.0
  %5068 = vmatmul.mubr.f32.gmra.mrb[0].mxu0 %v1074
  %v5069 = vpop.f32.mrb[0].mxu0
  %v5070 = vadd.f32 0.0, %v5069
  %v5071 = vpop.f32.mrb[0].mxu0
  %5072 = vmatprep.mubr.f32.mxu0 0.0
  %5073 = vmatmul.mubr.f32.gmra.mrb[0].mxu0 %v1077
  %v5074 = vpop.f32.mrb[0].mxu0
  %v5075 = vadd.f32 0.0, %v5074
  %v5076 = vpop.f32.mrb[0].mxu0
  %5077 = vmatprep.mubr.f32.mxu0 0.0
  %5078 = vmatmul.mubr.f32.gmra.mrb[0].mxu0 %v1080
  %v5079 = vpop.f32.mrb[0].mxu0
  %v5080 = vadd.f32 0.0, %v5079
  %v5081 = vpop.f32.mrb[0].mxu0
  %5082 = vmatprep.mubr.f32.mxu0 0.0
  %5083 = vmatmul.mubr.f32.gmra.mrb[0].mxu0 %v1083
  %v5084 = vpop.f32.mrb[0].mxu0
  %v5085 = vadd.f32 0.0, %v5084
  %v5086 = vpop.f32.mrb[0].mxu0
  %5087 = vdwg.mxu0
  %v5088 = vld [vmem:[%s605 + $0x20] sm:$0xff]
  %v5089 = vld [vmem:[%s605 + $0x28] sm:$0xff]
  %v5090 = vld [vmem:[%s605 + $0x30] sm:$0xff]
  %v5091 = vld [vmem:[%s605 + $0x38] sm:$0xff]
  %v5092 = vmul.f32 %v5070, %v5088
  %v5093 = vmul.f32 %v5075, %v5089
  %v5094 = vmul.f32 %v5080, %v5090
  %v5095 = vmul.f32 %v5085, %v5091
  %v5096 = vadd.f32 %v4992, %v5092
  %v5097 = vadd.f32 %v4993, %v5093
  %v5098 = vadd.f32 %v4994, %v5094
  %v5099 = vadd.f32 %v4995, %v5095
  %v5100 = vrcp.pop %v4999
  %v5101 = vmul.f32 %v4999, %v5100
  %v5102 = vsub.f32 2.0, %v5101
  %v5103 = vmul.f32 %v5100, %v5102
  %v5105 = vsel %vm1085, %v5103, 0
  %5107 = vmatprep.subr.mxu0 0.0
  %5108 = vmatpush1.msra.mxu0 %v5105
  %5109 = vmatprep.subr.mxu0 0.0
  %5110 = vmatpush1.msra.mxu0 0.0
  %5111 = vmatprep.subr.mxu0 0.0
  %5112 = vmatpush1.msra.mxu0 0.0
  %5113 = vmatprep.subr.mxu0 0.0
  %5114 = vmatpush1.msra.mxu0 0.0
  %5115 = vmatprep.subr.mxu0 0.0
  %5116 = vmatpush1.msra.mxu0 0.0
  %5117 = vmatprep.subr.mxu0 0.0
  %5118 = vmatpush1.msra.mxu0 0.0
  %5119 = vmatprep.subr.mxu0 0.0
  %5120 = vmatpush1.msra.mxu0 0.0
  %5121 = vmatprep.subr.mxu0 0.0
  %5122 = vmatpush1.msra.mxu0 0.0
  %5123 = vmatprep.subr.mxu0 0.0
  %5124 = vmatpush1.msra.mxu0 0.0
  %5125 = vmatprep.subr.mxu0 0.0
  %5126 = vmatpush1.msra.mxu0 0.0
  %5127 = vmatprep.subr.mxu0 0.0
  %5128 = vmatpush1.msra.mxu0 0.0
  %5129 = vmatprep.subr.mxu0 0.0
  %5130 = vmatpush1.msra.mxu0 0.0
  %5131 = vmatprep.subr.mxu0 0.0
  %5132 = vmatpush1.msra.mxu0 0.0
  %5133 = vmatprep.subr.mxu0 0.0
  %5134 = vmatpush1.msra.mxu0 0.0
  %5135 = vmatprep.subr.mxu0 0.0
  %5136 = vmatpush1.msra.mxu0 0.0
  %5137 = vmatprep.subr.mxu0 0.0
  %5138 = vmatpush1.msra.mxu0 0.0
  %5139 = vmatprep.subr.mxu0 0.0
  %5140 = vmatpush1.msra.mxu0 0.0
  %5141 = vmatprep.subr.mxu0 0.0
  %5142 = vmatpush1.msra.mxu0 0.0
  %5143 = vmatprep.subr.mxu0 0.0
  %5144 = vmatpush1.msra.mxu0 0.0
  %5145 = vmatprep.subr.mxu0 0.0
  %5146 = vmatpush1.msra.mxu0 0.0
  %5147 = vmatprep.subr.mxu0 0.0
  %5148 = vmatpush1.msra.mxu0 0.0
  %5149 = vmatprep.subr.mxu0 0.0
  %5150 = vmatpush1.msra.mxu0 0.0
  %5151 = vmatprep.subr.mxu0 0.0
  %5152 = vmatpush1.msra.mxu0 0.0
  %5153 = vmatprep.subr.mxu0 0.0
  %5154 = vmatpush1.msra.mxu0 0.0
  %5155 = vmatprep.subr.mxu0 0.0
  %5156 = vmatpush1.msra.mxu0 0.0
  %5157 = vmatprep.subr.mxu0 0.0
  %5158 = vmatpush1.msra.mxu0 0.0
  %5159 = vmatprep.subr.mxu0 0.0
  %5160 = vmatpush1.msra.mxu0 0.0
  %5161 = vmatprep.subr.mxu0 0.0
  %5162 = vmatpush1.msra.mxu0 0.0
  %5163 = vmatprep.subr.mxu0 0.0
  %5164 = vmatpush1.msra.mxu0 0.0
  %5165 = vmatprep.subr.mxu0 0.0
  %5166 = vmatpush1.msra.mxu0 0.0
  %5167 = vmatprep.subr.mxu0 0.0
  %5168 = vmatpush1.msra.mxu0 0.0
  %5169 = vmatprep.subr.mxu0 0.0
  %5170 = vmatpush1.msra.mxu0 0.0
  %5171 = vmatprep.mubr.f32.mxu0 0.0
  %5172 = vmatmul.mubr.f32.gmra.mrb[0].mxu0 %v1074
  %v5173 = vpop.f32.mrb[0].mxu0
  %v5174 = vadd.f32 0.0, %v5173
  %v5175 = vpop.f32.mrb[0].mxu0
  %5176 = vmatprep.mubr.f32.mxu0 0.0
  %5177 = vmatmul.mubr.f32.gmra.mrb[0].mxu0 %v1077
  %v5178 = vpop.f32.mrb[0].mxu0
  %v5179 = vadd.f32 0.0, %v5178
  %v5180 = vpop.f32.mrb[0].mxu0
  %5181 = vmatprep.mubr.f32.mxu0 0.0
  %5182 = vmatmul.mubr.f32.gmra.mrb[0].mxu0 %v1080
  %v5183 = vpop.f32.mrb[0].mxu0
  %v5184 = vadd.f32 0.0, %v5183
  %v5185 = vpop.f32.mrb[0].mxu0
  %5186 = vmatprep.mubr.f32.mxu0 0.0
  %5187 = vmatmul.mubr.f32.gmra.mrb[0].mxu0 %v1083
  %v5188 = vpop.f32.mrb[0].mxu0
  %v5189 = vadd.f32 0.0, %v5188
  %v5190 = vpop.f32.mrb[0].mxu0
  %5191 = vdwg.mxu0
  %v5192 = vmul.f32 %v5096, %v5174
  %v5193 = vmul.f32 %v5097, %v5179
  %v5194 = vmul.f32 %v5098, %v5184
  %v5195 = vmul.f32 %v5099, %v5189
  %5196 = vmatprep.subr.mxu0 0.0
  %5197 = vmatpush1.msra.mxu0 %v5192
  %5198 = vmatprep.subr.mxu0 0.0
  %5199 = vmatpush1.msra.mxu0 %v5193
  %5200 = vmatprep.subr.mxu0 0.0
  %5201 = vmatpush1.msra.mxu0 %v5194
  %5202 = vmatprep.subr.mxu0 0.0
  %5203 = vmatpush1.msra.mxu0 %v5195
  %5204 = vmatprep.subr.mxu0 0.0
  %5205 = vmatpush1.msra.mxu0 0.0
  %5206 = vmatprep.subr.mxu0 0.0
  %5207 = vmatpush1.msra.mxu0 0.0
  %5208 = vmatprep.subr.mxu0 0.0
  %5209 = vmatpush1.msra.mxu0 0.0
  %5210 = vmatprep.subr.mxu0 0.0
  %5211 = vmatpush1.msra.mxu0 0.0
  %5212 = vmatprep.subr.mxu0 0.0
  %5213 = vmatpush1.msra.mxu0 0.0
  %5214 = vmatprep.subr.mxu0 0.0
  %5215 = vmatpush1.msra.mxu0 0.0
  %5216 = vmatprep.subr.mxu0 0.0
  %5217 = vmatpush1.msra.mxu0 0.0
  %5218 = vmatprep.subr.mxu0 0.0
  %5219 = vmatpush1.msra.mxu0 0.0
  %5220 = vmatprep.subr.mxu0 0.0
  %5221 = vmatpush1.msra.mxu0 0.0
  %5222 = vmatprep.subr.mxu0 0.0
  %5223 = vmatpush1.msra.mxu0 0.0
  %5224 = vmatprep.subr.mxu0 0.0
  %5225 = vmatpush1.msra.mxu0 0.0
  %5226 = vmatprep.subr.mxu0 0.0
  %5227 = vmatpush1.msra.mxu0 0.0
  %5228 = vmatprep.subr.mxu0 0.0
  %5229 = vmatpush1.msra.mxu0 0.0
  %5230 = vmatprep.subr.mxu0 0.0
  %5231 = vmatpush1.msra.mxu0 0.0
  %5232 = vmatprep.subr.mxu0 0.0
  %5233 = vmatpush1.msra.mxu0 0.0
  %5234 = vmatprep.subr.mxu0 0.0
  %5235 = vmatpush1.msra.mxu0 0.0
  %5236 = vmatprep.subr.mxu0 0.0
  %5237 = vmatpush1.msra.mxu0 0.0
  %5238 = vmatprep.subr.mxu0 0.0
  %5239 = vmatpush1.msra.mxu0 0.0
  %5240 = vmatprep.subr.mxu0 0.0
  %5241 = vmatpush1.msra.mxu0 0.0
  %5242 = vmatprep.subr.mxu0 0.0
  %5243 = vmatpush1.msra.mxu0 0.0
  %5244 = vmatprep.subr.mxu0 0.0
  %5245 = vmatpush1.msra.mxu0 0.0
  %5246 = vmatprep.subr.mxu0 0.0
  %5247 = vmatpush1.msra.mxu0 0.0
  %5248 = vmatprep.subr.mxu0 0.0
  %5249 = vmatpush1.msra.mxu0 0.0
  %5250 = vmatprep.subr.mxu0 0.0
  %5251 = vmatpush1.msra.mxu0 0.0
  %5252 = vmatprep.subr.mxu0 0.0
  %5253 = vmatpush1.msra.mxu0 0.0
  %5254 = vmatprep.subr.mxu0 0.0
  %5255 = vmatpush1.msra.mxu0 0.0
  %5256 = vmatprep.subr.mxu0 0.0
  %5257 = vmatpush1.msra.mxu0 0.0
  %5258 = vmatprep.subr.mxu0 0.0
  %5259 = vmatpush1.msra.mxu0 0.0
  %5260 = vmatprep.mubr.f32.mxu0 0.0
  %5261 = vmatmul.mubr.f32.gmra.mrb[0].mxu0 %v1611
  %v5262 = vpop.f32.mrb[0].mxu0
  %v5263 = vadd.f32 %v1593, %v5262
  %v5264 = vpop.f32.mrb[0].mxu0
  %5265 = vmatprep.mubr.f32.mxu0 0.0
  %5266 = vmatmul.mubr.f32.gmra.mrb[0].mxu0 %v1614
  %v5267 = vpop.f32.mrb[0].mxu0
  %v5268 = vadd.f32 %v1598, %v5267
  %v5269 = vpop.f32.mrb[0].mxu0
  %5270 = vmatprep.mubr.f32.mxu0 0.0
  %5271 = vmatmul.mubr.f32.gmra.mrb[0].mxu0 %v1617
  %v5272 = vpop.f32.mrb[0].mxu0
  %v5273 = vadd.f32 %v1603, %v5272
  %v5274 = vpop.f32.mrb[0].mxu0
  %5275 = vmatprep.mubr.f32.mxu0 0.0
  %5276 = vmatmul.mubr.f32.gmra.mrb[0].mxu0 %v1620
  %v5277 = vpop.f32.mrb[0].mxu0
  %v5278 = vadd.f32 %v1608, %v5277
  %v5279 = vpop.f32.mrb[0].mxu0
  %5280 = vdwg.mxu0
  %v5281 = vadd.f32 %v5263, %v4285
  %v5282 = vadd.f32 %v5268, %v4286
  %v5283 = vadd.f32 %v5273, %v4287
  %v5284 = vadd.f32 %v5278, %v4288
  %5285 = vmatprep.subr.mxu0 0.0
  %5286 = vmatpush1.msra.mxu0 %v5281
  %5287 = vmatprep.subr.mxu0 0.0
  %5288 = vmatpush1.msra.mxu0 %v5282
  %5289 = vmatprep.subr.mxu0 0.0
  %5290 = vmatpush1.msra.mxu0 %v5283
  %5291 = vmatprep.subr.mxu0 0.0
  %5292 = vmatpush1.msra.mxu0 %v5284
  %5293 = vmatprep.subr.mxu0 0.0
  %5294 = vmatpush1.msra.mxu0 0.0
  %5295 = vmatprep.subr.mxu0 0.0
  %5296 = vmatpush1.msra.mxu0 0.0
  %5297 = vmatprep.subr.mxu0 0.0
  %5298 = vmatpush1.msra.mxu0 0.0
  %5299 = vmatprep.subr.mxu0 0.0
  %5300 = vmatpush1.msra.mxu0 0.0
  %5301 = vmatprep.subr.mxu0 0.0
  %5302 = vmatpush1.msra.mxu0 0.0
  %5303 = vmatprep.subr.mxu0 0.0
  %5304 = vmatpush1.msra.mxu0 0.0
  %5305 = vmatprep.subr.mxu0 0.0
  %5306 = vmatpush1.msra.mxu0 0.0
  %5307 = vmatprep.subr.mxu0 0.0
  %5308 = vmatpush1.msra.mxu0 0.0
  %5309 = vmatprep.subr.mxu0 0.0
  %5310 = vmatpush1.msra.mxu0 0.0
  %5311 = vmatprep.subr.mxu0 0.0
  %5312 = vmatpush1.msra.mxu0 0.0
  %5313 = vmatprep.subr.mxu0 0.0
  %5314 = vmatpush1.msra.mxu0 0.0
  %5315 = vmatprep.subr.mxu0 0.0
  %5316 = vmatpush1.msra.mxu0 0.0
  %5317 = vmatprep.subr.mxu0 0.0
  %5318 = vmatpush1.msra.mxu0 0.0
  %5319 = vmatprep.subr.mxu0 0.0
  %5320 = vmatpush1.msra.mxu0 0.0
  %5321 = vmatprep.subr.mxu0 0.0
  %5322 = vmatpush1.msra.mxu0 0.0
  %5323 = vmatprep.subr.mxu0 0.0
  %5324 = vmatpush1.msra.mxu0 0.0
  %5325 = vmatprep.subr.mxu0 0.0
  %5326 = vmatpush1.msra.mxu0 0.0
  %5327 = vmatprep.subr.mxu0 0.0
  %5328 = vmatpush1.msra.mxu0 0.0
  %5329 = vmatprep.subr.mxu0 0.0
  %5330 = vmatpush1.msra.mxu0 0.0
  %5331 = vmatprep.subr.mxu0 0.0
  %5332 = vmatpush1.msra.mxu0 0.0
  %5333 = vmatprep.subr.mxu0 0.0
  %5334 = vmatpush1.msra.mxu0 0.0
  %5335 = vmatprep.subr.mxu0 0.0
  %5336 = vmatpush1.msra.mxu0 0.0
  %5337 = vmatprep.subr.mxu0 0.0
  %5338 = vmatpush1.msra.mxu0 0.0
  %5339 = vmatprep.subr.mxu0 0.0
  %5340 = vmatpush1.msra.mxu0 0.0
  %5341 = vmatprep.subr.mxu0 0.0
  %5342 = vmatpush1.msra.mxu0 0.0
  %5343 = vmatprep.subr.mxu0 0.0
  %5344 = vmatpush1.msra.mxu0 0.0
  %5345 = vmatprep.subr.mxu0 0.0
  %5346 = vmatpush1.msra.mxu0 0.0
  %5347 = vmatprep.subr.mxu0 0.0
  %5348 = vmatpush1.msra.mxu0 0.0
  %5349 = vmatprep.mubr.f32.mxu0 0.0
  %5350 = vmatmul.mubr.f32.gmra.mrb[0].mxu0 %v1712
  %v5351 = vpop.f32.mrb[0].mxu0
  %v5352 = vadd.f32 0.0, %v5351
  %v5353 = vpop.f32.mrb[0].mxu0
  %5354 = vdwg.mxu0
  %v5355 = vmul.f32 %v5352, 0.03125
  %v5356 = vmul.f32 %v5281, %v5281
  %v5357 = vmul.f32 %v5282, %v5282
  %v5358 = vmul.f32 %v5283, %v5283
  %v5359 = vmul.f32 %v5284, %v5284
  %5360 = vmatprep.subr.mxu0 0.0
  %5361 = vmatpush1.msra.mxu0 %v5356
  %5362 = vmatprep.subr.mxu0 0.0
  %5363 = vmatpush1.msra.mxu0 %v5357
  %5364 = vmatprep.subr.mxu0 0.0
  %5365 = vmatpush1.msra.mxu0 %v5358
  %5366 = vmatprep.subr.mxu0 0.0
  %5367 = vmatpush1.msra.mxu0 %v5359
  %5368 = vmatprep.subr.mxu0 0.0
  %5369 = vmatpush1.msra.mxu0 0.0
  %5370 = vmatprep.subr.mxu0 0.0
  %5371 = vmatpush1.msra.mxu0 0.0
  %5372 = vmatprep.subr.mxu0 0.0
  %5373 = vmatpush1.msra.mxu0 0.0
  %5374 = vmatprep.subr.mxu0 0.0
  %5375 = vmatpush1.msra.mxu0 0.0
  %5376 = vmatprep.subr.mxu0 0.0
  %5377 = vmatpush1.msra.mxu0 0.0
  %5378 = vmatprep.subr.mxu0 0.0
  %5379 = vmatpush1.msra.mxu0 0.0
  %5380 = vmatprep.subr.mxu0 0.0
  %5381 = vmatpush1.msra.mxu0 0.0
  %5382 = vmatprep.subr.mxu0 0.0
  %5383 = vmatpush1.msra.mxu0 0.0
  %5384 = vmatprep.subr.mxu0 0.0
  %5385 = vmatpush1.msra.mxu0 0.0
  %5386 = vmatprep.subr.mxu0 0.0
  %5387 = vmatpush1.msra.mxu0 0.0
  %5388 = vmatprep.subr.mxu0 0.0
  %5389 = vmatpush1.msra.mxu0 0.0
  %5390 = vmatprep.subr.mxu0 0.0
  %5391 = vmatpush1.msra.mxu0 0.0
  %5392 = vmatprep.subr.mxu0 0.0
  %5393 = vmatpush1.msra.mxu0 0.0
  %5394 = vmatprep.subr.mxu0 0.0
  %5395 = vmatpush1.msra.mxu0 0.0
  %5396 = vmatprep.subr.mxu0 0.0
  %5397 = vmatpush1.msra.mxu0 0.0
  %5398 = vmatprep.subr.mxu0 0.0
  %5399 = vmatpush1.msra.mxu0 0.0
  %5400 = vmatprep.subr.mxu0 0.0
  %5401 = vmatpush1.msra.mxu0 0.0
  %5402 = vmatprep.subr.mxu0 0.0
  %5403 = vmatpush1.msra.mxu0 0.0
  %5404 = vmatprep.subr.mxu0 0.0
  %5405 = vmatpush1.msra.mxu0 0.0
  %5406 = vmatprep.subr.mxu0 0.0
  %5407 = vmatpush1.msra.mxu0 0.0
  %5408 = vmatprep.subr.mxu0 0.0
  %5409 = vmatpush1.msra.mxu0 0.0
  %5410 = vmatprep.subr.mxu0 0.0
  %5411 = vmatpush1.msra.mxu0 0.0
  %5412 = vmatprep.subr.mxu0 0.0
  %5413 = vmatpush1.msra.mxu0 0.0
  %5414 = vmatprep.subr.mxu0 0.0
  %5415 = vmatpush1.msra.mxu0 0.0
  %5416 = vmatprep.subr.mxu0 0.0
  %5417 = vmatpush1.msra.mxu0 0.0
  %5418 = vmatprep.subr.mxu0 0.0
  %5419 = vmatpush1.msra.mxu0 0.0
  %5420 = vmatprep.subr.mxu0 0.0
  %5421 = vmatpush1.msra.mxu0 0.0
  %5422 = vmatprep.subr.mxu0 0.0
  %5423 = vmatpush1.msra.mxu0 0.0
  %5424 = vmatprep.mubr.f32.mxu0 0.0
  %5425 = vmatmul.mubr.f32.gmra.mrb[0].mxu0 %v1712
  %v5426 = vpop.f32.mrb[0].mxu0
  %v5427 = vadd.f32 0.0, %v5426
  %v5428 = vpop.f32.mrb[0].mxu0
  %5429 = vdwg.mxu0
  %v5430 = vmul.f32 %v5427, 0.03125
  %v5431 = vmul.f32 %v5355, %v5355
  %v5432 = vsub.f32 %v5430, %v5431
  %v5433 = vmax.f32 %v5432, 0.0
  %v5434 = vlaneseq
  %v5435 = vshrl.u32 %v5434, 7
  %v5436 = vsub.s32 0, %v5435
  %v5437 = vrot.slane %v5355, %v5436
  %v5438 = vsub.f32 %v5281, %v5437
  %v5439 = vsub.f32 %v5282, %v5437
  %v5440 = vsub.f32 %v5283, %v5437
  %v5441 = vsub.f32 %v5284, %v5437
  %v5442 = vadd.f32 %v5433, 1e-05
  %v5443 = vrsqrt.pop %v5442
  %v5444 = vlaneseq
  %v5445 = vshrl.u32 %v5444, 7
  %v5446 = vsub.s32 0, %v5445
  %v5447 = vrot.slane %v5443, %v5446
  %v5448 = vmul.f32 %v5438, %v5447
  %v5449 = vmul.f32 %v5439, %v5447
  %v5450 = vmul.f32 %v5440, %v5447
  %v5451 = vmul.f32 %v5441, %v5447
  %v5452 = vmul.f32 %v5448, %v1883
  %v5453 = vmul.f32 %v5449, %v1887
  %v5454 = vmul.f32 %v5450, %v1891
  %v5455 = vmul.f32 %v5451, %v1895
  %v5456 = vadd.f32 %v5452, %v1903
  %v5457 = vadd.f32 %v5453, %v1907
  %v5458 = vadd.f32 %v5454, %v1911
  %v5459 = vadd.f32 %v5455, %v1915
  %s5460 = scalar_lea.vmem %s5, 96
  %5461 = vst.msk [vmem:[%s5460] sm:$0xff] %vm248, %v5456
  %5462 = vst.msk [vmem:[%s5460 + $0x8] sm:$0xff] %vm248, %v5457
  %5463 = vst.msk [vmem:[%s5460 + $0x10] sm:$0xff] %vm248, %v5458
  %5464 = vst.msk [vmem:[%s5460 + $0x18] sm:$0xff] %vm248, %v5459
  // Predicated region
  $region22: #{tpu_custom_call.1} parent=0 // pred_check
    _
  $region23: #{tpu_custom_call.1} parent=0 // pred_check_branch
    %5466 = sbr.rel (0) target = $region25
  $region24: #{tpu_custom_call.1} parent=0 // pred_region
    _
  $region25: #{tpu_custom_call.1} parent=0 // pred_fallthru
    _
  // Predicated region
  $region26: #{tpu_custom_call.1} parent=0 // pred_check
    _
  $region27: #{tpu_custom_call.1} parent=0 // pred_check_branch
    %5468 = sbr.rel (0) target = $region29
  $region28: #{tpu_custom_call.1} parent=0 // pred_region
    _
  $region29: #{tpu_custom_call.1} parent=0 // pred_fallthru
    _

</llo_original>
